<compile_context>
chip_gen: v7x
topology: tpu7x:2x2x1
jax: 0.10.0
libtpu: 0.0.40
codegen_flags: <defaults>
</compile_context>

<pallas_src>
import functools

import jax
import jax.numpy as jnp
from jax import lax
from jax.experimental import pallas as pl
from jax.experimental.pallas import tpu as pltpu

# ----- model hyperparameters (match the PyTorch module) -----
N_EMBD = 384
BLOCK_SIZE = 256
N_HEAD = 6
N_LAYER = 6
VOCAB_SIZE = 50304
HEAD_SIZE = N_EMBD // N_HEAD
LN_EPS = 1e-5                      # torch.nn.LayerNorm default

VOCAB_TILE = 4096                  # wide lane-dense lm_head column tiles
N_VOCAB_TILES = (VOCAB_SIZE + VOCAB_TILE - 1) // VOCAB_TILE      # 13
VOCAB_PAD = N_VOCAB_TILES * VOCAB_TILE                           # 53248 (weights only)
ROW_TILE = 256                     # lm_head row tile
VMEM_LIMIT = 32 * 1024 * 1024      # fits v7x (64 MiB physical) with headroom
NEG_MASK = -1e30                   # finite causal-mask value (robust vs -inf)


def _round_up(x, m):
    return ((x + m - 1) // m) * m


def _layernorm(x, gamma, beta):
    # f32 math on all generations (v5e VPU/EUP have no bf16 support).
    mu = jnp.mean(x, axis=-1, keepdims=True)
    var = jnp.mean((x - mu) ** 2, axis=-1, keepdims=True)
    return (x - mu) * lax.rsqrt(var + LN_EPS) * gamma + beta


# --------------------------------------------------------------------------
# Fused 6-layer transformer stack + final LayerNorm.
# Grid = (B, N_LAYER); the f32 residual stream lives in a VMEM scratch that is
# resident across the (arbitrary) layer axis; per-layer weights are stacked
# along a leading layer axis and streamed/prefetched per grid step.  At the
# last layer, ln_f(x) is written out in bf16 (directly consumable by lm_head).
# --------------------------------------------------------------------------
def _stack_kernel(x_ref, g1_ref, b1_ref, wq_ref, wk_ref, wv_ref, wo_ref,
                  bo_ref, g2_ref, b2_ref, w1_ref, bf1_ref, w2_ref, bf2_ref,
                  gf_ref, bf_ref, o_ref, res_ref):
    l = pl.program_id(1)

    @pl.when(l == 0)
    def _():
        res_ref[...] = x_ref[0]              # seed the resident residual stream

    x = res_ref[...]                         # (T, C) f32 residual
    T = x.shape[0]

    # ---- multi-head causal self-attention on ln1(x) ----
    xn = _layernorm(x, g1_ref[0], b1_ref[0]).astype(jnp.bfloat16)
    # full-depth (K=384) QKV projections, f32 accumulation
    q = jnp.dot(xn, wq_ref[0], preferred_element_type=jnp.float32)
    k = jnp.dot(xn, wk_ref[0], preferred_element_type=jnp.float32)
    v = jnp.dot(xn, wv_ref[0], preferred_element_type=jnp.float32)

    # pre-scale q once (matches torch: wei = q @ k.T * C**-0.5, C = n_embd)
    q = q * (N_EMBD ** -0.5)
    qb = q.astype(jnp.bfloat16)
    kb = k.astype(jnp.bfloat16)
    vb = v.astype(jnp.bfloat16)

    row = lax.broadcasted_iota(jnp.int32, (T, T), 0)
    col = lax.broadcasted_iota(jnp.int32, (T, T), 1)
    causal = row >= col

    heads = []
    for h in range(N_HEAD):                  # static loop over 6 heads
        lo = h * HEAD_SIZE
        hi = lo + HEAD_SIZE
        # scores: contract last dims (no materialized transpose)
        s = lax.dot_general(qb[:, lo:hi], kb[:, lo:hi],
                            (((1,), (1,)), ((), ())),
                            preferred_element_type=jnp.float32)
        s = jnp.where(causal, s, NEG_MASK)
        s = s - jnp.max(s, axis=-1, keepdims=True)
        p = jnp.exp(s)
        # EUP approximate reciprocal for the softmax denominator
        p = p * pl.reciprocal(jnp.sum(p, axis=-1, keepdims=True), approx=True)
        # dropout(p) is identity in eval mode
        heads.append(jnp.dot(p.astype(jnp.bfloat16), vb[:, lo:hi],
                             preferred_element_type=jnp.float32))

    # single full-depth output projection: concat heads (torch.cat semantics)
    cat = jnp.concatenate(heads, axis=-1).astype(jnp.bfloat16)     # (T, C)
    sa = jnp.dot(cat, wo_ref[0], preferred_element_type=jnp.float32) + bo_ref[0]

    x = x + sa

    # ---- feed-forward on ln2(x) ----
    xn2 = _layernorm(x, g2_ref[0], b2_ref[0]).astype(jnp.bfloat16)
    h1 = jnp.dot(xn2, w1_ref[0], preferred_element_type=jnp.float32) + bf1_ref[0]
    h1 = jnp.maximum(h1, 0.0).astype(jnp.bfloat16)                  # ReLU
    ff = jnp.dot(h1, w2_ref[0], preferred_element_type=jnp.float32) + bf2_ref[0]

    x = x + ff
    res_ref[...] = x

    # ---- final LayerNorm fused at the last layer; bf16 output for lm_head ----
    @pl.when(l == N_LAYER - 1)
    def _():
        o_ref[0] = _layernorm(x, gf_ref[...], bf_ref[...]).astype(jnp.bfloat16)


@functools.lru_cache(maxsize=None)
def _make_stack_fn(B, T):
    C = N_EMBD
    H = 4 * N_EMBD

    def wspec(d0, d1):
        return pl.BlockSpec((1, d0, d1), lambda b, l: (l, 0, 0))

    in_specs = [
        pl.BlockSpec((1, T, C), lambda b, l: (b, 0, 0)),       # x
        wspec(1, C), wspec(1, C),                              # g1, b1
        wspec(C, C), wspec(C, C), wspec(C, C), wspec(C, C),    # wq, wk, wv, wo
        wspec(1, C),                                           # bo
        wspec(1, C), wspec(1, C),                              # g2, b2
        wspec(C, H), wspec(1, H),                              # w1, bf1
        wspec(H, C), wspec(1, C),                              # w2, bf2
        pl.BlockSpec((1, C), lambda b, l: (0, 0)),             # gf (ln_f weight)
        pl.BlockSpec((1, C), lambda b, l: (0, 0)),             # bf (ln_f bias)
    ]
    return pl.pallas_call(
        _stack_kernel,
        out_shape=jax.ShapeDtypeStruct((B, T, C), jnp.bfloat16),
        grid=(B, N_LAYER),
        in_specs=in_specs,
        out_specs=pl.BlockSpec((1, T, C), lambda b, l: (b, 0, 0)),
        scratch_shapes=[pltpu.VMEM((T, C), jnp.float32)],      # resident residual
        compiler_params=pltpu.CompilerParams(
            dimension_semantics=("parallel", "arbitrary"),
            vmem_limit_bytes=VMEM_LIMIT),
    )


def transformer_stack(x, blk, gf, bf):
    B, T, _ = x.shape
    fn = _make_stack_fn(B, T)
    return fn(x, blk['g1'], blk['b1'], blk['wq'], blk['wk'], blk['wv'],
              blk['wo'], blk['bo'], blk['g2'], blk['b2'], blk['w1'],
              blk['bf1'], blk['w2'], blk['bf2'], gf, bf)


# --------------------------------------------------------------------------
# lm_head: plain tiled matmul on the already-normalized bf16 activations.
# Vocab axis is the OUTER grid dim (lm_w streamed once; small x re-read),
# both axes "parallel" (megacore on v7x).  Output is unpadded: the ragged
# last vocab tile is handled by Pallas write masking, so no slice copy.
# --------------------------------------------------------------------------
def _lm_head_kernel(x_ref, w_ref, b_ref, o_ref):
    o_ref[...] = (jnp.dot(x_ref[...], w_ref[...],
                          preferred_element_type=jnp.float32) + b_ref[...])


@functools.lru_cache(maxsize=None)
def _make_lm_head_fn(R_pad, row_tile):
    grid = (N_VOCAB_TILES, R_pad // row_tile)                  # (vocab, rows)
    return pl.pallas_call(
        _lm_head_kernel,
        out_shape=jax.ShapeDtypeStruct((R_pad, VOCAB_SIZE), jnp.float32),
        grid=grid,
        in_specs=[
            pl.BlockSpec((row_tile, N_EMBD), lambda j, i: (i, 0)),     # x bf16
            pl.BlockSpec((N_EMBD, VOCAB_TILE), lambda j, i: (0, j)),   # w bf16
            pl.BlockSpec((1, VOCAB_TILE), lambda j, i: (0, j)),        # bias
        ],
        out_specs=pl.BlockSpec((row_tile, VOCAB_TILE), lambda j, i: (i, j)),
        compiler_params=pltpu.CompilerParams(
            dimension_semantics=("parallel", "parallel"),
            vmem_limit_bytes=VMEM_LIMIT),
    )


def lm_head(xn, params):
    # xn: (B, T, C) bf16, already ln_f-normalized by the stack kernel.
    B, T, _ = xn.shape
    R = B * T
    x2 = xn.reshape(R, N_EMBD)
    row_tile = ROW_TILE if R >= ROW_TILE else _round_up(R, 8)
    R_pad = _round_up(R, row_tile)
    if R_pad != R:
        x2 = jnp.pad(x2, ((0, R_pad - R), (0, 0)))
    fn = _make_lm_head_fn(R_pad, row_tile)
    logits = fn(x2, params['lm_w'], params['lm_b'])            # (R_pad, vocab) f32
    if R_pad != R:
        logits = logits[:R]
    return logits.reshape(B, T, VOCAB_SIZE)


# --------------------------------------------------------------------------
# Full forward pass (embedding gather + loss kept as plain JAX glue).
# --------------------------------------------------------------------------
def bigram_lm_forward(idx, params, targets=None):
    B, T = idx.shape
    # TODO(synk): embedding lookups are HBM gathers -> left to plain JAX/XLA.
    tok_emb = jnp.take(params['tok_emb'], idx, axis=0)        # (B, T, C) f32
    pos_emb = params['pos_emb'][:T]                           # (T, C)
    x = (tok_emb + pos_emb[None, :, :]).astype(jnp.float32)
    xn = transformer_stack(x, params['blk'], params['gf'], params['bf'])
    logits = lm_head(xn, params)                              # (B, T, vocab) f32
    if targets is None:
        loss = None
    else:
        # TODO(synk): cross-entropy kept in plain JAX glue (cheap reduction);
        # fusing logsumexp/CE into the lm_head kernel would avoid writing the
        # full f32 logits to HBM but is only worthwhile in training.
        lg = logits.reshape(B * T, VOCAB_SIZE)
        tg = targets.reshape(B * T)
        logz = jax.nn.logsumexp(lg, axis=-1)
        ll = lg[jnp.arange(B * T), tg]
        loss = jnp.mean(logz - ll)
    return logits, loss


# --------------------------------------------------------------------------
# Deterministic parameter init (shapes per the PyTorch __init__), with matmul
# weights stored in bf16 and stacked along a leading layer axis.
# --------------------------------------------------------------------------
def init_params(key):
    def dense(k, shape, scale=0.02, dtype=jnp.bfloat16):
        return (scale * jax.random.normal(k, shape, dtype=jnp.float32)).astype(dtype)

    L = N_LAYER
    ones_lc = jnp.ones((L, 1, N_EMBD), jnp.float32)
    zeros_lc = jnp.zeros((L, 1, N_EMBD), jnp.float32)

    keys = jax.random.split(key, 9)

    lm_w = dense(keys[2], (N_EMBD, VOCAB_SIZE), dtype=jnp.float32)
    lm_w = jnp.pad(lm_w, ((0, 0), (0, VOCAB_PAD - VOCAB_SIZE))).astype(jnp.bfloat16)

    params = {
        'tok_emb': dense(keys[0], (VOCAB_SIZE, N_EMBD), dtype=jnp.float32),
        'pos_emb': dense(keys[1], (BLOCK_SIZE, N_EMBD), dtype=jnp.float32),
        'lm_w': lm_w,                                          # (C, VOCAB_PAD) bf16
        'lm_b': jnp.zeros((1, VOCAB_PAD), jnp.float32),
        'gf': jnp.ones((1, N_EMBD), jnp.float32),
        'bf': jnp.zeros((1, N_EMBD), jnp.float32),
        'blk': {
            'g1': ones_lc, 'b1': zeros_lc,
            'wq': dense(keys[3], (L, N_EMBD, N_EMBD)),
            'wk': dense(keys[4], (L, N_EMBD, N_EMBD)),
            'wv': dense(keys[5], (L, N_EMBD, N_EMBD)),
            'wo': dense(keys[6], (L, N_EMBD, N_EMBD)),
            'bo': zeros_lc,
            'g2': ones_lc, 'b2': zeros_lc,
            'w1': dense(keys[7], (L, N_EMBD, 4 * N_EMBD)),
            'bf1': jnp.zeros((L, 1, 4 * N_EMBD), jnp.float32),
            'w2': dense(keys[8], (L, 4 * N_EMBD, N_EMBD)),
            'bf2': zeros_lc,
        },
    }
    return params


if __name__ == "__main__":
    key = jax.random.PRNGKey(0)
    pkey, dkey = jax.random.split(key)
    params = init_params(pkey)

    B, T = 2, 8   # small shapes; T <= block_size
    idx = jax.random.randint(dkey, (B, T), 0, VOCAB_SIZE, dtype=jnp.int32)

    logits, loss = bigram_lm_forward(idx, params)   # targets=None -> loss None
    logits = jax.block_until_ready(logits)

    assert logits.shape == (B, T, VOCAB_SIZE), logits.shape
    assert logits.dtype == jnp.float32
    assert loss is None
    assert bool(jnp.isfinite(logits).all())
    print("KERNEL_OK")
</pallas_src>

<mosaic_0001>
module attributes {stable_mosaic.version = 11 : i64} {
  func.func @_stack_kernel(%arg0: i32, %arg1: i32, %arg2: memref<1x8x384xf32, #tpu.memory_space<vmem>>, %arg3: memref<1x1x384xf32, #tpu.memory_space<vmem>>, %arg4: memref<1x1x384xf32, #tpu.memory_space<vmem>>, %arg5: memref<1x384x384xbf16, #tpu.memory_space<vmem>>, %arg6: memref<1x384x384xbf16, #tpu.memory_space<vmem>>, %arg7: memref<1x384x384xbf16, #tpu.memory_space<vmem>>, %arg8: memref<1x384x384xbf16, #tpu.memory_space<vmem>>, %arg9: memref<1x1x384xf32, #tpu.memory_space<vmem>>, %arg10: memref<1x1x384xf32, #tpu.memory_space<vmem>>, %arg11: memref<1x1x384xf32, #tpu.memory_space<vmem>>, %arg12: memref<1x384x1536xbf16, #tpu.memory_space<vmem>>, %arg13: memref<1x1x1536xf32, #tpu.memory_space<vmem>>, %arg14: memref<1x1536x384xbf16, #tpu.memory_space<vmem>>, %arg15: memref<1x1x384xf32, #tpu.memory_space<vmem>>, %arg16: memref<1x384xf32, #tpu.memory_space<vmem>>, %arg17: memref<1x384xf32, #tpu.memory_space<vmem>>, %arg18: memref<1x8x384xbf16, #tpu.memory_space<vmem>>, %arg19: memref<8x384xf32, #tpu.memory_space<vmem>>) attributes {dimension_semantics = [#tpu.dimension_semantics<parallel>, #tpu.dimension_semantics<arbitrary>], iteration_bounds = array<i64: 2, 6>, scalar_prefetch = 0 : i64, scratch_operands = 1 : i64, tpu.core_type = #tpu.core_type<tc>, window_params = [{transform_indices = @transform_0, window_bounds = array<i64: 1, 8, 384>}, {transform_indices = @transform_1, window_bounds = array<i64: 1, 1, 384>}, {transform_indices = @transform_2, window_bounds = array<i64: 1, 1, 384>}, {transform_indices = @transform_3, window_bounds = array<i64: 1, 384, 384>}, {transform_indices = @transform_4, window_bounds = array<i64: 1, 384, 384>}, {transform_indices = @transform_5, window_bounds = array<i64: 1, 384, 384>}, {transform_indices = @transform_6, window_bounds = array<i64: 1, 384, 384>}, {transform_indices = @transform_7, window_bounds = array<i64: 1, 1, 384>}, {transform_indices = @transform_8, window_bounds = array<i64: 1, 1, 384>}, {transform_indices = @transform_9, window_bounds = array<i64: 1, 1, 384>}, {transform_indices = @transform_10, window_bounds = array<i64: 1, 384, 1536>}, {transform_indices = @transform_11, window_bounds = array<i64: 1, 1, 1536>}, {transform_indices = @transform_12, window_bounds = array<i64: 1, 1536, 384>}, {transform_indices = @transform_13, window_bounds = array<i64: 1, 1, 384>}, {pipeline_mode = #tpu.pipeline_mode<synchronous>, transform_indices = @transform_14, window_bounds = array<i64: 1, 384>}, {pipeline_mode = #tpu.pipeline_mode<synchronous>, transform_indices = @transform_15, window_bounds = array<i64: 1, 384>}, {transform_indices = @transform_16, window_bounds = array<i64: 1, 8, 384>}]} {
    %c0_i32 = arith.constant 0 : i32
    %0 = arith.cmpi eq, %arg1, %c0_i32 : i32
    %1 = arith.extui %0 : i1 to i32
    %c0_i32_0 = arith.constant 0 : i32
    %2 = arith.cmpi ne, %1, %c0_i32_0 : i32
    scf.if %2 {
      %c0_91 = arith.constant 0 : index
      %c0_92 = arith.constant 0 : index
      %c0_93 = arith.constant 0 : index
      %215 = vector.load %arg2[%c0_91, %c0_92, %c0_93] : memref<1x8x384xf32, #tpu.memory_space<vmem>>, vector<1x8x384xf32>
      %216 = vector.shape_cast %215 : vector<1x8x384xf32> to vector<8x384xf32>
      %c0_94 = arith.constant 0 : index
      %c0_95 = arith.constant 0 : index
      %217 = vector.load %arg19[%c0_94, %c0_95] : memref<8x384xf32, #tpu.memory_space<vmem>>, vector<8x384xf32>
      tpu.vector_store %arg19[%c0_94, %c0_95], %216 {strides = array<i32>} : memref<8x384xf32, #tpu.memory_space<vmem>>, vector<8x384xf32>,
    } else {
    }
    %c0 = arith.constant 0 : index
    %c0_1 = arith.constant 0 : index
    %3 = vector.load %arg19[%c0, %c0_1] : memref<8x384xf32, #tpu.memory_space<vmem>>, vector<8x384xf32>
    %c0_2 = arith.constant 0 : index
    %c0_3 = arith.constant 0 : index
    %c0_4 = arith.constant 0 : index
    %4 = vector.load %arg3[%c0_2, %c0_3, %c0_4] : memref<1x1x384xf32, #tpu.memory_space<vmem>>, vector<1x1x384xf32>
    %5 = vector.shape_cast %4 : vector<1x1x384xf32> to vector<1x384xf32>
    %c0_5 = arith.constant 0 : index
    %c0_6 = arith.constant 0 : index
    %c0_7 = arith.constant 0 : index
    %6 = vector.load %arg4[%c0_5, %c0_6, %c0_7] : memref<1x1x384xf32, #tpu.memory_space<vmem>>, vector<1x1x384xf32>
    %7 = vector.shape_cast %6 : vector<1x1x384xf32> to vector<1x384xf32>
    %cst = arith.constant dense<0.000000e+00> : vector<8xf32>
    %8 = vector.multi_reduction <add>, %3, %cst [1] : vector<8x384xf32> to vector<8xf32>
    %9 = vector.shape_cast %8 : vector<8xf32> to vector<8x1xf32>
    %cst_8 = arith.constant 3.840000e+02 : f32
    %10 = vector.broadcast %cst_8 : f32 to vector<8x1xf32>
    %11 = arith.divf %9, %10 : vector<8x1xf32>
    %12 = vector.broadcast %11 : vector<8x1xf32> to vector<8x384xf32>
    %13 = arith.subf %3, %12 : vector<8x384xf32>
    %14 = arith.mulf %13, %13 : vector<8x384xf32>
    %cst_9 = arith.constant dense<0.000000e+00> : vector<8xf32>
    %15 = vector.multi_reduction <add>, %14, %cst_9 [1] : vector<8x384xf32> to vector<8xf32>
    %16 = vector.shape_cast %15 : vector<8xf32> to vector<8x1xf32>
    %cst_10 = arith.constant 3.840000e+02 : f32
    %17 = vector.broadcast %cst_10 : f32 to vector<8x1xf32>
    %18 = arith.divf %16, %17 : vector<8x1xf32>
    %19 = vector.broadcast %11 : vector<8x1xf32> to vector<8x384xf32>
    %20 = arith.subf %3, %19 : vector<8x384xf32>
    %cst_11 = arith.constant 9.99999974E-6 : f32
    %21 = vector.broadcast %cst_11 : f32 to vector<8x1xf32>
    %22 = arith.addf %18, %21 : vector<8x1xf32>
    %23 = math.rsqrt %22 : vector<8x1xf32>
    %24 = vector.broadcast %23 : vector<8x1xf32> to vector<8x384xf32>
    %25 = arith.mulf %20, %24 : vector<8x384xf32>
    %26 = vector.broadcast %5 : vector<1x384xf32> to vector<8x384xf32>
    %27 = arith.mulf %25, %26 : vector<8x384xf32>
    %28 = vector.broadcast %7 : vector<1x384xf32> to vector<8x384xf32>
    %29 = arith.addf %27, %28 : vector<8x384xf32>
    %30 = arith.truncf %29 : vector<8x384xf32> to vector<8x384xbf16>
    %c0_12 = arith.constant 0 : index
    %c0_13 = arith.constant 0 : index
    %c0_14 = arith.constant 0 : index
    %31 = vector.load %arg5[%c0_12, %c0_13, %c0_14] : memref<1x384x384xbf16, #tpu.memory_space<vmem>>, vector<1x384x384xbf16>
    %32 = vector.shape_cast %31 : vector<1x384x384xbf16> to vector<384x384xbf16>
    %cst_15 = arith.constant dense<0.000000e+00> : vector<8x384xf32>
    %33 = tpu.matmul %30, %32, %cst_15 {dimension_numbers = #tpu.dot_dimension_numbers<[1], [0], [0], [1], [0, 0, 1, 1], [], []>} : vector<8x384xbf16>, vector<384x384xbf16>, vector<8x384xf32> -> vector<8x384xf32>
    %c0_16 = arith.constant 0 : index
    %c0_17 = arith.constant 0 : index
    %c0_18 = arith.constant 0 : index
    %34 = vector.load %arg6[%c0_16, %c0_17, %c0_18] : memref<1x384x384xbf16, #tpu.memory_space<vmem>>, vector<1x384x384xbf16>
    %35 = vector.shape_cast %34 : vector<1x384x384xbf16> to vector<384x384xbf16>
    %cst_19 = arith.constant dense<0.000000e+00> : vector<8x384xf32>
    %36 = tpu.matmul %30, %35, %cst_19 {dimension_numbers = #tpu.dot_dimension_numbers<[1], [0], [0], [1], [0, 0, 1, 1], [], []>} : vector<8x384xbf16>, vector<384x384xbf16>, vector<8x384xf32> -> vector<8x384xf32>
    %c0_20 = arith.constant 0 : index
    %c0_21 = arith.constant 0 : index
    %c0_22 = arith.constant 0 : index
    %37 = vector.load %arg7[%c0_20, %c0_21, %c0_22] : memref<1x384x384xbf16, #tpu.memory_space<vmem>>, vector<1x384x384xbf16>
    %38 = vector.shape_cast %37 : vector<1x384x384xbf16> to vector<384x384xbf16>
    %cst_23 = arith.constant dense<0.000000e+00> : vector<8x384xf32>
    %39 = tpu.matmul %30, %38, %cst_23 {dimension_numbers = #tpu.dot_dimension_numbers<[1], [0], [0], [1], [0, 0, 1, 1], [], []>} : vector<8x384xbf16>, vector<384x384xbf16>, vector<8x384xf32> -> vector<8x384xf32>
    %cst_24 = arith.constant 0.0510310382 : f32
    %40 = vector.broadcast %cst_24 : f32 to vector<8x384xf32>
    %41 = arith.mulf %33, %40 : vector<8x384xf32>
    %42 = arith.truncf %41 : vector<8x384xf32> to vector<8x384xbf16>
    %43 = arith.truncf %36 : vector<8x384xf32> to vector<8x384xbf16>
    %44 = arith.truncf %39 : vector<8x384xf32> to vector<8x384xbf16>
    %45 = tpu.iota {dimensions = array<i32: 0>} : vector<8x8xi32>
    %46 = tpu.iota {dimensions = array<i32: 1>} : vector<8x8xi32>
    %47 = arith.cmpi sge, %45, %46 : vector<8x8xi32>
    %48 = vector.extract_strided_slice %42 {offsets = [0, 0], sizes = [8, 64], strides = [1, 1]} : vector<8x384xbf16> to vector<8x64xbf16>
    %49 = vector.extract_strided_slice %43 {offsets = [0, 0], sizes = [8, 64], strides = [1, 1]} : vector<8x384xbf16> to vector<8x64xbf16>
    %cst_25 = arith.constant dense<0.000000e+00> : vector<8x8xf32>
    %50 = tpu.matmul %48, %49, %cst_25 {dimension_numbers = #tpu.dot_dimension_numbers<[1], [1], [0], [0], [0, 0, 1, 0], [], []>} : vector<8x64xbf16>, vector<8x64xbf16>, vector<8x8xf32> -> vector<8x8xf32>
    %cst_26 = arith.constant -1.000000e+30 : f32
    %51 = vector.broadcast %cst_26 : f32 to vector<8x8xf32>
    %52 = arith.select %47, %50, %51 : vector<8x8xi1>, vector<8x8xf32>
    %cst_27 = arith.constant dense<0xFF800000> : vector<8xf32>
    %53 = vector.multi_reduction <maximumf>, %52, %cst_27 [1] : vector<8x8xf32> to vector<8xf32>
    %54 = vector.shape_cast %53 : vector<8xf32> to vector<8x1xf32>
    %55 = vector.broadcast %54 : vector<8x1xf32> to vector<8x8xf32>
    %56 = arith.subf %52, %55 : vector<8x8xf32>
    %57 = math.exp %56 : vector<8x8xf32>
    %cst_28 = arith.constant dense<0.000000e+00> : vector<8xf32>
    %58 = vector.multi_reduction <add>, %57, %cst_28 [1] : vector<8x8xf32> to vector<8xf32>
    %59 = vector.shape_cast %58 : vector<8xf32> to vector<8x1xf32>
    %60 = tpu.reciprocal %59 {approx = true} : vector<8x1xf32> -> vector<8x1xf32>
    %61 = vector.broadcast %60 : vector<8x1xf32> to vector<8x8xf32>
    %62 = arith.mulf %57, %61 : vector<8x8xf32>
    %63 = arith.truncf %62 : vector<8x8xf32> to vector<8x8xbf16>
    %64 = vector.extract_strided_slice %44 {offsets = [0, 0], sizes = [8, 64], strides = [1, 1]} : vector<8x384xbf16> to vector<8x64xbf16>
    %cst_29 = arith.constant dense<0.000000e+00> : vector<8x64xf32>
    %65 = tpu.matmul %63, %64, %cst_29 {dimension_numbers = #tpu.dot_dimension_numbers<[1], [0], [0], [1], [0, 0, 1, 1], [], []>} : vector<8x8xbf16>, vector<8x64xbf16>, vector<8x64xf32> -> vector<8x64xf32>
    %66 = vector.extract_strided_slice %42 {offsets = [0, 64], sizes = [8, 64], strides = [1, 1]} : vector<8x384xbf16> to vector<8x64xbf16>
    %67 = vector.extract_strided_slice %43 {offsets = [0, 64], sizes = [8, 64], strides = [1, 1]} : vector<8x384xbf16> to vector<8x64xbf16>
    %cst_30 = arith.constant dense<0.000000e+00> : vector<8x8xf32>
    %68 = tpu.matmul %66, %67, %cst_30 {dimension_numbers = #tpu.dot_dimension_numbers<[1], [1], [0], [0], [0, 0, 1, 0], [], []>} : vector<8x64xbf16>, vector<8x64xbf16>, vector<8x8xf32> -> vector<8x8xf32>
    %cst_31 = arith.constant -1.000000e+30 : f32
    %69 = vector.broadcast %cst_31 : f32 to vector<8x8xf32>
    %70 = arith.select %47, %68, %69 : vector<8x8xi1>, vector<8x8xf32>
    %cst_32 = arith.constant dense<0xFF800000> : vector<8xf32>
    %71 = vector.multi_reduction <maximumf>, %70, %cst_32 [1] : vector<8x8xf32> to vector<8xf32>
    %72 = vector.shape_cast %71 : vector<8xf32> to vector<8x1xf32>
    %73 = vector.broadcast %72 : vector<8x1xf32> to vector<8x8xf32>
    %74 = arith.subf %70, %73 : vector<8x8xf32>
    %75 = math.exp %74 : vector<8x8xf32>
    %cst_33 = arith.constant dense<0.000000e+00> : vector<8xf32>
    %76 = vector.multi_reduction <add>, %75, %cst_33 [1] : vector<8x8xf32> to vector<8xf32>
    %77 = vector.shape_cast %76 : vector<8xf32> to vector<8x1xf32>
    %78 = tpu.reciprocal %77 {approx = true} : vector<8x1xf32> -> vector<8x1xf32>
    %79 = vector.broadcast %78 : vector<8x1xf32> to vector<8x8xf32>
    %80 = arith.mulf %75, %79 : vector<8x8xf32>
    %81 = arith.truncf %80 : vector<8x8xf32> to vector<8x8xbf16>
    %82 = vector.extract_strided_slice %44 {offsets = [0, 64], sizes = [8, 64], strides = [1, 1]} : vector<8x384xbf16> to vector<8x64xbf16>
    %cst_34 = arith.constant dense<0.000000e+00> : vector<8x64xf32>
    %83 = tpu.matmul %81, %82, %cst_34 {dimension_numbers = #tpu.dot_dimension_numbers<[1], [0], [0], [1], [0, 0, 1, 1], [], []>} : vector<8x8xbf16>, vector<8x64xbf16>, vector<8x64xf32> -> vector<8x64xf32>
    %84 = vector.extract_strided_slice %42 {offsets = [0, 128], sizes = [8, 64], strides = [1, 1]} : vector<8x384xbf16> to vector<8x64xbf16>
    %85 = vector.extract_strided_slice %43 {offsets = [0, 128], sizes = [8, 64], strides = [1, 1]} : vector<8x384xbf16> to vector<8x64xbf16>
    %cst_35 = arith.constant dense<0.000000e+00> : vector<8x8xf32>
    %86 = tpu.matmul %84, %85, %cst_35 {dimension_numbers = #tpu.dot_dimension_numbers<[1], [1], [0], [0], [0, 0, 1, 0], [], []>} : vector<8x64xbf16>, vector<8x64xbf16>, vector<8x8xf32> -> vector<8x8xf32>
    %cst_36 = arith.constant -1.000000e+30 : f32
    %87 = vector.broadcast %cst_36 : f32 to vector<8x8xf32>
    %88 = arith.select %47, %86, %87 : vector<8x8xi1>, vector<8x8xf32>
    %cst_37 = arith.constant dense<0xFF800000> : vector<8xf32>
    %89 = vector.multi_reduction <maximumf>, %88, %cst_37 [1] : vector<8x8xf32> to vector<8xf32>
    %90 = vector.shape_cast %89 : vector<8xf32> to vector<8x1xf32>
    %91 = vector.broadcast %90 : vector<8x1xf32> to vector<8x8xf32>
    %92 = arith.subf %88, %91 : vector<8x8xf32>
    %93 = math.exp %92 : vector<8x8xf32>
    %cst_38 = arith.constant dense<0.000000e+00> : vector<8xf32>
    %94 = vector.multi_reduction <add>, %93, %cst_38 [1] : vector<8x8xf32> to vector<8xf32>
    %95 = vector.shape_cast %94 : vector<8xf32> to vector<8x1xf32>
    %96 = tpu.reciprocal %95 {approx = true} : vector<8x1xf32> -> vector<8x1xf32>
    %97 = vector.broadcast %96 : vector<8x1xf32> to vector<8x8xf32>
    %98 = arith.mulf %93, %97 : vector<8x8xf32>
    %99 = arith.truncf %98 : vector<8x8xf32> to vector<8x8xbf16>
    %100 = vector.extract_strided_slice %44 {offsets = [0, 128], sizes = [8, 64], strides = [1, 1]} : vector<8x384xbf16> to vector<8x64xbf16>
    %cst_39 = arith.constant dense<0.000000e+00> : vector<8x64xf32>
    %101 = tpu.matmul %99, %100, %cst_39 {dimension_numbers = #tpu.dot_dimension_numbers<[1], [0], [0], [1], [0, 0, 1, 1], [], []>} : vector<8x8xbf16>, vector<8x64xbf16>, vector<8x64xf32> -> vector<8x64xf32>
    %102 = vector.extract_strided_slice %42 {offsets = [0, 192], sizes = [8, 64], strides = [1, 1]} : vector<8x384xbf16> to vector<8x64xbf16>
    %103 = vector.extract_strided_slice %43 {offsets = [0, 192], sizes = [8, 64], strides = [1, 1]} : vector<8x384xbf16> to vector<8x64xbf16>
    %cst_40 = arith.constant dense<0.000000e+00> : vector<8x8xf32>
    %104 = tpu.matmul %102, %103, %cst_40 {dimension_numbers = #tpu.dot_dimension_numbers<[1], [1], [0], [0], [0, 0, 1, 0], [], []>} : vector<8x64xbf16>, vector<8x64xbf16>, vector<8x8xf32> -> vector<8x8xf32>
    %cst_41 = arith.constant -1.000000e+30 : f32
    %105 = vector.broadcast %cst_41 : f32 to vector<8x8xf32>
    %106 = arith.select %47, %104, %105 : vector<8x8xi1>, vector<8x8xf32>
    %cst_42 = arith.constant dense<0xFF800000> : vector<8xf32>
    %107 = vector.multi_reduction <maximumf>, %106, %cst_42 [1] : vector<8x8xf32> to vector<8xf32>
    %108 = vector.shape_cast %107 : vector<8xf32> to vector<8x1xf32>
    %109 = vector.broadcast %108 : vector<8x1xf32> to vector<8x8xf32>
    %110 = arith.subf %106, %109 : vector<8x8xf32>
    %111 = math.exp %110 : vector<8x8xf32>
    %cst_43 = arith.constant dense<0.000000e+00> : vector<8xf32>
    %112 = vector.multi_reduction <add>, %111, %cst_43 [1] : vector<8x8xf32> to vector<8xf32>
    %113 = vector.shape_cast %112 : vector<8xf32> to vector<8x1xf32>
    %114 = tpu.reciprocal %113 {approx = true} : vector<8x1xf32> -> vector<8x1xf32>
    %115 = vector.broadcast %114 : vector<8x1xf32> to vector<8x8xf32>
    %116 = arith.mulf %111, %115 : vector<8x8xf32>
    %117 = arith.truncf %116 : vector<8x8xf32> to vector<8x8xbf16>
    %118 = vector.extract_strided_slice %44 {offsets = [0, 192], sizes = [8, 64], strides = [1, 1]} : vector<8x384xbf16> to vector<8x64xbf16>
    %cst_44 = arith.constant dense<0.000000e+00> : vector<8x64xf32>
    %119 = tpu.matmul %117, %118, %cst_44 {dimension_numbers = #tpu.dot_dimension_numbers<[1], [0], [0], [1], [0, 0, 1, 1], [], []>} : vector<8x8xbf16>, vector<8x64xbf16>, vector<8x64xf32> -> vector<8x64xf32>
    %120 = vector.extract_strided_slice %42 {offsets = [0, 256], sizes = [8, 64], strides = [1, 1]} : vector<8x384xbf16> to vector<8x64xbf16>
    %121 = vector.extract_strided_slice %43 {offsets = [0, 256], sizes = [8, 64], strides = [1, 1]} : vector<8x384xbf16> to vector<8x64xbf16>
    %cst_45 = arith.constant dense<0.000000e+00> : vector<8x8xf32>
    %122 = tpu.matmul %120, %121, %cst_45 {dimension_numbers = #tpu.dot_dimension_numbers<[1], [1], [0], [0], [0, 0, 1, 0], [], []>} : vector<8x64xbf16>, vector<8x64xbf16>, vector<8x8xf32> -> vector<8x8xf32>
    %cst_46 = arith.constant -1.000000e+30 : f32
    %123 = vector.broadcast %cst_46 : f32 to vector<8x8xf32>
    %124 = arith.select %47, %122, %123 : vector<8x8xi1>, vector<8x8xf32>
    %cst_47 = arith.constant dense<0xFF800000> : vector<8xf32>
    %125 = vector.multi_reduction <maximumf>, %124, %cst_47 [1] : vector<8x8xf32> to vector<8xf32>
    %126 = vector.shape_cast %125 : vector<8xf32> to vector<8x1xf32>
    %127 = vector.broadcast %126 : vector<8x1xf32> to vector<8x8xf32>
    %128 = arith.subf %124, %127 : vector<8x8xf32>
    %129 = math.exp %128 : vector<8x8xf32>
    %cst_48 = arith.constant dense<0.000000e+00> : vector<8xf32>
    %130 = vector.multi_reduction <add>, %129, %cst_48 [1] : vector<8x8xf32> to vector<8xf32>
    %131 = vector.shape_cast %130 : vector<8xf32> to vector<8x1xf32>
    %132 = tpu.reciprocal %131 {approx = true} : vector<8x1xf32> -> vector<8x1xf32>
    %133 = vector.broadcast %132 : vector<8x1xf32> to vector<8x8xf32>
    %134 = arith.mulf %129, %133 : vector<8x8xf32>
    %135 = arith.truncf %134 : vector<8x8xf32> to vector<8x8xbf16>
    %136 = vector.extract_strided_slice %44 {offsets = [0, 256], sizes = [8, 64], strides = [1, 1]} : vector<8x384xbf16> to vector<8x64xbf16>
    %cst_49 = arith.constant dense<0.000000e+00> : vector<8x64xf32>
    %137 = tpu.matmul %135, %136, %cst_49 {dimension_numbers = #tpu.dot_dimension_numbers<[1], [0], [0], [1], [0, 0, 1, 1], [], []>} : vector<8x8xbf16>, vector<8x64xbf16>, vector<8x64xf32> -> vector<8x64xf32>
    %138 = vector.extract_strided_slice %42 {offsets = [0, 320], sizes = [8, 64], strides = [1, 1]} : vector<8x384xbf16> to vector<8x64xbf16>
    %139 = vector.extract_strided_slice %43 {offsets = [0, 320], sizes = [8, 64], strides = [1, 1]} : vector<8x384xbf16> to vector<8x64xbf16>
    %cst_50 = arith.constant dense<0.000000e+00> : vector<8x8xf32>
    %140 = tpu.matmul %138, %139, %cst_50 {dimension_numbers = #tpu.dot_dimension_numbers<[1], [1], [0], [0], [0, 0, 1, 0], [], []>} : vector<8x64xbf16>, vector<8x64xbf16>, vector<8x8xf32> -> vector<8x8xf32>
    %cst_51 = arith.constant -1.000000e+30 : f32
    %141 = vector.broadcast %cst_51 : f32 to vector<8x8xf32>
    %142 = arith.select %47, %140, %141 : vector<8x8xi1>, vector<8x8xf32>
    %cst_52 = arith.constant dense<0xFF800000> : vector<8xf32>
    %143 = vector.multi_reduction <maximumf>, %142, %cst_52 [1] : vector<8x8xf32> to vector<8xf32>
    %144 = vector.shape_cast %143 : vector<8xf32> to vector<8x1xf32>
    %145 = vector.broadcast %144 : vector<8x1xf32> to vector<8x8xf32>
    %146 = arith.subf %142, %145 : vector<8x8xf32>
    %147 = math.exp %146 : vector<8x8xf32>
    %cst_53 = arith.constant dense<0.000000e+00> : vector<8xf32>
    %148 = vector.multi_reduction <add>, %147, %cst_53 [1] : vector<8x8xf32> to vector<8xf32>
    %149 = vector.shape_cast %148 : vector<8xf32> to vector<8x1xf32>
    %150 = tpu.reciprocal %149 {approx = true} : vector<8x1xf32> -> vector<8x1xf32>
    %151 = vector.broadcast %150 : vector<8x1xf32> to vector<8x8xf32>
    %152 = arith.mulf %147, %151 : vector<8x8xf32>
    %153 = arith.truncf %152 : vector<8x8xf32> to vector<8x8xbf16>
    %154 = vector.extract_strided_slice %44 {offsets = [0, 320], sizes = [8, 64], strides = [1, 1]} : vector<8x384xbf16> to vector<8x64xbf16>
    %cst_54 = arith.constant dense<0.000000e+00> : vector<8x64xf32>
    %155 = tpu.matmul %153, %154, %cst_54 {dimension_numbers = #tpu.dot_dimension_numbers<[1], [0], [0], [1], [0, 0, 1, 1], [], []>} : vector<8x8xbf16>, vector<8x64xbf16>, vector<8x64xf32> -> vector<8x64xf32>
    %156 = tpu.concatenate %65, %83, %101, %119, %137, %155 in 1 : vector<8x64xf32>, vector<8x64xf32>, vector<8x64xf32>, vector<8x64xf32>, vector<8x64xf32>, vector<8x64xf32> -> vector<8x384xf32>
    %157 = arith.truncf %156 : vector<8x384xf32> to vector<8x384xbf16>
    %c0_55 = arith.constant 0 : index
    %c0_56 = arith.constant 0 : index
    %c0_57 = arith.constant 0 : index
    %158 = vector.load %arg8[%c0_55, %c0_56, %c0_57] : memref<1x384x384xbf16, #tpu.memory_space<vmem>>, vector<1x384x384xbf16>
    %159 = vector.shape_cast %158 : vector<1x384x384xbf16> to vector<384x384xbf16>
    %cst_58 = arith.constant dense<0.000000e+00> : vector<8x384xf32>
    %160 = tpu.matmul %157, %159, %cst_58 {dimension_numbers = #tpu.dot_dimension_numbers<[1], [0], [0], [1], [0, 0, 1, 1], [], []>} : vector<8x384xbf16>, vector<384x384xbf16>, vector<8x384xf32> -> vector<8x384xf32>
    %c0_59 = arith.constant 0 : index
    %c0_60 = arith.constant 0 : index
    %c0_61 = arith.constant 0 : index
    %161 = vector.load %arg9[%c0_59, %c0_60, %c0_61] : memref<1x1x384xf32, #tpu.memory_space<vmem>>, vector<1x1x384xf32>
    %162 = vector.shape_cast %161 : vector<1x1x384xf32> to vector<1x384xf32>
    %163 = vector.broadcast %162 : vector<1x384xf32> to vector<8x384xf32>
    %164 = arith.addf %160, %163 : vector<8x384xf32>
    %165 = arith.addf %3, %164 : vector<8x384xf32>
    %c0_62 = arith.constant 0 : index
    %c0_63 = arith.constant 0 : index
    %c0_64 = arith.constant 0 : index
    %166 = vector.load %arg10[%c0_62, %c0_63, %c0_64] : memref<1x1x384xf32, #tpu.memory_space<vmem>>, vector<1x1x384xf32>
    %167 = vector.shape_cast %166 : vector<1x1x384xf32> to vector<1x384xf32>
    %c0_65 = arith.constant 0 : index
    %c0_66 = arith.constant 0 : index
    %c0_67 = arith.constant 0 : index
    %168 = vector.load %arg11[%c0_65, %c0_66, %c0_67] : memref<1x1x384xf32, #tpu.memory_space<vmem>>, vector<1x1x384xf32>
    %169 = vector.shape_cast %168 : vector<1x1x384xf32> to vector<1x384xf32>
    %cst_68 = arith.constant dense<0.000000e+00> : vector<8xf32>
    %170 = vector.multi_reduction <add>, %165, %cst_68 [1] : vector<8x384xf32> to vector<8xf32>
    %171 = vector.shape_cast %170 : vector<8xf32> to vector<8x1xf32>
    %cst_69 = arith.constant 3.840000e+02 : f32
    %172 = vector.broadcast %cst_69 : f32 to vector<8x1xf32>
    %173 = arith.divf %171, %172 : vector<8x1xf32>
    %174 = vector.broadcast %173 : vector<8x1xf32> to vector<8x384xf32>
    %175 = arith.subf %165, %174 : vector<8x384xf32>
    %176 = arith.mulf %175, %175 : vector<8x384xf32>
    %cst_70 = arith.constant dense<0.000000e+00> : vector<8xf32>
    %177 = vector.multi_reduction <add>, %176, %cst_70 [1] : vector<8x384xf32> to vector<8xf32>
    %178 = vector.shape_cast %177 : vector<8xf32> to vector<8x1xf32>
    %cst_71 = arith.constant 3.840000e+02 : f32
    %179 = vector.broadcast %cst_71 : f32 to vector<8x1xf32>
    %180 = arith.divf %178, %179 : vector<8x1xf32>
    %181 = vector.broadcast %173 : vector<8x1xf32> to vector<8x384xf32>
    %182 = arith.subf %165, %181 : vector<8x384xf32>
    %cst_72 = arith.constant 9.99999974E-6 : f32
    %183 = vector.broadcast %cst_72 : f32 to vector<8x1xf32>
    %184 = arith.addf %180, %183 : vector<8x1xf32>
    %185 = math.rsqrt %184 : vector<8x1xf32>
    %186 = vector.broadcast %185 : vector<8x1xf32> to vector<8x384xf32>
    %187 = arith.mulf %182, %186 : vector<8x384xf32>
    %188 = vector.broadcast %167 : vector<1x384xf32> to vector<8x384xf32>
    %189 = arith.mulf %187, %188 : vector<8x384xf32>
    %190 = vector.broadcast %169 : vector<1x384xf32> to vector<8x384xf32>
    %191 = arith.addf %189, %190 : vector<8x384xf32>
    %192 = arith.truncf %191 : vector<8x384xf32> to vector<8x384xbf16>
    %c0_73 = arith.constant 0 : index
    %c0_74 = arith.constant 0 : index
    %c0_75 = arith.constant 0 : index
    %193 = vector.load %arg12[%c0_73, %c0_74, %c0_75] : memref<1x384x1536xbf16, #tpu.memory_space<vmem>>, vector<1x384x1536xbf16>
    %194 = vector.shape_cast %193 : vector<1x384x1536xbf16> to vector<384x1536xbf16>
    %cst_76 = arith.constant dense<0.000000e+00> : vector<8x1536xf32>
    %195 = tpu.matmul %192, %194, %cst_76 {dimension_numbers = #tpu.dot_dimension_numbers<[1], [0], [0], [1], [0, 0, 1, 1], [], []>} : vector<8x384xbf16>, vector<384x1536xbf16>, vector<8x1536xf32> -> vector<8x1536xf32>
    %c0_77 = arith.constant 0 : index
    %c0_78 = arith.constant 0 : index
    %c0_79 = arith.constant 0 : index
    %196 = vector.load %arg13[%c0_77, %c0_78, %c0_79] : memref<1x1x1536xf32, #tpu.memory_space<vmem>>, vector<1x1x1536xf32>
    %197 = vector.shape_cast %196 : vector<1x1x1536xf32> to vector<1x1536xf32>
    %198 = vector.broadcast %197 : vector<1x1536xf32> to vector<8x1536xf32>
    %199 = arith.addf %195, %198 : vector<8x1536xf32>
    %cst_80 = arith.constant 0.000000e+00 : f32
    %200 = vector.broadcast %cst_80 : f32 to vector<8x1536xf32>
    %201 = arith.maximumf %199, %200 : vector<8x1536xf32>
    %202 = arith.truncf %201 : vector<8x1536xf32> to vector<8x1536xbf16>
    %c0_81 = arith.constant 0 : index
    %c0_82 = arith.constant 0 : index
    %c0_83 = arith.constant 0 : index
    %203 = vector.load %arg14[%c0_81, %c0_82, %c0_83] : memref<1x1536x384xbf16, #tpu.memory_space<vmem>>, vector<1x1536x384xbf16>
    %204 = vector.shape_cast %203 : vector<1x1536x384xbf16> to vector<1536x384xbf16>
    %cst_84 = arith.constant dense<0.000000e+00> : vector<8x384xf32>
    %205 = tpu.matmul %202, %204, %cst_84 {dimension_numbers = #tpu.dot_dimension_numbers<[1], [0], [0], [1], [0, 0, 1, 1], [], []>} : vector<8x1536xbf16>, vector<1536x384xbf16>, vector<8x384xf32> -> vector<8x384xf32>
    %c0_85 = arith.constant 0 : index
    %c0_86 = arith.constant 0 : index
    %c0_87 = arith.constant 0 : index
    %206 = vector.load %arg15[%c0_85, %c0_86, %c0_87] : memref<1x1x384xf32, #tpu.memory_space<vmem>>, vector<1x1x384xf32>
    %207 = vector.shape_cast %206 : vector<1x1x384xf32> to vector<1x384xf32>
    %208 = vector.broadcast %207 : vector<1x384xf32> to vector<8x384xf32>
    %209 = arith.addf %205, %208 : vector<8x384xf32>
    %210 = arith.addf %165, %209 : vector<8x384xf32>
    %c0_88 = arith.constant 0 : index
    %c0_89 = arith.constant 0 : index
    %211 = vector.load %arg19[%c0_88, %c0_89] : memref<8x384xf32, #tpu.memory_space<vmem>>, vector<8x384xf32>
    tpu.vector_store %arg19[%c0_88, %c0_89], %210 {strides = array<i32>} : memref<8x384xf32, #tpu.memory_space<vmem>>, vector<8x384xf32>,
    %c5_i32 = arith.constant 5 : i32
    %212 = arith.cmpi eq, %arg1, %c5_i32 : i32
    %213 = arith.extui %212 : i1 to i32
    %c0_i32_90 = arith.constant 0 : i32
    %214 = arith.cmpi ne, %213, %c0_i32_90 : i32
    scf.if %214 {
      %c0_91 = arith.constant 0 : index
      %c0_92 = arith.constant 0 : index
      %215 = vector.load %arg16[%c0_91, %c0_92] : memref<1x384xf32, #tpu.memory_space<vmem>>, vector<1x384xf32>
      %c0_93 = arith.constant 0 : index
      %c0_94 = arith.constant 0 : index
      %216 = vector.load %arg17[%c0_93, %c0_94] : memref<1x384xf32, #tpu.memory_space<vmem>>, vector<1x384xf32>
      %cst_95 = arith.constant dense<0.000000e+00> : vector<8xf32>
      %217 = vector.multi_reduction <add>, %210, %cst_95 [1] : vector<8x384xf32> to vector<8xf32>
      %218 = vector.shape_cast %217 : vector<8xf32> to vector<8x1xf32>
      %cst_96 = arith.constant 3.840000e+02 : f32
      %219 = vector.broadcast %cst_96 : f32 to vector<8x1xf32>
      %220 = arith.divf %218, %219 : vector<8x1xf32>
      %221 = vector.broadcast %220 : vector<8x1xf32> to vector<8x384xf32>
      %222 = arith.subf %210, %221 : vector<8x384xf32>
      %223 = arith.mulf %222, %222 : vector<8x384xf32>
      %cst_97 = arith.constant dense<0.000000e+00> : vector<8xf32>
      %224 = vector.multi_reduction <add>, %223, %cst_97 [1] : vector<8x384xf32> to vector<8xf32>
      %225 = vector.shape_cast %224 : vector<8xf32> to vector<8x1xf32>
      %cst_98 = arith.constant 3.840000e+02 : f32
      %226 = vector.broadcast %cst_98 : f32 to vector<8x1xf32>
      %227 = arith.divf %225, %226 : vector<8x1xf32>
      %228 = vector.broadcast %220 : vector<8x1xf32> to vector<8x384xf32>
      %229 = arith.subf %210, %228 : vector<8x384xf32>
      %cst_99 = arith.constant 9.99999974E-6 : f32
      %230 = vector.broadcast %cst_99 : f32 to vector<8x1xf32>
      %231 = arith.addf %227, %230 : vector<8x1xf32>
      %232 = math.rsqrt %231 : vector<8x1xf32>
      %233 = vector.broadcast %232 : vector<8x1xf32> to vector<8x384xf32>
      %234 = arith.mulf %229, %233 : vector<8x384xf32>
      %235 = vector.broadcast %215 : vector<1x384xf32> to vector<8x384xf32>
      %236 = arith.mulf %234, %235 : vector<8x384xf32>
      %237 = vector.broadcast %216 : vector<1x384xf32> to vector<8x384xf32>
      %238 = arith.addf %236, %237 : vector<8x384xf32>
      %239 = arith.truncf %238 : vector<8x384xf32> to vector<8x384xbf16>
      %c0_100 = arith.constant 0 : index
      %c0_101 = arith.constant 0 : index
      %c0_102 = arith.constant 0 : index
      %240 = vector.load %arg18[%c0_100, %c0_101, %c0_102] : memref<1x8x384xbf16, #tpu.memory_space<vmem>>, vector<1x8x384xbf16>
      %241 = vector.shape_cast %240 : vector<1x8x384xbf16> to vector<8x384xbf16>
      %242 = vector.shape_cast %239 : vector<8x384xbf16> to vector<1x8x384xbf16>
      tpu.vector_store %arg18[%c0_100, %c0_101, %c0_102], %242 {strides = array<i32>} : memref<1x8x384xbf16, #tpu.memory_space<vmem>>, vector<1x8x384xbf16>,
    } else {
    }
    return
  }
  func.func @transform_0(%arg0: i32, %arg1: i32) -> (i32, i32, i32) {
    %c0_i32 = arith.constant 0 : i32
    %c0_i32_0 = arith.constant 0 : i32
    %c0_i32_1 = arith.constant 0 : i32
    return %arg0, %c0_i32, %c0_i32_0 : i32, i32, i32
  }
  func.func @transform_1(%arg0: i32, %arg1: i32) -> (i32, i32, i32) {
    %c0_i32 = arith.constant 0 : i32
    %c0_i32_0 = arith.constant 0 : i32
    %c0_i32_1 = arith.constant 0 : i32
    return %arg1, %c0_i32, %c0_i32_0 : i32, i32, i32
  }
  func.func @transform_2(%arg0: i32, %arg1: i32) -> (i32, i32, i32) {
    %c0_i32 = arith.constant 0 : i32
    %c0_i32_0 = arith.constant 0 : i32
    %c0_i32_1 = arith.constant 0 : i32
    return %arg1, %c0_i32, %c0_i32_0 : i32, i32, i32
  }
  func.func @transform_3(%arg0: i32, %arg1: i32) -> (i32, i32, i32) {
    %c0_i32 = arith.constant 0 : i32
    %c0_i32_0 = arith.constant 0 : i32
    %c0_i32_1 = arith.constant 0 : i32
    return %arg1, %c0_i32, %c0_i32_0 : i32, i32, i32
  }
  func.func @transform_4(%arg0: i32, %arg1: i32) -> (i32, i32, i32) {
    %c0_i32 = arith.constant 0 : i32
    %c0_i32_0 = arith.constant 0 : i32
    %c0_i32_1 = arith.constant 0 : i32
    return %arg1, %c0_i32, %c0_i32_0 : i32, i32, i32
  }
  func.func @transform_5(%arg0: i32, %arg1: i32) -> (i32, i32, i32) {
    %c0_i32 = arith.constant 0 : i32
    %c0_i32_0 = arith.constant 0 : i32
    %c0_i32_1 = arith.constant 0 : i32
    return %arg1, %c0_i32, %c0_i32_0 : i32, i32, i32
  }
  func.func @transform_6(%arg0: i32, %arg1: i32) -> (i32, i32, i32) {
    %c0_i32 = arith.constant 0 : i32
    %c0_i32_0 = arith.constant 0 : i32
    %c0_i32_1 = arith.constant 0 : i32
    return %arg1, %c0_i32, %c0_i32_0 : i32, i32, i32
  }
  func.func @transform_7(%arg0: i32, %arg1: i32) -> (i32, i32, i32) {
    %c0_i32 = arith.constant 0 : i32
    %c0_i32_0 = arith.constant 0 : i32
    %c0_i32_1 = arith.constant 0 : i32
    return %arg1, %c0_i32, %c0_i32_0 : i32, i32, i32
  }
  func.func @transform_8(%arg0: i32, %arg1: i32) -> (i32, i32, i32) {
    %c0_i32 = arith.constant 0 : i32
    %c0_i32_0 = arith.constant 0 : i32
    %c0_i32_1 = arith.constant 0 : i32
    return %arg1, %c0_i32, %c0_i32_0 : i32, i32, i32
  }
  func.func @transform_9(%arg0: i32, %arg1: i32) -> (i32, i32, i32) {
    %c0_i32 = arith.constant 0 : i32
    %c0_i32_0 = arith.constant 0 : i32
    %c0_i32_1 = arith.constant 0 : i32
    return %arg1, %c0_i32, %c0_i32_0 : i32, i32, i32
  }
  func.func @transform_10(%arg0: i32, %arg1: i32) -> (i32, i32, i32) {
    %c0_i32 = arith.constant 0 : i32
    %c0_i32_0 = arith.constant 0 : i32
    %c0_i32_1 = arith.constant 0 : i32
    return %arg1, %c0_i32, %c0_i32_0 : i32, i32, i32
  }
  func.func @transform_11(%arg0: i32, %arg1: i32) -> (i32, i32, i32) {
    %c0_i32 = arith.constant 0 : i32
    %c0_i32_0 = arith.constant 0 : i32
    %c0_i32_1 = arith.constant 0 : i32
    return %arg1, %c0_i32, %c0_i32_0 : i32, i32, i32
  }
  func.func @transform_12(%arg0: i32, %arg1: i32) -> (i32, i32, i32) {
    %c0_i32 = arith.constant 0 : i32
    %c0_i32_0 = arith.constant 0 : i32
    %c0_i32_1 = arith.constant 0 : i32
    return %arg1, %c0_i32, %c0_i32_0 : i32, i32, i32
  }
  func.func @transform_13(%arg0: i32, %arg1: i32) -> (i32, i32, i32) {
    %c0_i32 = arith.constant 0 : i32
    %c0_i32_0 = arith.constant 0 : i32
    %c0_i32_1 = arith.constant 0 : i32
    return %arg1, %c0_i32, %c0_i32_0 : i32, i32, i32
  }
  func.func @transform_14(%arg0: i32, %arg1: i32) -> (i32, i32) {
    %c0_i32 = arith.constant 0 : i32
    %c0_i32_0 = arith.constant 0 : i32
    %c0_i32_1 = arith.constant 0 : i32
    return %c0_i32, %c0_i32_0 : i32, i32
  }
  func.func @transform_15(%arg0: i32, %arg1: i32) -> (i32, i32) {
    %c0_i32 = arith.constant 0 : i32
    %c0_i32_0 = arith.constant 0 : i32
    %c0_i32_1 = arith.constant 0 : i32
    return %c0_i32, %c0_i32_0 : i32, i32
  }
  func.func @transform_16(%arg0: i32, %arg1: i32) -> (i32, i32, i32) {
    %c0_i32 = arith.constant 0 : i32
    %c0_i32_0 = arith.constant 0 : i32
    %c0_i32_1 = arith.constant 0 : i32
    return %arg0, %c0_i32, %c0_i32_0 : i32, i32, i32
  }
}

</mosaic_0001>

<llo_original>
// kernel: tpu_custom_call.1
$region0: #{tpu_custom_call.1}
  #allocation0 [shape = 'u32[]', space=smem, size = 0x4, offset = 0x4, fixed_abs, tag = 'smem constant byte address 0x4 - core index']
  #allocation1 [shape = 'u32[144,128]{1,0:T(1,128)}', space=vmem, size = 0x12000, scoped, tag = 'internal scratch']
  #allocation2 [shape = 'f32[8,384]{1,0:T(8,128)}', space=vmem, size = 0x3000, scoped, tag = 'scratch operand']
  %s0 = inlined_call_operand.hbm [shape: f32[2,8,384], index: 0, kind: input, shape index: {}]
  %s1 = inlined_call_operand.hbm [shape: f32[6,1,384], index: 1, kind: input, shape index: {}]
  %s2 = inlined_call_operand.hbm [shape: f32[6,1,384], index: 2, kind: input, shape index: {}]
  %s3 = inlined_call_operand.hbm [shape: bf16[6,384,384], index: 3, kind: input, shape index: {}]
  %s4 = inlined_call_operand.hbm [shape: bf16[6,384,384], index: 4, kind: input, shape index: {}]
  %s5 = inlined_call_operand.hbm [shape: bf16[6,384,384], index: 5, kind: input, shape index: {}]
  %s6 = inlined_call_operand.hbm [shape: bf16[6,384,384], index: 6, kind: input, shape index: {}]
  %s7 = inlined_call_operand.hbm [shape: f32[6,1,384], index: 7, kind: input, shape index: {}]
  %s8 = inlined_call_operand.hbm [shape: f32[6,1,384], index: 8, kind: input, shape index: {}]
  %s9 = inlined_call_operand.hbm [shape: f32[6,1,384], index: 9, kind: input, shape index: {}]
  %s10 = inlined_call_operand.hbm [shape: bf16[6,384,1536], index: 10, kind: input, shape index: {}]
  %s11 = inlined_call_operand.hbm [shape: f32[6,1,1536], index: 11, kind: input, shape index: {}]
  %s12 = inlined_call_operand.hbm [shape: bf16[6,1536,384], index: 12, kind: input, shape index: {}]
  %s13 = inlined_call_operand.hbm [shape: f32[6,1,384], index: 13, kind: input, shape index: {}]
  %s14 = inlined_call_operand.hbm [shape: f32[1,384], index: 14, kind: input, shape index: {}]
  %s15 = inlined_call_operand.hbm [shape: f32[1,384], index: 15, kind: input, shape index: {}]
  %s16 = inlined_call_operand.hbm [shape: bf16[2,8,384], index: 16, kind: output, shape index: {}]
  %s17 = sld [smem:[#allocation0]]
  $region169: #{tpu_custom_call.1} parent=0
    _
  %s19 = ssub.s32 1, %s17
  %s20 = scalar_select 0, %s19, %s17
  $region1: #{tpu_custom_call.1} parent=0
    #allocation3 [shape = 'u8[24576]{0}', space=vmem, size = 0x6000, scoped, tag = 'input window, operand 0']
    #allocation4 [shape = 's32[2]{0}', space=sflag, size = 0x8, scoped, tag = 'scoped memory for tpu_custom_call.1']
    #allocation5 [shape = 's32[2]{0}', space=sflag, size = 0x8, scoped, tag = 'scoped memory for tpu_custom_call.1']
    #allocation6 [shape = 'u8[3072]{0}', space=vmem, size = 0xc00, scoped, tag = 'input window, operand 1']
    #allocation7 [shape = 's32[2]{0}', space=sflag, size = 0x8, scoped, tag = 'scoped memory for tpu_custom_call.1']
    #allocation8 [shape = 'u8[3072]{0}', space=vmem, size = 0xc00, scoped, tag = 'input window, operand 2']
    #allocation9 [shape = 'u8[589824]{0}', space=vmem, size = 0x90000, scoped, tag = 'input window, operand 3']
    #allocation10 [shape = 's32[2]{0}', space=sflag, size = 0x8, scoped, tag = 'scoped memory for tpu_custom_call.1']
    #allocation11 [shape = 'u8[589824]{0}', space=vmem, size = 0x90000, scoped, tag = 'input window, operand 4']
    #allocation12 [shape = 'u8[589824]{0}', space=vmem, size = 0x90000, scoped, tag = 'input window, operand 5']
    #allocation13 [shape = 's32[2]{0}', space=sflag, size = 0x8, scoped, tag = 'scoped memory for tpu_custom_call.1']
    #allocation14 [shape = 'u8[589824]{0}', space=vmem, size = 0x90000, scoped, tag = 'input window, operand 6']
    #allocation15 [shape = 'u8[3072]{0}', space=vmem, size = 0xc00, scoped, tag = 'input window, operand 7']
    #allocation16 [shape = 's32[2]{0}', space=sflag, size = 0x8, scoped, tag = 'scoped memory for tpu_custom_call.1']
    #allocation17 [shape = 'u8[3072]{0}', space=vmem, size = 0xc00, scoped, tag = 'input window, operand 8']
    #allocation18 [shape = 'u8[3072]{0}', space=vmem, size = 0xc00, scoped, tag = 'input window, operand 9']
    #allocation19 [shape = 's32[2]{0}', space=sflag, size = 0x8, scoped, tag = 'scoped memory for tpu_custom_call.1']
    #allocation20 [shape = 'u8[2359296]{0}', space=vmem, size = 0x240000, scoped, tag = 'input window, operand 10']
    #allocation21 [shape = 'u8[12288]{0}', space=vmem, size = 0x3000, scoped, tag = 'input window, operand 11']
    #allocation22 [shape = 's32[2]{0}', space=sflag, size = 0x8, scoped, tag = 'scoped memory for tpu_custom_call.1']
    #allocation23 [shape = 'u8[2359296]{0}', space=vmem, size = 0x240000, scoped, tag = 'input window, operand 12']
    #allocation24 [shape = 'u8[3072]{0}', space=vmem, size = 0xc00, scoped, tag = 'input window, operand 13']
    #allocation25 [shape = 's32[2]{0}', space=sflag, size = 0x8, scoped, tag = 'scoped memory for tpu_custom_call.1']
    #allocation26 [shape = 'u8[1536]{0}', space=vmem, size = 0x800, scoped, tag = 'input window, operand 14, single buffered']
    #allocation27 [shape = 'u8[1536]{0}', space=vmem, size = 0x800, scoped, tag = 'input window, operand 15, single buffered']
    #allocation28 [shape = 's32[1]{0}', space=sflag, size = 0x4, scoped, tag = 'scoped memory for tpu_custom_call.1']
    #allocation29 [shape = 'u8[12288]{0}', space=vmem, size = 0x3000, scoped, tag = 'output window, operand 0']
    %21 = vsyncpa [#allocation4], 0
    %s22 = scalar_lea.sflag [#allocation4], 1
    %23 = vsyncpa %s22, 0
    %24 = vsyncpa [#allocation7], 0
    %s25 = scalar_lea.sflag [#allocation7], 1
    %26 = vsyncpa %s25, 0
    %27 = vsyncpa [#allocation10], 0
    %s28 = scalar_lea.sflag [#allocation10], 1
    %29 = vsyncpa %s28, 0
    %30 = vsyncpa [#allocation13], 0
    %s31 = scalar_lea.sflag [#allocation13], 1
    %32 = vsyncpa %s31, 0
    %33 = vsyncpa [#allocation16], 0
    %s34 = scalar_lea.sflag [#allocation16], 1
    %35 = vsyncpa %s34, 0
    %36 = vsyncpa [#allocation19], 0
    %s37 = scalar_lea.sflag [#allocation19], 1
    %38 = vsyncpa %s37, 0
    %39 = vsyncpa [#allocation22], 0
    %s40 = scalar_lea.sflag [#allocation22], 1
    %41 = vsyncpa %s40, 0
    %42 = vsyncpa [#allocation25], 0
    %s43 = scalar_lea.sflag [#allocation25], 1
    %44 = vsyncpa %s43, 0
    %45 = vsyncpa [#allocation28], 0
    %46 = vsyncpa [#allocation5], 0
    %s47 = scalar_lea.sflag [#allocation5], 1
    %48 = vsyncpa %s47, 0
    loop: start=0, step=1, limit=14
    $region2: #{tpu_custom_call.1} parent=1 // loop_pre_header
      _
    $region3: #{tpu_custom_call.1} parent=1 // loop_header
      %s50 = sphi 0, %s54
      %p51 = scmp.ge.s32.totalorder %s50, 14
      %s57 = sphi 0, %s69
      %s58 = sphi 0, %s65
      %s59 = sphi 0, %s57
      %s60 = sphi 0, %s58
      %s61 = sphi 0, %s59
      %s62 = sphi 0, %s60
      %s72 = sphi 0, %s74
      %s75 = sphi 0, %s72
      %s76 = sphi 0, %s75
      %s92 = sphi 0, %s76
      %s98 = sphi 0, %s100
      %s101 = sphi 0, %s98
      %s102 = sphi 0, %s101
      %s118 = sphi 0, %s102
      %s124 = sphi 0, %s126
      %s127 = sphi 0, %s124
      %s128 = sphi 0, %s127
      %s144 = sphi 0, %s128
      %s150 = sphi 0, %s152
      %s153 = sphi 0, %s150
      %s154 = sphi 0, %s153
      %s170 = sphi 0, %s154
      %s176 = sphi 0, %s178
      %s179 = sphi 0, %s176
      %s180 = sphi 0, %s179
      %s196 = sphi 0, %s180
      %s202 = sphi 0, %s204
      %s205 = sphi 0, %s202
      %s206 = sphi 0, %s205
      %s222 = sphi 0, %s206
      %s228 = sphi 0, %s230
      %s231 = sphi 0, %s228
      %s232 = sphi 0, %s231
      %s248 = sphi 0, %s232
      %s254 = sphi 0, %s256
      %s257 = sphi 0, %s254
      %s258 = sphi 0, %s257
      %s274 = sphi 0, %s258
      %s280 = sphi 0, %s282
      %s283 = sphi 0, %s280
      %s284 = sphi 0, %s283
      %s300 = sphi 0, %s284
      %s306 = sphi 0, %s308
      %s309 = sphi 0, %s306
      %s310 = sphi 0, %s309
      %s326 = sphi 0, %s310
      %s332 = sphi 0, %s334
      %s335 = sphi 0, %s332
      %s336 = sphi 0, %s335
      %s352 = sphi 0, %s336
      %s358 = sphi 0, %s360
      %s361 = sphi 0, %s358
      %s362 = sphi 0, %s361
      %s378 = sphi 0, %s362
      %s384 = sphi 0, %s386
      %s387 = sphi 0, %s384
      %s388 = sphi 0, %s387
      %s404 = sphi 0, %s388
      %s410 = sphi 0, %s412
      %s413 = sphi 0, %s410
      %s414 = sphi 0, %s413
      %s430 = sphi 0, %s414
      %s434 = sphi 0, %s434
      %s436 = sphi 0, %s434
      %s437 = sphi 0, %s436
      %s451 = sphi 0, %s437
      %s455 = sphi 0, %s455
      %s457 = sphi 0, %s455
      %s458 = sphi 0, %s457
      %s472 = sphi 0, %s458
      %s478 = sphi 0, %s480
      %s481 = sphi 0, %s478
      %s482 = sphi 0, %s481
      %s498 = sphi 0, %s482
    $region4: #{tpu_custom_call.1} parent=1 // loop_header_branch
      %53 = sbr.rel (%p51) target = $region8
    $region5: #{tpu_custom_call.1} parent=1 // loop_body
      %s55 = ssub.s32 %s50, 1
      %s56 = ssub.s32 %s50, 2
      %s63 = sadd.s32 1, %s58
      %p64 = scmp.ge.s32.totalorder %s63, 6
      %s65 = scalar_select %p64, 0, %s63
      %s66 = sadd.s32 1, %s57
      %s67 = scalar_select %p64, %s66, %s57
      %p68 = scmp.ge.s32.totalorder %s67, 2
      %s69 = scalar_select %p68, 0, %s67
      %s70 = ssub.s32 %s57, %s69
      %p71 = scmp.eq.s32.totalorder %s70, 0
      %s73 = sadd.s32 %s72, 1
      %s74 = scalar_select %p71, %s72, %s73
      %p77 = pneg %p71
      %p78 = scmp.eq.s32.totalorder %s50, 11
      %p79 = por %p77, %p78
      %p80 = scmp.ne.s32.totalorder %s72, %s75
      %p81 = scmp.eq.s32.totalorder %s50, 0
      %p82 = por %p80, %p81
      %p83 = scmp.ne.s32.totalorder %s72, %s75
      %p84 = scmp.eq.s32.totalorder %s55, 11
      %p85 = por %p83, %p84
      %p86 = scmp.ne.s32.totalorder %s75, %s76
      %p87 = scmp.eq.s32.totalorder %s55, 0
      %p88 = por %p86, %p87
      %p89 = scmp.ne.s32.totalorder %s75, %s76
      %p90 = scmp.eq.s32.totalorder %s56, 11
      %p91 = por %p89, %p90
      %p93 = scmp.ne.s32.totalorder %s76, %s92
      %p94 = scmp.eq.s32.totalorder %s56, 0
      %p95 = por %p93, %p94
      %s96 = ssub.s32 %s58, %s65
      %p97 = scmp.eq.s32.totalorder %s96, 0
      %s99 = sadd.s32 %s98, 1
      %s100 = scalar_select %p97, %s98, %s99
      %p103 = pneg %p97
      %p104 = scmp.eq.s32.totalorder %s50, 11
      %p105 = por %p103, %p104
      %p106 = scmp.ne.s32.totalorder %s98, %s101
      %p107 = scmp.eq.s32.totalorder %s50, 0
      %p108 = por %p106, %p107
      %p109 = scmp.ne.s32.totalorder %s98, %s101
      %p110 = scmp.eq.s32.totalorder %s55, 11
      %p111 = por %p109, %p110
      %p112 = scmp.ne.s32.totalorder %s101, %s102
      %p113 = scmp.eq.s32.totalorder %s55, 0
      %p114 = por %p112, %p113
      %p115 = scmp.ne.s32.totalorder %s101, %s102
      %p116 = scmp.eq.s32.totalorder %s56, 11
      %p117 = por %p115, %p116
      %p119 = scmp.ne.s32.totalorder %s102, %s118
      %p120 = scmp.eq.s32.totalorder %s56, 0
      %p121 = por %p119, %p120
      %s122 = ssub.s32 %s58, %s65
      %p123 = scmp.eq.s32.totalorder %s122, 0
      %s125 = sadd.s32 %s124, 1
      %s126 = scalar_select %p123, %s124, %s125
      %p129 = pneg %p123
      %p130 = scmp.eq.s32.totalorder %s50, 11
      %p131 = por %p129, %p130
      %p132 = scmp.ne.s32.totalorder %s124, %s127
      %p133 = scmp.eq.s32.totalorder %s50, 0
      %p134 = por %p132, %p133
      %p135 = scmp.ne.s32.totalorder %s124, %s127
      %p136 = scmp.eq.s32.totalorder %s55, 11
      %p137 = por %p135, %p136
      %p138 = scmp.ne.s32.totalorder %s127, %s128
      %p139 = scmp.eq.s32.totalorder %s55, 0
      %p140 = por %p138, %p139
      %p141 = scmp.ne.s32.totalorder %s127, %s128
      %p142 = scmp.eq.s32.totalorder %s56, 11
      %p143 = por %p141, %p142
      %p145 = scmp.ne.s32.totalorder %s128, %s144
      %p146 = scmp.eq.s32.totalorder %s56, 0
      %p147 = por %p145, %p146
      %s148 = ssub.s32 %s58, %s65
      %p149 = scmp.eq.s32.totalorder %s148, 0
      %s151 = sadd.s32 %s150, 1
      %s152 = scalar_select %p149, %s150, %s151
      %p155 = pneg %p149
      %p156 = scmp.eq.s32.totalorder %s50, 11
      %p157 = por %p155, %p156
      %p158 = scmp.ne.s32.totalorder %s150, %s153
      %p159 = scmp.eq.s32.totalorder %s50, 0
      %p160 = por %p158, %p159
      %p161 = scmp.ne.s32.totalorder %s150, %s153
      %p162 = scmp.eq.s32.totalorder %s55, 11
      %p163 = por %p161, %p162
      %p164 = scmp.ne.s32.totalorder %s153, %s154
      %p165 = scmp.eq.s32.totalorder %s55, 0
      %p166 = por %p164, %p165
      %p167 = scmp.ne.s32.totalorder %s153, %s154
      %p168 = scmp.eq.s32.totalorder %s56, 11
      %p169 = por %p167, %p168
      %p171 = scmp.ne.s32.totalorder %s154, %s170
      %p172 = scmp.eq.s32.totalorder %s56, 0
      %p173 = por %p171, %p172
      %s174 = ssub.s32 %s58, %s65
      %p175 = scmp.eq.s32.totalorder %s174, 0
      %s177 = sadd.s32 %s176, 1
      %s178 = scalar_select %p175, %s176, %s177
      %p181 = pneg %p175
      %p182 = scmp.eq.s32.totalorder %s50, 11
      %p183 = por %p181, %p182
      %p184 = scmp.ne.s32.totalorder %s176, %s179
      %p185 = scmp.eq.s32.totalorder %s50, 0
      %p186 = por %p184, %p185
      %p187 = scmp.ne.s32.totalorder %s176, %s179
      %p188 = scmp.eq.s32.totalorder %s55, 11
      %p189 = por %p187, %p188
      %p190 = scmp.ne.s32.totalorder %s179, %s180
      %p191 = scmp.eq.s32.totalorder %s55, 0
      %p192 = por %p190, %p191
      %p193 = scmp.ne.s32.totalorder %s179, %s180
      %p194 = scmp.eq.s32.totalorder %s56, 11
      %p195 = por %p193, %p194
      %p197 = scmp.ne.s32.totalorder %s180, %s196
      %p198 = scmp.eq.s32.totalorder %s56, 0
      %p199 = por %p197, %p198
      %s200 = ssub.s32 %s58, %s65
      %p201 = scmp.eq.s32.totalorder %s200, 0
      %s203 = sadd.s32 %s202, 1
      %s204 = scalar_select %p201, %s202, %s203
      %p207 = pneg %p201
      %p208 = scmp.eq.s32.totalorder %s50, 11
      %p209 = por %p207, %p208
      %p210 = scmp.ne.s32.totalorder %s202, %s205
      %p211 = scmp.eq.s32.totalorder %s50, 0
      %p212 = por %p210, %p211
      %p213 = scmp.ne.s32.totalorder %s202, %s205
      %p214 = scmp.eq.s32.totalorder %s55, 11
      %p215 = por %p213, %p214
      %p216 = scmp.ne.s32.totalorder %s205, %s206
      %p217 = scmp.eq.s32.totalorder %s55, 0
      %p218 = por %p216, %p217
      %p219 = scmp.ne.s32.totalorder %s205, %s206
      %p220 = scmp.eq.s32.totalorder %s56, 11
      %p221 = por %p219, %p220
      %p223 = scmp.ne.s32.totalorder %s206, %s222
      %p224 = scmp.eq.s32.totalorder %s56, 0
      %p225 = por %p223, %p224
      %s226 = ssub.s32 %s58, %s65
      %p227 = scmp.eq.s32.totalorder %s226, 0
      %s229 = sadd.s32 %s228, 1
      %s230 = scalar_select %p227, %s228, %s229
      %p233 = pneg %p227
      %p234 = scmp.eq.s32.totalorder %s50, 11
      %p235 = por %p233, %p234
      %p236 = scmp.ne.s32.totalorder %s228, %s231
      %p237 = scmp.eq.s32.totalorder %s50, 0
      %p238 = por %p236, %p237
      %p239 = scmp.ne.s32.totalorder %s228, %s231
      %p240 = scmp.eq.s32.totalorder %s55, 11
      %p241 = por %p239, %p240
      %p242 = scmp.ne.s32.totalorder %s231, %s232
      %p243 = scmp.eq.s32.totalorder %s55, 0
      %p244 = por %p242, %p243
      %p245 = scmp.ne.s32.totalorder %s231, %s232
      %p246 = scmp.eq.s32.totalorder %s56, 11
      %p247 = por %p245, %p246
      %p249 = scmp.ne.s32.totalorder %s232, %s248
      %p250 = scmp.eq.s32.totalorder %s56, 0
      %p251 = por %p249, %p250
      %s252 = ssub.s32 %s58, %s65
      %p253 = scmp.eq.s32.totalorder %s252, 0
      %s255 = sadd.s32 %s254, 1
      %s256 = scalar_select %p253, %s254, %s255
      %p259 = pneg %p253
      %p260 = scmp.eq.s32.totalorder %s50, 11
      %p261 = por %p259, %p260
      %p262 = scmp.ne.s32.totalorder %s254, %s257
      %p263 = scmp.eq.s32.totalorder %s50, 0
      %p264 = por %p262, %p263
      %p265 = scmp.ne.s32.totalorder %s254, %s257
      %p266 = scmp.eq.s32.totalorder %s55, 11
      %p267 = por %p265, %p266
      %p268 = scmp.ne.s32.totalorder %s257, %s258
      %p269 = scmp.eq.s32.totalorder %s55, 0
      %p270 = por %p268, %p269
      %p271 = scmp.ne.s32.totalorder %s257, %s258
      %p272 = scmp.eq.s32.totalorder %s56, 11
      %p273 = por %p271, %p272
      %p275 = scmp.ne.s32.totalorder %s258, %s274
      %p276 = scmp.eq.s32.totalorder %s56, 0
      %p277 = por %p275, %p276
      %s278 = ssub.s32 %s58, %s65
      %p279 = scmp.eq.s32.totalorder %s278, 0
      %s281 = sadd.s32 %s280, 1
      %s282 = scalar_select %p279, %s280, %s281
      %p285 = pneg %p279
      %p286 = scmp.eq.s32.totalorder %s50, 11
      %p287 = por %p285, %p286
      %p288 = scmp.ne.s32.totalorder %s280, %s283
      %p289 = scmp.eq.s32.totalorder %s50, 0
      %p290 = por %p288, %p289
      %p291 = scmp.ne.s32.totalorder %s280, %s283
      %p292 = scmp.eq.s32.totalorder %s55, 11
      %p293 = por %p291, %p292
      %p294 = scmp.ne.s32.totalorder %s283, %s284
      %p295 = scmp.eq.s32.totalorder %s55, 0
      %p296 = por %p294, %p295
      %p297 = scmp.ne.s32.totalorder %s283, %s284
      %p298 = scmp.eq.s32.totalorder %s56, 11
      %p299 = por %p297, %p298
      %p301 = scmp.ne.s32.totalorder %s284, %s300
      %p302 = scmp.eq.s32.totalorder %s56, 0
      %p303 = por %p301, %p302
      %s304 = ssub.s32 %s58, %s65
      %p305 = scmp.eq.s32.totalorder %s304, 0
      %s307 = sadd.s32 %s306, 1
      %s308 = scalar_select %p305, %s306, %s307
      %p311 = pneg %p305
      %p312 = scmp.eq.s32.totalorder %s50, 11
      %p313 = por %p311, %p312
      %p314 = scmp.ne.s32.totalorder %s306, %s309
      %p315 = scmp.eq.s32.totalorder %s50, 0
      %p316 = por %p314, %p315
      %p317 = scmp.ne.s32.totalorder %s306, %s309
      %p318 = scmp.eq.s32.totalorder %s55, 11
      %p319 = por %p317, %p318
      %p320 = scmp.ne.s32.totalorder %s309, %s310
      %p321 = scmp.eq.s32.totalorder %s55, 0
      %p322 = por %p320, %p321
      %p323 = scmp.ne.s32.totalorder %s309, %s310
      %p324 = scmp.eq.s32.totalorder %s56, 11
      %p325 = por %p323, %p324
      %p327 = scmp.ne.s32.totalorder %s310, %s326
      %p328 = scmp.eq.s32.totalorder %s56, 0
      %p329 = por %p327, %p328
      %s330 = ssub.s32 %s58, %s65
      %p331 = scmp.eq.s32.totalorder %s330, 0
      %s333 = sadd.s32 %s332, 1
      %s334 = scalar_select %p331, %s332, %s333
      %p337 = pneg %p331
      %p338 = scmp.eq.s32.totalorder %s50, 11
      %p339 = por %p337, %p338
      %p340 = scmp.ne.s32.totalorder %s332, %s335
      %p341 = scmp.eq.s32.totalorder %s50, 0
      %p342 = por %p340, %p341
      %p343 = scmp.ne.s32.totalorder %s332, %s335
      %p344 = scmp.eq.s32.totalorder %s55, 11
      %p345 = por %p343, %p344
      %p346 = scmp.ne.s32.totalorder %s335, %s336
      %p347 = scmp.eq.s32.totalorder %s55, 0
      %p348 = por %p346, %p347
      %p349 = scmp.ne.s32.totalorder %s335, %s336
      %p350 = scmp.eq.s32.totalorder %s56, 11
      %p351 = por %p349, %p350
      %p353 = scmp.ne.s32.totalorder %s336, %s352
      %p354 = scmp.eq.s32.totalorder %s56, 0
      %p355 = por %p353, %p354
      %s356 = ssub.s32 %s58, %s65
      %p357 = scmp.eq.s32.totalorder %s356, 0
      %s359 = sadd.s32 %s358, 1
      %s360 = scalar_select %p357, %s358, %s359
      %p363 = pneg %p357
      %p364 = scmp.eq.s32.totalorder %s50, 11
      %p365 = por %p363, %p364
      %p366 = scmp.ne.s32.totalorder %s358, %s361
      %p367 = scmp.eq.s32.totalorder %s50, 0
      %p368 = por %p366, %p367
      %p369 = scmp.ne.s32.totalorder %s358, %s361
      %p370 = scmp.eq.s32.totalorder %s55, 11
      %p371 = por %p369, %p370
      %p372 = scmp.ne.s32.totalorder %s361, %s362
      %p373 = scmp.eq.s32.totalorder %s55, 0
      %p374 = por %p372, %p373
      %p375 = scmp.ne.s32.totalorder %s361, %s362
      %p376 = scmp.eq.s32.totalorder %s56, 11
      %p377 = por %p375, %p376
      %p379 = scmp.ne.s32.totalorder %s362, %s378
      %p380 = scmp.eq.s32.totalorder %s56, 0
      %p381 = por %p379, %p380
      %s382 = ssub.s32 %s58, %s65
      %p383 = scmp.eq.s32.totalorder %s382, 0
      %s385 = sadd.s32 %s384, 1
      %s386 = scalar_select %p383, %s384, %s385
      %p389 = pneg %p383
      %p390 = scmp.eq.s32.totalorder %s50, 11
      %p391 = por %p389, %p390
      %p392 = scmp.ne.s32.totalorder %s384, %s387
      %p393 = scmp.eq.s32.totalorder %s50, 0
      %p394 = por %p392, %p393
      %p395 = scmp.ne.s32.totalorder %s384, %s387
      %p396 = scmp.eq.s32.totalorder %s55, 11
      %p397 = por %p395, %p396
      %p398 = scmp.ne.s32.totalorder %s387, %s388
      %p399 = scmp.eq.s32.totalorder %s55, 0
      %p400 = por %p398, %p399
      %p401 = scmp.ne.s32.totalorder %s387, %s388
      %p402 = scmp.eq.s32.totalorder %s56, 11
      %p403 = por %p401, %p402
      %p405 = scmp.ne.s32.totalorder %s388, %s404
      %p406 = scmp.eq.s32.totalorder %s56, 0
      %p407 = por %p405, %p406
      %s408 = ssub.s32 %s58, %s65
      %p409 = scmp.eq.s32.totalorder %s408, 0
      %s411 = sadd.s32 %s410, 1
      %s412 = scalar_select %p409, %s410, %s411
      %p415 = pneg %p409
      %p416 = scmp.eq.s32.totalorder %s50, 11
      %p417 = por %p415, %p416
      %p418 = scmp.ne.s32.totalorder %s410, %s413
      %p419 = scmp.eq.s32.totalorder %s50, 0
      %p420 = por %p418, %p419
      %p421 = scmp.ne.s32.totalorder %s410, %s413
      %p422 = scmp.eq.s32.totalorder %s55, 11
      %p423 = por %p421, %p422
      %p424 = scmp.ne.s32.totalorder %s413, %s414
      %p425 = scmp.eq.s32.totalorder %s55, 0
      %p426 = por %p424, %p425
      %p427 = scmp.ne.s32.totalorder %s413, %s414
      %p428 = scmp.eq.s32.totalorder %s56, 11
      %p429 = por %p427, %p428
      %p431 = scmp.ne.s32.totalorder %s414, %s430
      %p432 = scmp.eq.s32.totalorder %s56, 0
      %p433 = por %p431, %p432
      %s435 = sadd.s32 %s434, 1
      %p438 = scmp.eq.s32.totalorder %s50, 11
      %p439 = scmp.ne.s32.totalorder %s434, %s436
      %p440 = scmp.eq.s32.totalorder %s50, 0
      %p441 = por %p439, %p440
      %p442 = scmp.ne.s32.totalorder %s434, %s436
      %p443 = scmp.eq.s32.totalorder %s55, 11
      %p444 = por %p442, %p443
      %p445 = scmp.ne.s32.totalorder %s436, %s437
      %p446 = scmp.eq.s32.totalorder %s55, 0
      %p447 = por %p445, %p446
      %p448 = scmp.ne.s32.totalorder %s436, %s437
      %p449 = scmp.eq.s32.totalorder %s56, 11
      %p450 = por %p448, %p449
      %p452 = scmp.ne.s32.totalorder %s437, %s451
      %p453 = scmp.eq.s32.totalorder %s56, 0
      %p454 = por %p452, %p453
      %s456 = sadd.s32 %s455, 1
      %p459 = scmp.eq.s32.totalorder %s50, 11
      %p460 = scmp.ne.s32.totalorder %s455, %s457
      %p461 = scmp.eq.s32.totalorder %s50, 0
      %p462 = por %p460, %p461
      %p463 = scmp.ne.s32.totalorder %s455, %s457
      %p464 = scmp.eq.s32.totalorder %s55, 11
      %p465 = por %p463, %p464
      %p466 = scmp.ne.s32.totalorder %s457, %s458
      %p467 = scmp.eq.s32.totalorder %s55, 0
      %p468 = por %p466, %p467
      %p469 = scmp.ne.s32.totalorder %s457, %s458
      %p470 = scmp.eq.s32.totalorder %s56, 11
      %p471 = por %p469, %p470
      %p473 = scmp.ne.s32.totalorder %s458, %s472
      %p474 = scmp.eq.s32.totalorder %s56, 0
      %p475 = por %p473, %p474
      %s476 = ssub.s32 %s57, %s69
      %p477 = scmp.eq.s32.totalorder %s476, 0
      %s479 = sadd.s32 %s478, 1
      %s480 = scalar_select %p477, %s478, %s479
      %p483 = pneg %p477
      %p484 = scmp.eq.s32.totalorder %s50, 11
      %p485 = por %p483, %p484
      %p486 = scmp.ne.s32.totalorder %s478, %s481
      %p487 = scmp.eq.s32.totalorder %s50, 0
      %p488 = por %p486, %p487
      %p489 = scmp.ne.s32.totalorder %s478, %s481
      %p490 = scmp.eq.s32.totalorder %s55, 11
      %p491 = por %p489, %p490
      %p492 = scmp.ne.s32.totalorder %s481, %s482
      %p493 = scmp.eq.s32.totalorder %s55, 0
      %p494 = por %p492, %p493
      %p495 = scmp.ne.s32.totalorder %s481, %s482
      %p496 = scmp.eq.s32.totalorder %s56, 11
      %p497 = por %p495, %p496
      %p499 = scmp.ne.s32.totalorder %s482, %s498
      %p500 = scmp.eq.s32.totalorder %s56, 0
      %p501 = por %p499, %p500
      %p502 = scmp.le.s32.totalorder 1, %s50
      %p503 = scmp.lt.s32.totalorder %s50, 13
      %p504 = pnand %p502, %p503
      %p505 = pneg %p504
      // Predicated region
      $region9: #{tpu_custom_call.1} parent=5 // pred_check
        _
      $region10: #{tpu_custom_call.1} parent=5 // pred_check_branch
        %507 = sbr.rel (%p504) target = $region12
      $region11: #{tpu_custom_call.1} parent=5 // pred_region
        %s508 = ssub.s32 %s50, 1
        // Predicated region
        $region13: #{tpu_custom_call.1} parent=11 // pred_check
          %p509 = pneg %p447
        $region14: #{tpu_custom_call.1} parent=11 // pred_check_branch
          %511 = sbr.rel (%p509) target = $region16
        $region15: #{tpu_custom_call.1} parent=11 // pred_region
          %s513 = ssub.s32 48, 48
          %514 = vsyncadd [#allocation25], %s513
          %s516 = sshll.u32 [#allocation26], 4
          %s517 = int_to_ptr.vmem [resolvable:$true] %s516
          %519 = dma.hbm_to_vmem [thread:$0]  %s14, 48, %s517, [#allocation25]
        $region16: #{tpu_custom_call.1} parent=11 // pred_fallthru
          _
        // Predicated region
        $region17: #{tpu_custom_call.1} parent=11 // pred_check
          %p520 = pneg %p468
        $region18: #{tpu_custom_call.1} parent=11 // pred_check_branch
          %522 = sbr.rel (%p520) target = $region20
        $region19: #{tpu_custom_call.1} parent=11 // pred_region
          %s524 = ssub.s32 48, 48
          %525 = vsyncadd [#allocation28], %s524
          %s527 = sshll.u32 [#allocation27], 4
          %s528 = int_to_ptr.vmem [resolvable:$true] %s527
          %530 = dma.hbm_to_vmem [thread:$0]  %s15, 48, %s528, [#allocation28]
        $region20: #{tpu_custom_call.1} parent=11 // pred_fallthru
          _
      $region12: #{tpu_custom_call.1} parent=5 // pred_fallthru
        _
      %p531 = scmp.lt.s32.totalorder %s50, 12
      // Predicated region
      $region21: #{tpu_custom_call.1} parent=5 // pred_check
        %p532 = pneg %p531
      $region22: #{tpu_custom_call.1} parent=5 // pred_check_branch
        %534 = sbr.rel (%p532) target = $region24
      $region23: #{tpu_custom_call.1} parent=5 // pred_region
        // Predicated region
        $region25: #{tpu_custom_call.1} parent=23 // pred_check
          %p535 = pneg %p82
        $region26: #{tpu_custom_call.1} parent=23 // pred_check_branch
          %537 = sbr.rel (%p535) target = $region28
        $region27: #{tpu_custom_call.1} parent=23 // pred_region
          %s538 = sand.u32 %s72, 1
          %s539 = scalar_lea.sflag [#allocation4], %s538
          %s540 = sand.u32 %s72, 1
          %s541 = smul.addr %s540, 24
          %s542 = scalar_lea.vmem [#allocation3], %s541
          %s544 = ssub.s32 384, 384
          %545 = vsyncadd %s539, %s544
          %s546 = smul.addr %s57, 3
          %s547 = smul.addr %s546, 128
          %s548 = scalar_lea.hbm %s0, %s547
          %s550 = sshll.u32 %s542, 4
          %s551 = int_to_ptr.vmem [resolvable:$true] %s550
          %553 = dma.hbm_to_vmem [thread:$0]  %s548, 384, %s551, %s539
        $region28: #{tpu_custom_call.1} parent=23 // pred_fallthru
          _
        // Predicated region
        $region29: #{tpu_custom_call.1} parent=23 // pred_check
          %p554 = pneg %p108
        $region30: #{tpu_custom_call.1} parent=23 // pred_check_branch
          %556 = sbr.rel (%p554) target = $region32
        $region31: #{tpu_custom_call.1} parent=23 // pred_region
          %s557 = sand.u32 %s50, 1
          %s558 = scalar_lea.sflag [#allocation7], %s557
          %s559 = sand.u32 %s98, 1
          %s560 = smul.addr %s559, 3
          %s561 = scalar_lea.vmem [#allocation6], %s560
          %s563 = ssub.s32 48, 48
          %564 = vsyncadd %s558, %s563
          %s565 = smul.addr %s58, 3
          %s566 = smul.addr %s565, 16
          %s567 = scalar_lea.hbm %s1, %s566
          %s569 = sshll.u32 %s561, 4
          %s570 = int_to_ptr.vmem [resolvable:$true] %s569
          %572 = dma.hbm_to_vmem [thread:$0]  %s567, 48, %s570, %s558
        $region32: #{tpu_custom_call.1} parent=23 // pred_fallthru
          _
        // Predicated region
        $region33: #{tpu_custom_call.1} parent=23 // pred_check
          %p573 = pneg %p134
        $region34: #{tpu_custom_call.1} parent=23 // pred_check_branch
          %575 = sbr.rel (%p573) target = $region36
        $region35: #{tpu_custom_call.1} parent=23 // pred_region
          %s576 = sand.u32 %s50, 1
          %s577 = scalar_lea.sflag [#allocation7], %s576
          %s578 = sand.u32 %s124, 1
          %s579 = smul.addr %s578, 3
          %s580 = scalar_lea.vmem [#allocation8], %s579
          %s582 = ssub.s32 48, 48
          %583 = vsyncadd %s577, %s582
          %s584 = smul.addr %s58, 3
          %s585 = smul.addr %s584, 16
          %s586 = scalar_lea.hbm %s2, %s585
          %s588 = sshll.u32 %s580, 4
          %s589 = int_to_ptr.vmem [resolvable:$true] %s588
          %591 = dma.hbm_to_vmem [thread:$0]  %s586, 48, %s589, %s577
        $region36: #{tpu_custom_call.1} parent=23 // pred_fallthru
          _
        // Predicated region
        $region37: #{tpu_custom_call.1} parent=23 // pred_check
          %p592 = pneg %p160
        $region38: #{tpu_custom_call.1} parent=23 // pred_check_branch
          %594 = sbr.rel (%p592) target = $region40
        $region39: #{tpu_custom_call.1} parent=23 // pred_region
          %s595 = sand.u32 %s50, 1
          %s596 = scalar_lea.sflag [#allocation10], %s595
          %s597 = sand.u32 %s150, 1
          %s598 = smul.addr %s597, 576
          %s599 = scalar_lea.vmem [#allocation9], %s598
          %s601 = ssub.s32 9216, 9216
          %602 = vsyncadd %s596, %s601
          %s603 = smul.addr %s58, 144
          %s604 = smul.addr %s603, 64
          %s605 = scalar_lea.hbm %s3, %s604
          %s606 = sshll.u32 %s599, 4
          %s607 = int_to_ptr.vmem [resolvable:$true] %s606
          %612 = dma.hbm_to_vmem [thread:$0]  %s605, 9216, %s607, %s596, 192, 192, 12
        $region40: #{tpu_custom_call.1} parent=23 // pred_fallthru
          _
        // Predicated region
        $region41: #{tpu_custom_call.1} parent=23 // pred_check
          %p613 = pneg %p186
        $region42: #{tpu_custom_call.1} parent=23 // pred_check_branch
          %615 = sbr.rel (%p613) target = $region44
        $region43: #{tpu_custom_call.1} parent=23 // pred_region
          %s616 = sand.u32 %s50, 1
          %s617 = scalar_lea.sflag [#allocation10], %s616
          %s618 = sand.u32 %s176, 1
          %s619 = smul.addr %s618, 576
          %s620 = scalar_lea.vmem [#allocation11], %s619
          %s622 = ssub.s32 9216, 9216
          %623 = vsyncadd %s617, %s622
          %s624 = smul.addr %s58, 144
          %s625 = smul.addr %s624, 64
          %s626 = scalar_lea.hbm %s4, %s625
          %s627 = sshll.u32 %s620, 4
          %s628 = int_to_ptr.vmem [resolvable:$true] %s627
          %633 = dma.hbm_to_vmem [thread:$0]  %s626, 9216, %s628, %s617, 192, 192, 12
        $region44: #{tpu_custom_call.1} parent=23 // pred_fallthru
          _
        // Predicated region
        $region45: #{tpu_custom_call.1} parent=23 // pred_check
          %p634 = pneg %p212
        $region46: #{tpu_custom_call.1} parent=23 // pred_check_branch
          %636 = sbr.rel (%p634) target = $region48
        $region47: #{tpu_custom_call.1} parent=23 // pred_region
          %s637 = sand.u32 %s50, 1
          %s638 = scalar_lea.sflag [#allocation13], %s637
          %s639 = sand.u32 %s202, 1
          %s640 = smul.addr %s639, 576
          %s641 = scalar_lea.vmem [#allocation12], %s640
          %s643 = ssub.s32 9216, 9216
          %644 = vsyncadd %s638, %s643
          %s645 = smul.addr %s58, 144
          %s646 = smul.addr %s645, 64
          %s647 = scalar_lea.hbm %s5, %s646
          %s648 = sshll.u32 %s641, 4
          %s649 = int_to_ptr.vmem [resolvable:$true] %s648
          %654 = dma.hbm_to_vmem [thread:$0]  %s647, 9216, %s649, %s638, 192, 192, 12
        $region48: #{tpu_custom_call.1} parent=23 // pred_fallthru
          _
        // Predicated region
        $region49: #{tpu_custom_call.1} parent=23 // pred_check
          %p655 = pneg %p238
        $region50: #{tpu_custom_call.1} parent=23 // pred_check_branch
          %657 = sbr.rel (%p655) target = $region52
        $region51: #{tpu_custom_call.1} parent=23 // pred_region
          %s658 = sand.u32 %s50, 1
          %s659 = scalar_lea.sflag [#allocation13], %s658
          %s660 = sand.u32 %s228, 1
          %s661 = smul.addr %s660, 576
          %s662 = scalar_lea.vmem [#allocation14], %s661
          %s664 = ssub.s32 9216, 9216
          %665 = vsyncadd %s659, %s664
          %s666 = smul.addr %s58, 144
          %s667 = smul.addr %s666, 64
          %s668 = scalar_lea.hbm %s6, %s667
          %s669 = sshll.u32 %s662, 4
          %s670 = int_to_ptr.vmem [resolvable:$true] %s669
          %675 = dma.hbm_to_vmem [thread:$0]  %s668, 9216, %s670, %s659, 192, 192, 12
        $region52: #{tpu_custom_call.1} parent=23 // pred_fallthru
          _
        // Predicated region
        $region53: #{tpu_custom_call.1} parent=23 // pred_check
          %p676 = pneg %p264
        $region54: #{tpu_custom_call.1} parent=23 // pred_check_branch
          %678 = sbr.rel (%p676) target = $region56
        $region55: #{tpu_custom_call.1} parent=23 // pred_region
          %s679 = sand.u32 %s50, 1
          %s680 = scalar_lea.sflag [#allocation16], %s679
          %s681 = sand.u32 %s254, 1
          %s682 = smul.addr %s681, 3
          %s683 = scalar_lea.vmem [#allocation15], %s682
          %s685 = ssub.s32 48, 48
          %686 = vsyncadd %s680, %s685
          %s687 = smul.addr %s58, 3
          %s688 = smul.addr %s687, 16
          %s689 = scalar_lea.hbm %s7, %s688
          %s691 = sshll.u32 %s683, 4
          %s692 = int_to_ptr.vmem [resolvable:$true] %s691
          %694 = dma.hbm_to_vmem [thread:$0]  %s689, 48, %s692, %s680
        $region56: #{tpu_custom_call.1} parent=23 // pred_fallthru
          _
        // Predicated region
        $region57: #{tpu_custom_call.1} parent=23 // pred_check
          %p695 = pneg %p290
        $region58: #{tpu_custom_call.1} parent=23 // pred_check_branch
          %697 = sbr.rel (%p695) target = $region60
        $region59: #{tpu_custom_call.1} parent=23 // pred_region
          %s698 = sand.u32 %s50, 1
          %s699 = scalar_lea.sflag [#allocation16], %s698
          %s700 = sand.u32 %s280, 1
          %s701 = smul.addr %s700, 3
          %s702 = scalar_lea.vmem [#allocation17], %s701
          %s704 = ssub.s32 48, 48
          %705 = vsyncadd %s699, %s704
          %s706 = smul.addr %s58, 3
          %s707 = smul.addr %s706, 16
          %s708 = scalar_lea.hbm %s8, %s707
          %s710 = sshll.u32 %s702, 4
          %s711 = int_to_ptr.vmem [resolvable:$true] %s710
          %713 = dma.hbm_to_vmem [thread:$0]  %s708, 48, %s711, %s699
        $region60: #{tpu_custom_call.1} parent=23 // pred_fallthru
          _
        // Predicated region
        $region61: #{tpu_custom_call.1} parent=23 // pred_check
          %p714 = pneg %p316
        $region62: #{tpu_custom_call.1} parent=23 // pred_check_branch
          %716 = sbr.rel (%p714) target = $region64
        $region63: #{tpu_custom_call.1} parent=23 // pred_region
          %s717 = sand.u32 %s50, 1
          %s718 = scalar_lea.sflag [#allocation19], %s717
          %s719 = sand.u32 %s306, 1
          %s720 = smul.addr %s719, 3
          %s721 = scalar_lea.vmem [#allocation18], %s720
          %s723 = ssub.s32 48, 48
          %724 = vsyncadd %s718, %s723
          %s725 = smul.addr %s58, 3
          %s726 = smul.addr %s725, 16
          %s727 = scalar_lea.hbm %s9, %s726
          %s729 = sshll.u32 %s721, 4
          %s730 = int_to_ptr.vmem [resolvable:$true] %s729
          %732 = dma.hbm_to_vmem [thread:$0]  %s727, 48, %s730, %s718
        $region64: #{tpu_custom_call.1} parent=23 // pred_fallthru
          _
        // Predicated region
        $region65: #{tpu_custom_call.1} parent=23 // pred_check
          %p733 = pneg %p342
        $region66: #{tpu_custom_call.1} parent=23 // pred_check_branch
          %735 = sbr.rel (%p733) target = $region68
        $region67: #{tpu_custom_call.1} parent=23 // pred_region
          %s736 = sand.u32 %s50, 1
          %s737 = scalar_lea.sflag [#allocation19], %s736
          %s738 = sand.u32 %s332, 1
          %s739 = smul.addr %s738, 2304
          %s740 = scalar_lea.vmem [#allocation20], %s739
          %s742 = ssub.s32 36864, 36864
          %743 = vsyncadd %s737, %s742
          %s744 = smul.addr %s58, 576
          %s745 = smul.addr %s744, 64
          %s746 = scalar_lea.hbm %s10, %s745
          %s747 = sshll.u32 %s740, 4
          %s748 = int_to_ptr.vmem [resolvable:$true] %s747
          %753 = dma.hbm_to_vmem [thread:$0]  %s746, 36864, %s748, %s737, 768, 768, 48
        $region68: #{tpu_custom_call.1} parent=23 // pred_fallthru
          _
        // Predicated region
        $region69: #{tpu_custom_call.1} parent=23 // pred_check
          %p754 = pneg %p368
        $region70: #{tpu_custom_call.1} parent=23 // pred_check_branch
          %756 = sbr.rel (%p754) target = $region72
        $region71: #{tpu_custom_call.1} parent=23 // pred_region
          %s757 = sand.u32 %s50, 1
          %s758 = scalar_lea.sflag [#allocation22], %s757
          %s759 = sand.u32 %s358, 1
          %s760 = smul.addr %s759, 12
          %s761 = scalar_lea.vmem [#allocation21], %s760
          %s763 = ssub.s32 192, 192
          %764 = vsyncadd %s758, %s763
          %s765 = smul.addr %s58, 12
          %s766 = smul.addr %s765, 16
          %s767 = scalar_lea.hbm %s11, %s766
          %s769 = sshll.u32 %s761, 4
          %s770 = int_to_ptr.vmem [resolvable:$true] %s769
          %772 = dma.hbm_to_vmem [thread:$0]  %s767, 192, %s770, %s758
        $region72: #{tpu_custom_call.1} parent=23 // pred_fallthru
          _
        // Predicated region
        $region73: #{tpu_custom_call.1} parent=23 // pred_check
          %p773 = pneg %p394
        $region74: #{tpu_custom_call.1} parent=23 // pred_check_branch
          %775 = sbr.rel (%p773) target = $region76
        $region75: #{tpu_custom_call.1} parent=23 // pred_region
          %s776 = sand.u32 %s50, 1
          %s777 = scalar_lea.sflag [#allocation22], %s776
          %s778 = sand.u32 %s384, 1
          %s779 = smul.addr %s778, 2304
          %s780 = scalar_lea.vmem [#allocation23], %s779
          %s782 = ssub.s32 36864, 36864
          %783 = vsyncadd %s777, %s782
          %s784 = smul.addr %s58, 576
          %s785 = smul.addr %s784, 64
          %s786 = scalar_lea.hbm %s12, %s785
          %s787 = sshll.u32 %s780, 4
          %s788 = int_to_ptr.vmem [resolvable:$true] %s787
          %793 = dma.hbm_to_vmem [thread:$0]  %s786, 36864, %s788, %s777, 192, 192, 12
        $region76: #{tpu_custom_call.1} parent=23 // pred_fallthru
          _
        // Predicated region
        $region77: #{tpu_custom_call.1} parent=23 // pred_check
          %p794 = pneg %p420
        $region78: #{tpu_custom_call.1} parent=23 // pred_check_branch
          %796 = sbr.rel (%p794) target = $region80
        $region79: #{tpu_custom_call.1} parent=23 // pred_region
          %s797 = sand.u32 %s50, 1
          %s798 = scalar_lea.sflag [#allocation25], %s797
          %s799 = sand.u32 %s410, 1
          %s800 = smul.addr %s799, 3
          %s801 = scalar_lea.vmem [#allocation24], %s800
          %s803 = ssub.s32 48, 48
          %804 = vsyncadd %s798, %s803
          %s805 = smul.addr %s58, 3
          %s806 = smul.addr %s805, 16
          %s807 = scalar_lea.hbm %s13, %s806
          %s809 = sshll.u32 %s801, 4
          %s810 = int_to_ptr.vmem [resolvable:$true] %s809
          %812 = dma.hbm_to_vmem [thread:$0]  %s807, 48, %s810, %s798
        $region80: #{tpu_custom_call.1} parent=23 // pred_fallthru
          _
      $region24: #{tpu_custom_call.1} parent=5 // pred_fallthru
        _
      %p813 = scmp.le.s32.totalorder 1, %s50
      %p814 = scmp.lt.s32.totalorder %s50, 13
      %p815 = pnand %p813, %p814
      %p816 = pneg %p815
      // Predicated region
      $region81: #{tpu_custom_call.1} parent=5 // pred_check
        _
      $region82: #{tpu_custom_call.1} parent=5 // pred_check_branch
        %818 = sbr.rel (%p815) target = $region84
      $region83: #{tpu_custom_call.1} parent=5 // pred_region
        %s819 = ssub.s32 %s50, 1
        %s820 = sand.u32 %s75, 1
        %s821 = scalar_lea.sflag [#allocation4], %s820
        %s822 = sand.u32 %s75, 1
        %s823 = smul.addr %s822, 24
        %s824 = scalar_lea.vmem [#allocation3], %s823
        // Predicated region
        $region85: #{tpu_custom_call.1} parent=83 // pred_check
          %p825 = pneg %p88
        $region86: #{tpu_custom_call.1} parent=83 // pred_check_branch
          %827 = sbr.rel (%p825) target = $region88
        $region87: #{tpu_custom_call.1} parent=83 // pred_region
          %828 = dma.done %s821, 384
        $region88: #{tpu_custom_call.1} parent=83 // pred_fallthru
          _
        %s829 = sand.u32 %s55, 1
        %s830 = scalar_lea.sflag [#allocation7], %s829
        %s831 = sand.u32 %s101, 1
        %s832 = smul.addr %s831, 3
        %s833 = scalar_lea.vmem [#allocation6], %s832
        // Predicated region
        $region89: #{tpu_custom_call.1} parent=83 // pred_check
          %p834 = pneg %p114
        $region90: #{tpu_custom_call.1} parent=83 // pred_check_branch
          %836 = sbr.rel (%p834) target = $region92
        $region91: #{tpu_custom_call.1} parent=83 // pred_region
          %837 = dma.done %s830, 48
        $region92: #{tpu_custom_call.1} parent=83 // pred_fallthru
          _
        %s838 = sand.u32 %s55, 1
        %s839 = scalar_lea.sflag [#allocation7], %s838
        %s840 = sand.u32 %s127, 1
        %s841 = smul.addr %s840, 3
        %s842 = scalar_lea.vmem [#allocation8], %s841
        // Predicated region
        $region93: #{tpu_custom_call.1} parent=83 // pred_check
          %p843 = pneg %p140
        $region94: #{tpu_custom_call.1} parent=83 // pred_check_branch
          %845 = sbr.rel (%p843) target = $region96
        $region95: #{tpu_custom_call.1} parent=83 // pred_region
          %846 = dma.done %s839, 48
        $region96: #{tpu_custom_call.1} parent=83 // pred_fallthru
          _
        %s847 = sand.u32 %s55, 1
        %s848 = scalar_lea.sflag [#allocation10], %s847
        %s849 = sand.u32 %s153, 1
        %s850 = smul.addr %s849, 576
        %s851 = scalar_lea.vmem [#allocation9], %s850
        // Predicated region
        $region97: #{tpu_custom_call.1} parent=83 // pred_check
          %p852 = pneg %p166
        $region98: #{tpu_custom_call.1} parent=83 // pred_check_branch
          %854 = sbr.rel (%p852) target = $region100
        $region99: #{tpu_custom_call.1} parent=83 // pred_region
          %855 = dma.done %s848, 9216
        $region100: #{tpu_custom_call.1} parent=83 // pred_fallthru
          _
        %s856 = sand.u32 %s55, 1
        %s857 = scalar_lea.sflag [#allocation10], %s856
        %s858 = sand.u32 %s179, 1
        %s859 = smul.addr %s858, 576
        %s860 = scalar_lea.vmem [#allocation11], %s859
        // Predicated region
        $region101: #{tpu_custom_call.1} parent=83 // pred_check
          %p861 = pneg %p192
        $region102: #{tpu_custom_call.1} parent=83 // pred_check_branch
          %863 = sbr.rel (%p861) target = $region104
        $region103: #{tpu_custom_call.1} parent=83 // pred_region
          %864 = dma.done %s857, 9216
        $region104: #{tpu_custom_call.1} parent=83 // pred_fallthru
          _
        %s865 = sand.u32 %s55, 1
        %s866 = scalar_lea.sflag [#allocation13], %s865
        %s867 = sand.u32 %s205, 1
        %s868 = smul.addr %s867, 576
        %s869 = scalar_lea.vmem [#allocation12], %s868
        // Predicated region
        $region105: #{tpu_custom_call.1} parent=83 // pred_check
          %p870 = pneg %p218
        $region106: #{tpu_custom_call.1} parent=83 // pred_check_branch
          %872 = sbr.rel (%p870) target = $region108
        $region107: #{tpu_custom_call.1} parent=83 // pred_region
          %873 = dma.done %s866, 9216
        $region108: #{tpu_custom_call.1} parent=83 // pred_fallthru
          _
        %s874 = sand.u32 %s55, 1
        %s875 = scalar_lea.sflag [#allocation13], %s874
        %s876 = sand.u32 %s231, 1
        %s877 = smul.addr %s876, 576
        %s878 = scalar_lea.vmem [#allocation14], %s877
        // Predicated region
        $region109: #{tpu_custom_call.1} parent=83 // pred_check
          %p879 = pneg %p244
        $region110: #{tpu_custom_call.1} parent=83 // pred_check_branch
          %881 = sbr.rel (%p879) target = $region112
        $region111: #{tpu_custom_call.1} parent=83 // pred_region
          %882 = dma.done %s875, 9216
        $region112: #{tpu_custom_call.1} parent=83 // pred_fallthru
          _
        %s883 = sand.u32 %s55, 1
        %s884 = scalar_lea.sflag [#allocation16], %s883
        %s885 = sand.u32 %s257, 1
        %s886 = smul.addr %s885, 3
        %s887 = scalar_lea.vmem [#allocation15], %s886
        // Predicated region
        $region113: #{tpu_custom_call.1} parent=83 // pred_check
          %p888 = pneg %p270
        $region114: #{tpu_custom_call.1} parent=83 // pred_check_branch
          %890 = sbr.rel (%p888) target = $region116
        $region115: #{tpu_custom_call.1} parent=83 // pred_region
          %891 = dma.done %s884, 48
        $region116: #{tpu_custom_call.1} parent=83 // pred_fallthru
          _
        %s892 = sand.u32 %s55, 1
        %s893 = scalar_lea.sflag [#allocation16], %s892
        %s894 = sand.u32 %s283, 1
        %s895 = smul.addr %s894, 3
        %s896 = scalar_lea.vmem [#allocation17], %s895
        // Predicated region
        $region117: #{tpu_custom_call.1} parent=83 // pred_check
          %p897 = pneg %p296
        $region118: #{tpu_custom_call.1} parent=83 // pred_check_branch
          %899 = sbr.rel (%p897) target = $region120
        $region119: #{tpu_custom_call.1} parent=83 // pred_region
          %900 = dma.done %s893, 48
        $region120: #{tpu_custom_call.1} parent=83 // pred_fallthru
          _
        %s901 = sand.u32 %s55, 1
        %s902 = scalar_lea.sflag [#allocation19], %s901
        %s903 = sand.u32 %s309, 1
        %s904 = smul.addr %s903, 3
        %s905 = scalar_lea.vmem [#allocation18], %s904
        // Predicated region
        $region121: #{tpu_custom_call.1} parent=83 // pred_check
          %p906 = pneg %p322
        $region122: #{tpu_custom_call.1} parent=83 // pred_check_branch
          %908 = sbr.rel (%p906) target = $region124
        $region123: #{tpu_custom_call.1} parent=83 // pred_region
          %909 = dma.done %s902, 48
        $region124: #{tpu_custom_call.1} parent=83 // pred_fallthru
          _
        %s910 = sand.u32 %s55, 1
        %s911 = scalar_lea.sflag [#allocation19], %s910
        %s912 = sand.u32 %s335, 1
        %s913 = smul.addr %s912, 2304
        %s914 = scalar_lea.vmem [#allocation20], %s913
        // Predicated region
        $region125: #{tpu_custom_call.1} parent=83 // pred_check
          %p915 = pneg %p348
        $region126: #{tpu_custom_call.1} parent=83 // pred_check_branch
          %917 = sbr.rel (%p915) target = $region128
        $region127: #{tpu_custom_call.1} parent=83 // pred_region
          %918 = dma.done %s911, 36864
        $region128: #{tpu_custom_call.1} parent=83 // pred_fallthru
          _
        %s919 = sand.u32 %s55, 1
        %s920 = scalar_lea.sflag [#allocation22], %s919
        %s921 = sand.u32 %s361, 1
        %s922 = smul.addr %s921, 12
        %s923 = scalar_lea.vmem [#allocation21], %s922
        // Predicated region
        $region129: #{tpu_custom_call.1} parent=83 // pred_check
          %p924 = pneg %p374
        $region130: #{tpu_custom_call.1} parent=83 // pred_check_branch
          %926 = sbr.rel (%p924) target = $region132
        $region131: #{tpu_custom_call.1} parent=83 // pred_region
          %927 = dma.done %s920, 192
        $region132: #{tpu_custom_call.1} parent=83 // pred_fallthru
          _
        %s928 = sand.u32 %s55, 1
        %s929 = scalar_lea.sflag [#allocation22], %s928
        %s930 = sand.u32 %s387, 1
        %s931 = smul.addr %s930, 2304
        %s932 = scalar_lea.vmem [#allocation23], %s931
        // Predicated region
        $region133: #{tpu_custom_call.1} parent=83 // pred_check
          %p933 = pneg %p400
        $region134: #{tpu_custom_call.1} parent=83 // pred_check_branch
          %935 = sbr.rel (%p933) target = $region136
        $region135: #{tpu_custom_call.1} parent=83 // pred_region
          %936 = dma.done %s929, 36864
        $region136: #{tpu_custom_call.1} parent=83 // pred_fallthru
          _
        %s937 = sand.u32 %s55, 1
        %s938 = scalar_lea.sflag [#allocation25], %s937
        %s939 = sand.u32 %s413, 1
        %s940 = smul.addr %s939, 3
        %s941 = scalar_lea.vmem [#allocation24], %s940
        // Predicated region
        $region137: #{tpu_custom_call.1} parent=83 // pred_check
          %p942 = pneg %p426
        $region138: #{tpu_custom_call.1} parent=83 // pred_check_branch
          %944 = sbr.rel (%p942) target = $region140
        $region139: #{tpu_custom_call.1} parent=83 // pred_region
          %945 = dma.done %s938, 48
        $region140: #{tpu_custom_call.1} parent=83 // pred_fallthru
          _
        // Predicated region
        $region141: #{tpu_custom_call.1} parent=83 // pred_check
          %p946 = pneg %p447
        $region142: #{tpu_custom_call.1} parent=83 // pred_check_branch
          %948 = sbr.rel (%p946) target = $region144
        $region143: #{tpu_custom_call.1} parent=83 // pred_region
          %949 = dma.done [#allocation25], 48
        $region144: #{tpu_custom_call.1} parent=83 // pred_fallthru
          _
        // Predicated region
        $region145: #{tpu_custom_call.1} parent=83 // pred_check
          %p950 = pneg %p468
        $region146: #{tpu_custom_call.1} parent=83 // pred_check_branch
          %952 = sbr.rel (%p950) target = $region148
        $region147: #{tpu_custom_call.1} parent=83 // pred_region
          %953 = dma.done [#allocation28], 48
        $region148: #{tpu_custom_call.1} parent=83 // pred_fallthru
          _
        %s954 = sand.u32 %s75, 1
        %s955 = scalar_lea.sflag [#allocation4], %s954
        %s956 = sand.u32 %s75, 1
        %s957 = smul.addr %s956, 24
        %s958 = scalar_lea.vmem [#allocation3], %s957
        %p959 = pneg %p88
        %p960 = pneg %p85
        %s961 = sand.u32 %s55, 1
        %s962 = scalar_lea.sflag [#allocation7], %s961
        %s963 = sand.u32 %s101, 1
        %s964 = smul.addr %s963, 3
        %s965 = scalar_lea.vmem [#allocation6], %s964
        %p966 = pneg %p114
        %p967 = pneg %p111
        %s968 = sand.u32 %s55, 1
        %s969 = scalar_lea.sflag [#allocation7], %s968
        %s970 = sand.u32 %s127, 1
        %s971 = smul.addr %s970, 3
        %s972 = scalar_lea.vmem [#allocation8], %s971
        %p973 = pneg %p140
        %p974 = pneg %p137
        %s975 = sand.u32 %s55, 1
        %s976 = scalar_lea.sflag [#allocation10], %s975
        %s977 = sand.u32 %s153, 1
        %s978 = smul.addr %s977, 576
        %s979 = scalar_lea.vmem [#allocation9], %s978
        %p980 = pneg %p166
        %p981 = pneg %p163
        %s982 = sand.u32 %s55, 1
        %s983 = scalar_lea.sflag [#allocation10], %s982
        %s984 = sand.u32 %s179, 1
        %s985 = smul.addr %s984, 576
        %s986 = scalar_lea.vmem [#allocation11], %s985
        %p987 = pneg %p192
        %p988 = pneg %p189
        %s989 = sand.u32 %s55, 1
        %s990 = scalar_lea.sflag [#allocation13], %s989
        %s991 = sand.u32 %s205, 1
        %s992 = smul.addr %s991, 576
        %s993 = scalar_lea.vmem [#allocation12], %s992
        %p994 = pneg %p218
        %p995 = pneg %p215
        %s996 = sand.u32 %s55, 1
        %s997 = scalar_lea.sflag [#allocation13], %s996
        %s998 = sand.u32 %s231, 1
        %s999 = smul.addr %s998, 576
        %s1000 = scalar_lea.vmem [#allocation14], %s999
        %p1001 = pneg %p244
        %p1002 = pneg %p241
        %s1003 = sand.u32 %s55, 1
        %s1004 = scalar_lea.sflag [#allocation16], %s1003
        %s1005 = sand.u32 %s257, 1
        %s1006 = smul.addr %s1005, 3
        %s1007 = scalar_lea.vmem [#allocation15], %s1006
        %p1008 = pneg %p270
        %p1009 = pneg %p267
        %s1010 = sand.u32 %s55, 1
        %s1011 = scalar_lea.sflag [#allocation16], %s1010
        %s1012 = sand.u32 %s283, 1
        %s1013 = smul.addr %s1012, 3
        %s1014 = scalar_lea.vmem [#allocation17], %s1013
        %p1015 = pneg %p296
        %p1016 = pneg %p293
        %s1017 = sand.u32 %s55, 1
        %s1018 = scalar_lea.sflag [#allocation19], %s1017
        %s1019 = sand.u32 %s309, 1
        %s1020 = smul.addr %s1019, 3
        %s1021 = scalar_lea.vmem [#allocation18], %s1020
        %p1022 = pneg %p322
        %p1023 = pneg %p319
        %s1024 = sand.u32 %s55, 1
        %s1025 = scalar_lea.sflag [#allocation19], %s1024
        %s1026 = sand.u32 %s335, 1
        %s1027 = smul.addr %s1026, 2304
        %s1028 = scalar_lea.vmem [#allocation20], %s1027
        %p1029 = pneg %p348
        %p1030 = pneg %p345
        %s1031 = sand.u32 %s55, 1
        %s1032 = scalar_lea.sflag [#allocation22], %s1031
        %s1033 = sand.u32 %s361, 1
        %s1034 = smul.addr %s1033, 12
        %s1035 = scalar_lea.vmem [#allocation21], %s1034
        %p1036 = pneg %p374
        %p1037 = pneg %p371
        %s1038 = sand.u32 %s55, 1
        %s1039 = scalar_lea.sflag [#allocation22], %s1038
        %s1040 = sand.u32 %s387, 1
        %s1041 = smul.addr %s1040, 2304
        %s1042 = scalar_lea.vmem [#allocation23], %s1041
        %p1043 = pneg %p400
        %p1044 = pneg %p397
        %s1045 = sand.u32 %s55, 1
        %s1046 = scalar_lea.sflag [#allocation25], %s1045
        %s1047 = sand.u32 %s413, 1
        %s1048 = smul.addr %s1047, 3
        %s1049 = scalar_lea.vmem [#allocation24], %s1048
        %p1050 = pneg %p426
        %p1051 = pneg %p423
        %p1052 = pneg %p447
        %p1053 = pneg %p444
        %p1054 = pneg %p468
        %p1055 = pneg %p465
        %p1056 = pneg %p494
        %p1057 = pneg %p491
        %s1058 = sand.u32 %s481, 1
        %s1059 = scalar_lea.sflag [#allocation5], %s1058
        %s1060 = sand.u32 %s481, 1
        %s1061 = smul.addr %s1060, 12
        %s1062 = scalar_lea.vmem [#allocation29], %s1061
        %p1064 = scmp.eq.s32.totalorder %s60, 0
        // Predicated region
        $region149: #{tpu_custom_call.1} parent=83 // pred_check
          %p1065 = pneg %p1064
        $region150: #{tpu_custom_call.1} parent=83 // pred_check_branch
          %1067 = sbr.rel (%p1065) target = $region152
        $region151: #{tpu_custom_call.1} parent=83 // pred_region
          %v1068 = vld [vmem:[%s824] sm:$0xff]
          %v1069 = vld [vmem:[%s824 + $0x8] sm:$0xff]
          %v1070 = vld [vmem:[%s824 + $0x10] sm:$0xff]
          %1071 = vst [vmem:[#allocation2] sm:$0xff] %v1068
          %1072 = vst [vmem:[#allocation2 + $0x8] sm:$0xff] %v1069
          %1073 = vst [vmem:[#allocation2 + $0x10] sm:$0xff] %v1070
        $region152: #{tpu_custom_call.1} parent=83 // pred_fallthru
          _
        %v1074 = vld [vmem:[#allocation2] sm:$0xff]
        %v1075 = vld [vmem:[#allocation2 + $0x8] sm:$0xff]
        %v1076 = vld [vmem:[#allocation2 + $0x10] sm:$0xff]
        %v1077 = vld [vmem:[%s833] sm:$0x7]
        %v1078 = vld [vmem:[%s842] sm:$0x7]
        %v1079 = vadd.f32 %v1074, %v1075
        %v1080 = vadd.f32 %v1079, %v1076
        %1081 = vadd.xlane.f32.xlu0 %v1080
        %v1082 = vpop.xlane.xlu0 %1081
        %v1083 = vrcp.pop 384.0
        %v1084 = vmul.f32 %v1082, %v1083
        %v1085 = vsub.f32 %v1074, %v1084
        %v1086 = vsub.f32 %v1075, %v1084
        %v1087 = vsub.f32 %v1076, %v1084
        %v1088 = vmul.f32 %v1085, %v1085
        %v1089 = vmul.f32 %v1086, %v1086
        %v1090 = vmul.f32 %v1087, %v1087
        %v1091 = vadd.f32 %v1088, %v1089
        %v1092 = vadd.f32 %v1091, %v1090
        %1093 = vadd.xlane.f32.xlu0 %v1092
        %v1094 = vpop.xlane.xlu0 %1093
        %v1095 = vmul.f32 %v1094, %v1083
        %v1096 = vadd.f32 %v1095, 1e-05
        %v1097 = vrsqrt.pop %v1096
        %v1098 = vmul.f32 %v1085, %v1097
        %v1099 = vmul.f32 %v1086, %v1097
        %v1100 = vmul.f32 %v1087, %v1097
        %v1102 = vlaneseq
        %v1103 = vshrl.u32 %v1102, 7
        %v1104 = vsub.s32 0, %v1103
        %v1105 = vrot.slane %v1077, %v1104
        %v1106 = vlaneseq
        %v1107 = vshrl.u32 %v1106, 7
        %v1108 = vsub.s32 1, %v1107
        %v1109 = vrot.slane %v1077, %v1108
        %v1110 = vlaneseq
        %v1111 = vshrl.u32 %v1110, 7
        %v1112 = vsub.s32 2, %v1111
        %v1113 = vrot.slane %v1077, %v1112
        %v1117 = vmul.f32 %v1098, %v1105
        %v1118 = vmul.f32 %v1099, %v1109
        %v1119 = vmul.f32 %v1100, %v1113
        %v1121 = vlaneseq
        %v1122 = vshrl.u32 %v1121, 7
        %v1123 = vsub.s32 0, %v1122
        %v1124 = vrot.slane %v1078, %v1123
        %v1125 = vlaneseq
        %v1126 = vshrl.u32 %v1125, 7
        %v1127 = vsub.s32 1, %v1126
        %v1128 = vrot.slane %v1078, %v1127
        %v1129 = vlaneseq
        %v1130 = vshrl.u32 %v1129, 7
        %v1131 = vsub.s32 2, %v1130
        %v1132 = vrot.slane %v1078, %v1131
        %v1136 = vadd.f32 %v1117, %v1124
        %v1137 = vadd.f32 %v1118, %v1128
        %v1138 = vadd.f32 %v1119, %v1132
        %v1139 = vpack.c.bf16 %v1136, %v1136
        %v1140 = vpack.c.bf16 %v1137, %v1137
        %v1141 = vpack.c.bf16 %v1138, %v1138
        %v1142 = vld [vmem:[%s851] sm:$0xff]
        %v1143 = vld [vmem:[%s851 + $0x8] sm:$0xf]
        %v1144 = vld [vmem:[%s851 + $0xc] sm:$0xff]
        %v1145 = vld [vmem:[%s851 + $0x14] sm:$0xf]
        %v1146 = vld [vmem:[%s851 + $0x18] sm:$0xff]
        %v1147 = vld [vmem:[%s851 + $0x20] sm:$0xf]
        %v1148 = vld [vmem:[%s851 + $0x24] sm:$0xff]
        %v1149 = vld [vmem:[%s851 + $0x2c] sm:$0xf]
        %v1150 = vld [vmem:[%s851 + $0x30] sm:$0xff]
        %v1151 = vld [vmem:[%s851 + $0x38] sm:$0xf]
        %v1152 = vld [vmem:[%s851 + $0x3c] sm:$0xff]
        %v1153 = vld [vmem:[%s851 + $0x44] sm:$0xf]
        %v1154 = vld [vmem:[%s851 + $0x48] sm:$0xff]
        %v1155 = vld [vmem:[%s851 + $0x50] sm:$0xf]
        %v1156 = vld [vmem:[%s851 + $0x54] sm:$0xff]
        %v1157 = vld [vmem:[%s851 + $0x5c] sm:$0xf]
        %v1158 = vld [vmem:[%s851 + $0x60] sm:$0xff]
        %v1159 = vld [vmem:[%s851 + $0x68] sm:$0xf]
        %v1160 = vld [vmem:[%s851 + $0x6c] sm:$0xff]
        %v1161 = vld [vmem:[%s851 + $0x74] sm:$0xf]
        %v1162 = vld [vmem:[%s851 + $0x78] sm:$0xff]
        %v1163 = vld [vmem:[%s851 + $0x80] sm:$0xf]
        %v1164 = vld [vmem:[%s851 + $0x84] sm:$0xff]
        %v1165 = vld [vmem:[%s851 + $0x8c] sm:$0xf]
        %v1166 = vld [vmem:[%s851 + $0x90] sm:$0xff]
        %v1167 = vld [vmem:[%s851 + $0x98] sm:$0xf]
        %v1168 = vld [vmem:[%s851 + $0x9c] sm:$0xff]
        %v1169 = vld [vmem:[%s851 + $0xa4] sm:$0xf]
        %v1170 = vld [vmem:[%s851 + $0xa8] sm:$0xff]
        %v1171 = vld [vmem:[%s851 + $0xb0] sm:$0xf]
        %v1172 = vld [vmem:[%s851 + $0xb4] sm:$0xff]
        %v1173 = vld [vmem:[%s851 + $0xbc] sm:$0xf]
        %v1174 = vld [vmem:[%s851 + $0xc0] sm:$0xff]
        %v1175 = vld [vmem:[%s851 + $0xc8] sm:$0xf]
        %v1176 = vld [vmem:[%s851 + $0xcc] sm:$0xff]
        %v1177 = vld [vmem:[%s851 + $0xd4] sm:$0xf]
        %v1178 = vld [vmem:[%s851 + $0xd8] sm:$0xff]
        %v1179 = vld [vmem:[%s851 + $0xe0] sm:$0xf]
        %v1180 = vld [vmem:[%s851 + $0xe4] sm:$0xff]
        %v1181 = vld [vmem:[%s851 + $0xec] sm:$0xf]
        %v1182 = vld [vmem:[%s851 + $0xf0] sm:$0xff]
        %v1183 = vld [vmem:[%s851 + $0xf8] sm:$0xf]
        %v1184 = vld [vmem:[%s851 + $0xfc] sm:$0xff]
        %v1185 = vld [vmem:[%s851 + $0x104] sm:$0xf]
        %v1186 = vld [vmem:[%s851 + $0x108] sm:$0xff]
        %v1187 = vld [vmem:[%s851 + $0x110] sm:$0xf]
        %v1188 = vld [vmem:[%s851 + $0x114] sm:$0xff]
        %v1189 = vld [vmem:[%s851 + $0x11c] sm:$0xf]
        %v1190 = vld [vmem:[%s851 + $0x120] sm:$0xff]
        %v1191 = vld [vmem:[%s851 + $0x128] sm:$0xf]
        %v1192 = vld [vmem:[%s851 + $0x12c] sm:$0xff]
        %v1193 = vld [vmem:[%s851 + $0x134] sm:$0xf]
        %v1194 = vld [vmem:[%s851 + $0x138] sm:$0xff]
        %v1195 = vld [vmem:[%s851 + $0x140] sm:$0xf]
        %v1196 = vld [vmem:[%s851 + $0x144] sm:$0xff]
        %v1197 = vld [vmem:[%s851 + $0x14c] sm:$0xf]
        %v1198 = vld [vmem:[%s851 + $0x150] sm:$0xff]
        %v1199 = vld [vmem:[%s851 + $0x158] sm:$0xf]
        %v1200 = vld [vmem:[%s851 + $0x15c] sm:$0xff]
        %v1201 = vld [vmem:[%s851 + $0x164] sm:$0xf]
        %v1202 = vld [vmem:[%s851 + $0x168] sm:$0xff]
        %v1203 = vld [vmem:[%s851 + $0x170] sm:$0xf]
        %v1204 = vld [vmem:[%s851 + $0x174] sm:$0xff]
        %v1205 = vld [vmem:[%s851 + $0x17c] sm:$0xf]
        %v1206 = vld [vmem:[%s851 + $0x180] sm:$0xff]
        %v1207 = vld [vmem:[%s851 + $0x188] sm:$0xf]
        %v1208 = vld [vmem:[%s851 + $0x18c] sm:$0xff]
        %v1209 = vld [vmem:[%s851 + $0x194] sm:$0xf]
        %v1210 = vld [vmem:[%s851 + $0x198] sm:$0xff]
        %v1211 = vld [vmem:[%s851 + $0x1a0] sm:$0xf]
        %v1212 = vld [vmem:[%s851 + $0x1a4] sm:$0xff]
        %v1213 = vld [vmem:[%s851 + $0x1ac] sm:$0xf]
        %v1214 = vld [vmem:[%s851 + $0x1b0] sm:$0xff]
        %v1215 = vld [vmem:[%s851 + $0x1b8] sm:$0xf]
        %v1216 = vld [vmem:[%s851 + $0x1bc] sm:$0xff]
        %v1217 = vld [vmem:[%s851 + $0x1c4] sm:$0xf]
        %v1218 = vld [vmem:[%s851 + $0x1c8] sm:$0xff]
        %v1219 = vld [vmem:[%s851 + $0x1d0] sm:$0xf]
        %v1220 = vld [vmem:[%s851 + $0x1d4] sm:$0xff]
        %v1221 = vld [vmem:[%s851 + $0x1dc] sm:$0xf]
        %v1222 = vld [vmem:[%s851 + $0x1e0] sm:$0xff]
        %v1223 = vld [vmem:[%s851 + $0x1e8] sm:$0xf]
        %v1224 = vld [vmem:[%s851 + $0x1ec] sm:$0xff]
        %v1225 = vld [vmem:[%s851 + $0x1f4] sm:$0xf]
        %v1226 = vld [vmem:[%s851 + $0x1f8] sm:$0xff]
        %v1227 = vld [vmem:[%s851 + $0x200] sm:$0xf]
        %v1228 = vld [vmem:[%s851 + $0x204] sm:$0xff]
        %v1229 = vld [vmem:[%s851 + $0x20c] sm:$0xf]
        %v1230 = vld [vmem:[%s851 + $0x210] sm:$0xff]
        %v1231 = vld [vmem:[%s851 + $0x218] sm:$0xf]
        %v1232 = vld [vmem:[%s851 + $0x21c] sm:$0xff]
        %v1233 = vld [vmem:[%s851 + $0x224] sm:$0xf]
        %v1234 = vld [vmem:[%s851 + $0x228] sm:$0xff]
        %v1235 = vld [vmem:[%s851 + $0x230] sm:$0xf]
        %v1236 = vld [vmem:[%s851 + $0x234] sm:$0xff]
        %v1237 = vld [vmem:[%s851 + $0x23c] sm:$0xf]
        %v1334 = vunpack.c.l.b16 %v1142
        %v1335 = vunpack.c.h.b16 %v1142
        %v1336 = vunpack.c.l.b16 %v1143
        %v1337 = vunpack.c.l.b16 %v1144
        %v1338 = vunpack.c.h.b16 %v1144
        %v1339 = vunpack.c.l.b16 %v1145
        %v1340 = vunpack.c.l.b16 %v1146
        %v1341 = vunpack.c.h.b16 %v1146
        %v1342 = vunpack.c.l.b16 %v1147
        %v1343 = vunpack.c.l.b16 %v1148
        %v1344 = vunpack.c.h.b16 %v1148
        %v1345 = vunpack.c.l.b16 %v1149
        %v1346 = vunpack.c.l.b16 %v1150
        %v1347 = vunpack.c.h.b16 %v1150
        %v1348 = vunpack.c.l.b16 %v1151
        %v1349 = vunpack.c.l.b16 %v1152
        %v1350 = vunpack.c.h.b16 %v1152
        %v1351 = vunpack.c.l.b16 %v1153
        %v1352 = vunpack.c.l.b16 %v1154
        %v1353 = vunpack.c.h.b16 %v1154
        %v1354 = vunpack.c.l.b16 %v1155
        %v1355 = vunpack.c.l.b16 %v1156
        %v1356 = vunpack.c.h.b16 %v1156
        %v1357 = vunpack.c.l.b16 %v1157
        %v1358 = vunpack.c.l.b16 %v1158
        %v1359 = vunpack.c.h.b16 %v1158
        %v1360 = vunpack.c.l.b16 %v1159
        %v1361 = vunpack.c.l.b16 %v1160
        %v1362 = vunpack.c.h.b16 %v1160
        %v1363 = vunpack.c.l.b16 %v1161
        %v1364 = vunpack.c.l.b16 %v1162
        %v1365 = vunpack.c.h.b16 %v1162
        %v1366 = vunpack.c.l.b16 %v1163
        %v1367 = vunpack.c.l.b16 %v1164
        %v1368 = vunpack.c.h.b16 %v1164
        %v1369 = vunpack.c.l.b16 %v1165
        %v1370 = vunpack.c.l.b16 %v1166
        %v1371 = vunpack.c.h.b16 %v1166
        %v1372 = vunpack.c.l.b16 %v1167
        %v1373 = vunpack.c.l.b16 %v1168
        %v1374 = vunpack.c.h.b16 %v1168
        %v1375 = vunpack.c.l.b16 %v1169
        %v1376 = vunpack.c.l.b16 %v1170
        %v1377 = vunpack.c.h.b16 %v1170
        %v1378 = vunpack.c.l.b16 %v1171
        %v1379 = vunpack.c.l.b16 %v1172
        %v1380 = vunpack.c.h.b16 %v1172
        %v1381 = vunpack.c.l.b16 %v1173
        %v1382 = vunpack.c.l.b16 %v1174
        %v1383 = vunpack.c.h.b16 %v1174
        %v1384 = vunpack.c.l.b16 %v1175
        %v1385 = vunpack.c.l.b16 %v1176
        %v1386 = vunpack.c.h.b16 %v1176
        %v1387 = vunpack.c.l.b16 %v1177
        %v1388 = vunpack.c.l.b16 %v1178
        %v1389 = vunpack.c.h.b16 %v1178
        %v1390 = vunpack.c.l.b16 %v1179
        %v1391 = vunpack.c.l.b16 %v1180
        %v1392 = vunpack.c.h.b16 %v1180
        %v1393 = vunpack.c.l.b16 %v1181
        %v1394 = vunpack.c.l.b16 %v1182
        %v1395 = vunpack.c.h.b16 %v1182
        %v1396 = vunpack.c.l.b16 %v1183
        %v1397 = vunpack.c.l.b16 %v1184
        %v1398 = vunpack.c.h.b16 %v1184
        %v1399 = vunpack.c.l.b16 %v1185
        %v1400 = vunpack.c.l.b16 %v1186
        %v1401 = vunpack.c.h.b16 %v1186
        %v1402 = vunpack.c.l.b16 %v1187
        %v1403 = vunpack.c.l.b16 %v1188
        %v1404 = vunpack.c.h.b16 %v1188
        %v1405 = vunpack.c.l.b16 %v1189
        %v1406 = vunpack.c.l.b16 %v1190
        %v1407 = vunpack.c.h.b16 %v1190
        %v1408 = vunpack.c.l.b16 %v1191
        %v1409 = vunpack.c.l.b16 %v1192
        %v1410 = vunpack.c.h.b16 %v1192
        %v1411 = vunpack.c.l.b16 %v1193
        %v1412 = vunpack.c.l.b16 %v1194
        %v1413 = vunpack.c.h.b16 %v1194
        %v1414 = vunpack.c.l.b16 %v1195
        %v1415 = vunpack.c.l.b16 %v1196
        %v1416 = vunpack.c.h.b16 %v1196
        %v1417 = vunpack.c.l.b16 %v1197
        %v1418 = vunpack.c.l.b16 %v1198
        %v1419 = vunpack.c.h.b16 %v1198
        %v1420 = vunpack.c.l.b16 %v1199
        %v1421 = vunpack.c.l.b16 %v1200
        %v1422 = vunpack.c.h.b16 %v1200
        %v1423 = vunpack.c.l.b16 %v1201
        %v1424 = vunpack.c.l.b16 %v1202
        %v1425 = vunpack.c.h.b16 %v1202
        %v1426 = vunpack.c.l.b16 %v1203
        %v1427 = vunpack.c.l.b16 %v1204
        %v1428 = vunpack.c.h.b16 %v1204
        %v1429 = vunpack.c.l.b16 %v1205
        %v1430 = vunpack.c.l.b16 %v1206
        %v1431 = vunpack.c.h.b16 %v1206
        %v1432 = vunpack.c.l.b16 %v1207
        %v1433 = vunpack.c.l.b16 %v1208
        %v1434 = vunpack.c.h.b16 %v1208
        %v1435 = vunpack.c.l.b16 %v1209
        %v1436 = vunpack.c.l.b16 %v1210
        %v1437 = vunpack.c.h.b16 %v1210
        %v1438 = vunpack.c.l.b16 %v1211
        %v1439 = vunpack.c.l.b16 %v1212
        %v1440 = vunpack.c.h.b16 %v1212
        %v1441 = vunpack.c.l.b16 %v1213
        %v1442 = vunpack.c.l.b16 %v1214
        %v1443 = vunpack.c.h.b16 %v1214
        %v1444 = vunpack.c.l.b16 %v1215
        %v1445 = vunpack.c.l.b16 %v1216
        %v1446 = vunpack.c.h.b16 %v1216
        %v1447 = vunpack.c.l.b16 %v1217
        %v1448 = vunpack.c.l.b16 %v1218
        %v1449 = vunpack.c.h.b16 %v1218
        %v1450 = vunpack.c.l.b16 %v1219
        %v1451 = vunpack.c.l.b16 %v1220
        %v1452 = vunpack.c.h.b16 %v1220
        %v1453 = vunpack.c.l.b16 %v1221
        %v1454 = vunpack.c.l.b16 %v1222
        %v1455 = vunpack.c.h.b16 %v1222
        %v1456 = vunpack.c.l.b16 %v1223
        %v1457 = vunpack.c.l.b16 %v1224
        %v1458 = vunpack.c.h.b16 %v1224
        %v1459 = vunpack.c.l.b16 %v1225
        %v1460 = vunpack.c.l.b16 %v1226
        %v1461 = vunpack.c.h.b16 %v1226
        %v1462 = vunpack.c.l.b16 %v1227
        %v1463 = vunpack.c.l.b16 %v1228
        %v1464 = vunpack.c.h.b16 %v1228
        %v1465 = vunpack.c.l.b16 %v1229
        %v1466 = vunpack.c.l.b16 %v1230
        %v1467 = vunpack.c.h.b16 %v1230
        %v1468 = vunpack.c.l.b16 %v1231
        %v1469 = vunpack.c.l.b16 %v1232
        %v1470 = vunpack.c.h.b16 %v1232
        %v1471 = vunpack.c.l.b16 %v1233
        %v1472 = vunpack.c.l.b16 %v1234
        %v1473 = vunpack.c.h.b16 %v1234
        %v1474 = vunpack.c.l.b16 %v1235
        %v1475 = vunpack.c.l.b16 %v1236
        %v1476 = vunpack.c.h.b16 %v1236
        %v1477 = vunpack.c.l.b16 %v1237
        %v1478 = vpack.c.b16 %v1337, %v1334
        %v1479 = vpack.c.b16 %v1338, %v1335
        %v1480 = vpack.c.b16 %v1339, %v1336
        %v1481 = vpack.c.b16 %v1343, %v1340
        %v1482 = vpack.c.b16 %v1344, %v1341
        %v1483 = vpack.c.b16 %v1345, %v1342
        %v1484 = vpack.c.b16 %v1349, %v1346
        %v1485 = vpack.c.b16 %v1350, %v1347
        %v1486 = vpack.c.b16 %v1351, %v1348
        %v1487 = vpack.c.b16 %v1355, %v1352
        %v1488 = vpack.c.b16 %v1356, %v1353
        %v1489 = vpack.c.b16 %v1357, %v1354
        %v1490 = vpack.c.b16 %v1361, %v1358
        %v1491 = vpack.c.b16 %v1362, %v1359
        %v1492 = vpack.c.b16 %v1363, %v1360
        %v1493 = vpack.c.b16 %v1367, %v1364
        %v1494 = vpack.c.b16 %v1368, %v1365
        %v1495 = vpack.c.b16 %v1369, %v1366
        %v1496 = vpack.c.b16 %v1373, %v1370
        %v1497 = vpack.c.b16 %v1374, %v1371
        %v1498 = vpack.c.b16 %v1375, %v1372
        %v1499 = vpack.c.b16 %v1379, %v1376
        %v1500 = vpack.c.b16 %v1380, %v1377
        %v1501 = vpack.c.b16 %v1381, %v1378
        %v1502 = vpack.c.b16 %v1385, %v1382
        %v1503 = vpack.c.b16 %v1386, %v1383
        %v1504 = vpack.c.b16 %v1387, %v1384
        %v1505 = vpack.c.b16 %v1391, %v1388
        %v1506 = vpack.c.b16 %v1392, %v1389
        %v1507 = vpack.c.b16 %v1393, %v1390
        %v1508 = vpack.c.b16 %v1397, %v1394
        %v1509 = vpack.c.b16 %v1398, %v1395
        %v1510 = vpack.c.b16 %v1399, %v1396
        %v1511 = vpack.c.b16 %v1403, %v1400
        %v1512 = vpack.c.b16 %v1404, %v1401
        %v1513 = vpack.c.b16 %v1405, %v1402
        %v1514 = vpack.c.b16 %v1409, %v1406
        %v1515 = vpack.c.b16 %v1410, %v1407
        %v1516 = vpack.c.b16 %v1411, %v1408
        %v1517 = vpack.c.b16 %v1415, %v1412
        %v1518 = vpack.c.b16 %v1416, %v1413
        %v1519 = vpack.c.b16 %v1417, %v1414
        %v1520 = vpack.c.b16 %v1421, %v1418
        %v1521 = vpack.c.b16 %v1422, %v1419
        %v1522 = vpack.c.b16 %v1423, %v1420
        %v1523 = vpack.c.b16 %v1427, %v1424
        %v1524 = vpack.c.b16 %v1428, %v1425
        %v1525 = vpack.c.b16 %v1429, %v1426
        %v1526 = vpack.c.b16 %v1433, %v1430
        %v1527 = vpack.c.b16 %v1434, %v1431
        %v1528 = vpack.c.b16 %v1435, %v1432
        %v1529 = vpack.c.b16 %v1439, %v1436
        %v1530 = vpack.c.b16 %v1440, %v1437
        %v1531 = vpack.c.b16 %v1441, %v1438
        %v1532 = vpack.c.b16 %v1445, %v1442
        %v1533 = vpack.c.b16 %v1446, %v1443
        %v1534 = vpack.c.b16 %v1447, %v1444
        %v1535 = vpack.c.b16 %v1451, %v1448
        %v1536 = vpack.c.b16 %v1452, %v1449
        %v1537 = vpack.c.b16 %v1453, %v1450
        %v1538 = vpack.c.b16 %v1457, %v1454
        %v1539 = vpack.c.b16 %v1458, %v1455
        %v1540 = vpack.c.b16 %v1459, %v1456
        %v1541 = vpack.c.b16 %v1463, %v1460
        %v1542 = vpack.c.b16 %v1464, %v1461
        %v1543 = vpack.c.b16 %v1465, %v1462
        %v1544 = vpack.c.b16 %v1469, %v1466
        %v1545 = vpack.c.b16 %v1470, %v1467
        %v1546 = vpack.c.b16 %v1471, %v1468
        %v1547 = vpack.c.b16 %v1475, %v1472
        %v1548 = vpack.c.b16 %v1476, %v1473
        %v1549 = vpack.c.b16 %v1477, %v1474
        %1622 = vmatprep.subr.bf16.mxu0 %v1479
        %1623 = vmatpush1.bf16.msra.mxu0 %v1478
        %1624 = vmatprep.subr.bf16.mxu0 %v1482
        %1625 = vmatpush1.bf16.msra.mxu0 %v1481
        %1626 = vmatprep.subr.bf16.mxu0 %v1485
        %1627 = vmatpush1.bf16.msra.mxu0 %v1484
        %1628 = vmatprep.subr.bf16.mxu0 %v1488
        %1629 = vmatpush1.bf16.msra.mxu0 %v1487
        %1630 = vmatprep.subr.bf16.mxu0 %v1491
        %1631 = vmatpush1.bf16.msra.mxu0 %v1490
        %1632 = vmatprep.subr.bf16.mxu0 %v1494
        %1633 = vmatpush1.bf16.msra.mxu0 %v1493
        %1634 = vmatprep.subr.bf16.mxu0 %v1497
        %1635 = vmatpush1.bf16.msra.mxu0 %v1496
        %1636 = vmatprep.subr.bf16.mxu0 %v1500
        %1637 = vmatpush1.bf16.msra.mxu0 %v1499
        %1638 = vmatprep.subr.bf16.mxu0 %v1503
        %1639 = vmatpush1.bf16.msra.mxu0 %v1502
        %1640 = vmatprep.subr.bf16.mxu0 %v1506
        %1641 = vmatpush1.bf16.msra.mxu0 %v1505
        %1642 = vmatprep.subr.bf16.mxu0 %v1509
        %1643 = vmatpush1.bf16.msra.mxu0 %v1508
        %1644 = vmatprep.subr.bf16.mxu0 %v1512
        %1645 = vmatpush1.bf16.msra.mxu0 %v1511
        %1646 = vmatprep.subr.bf16.mxu0 %v1515
        %1647 = vmatpush1.bf16.msra.mxu0 %v1514
        %1648 = vmatprep.subr.bf16.mxu0 %v1518
        %1649 = vmatpush1.bf16.msra.mxu0 %v1517
        %1650 = vmatprep.subr.bf16.mxu0 %v1521
        %1651 = vmatpush1.bf16.msra.mxu0 %v1520
        %1652 = vmatprep.subr.bf16.mxu0 %v1524
        %1653 = vmatpush1.bf16.msra.mxu0 %v1523
        %1654 = vmatprep.mubr.bf16.mxu0 %v1140
        %1655 = vmatmul.mubr.bf16.gmra.mrb[0].mxu0 %v1139
        %v1656 = vpop.f32.mrb[0].mxu0
        %v1657 = vadd.f32 0.0, %v1656
        %v1658 = vpop.f32.mrb[0].mxu0
        %v1659 = vadd.f32 0.0, %v1658
        %v1660 = vpop.f32.mrb[0].mxu0
        %v1661 = vpop.f32.mrb[0].mxu0
        %1662 = vdwg.mxu0
        %1663 = vmatprep.subr.bf16.mxu0 %v1527
        %1664 = vmatpush1.bf16.msra.mxu0 %v1526
        %1665 = vmatprep.subr.bf16.mxu0 %v1530
        %1666 = vmatpush1.bf16.msra.mxu0 %v1529
        %1667 = vmatprep.subr.bf16.mxu0 %v1533
        %1668 = vmatpush1.bf16.msra.mxu0 %v1532
        %1669 = vmatprep.subr.bf16.mxu0 %v1536
        %1670 = vmatpush1.bf16.msra.mxu0 %v1535
        %1671 = vmatprep.subr.bf16.mxu0 %v1539
        %1672 = vmatpush1.bf16.msra.mxu0 %v1538
        %1673 = vmatprep.subr.bf16.mxu0 %v1542
        %1674 = vmatpush1.bf16.msra.mxu0 %v1541
        %1675 = vmatprep.subr.bf16.mxu0 %v1545
        %1676 = vmatpush1.bf16.msra.mxu0 %v1544
        %1677 = vmatprep.subr.bf16.mxu0 %v1548
        %1678 = vmatpush1.bf16.msra.mxu0 %v1547
        %1679 = vmatprep.subr.bf16.mxu0 0
        %1680 = vmatpush1.bf16.msra.mxu0 0
        %1681 = vmatprep.subr.bf16.mxu0 0
        %1682 = vmatpush1.bf16.msra.mxu0 0
        %1683 = vmatprep.subr.bf16.mxu0 0
        %1684 = vmatpush1.bf16.msra.mxu0 0
        %1685 = vmatprep.subr.bf16.mxu0 0
        %1686 = vmatpush1.bf16.msra.mxu0 0
        %1687 = vmatprep.subr.bf16.mxu0 0
        %1688 = vmatpush1.bf16.msra.mxu0 0
        %1689 = vmatprep.subr.bf16.mxu0 0
        %1690 = vmatpush1.bf16.msra.mxu0 0
        %1691 = vmatprep.subr.bf16.mxu0 0
        %1692 = vmatpush1.bf16.msra.mxu0 0
        %1693 = vmatprep.subr.bf16.mxu0 0
        %1694 = vmatpush1.bf16.msra.mxu0 0
        %1695 = vmatprep.mubr.bf16.mxu0 0
        %1696 = vmatmul.mubr.bf16.gmra.mrb[0].mxu0 %v1141
        %v1697 = vpop.f32.mrb[0].mxu0
        %v1698 = vadd.f32 %v1657, %v1697
        %v1699 = vpop.f32.mrb[0].mxu0
        %v1700 = vadd.f32 %v1659, %v1699
        %v1701 = vpop.f32.mrb[0].mxu0
        %v1702 = vpop.f32.mrb[0].mxu0
        %1703 = vdwg.mxu0
        %1704 = vmatprep.subr.bf16.mxu0 0
        %1705 = vmatpush1.bf16.msra.mxu0 %v1480
        %1706 = vmatprep.subr.bf16.mxu0 0
        %1707 = vmatpush1.bf16.msra.mxu0 %v1483
        %1708 = vmatprep.subr.bf16.mxu0 0
        %1709 = vmatpush1.bf16.msra.mxu0 %v1486
        %1710 = vmatprep.subr.bf16.mxu0 0
        %1711 = vmatpush1.bf16.msra.mxu0 %v1489
        %1712 = vmatprep.subr.bf16.mxu0 0
        %1713 = vmatpush1.bf16.msra.mxu0 %v1492
        %1714 = vmatprep.subr.bf16.mxu0 0
        %1715 = vmatpush1.bf16.msra.mxu0 %v1495
        %1716 = vmatprep.subr.bf16.mxu0 0
        %1717 = vmatpush1.bf16.msra.mxu0 %v1498
        %1718 = vmatprep.subr.bf16.mxu0 0
        %1719 = vmatpush1.bf16.msra.mxu0 %v1501
        %1720 = vmatprep.subr.bf16.mxu0 0
        %1721 = vmatpush1.bf16.msra.mxu0 %v1504
        %1722 = vmatprep.subr.bf16.mxu0 0
        %1723 = vmatpush1.bf16.msra.mxu0 %v1507
        %1724 = vmatprep.subr.bf16.mxu0 0
        %1725 = vmatpush1.bf16.msra.mxu0 %v1510
        %1726 = vmatprep.subr.bf16.mxu0 0
        %1727 = vmatpush1.bf16.msra.mxu0 %v1513
        %1728 = vmatprep.subr.bf16.mxu0 0
        %1729 = vmatpush1.bf16.msra.mxu0 %v1516
        %1730 = vmatprep.subr.bf16.mxu0 0
        %1731 = vmatpush1.bf16.msra.mxu0 %v1519
        %1732 = vmatprep.subr.bf16.mxu0 0
        %1733 = vmatpush1.bf16.msra.mxu0 %v1522
        %1734 = vmatprep.subr.bf16.mxu0 0
        %1735 = vmatpush1.bf16.msra.mxu0 %v1525
        %1736 = vmatprep.mubr.bf16.mxu0 %v1140
        %1737 = vmatmul.mubr.bf16.gmra.mrb[0].mxu0 %v1139
        %v1738 = vpop.f32.mrb[0].mxu0
        %v1739 = vadd.f32 0.0, %v1738
        %v1740 = vpop.f32.mrb[0].mxu0
        %v1741 = vpop.f32.mrb[0].mxu0
        %v1742 = vpop.f32.mrb[0].mxu0
        %1743 = vdwg.mxu0
        %1744 = vmatprep.subr.bf16.mxu0 0
        %1745 = vmatpush1.bf16.msra.mxu0 %v1528
        %1746 = vmatprep.subr.bf16.mxu0 0
        %1747 = vmatpush1.bf16.msra.mxu0 %v1531
        %1748 = vmatprep.subr.bf16.mxu0 0
        %1749 = vmatpush1.bf16.msra.mxu0 %v1534
        %1750 = vmatprep.subr.bf16.mxu0 0
        %1751 = vmatpush1.bf16.msra.mxu0 %v1537
        %1752 = vmatprep.subr.bf16.mxu0 0
        %1753 = vmatpush1.bf16.msra.mxu0 %v1540
        %1754 = vmatprep.subr.bf16.mxu0 0
        %1755 = vmatpush1.bf16.msra.mxu0 %v1543
        %1756 = vmatprep.subr.bf16.mxu0 0
        %1757 = vmatpush1.bf16.msra.mxu0 %v1546
        %1758 = vmatprep.subr.bf16.mxu0 0
        %1759 = vmatpush1.bf16.msra.mxu0 %v1549
        %1760 = vmatprep.subr.bf16.mxu0 0
        %1761 = vmatpush1.bf16.msra.mxu0 0
        %1762 = vmatprep.subr.bf16.mxu0 0
        %1763 = vmatpush1.bf16.msra.mxu0 0
        %1764 = vmatprep.subr.bf16.mxu0 0
        %1765 = vmatpush1.bf16.msra.mxu0 0
        %1766 = vmatprep.subr.bf16.mxu0 0
        %1767 = vmatpush1.bf16.msra.mxu0 0
        %1768 = vmatprep.subr.bf16.mxu0 0
        %1769 = vmatpush1.bf16.msra.mxu0 0
        %1770 = vmatprep.subr.bf16.mxu0 0
        %1771 = vmatpush1.bf16.msra.mxu0 0
        %1772 = vmatprep.subr.bf16.mxu0 0
        %1773 = vmatpush1.bf16.msra.mxu0 0
        %1774 = vmatprep.subr.bf16.mxu0 0
        %1775 = vmatpush1.bf16.msra.mxu0 0
        %1776 = vmatprep.mubr.bf16.mxu0 0
        %1777 = vmatmul.mubr.bf16.gmra.mrb[0].mxu0 %v1141
        %v1778 = vpop.f32.mrb[0].mxu0
        %v1779 = vadd.f32 %v1739, %v1778
        %v1780 = vpop.f32.mrb[0].mxu0
        %v1781 = vpop.f32.mrb[0].mxu0
        %v1782 = vpop.f32.mrb[0].mxu0
        %1783 = vdwg.mxu0
        %v1784 = vld [vmem:[%s860] sm:$0xff]
        %v1785 = vld [vmem:[%s860 + $0x8] sm:$0xf]
        %v1786 = vld [vmem:[%s860 + $0xc] sm:$0xff]
        %v1787 = vld [vmem:[%s860 + $0x14] sm:$0xf]
        %v1788 = vld [vmem:[%s860 + $0x18] sm:$0xff]
        %v1789 = vld [vmem:[%s860 + $0x20] sm:$0xf]
        %v1790 = vld [vmem:[%s860 + $0x24] sm:$0xff]
        %v1791 = vld [vmem:[%s860 + $0x2c] sm:$0xf]
        %v1792 = vld [vmem:[%s860 + $0x30] sm:$0xff]
        %v1793 = vld [vmem:[%s860 + $0x38] sm:$0xf]
        %v1794 = vld [vmem:[%s860 + $0x3c] sm:$0xff]
        %v1795 = vld [vmem:[%s860 + $0x44] sm:$0xf]
        %v1796 = vld [vmem:[%s860 + $0x48] sm:$0xff]
        %v1797 = vld [vmem:[%s860 + $0x50] sm:$0xf]
        %v1798 = vld [vmem:[%s860 + $0x54] sm:$0xff]
        %v1799 = vld [vmem:[%s860 + $0x5c] sm:$0xf]
        %v1800 = vld [vmem:[%s860 + $0x60] sm:$0xff]
        %v1801 = vld [vmem:[%s860 + $0x68] sm:$0xf]
        %v1802 = vld [vmem:[%s860 + $0x6c] sm:$0xff]
        %v1803 = vld [vmem:[%s860 + $0x74] sm:$0xf]
        %v1804 = vld [vmem:[%s860 + $0x78] sm:$0xff]
        %v1805 = vld [vmem:[%s860 + $0x80] sm:$0xf]
        %v1806 = vld [vmem:[%s860 + $0x84] sm:$0xff]
        %v1807 = vld [vmem:[%s860 + $0x8c] sm:$0xf]
        %v1808 = vld [vmem:[%s860 + $0x90] sm:$0xff]
        %v1809 = vld [vmem:[%s860 + $0x98] sm:$0xf]
        %v1810 = vld [vmem:[%s860 + $0x9c] sm:$0xff]
        %v1811 = vld [vmem:[%s860 + $0xa4] sm:$0xf]
        %v1812 = vld [vmem:[%s860 + $0xa8] sm:$0xff]
        %v1813 = vld [vmem:[%s860 + $0xb0] sm:$0xf]
        %v1814 = vld [vmem:[%s860 + $0xb4] sm:$0xff]
        %v1815 = vld [vmem:[%s860 + $0xbc] sm:$0xf]
        %v1816 = vld [vmem:[%s860 + $0xc0] sm:$0xff]
        %v1817 = vld [vmem:[%s860 + $0xc8] sm:$0xf]
        %v1818 = vld [vmem:[%s860 + $0xcc] sm:$0xff]
        %v1819 = vld [vmem:[%s860 + $0xd4] sm:$0xf]
        %v1820 = vld [vmem:[%s860 + $0xd8] sm:$0xff]
        %v1821 = vld [vmem:[%s860 + $0xe0] sm:$0xf]
        %v1822 = vld [vmem:[%s860 + $0xe4] sm:$0xff]
        %v1823 = vld [vmem:[%s860 + $0xec] sm:$0xf]
        %v1824 = vld [vmem:[%s860 + $0xf0] sm:$0xff]
        %v1825 = vld [vmem:[%s860 + $0xf8] sm:$0xf]
        %v1826 = vld [vmem:[%s860 + $0xfc] sm:$0xff]
        %v1827 = vld [vmem:[%s860 + $0x104] sm:$0xf]
        %v1828 = vld [vmem:[%s860 + $0x108] sm:$0xff]
        %v1829 = vld [vmem:[%s860 + $0x110] sm:$0xf]
        %v1830 = vld [vmem:[%s860 + $0x114] sm:$0xff]
        %v1831 = vld [vmem:[%s860 + $0x11c] sm:$0xf]
        %v1832 = vld [vmem:[%s860 + $0x120] sm:$0xff]
        %v1833 = vld [vmem:[%s860 + $0x128] sm:$0xf]
        %v1834 = vld [vmem:[%s860 + $0x12c] sm:$0xff]
        %v1835 = vld [vmem:[%s860 + $0x134] sm:$0xf]
        %v1836 = vld [vmem:[%s860 + $0x138] sm:$0xff]
        %v1837 = vld [vmem:[%s860 + $0x140] sm:$0xf]
        %v1838 = vld [vmem:[%s860 + $0x144] sm:$0xff]
        %v1839 = vld [vmem:[%s860 + $0x14c] sm:$0xf]
        %v1840 = vld [vmem:[%s860 + $0x150] sm:$0xff]
        %v1841 = vld [vmem:[%s860 + $0x158] sm:$0xf]
        %v1842 = vld [vmem:[%s860 + $0x15c] sm:$0xff]
        %v1843 = vld [vmem:[%s860 + $0x164] sm:$0xf]
        %v1844 = vld [vmem:[%s860 + $0x168] sm:$0xff]
        %v1845 = vld [vmem:[%s860 + $0x170] sm:$0xf]
        %v1846 = vld [vmem:[%s860 + $0x174] sm:$0xff]
        %v1847 = vld [vmem:[%s860 + $0x17c] sm:$0xf]
        %v1848 = vld [vmem:[%s860 + $0x180] sm:$0xff]
        %v1849 = vld [vmem:[%s860 + $0x188] sm:$0xf]
        %v1850 = vld [vmem:[%s860 + $0x18c] sm:$0xff]
        %v1851 = vld [vmem:[%s860 + $0x194] sm:$0xf]
        %v1852 = vld [vmem:[%s860 + $0x198] sm:$0xff]
        %v1853 = vld [vmem:[%s860 + $0x1a0] sm:$0xf]
        %v1854 = vld [vmem:[%s860 + $0x1a4] sm:$0xff]
        %v1855 = vld [vmem:[%s860 + $0x1ac] sm:$0xf]
        %v1856 = vld [vmem:[%s860 + $0x1b0] sm:$0xff]
        %v1857 = vld [vmem:[%s860 + $0x1b8] sm:$0xf]
        %v1858 = vld [vmem:[%s860 + $0x1bc] sm:$0xff]
        %v1859 = vld [vmem:[%s860 + $0x1c4] sm:$0xf]
        %v1860 = vld [vmem:[%s860 + $0x1c8] sm:$0xff]
        %v1861 = vld [vmem:[%s860 + $0x1d0] sm:$0xf]
        %v1862 = vld [vmem:[%s860 + $0x1d4] sm:$0xff]
        %v1863 = vld [vmem:[%s860 + $0x1dc] sm:$0xf]
        %v1864 = vld [vmem:[%s860 + $0x1e0] sm:$0xff]
        %v1865 = vld [vmem:[%s860 + $0x1e8] sm:$0xf]
        %v1866 = vld [vmem:[%s860 + $0x1ec] sm:$0xff]
        %v1867 = vld [vmem:[%s860 + $0x1f4] sm:$0xf]
        %v1868 = vld [vmem:[%s860 + $0x1f8] sm:$0xff]
        %v1869 = vld [vmem:[%s860 + $0x200] sm:$0xf]
        %v1870 = vld [vmem:[%s860 + $0x204] sm:$0xff]
        %v1871 = vld [vmem:[%s860 + $0x20c] sm:$0xf]
        %v1872 = vld [vmem:[%s860 + $0x210] sm:$0xff]
        %v1873 = vld [vmem:[%s860 + $0x218] sm:$0xf]
        %v1874 = vld [vmem:[%s860 + $0x21c] sm:$0xff]
        %v1875 = vld [vmem:[%s860 + $0x224] sm:$0xf]
        %v1876 = vld [vmem:[%s860 + $0x228] sm:$0xff]
        %v1877 = vld [vmem:[%s860 + $0x230] sm:$0xf]
        %v1878 = vld [vmem:[%s860 + $0x234] sm:$0xff]
        %v1879 = vld [vmem:[%s860 + $0x23c] sm:$0xf]
        %v1976 = vunpack.c.l.b16 %v1784
        %v1977 = vunpack.c.h.b16 %v1784
        %v1978 = vunpack.c.l.b16 %v1785
        %v1979 = vunpack.c.l.b16 %v1786
        %v1980 = vunpack.c.h.b16 %v1786
        %v1981 = vunpack.c.l.b16 %v1787
        %v1982 = vunpack.c.l.b16 %v1788
        %v1983 = vunpack.c.h.b16 %v1788
        %v1984 = vunpack.c.l.b16 %v1789
        %v1985 = vunpack.c.l.b16 %v1790
        %v1986 = vunpack.c.h.b16 %v1790
        %v1987 = vunpack.c.l.b16 %v1791
        %v1988 = vunpack.c.l.b16 %v1792
        %v1989 = vunpack.c.h.b16 %v1792
        %v1990 = vunpack.c.l.b16 %v1793
        %v1991 = vunpack.c.l.b16 %v1794
        %v1992 = vunpack.c.h.b16 %v1794
        %v1993 = vunpack.c.l.b16 %v1795
        %v1994 = vunpack.c.l.b16 %v1796
        %v1995 = vunpack.c.h.b16 %v1796
        %v1996 = vunpack.c.l.b16 %v1797
        %v1997 = vunpack.c.l.b16 %v1798
        %v1998 = vunpack.c.h.b16 %v1798
        %v1999 = vunpack.c.l.b16 %v1799
        %v2000 = vunpack.c.l.b16 %v1800
        %v2001 = vunpack.c.h.b16 %v1800
        %v2002 = vunpack.c.l.b16 %v1801
        %v2003 = vunpack.c.l.b16 %v1802
        %v2004 = vunpack.c.h.b16 %v1802
        %v2005 = vunpack.c.l.b16 %v1803
        %v2006 = vunpack.c.l.b16 %v1804
        %v2007 = vunpack.c.h.b16 %v1804
        %v2008 = vunpack.c.l.b16 %v1805
        %v2009 = vunpack.c.l.b16 %v1806
        %v2010 = vunpack.c.h.b16 %v1806
        %v2011 = vunpack.c.l.b16 %v1807
        %v2012 = vunpack.c.l.b16 %v1808
        %v2013 = vunpack.c.h.b16 %v1808
        %v2014 = vunpack.c.l.b16 %v1809
        %v2015 = vunpack.c.l.b16 %v1810
        %v2016 = vunpack.c.h.b16 %v1810
        %v2017 = vunpack.c.l.b16 %v1811
        %v2018 = vunpack.c.l.b16 %v1812
        %v2019 = vunpack.c.h.b16 %v1812
        %v2020 = vunpack.c.l.b16 %v1813
        %v2021 = vunpack.c.l.b16 %v1814
        %v2022 = vunpack.c.h.b16 %v1814
        %v2023 = vunpack.c.l.b16 %v1815
        %v2024 = vunpack.c.l.b16 %v1816
        %v2025 = vunpack.c.h.b16 %v1816
        %v2026 = vunpack.c.l.b16 %v1817
        %v2027 = vunpack.c.l.b16 %v1818
        %v2028 = vunpack.c.h.b16 %v1818
        %v2029 = vunpack.c.l.b16 %v1819
        %v2030 = vunpack.c.l.b16 %v1820
        %v2031 = vunpack.c.h.b16 %v1820
        %v2032 = vunpack.c.l.b16 %v1821
        %v2033 = vunpack.c.l.b16 %v1822
        %v2034 = vunpack.c.h.b16 %v1822
        %v2035 = vunpack.c.l.b16 %v1823
        %v2036 = vunpack.c.l.b16 %v1824
        %v2037 = vunpack.c.h.b16 %v1824
        %v2038 = vunpack.c.l.b16 %v1825
        %v2039 = vunpack.c.l.b16 %v1826
        %v2040 = vunpack.c.h.b16 %v1826
        %v2041 = vunpack.c.l.b16 %v1827
        %v2042 = vunpack.c.l.b16 %v1828
        %v2043 = vunpack.c.h.b16 %v1828
        %v2044 = vunpack.c.l.b16 %v1829
        %v2045 = vunpack.c.l.b16 %v1830
        %v2046 = vunpack.c.h.b16 %v1830
        %v2047 = vunpack.c.l.b16 %v1831
        %v2048 = vunpack.c.l.b16 %v1832
        %v2049 = vunpack.c.h.b16 %v1832
        %v2050 = vunpack.c.l.b16 %v1833
        %v2051 = vunpack.c.l.b16 %v1834
        %v2052 = vunpack.c.h.b16 %v1834
        %v2053 = vunpack.c.l.b16 %v1835
        %v2054 = vunpack.c.l.b16 %v1836
        %v2055 = vunpack.c.h.b16 %v1836
        %v2056 = vunpack.c.l.b16 %v1837
        %v2057 = vunpack.c.l.b16 %v1838
        %v2058 = vunpack.c.h.b16 %v1838
        %v2059 = vunpack.c.l.b16 %v1839
        %v2060 = vunpack.c.l.b16 %v1840
        %v2061 = vunpack.c.h.b16 %v1840
        %v2062 = vunpack.c.l.b16 %v1841
        %v2063 = vunpack.c.l.b16 %v1842
        %v2064 = vunpack.c.h.b16 %v1842
        %v2065 = vunpack.c.l.b16 %v1843
        %v2066 = vunpack.c.l.b16 %v1844
        %v2067 = vunpack.c.h.b16 %v1844
        %v2068 = vunpack.c.l.b16 %v1845
        %v2069 = vunpack.c.l.b16 %v1846
        %v2070 = vunpack.c.h.b16 %v1846
        %v2071 = vunpack.c.l.b16 %v1847
        %v2072 = vunpack.c.l.b16 %v1848
        %v2073 = vunpack.c.h.b16 %v1848
        %v2074 = vunpack.c.l.b16 %v1849
        %v2075 = vunpack.c.l.b16 %v1850
        %v2076 = vunpack.c.h.b16 %v1850
        %v2077 = vunpack.c.l.b16 %v1851
        %v2078 = vunpack.c.l.b16 %v1852
        %v2079 = vunpack.c.h.b16 %v1852
        %v2080 = vunpack.c.l.b16 %v1853
        %v2081 = vunpack.c.l.b16 %v1854
        %v2082 = vunpack.c.h.b16 %v1854
        %v2083 = vunpack.c.l.b16 %v1855
        %v2084 = vunpack.c.l.b16 %v1856
        %v2085 = vunpack.c.h.b16 %v1856
        %v2086 = vunpack.c.l.b16 %v1857
        %v2087 = vunpack.c.l.b16 %v1858
        %v2088 = vunpack.c.h.b16 %v1858
        %v2089 = vunpack.c.l.b16 %v1859
        %v2090 = vunpack.c.l.b16 %v1860
        %v2091 = vunpack.c.h.b16 %v1860
        %v2092 = vunpack.c.l.b16 %v1861
        %v2093 = vunpack.c.l.b16 %v1862
        %v2094 = vunpack.c.h.b16 %v1862
        %v2095 = vunpack.c.l.b16 %v1863
        %v2096 = vunpack.c.l.b16 %v1864
        %v2097 = vunpack.c.h.b16 %v1864
        %v2098 = vunpack.c.l.b16 %v1865
        %v2099 = vunpack.c.l.b16 %v1866
        %v2100 = vunpack.c.h.b16 %v1866
        %v2101 = vunpack.c.l.b16 %v1867
        %v2102 = vunpack.c.l.b16 %v1868
        %v2103 = vunpack.c.h.b16 %v1868
        %v2104 = vunpack.c.l.b16 %v1869
        %v2105 = vunpack.c.l.b16 %v1870
        %v2106 = vunpack.c.h.b16 %v1870
        %v2107 = vunpack.c.l.b16 %v1871
        %v2108 = vunpack.c.l.b16 %v1872
        %v2109 = vunpack.c.h.b16 %v1872
        %v2110 = vunpack.c.l.b16 %v1873
        %v2111 = vunpack.c.l.b16 %v1874
        %v2112 = vunpack.c.h.b16 %v1874
        %v2113 = vunpack.c.l.b16 %v1875
        %v2114 = vunpack.c.l.b16 %v1876
        %v2115 = vunpack.c.h.b16 %v1876
        %v2116 = vunpack.c.l.b16 %v1877
        %v2117 = vunpack.c.l.b16 %v1878
        %v2118 = vunpack.c.h.b16 %v1878
        %v2119 = vunpack.c.l.b16 %v1879
        %v2120 = vpack.c.b16 %v1979, %v1976
        %v2121 = vpack.c.b16 %v1980, %v1977
        %v2122 = vpack.c.b16 %v1981, %v1978
        %v2123 = vpack.c.b16 %v1985, %v1982
        %v2124 = vpack.c.b16 %v1986, %v1983
        %v2125 = vpack.c.b16 %v1987, %v1984
        %v2126 = vpack.c.b16 %v1991, %v1988
        %v2127 = vpack.c.b16 %v1992, %v1989
        %v2128 = vpack.c.b16 %v1993, %v1990
        %v2129 = vpack.c.b16 %v1997, %v1994
        %v2130 = vpack.c.b16 %v1998, %v1995
        %v2131 = vpack.c.b16 %v1999, %v1996
        %v2132 = vpack.c.b16 %v2003, %v2000
        %v2133 = vpack.c.b16 %v2004, %v2001
        %v2134 = vpack.c.b16 %v2005, %v2002
        %v2135 = vpack.c.b16 %v2009, %v2006
        %v2136 = vpack.c.b16 %v2010, %v2007
        %v2137 = vpack.c.b16 %v2011, %v2008
        %v2138 = vpack.c.b16 %v2015, %v2012
        %v2139 = vpack.c.b16 %v2016, %v2013
        %v2140 = vpack.c.b16 %v2017, %v2014
        %v2141 = vpack.c.b16 %v2021, %v2018
        %v2142 = vpack.c.b16 %v2022, %v2019
        %v2143 = vpack.c.b16 %v2023, %v2020
        %v2144 = vpack.c.b16 %v2027, %v2024
        %v2145 = vpack.c.b16 %v2028, %v2025
        %v2146 = vpack.c.b16 %v2029, %v2026
        %v2147 = vpack.c.b16 %v2033, %v2030
        %v2148 = vpack.c.b16 %v2034, %v2031
        %v2149 = vpack.c.b16 %v2035, %v2032
        %v2150 = vpack.c.b16 %v2039, %v2036
        %v2151 = vpack.c.b16 %v2040, %v2037
        %v2152 = vpack.c.b16 %v2041, %v2038
        %v2153 = vpack.c.b16 %v2045, %v2042
        %v2154 = vpack.c.b16 %v2046, %v2043
        %v2155 = vpack.c.b16 %v2047, %v2044
        %v2156 = vpack.c.b16 %v2051, %v2048
        %v2157 = vpack.c.b16 %v2052, %v2049
        %v2158 = vpack.c.b16 %v2053, %v2050
        %v2159 = vpack.c.b16 %v2057, %v2054
        %v2160 = vpack.c.b16 %v2058, %v2055
        %v2161 = vpack.c.b16 %v2059, %v2056
        %v2162 = vpack.c.b16 %v2063, %v2060
        %v2163 = vpack.c.b16 %v2064, %v2061
        %v2164 = vpack.c.b16 %v2065, %v2062
        %v2165 = vpack.c.b16 %v2069, %v2066
        %v2166 = vpack.c.b16 %v2070, %v2067
        %v2167 = vpack.c.b16 %v2071, %v2068
        %v2168 = vpack.c.b16 %v2075, %v2072
        %v2169 = vpack.c.b16 %v2076, %v2073
        %v2170 = vpack.c.b16 %v2077, %v2074
        %v2171 = vpack.c.b16 %v2081, %v2078
        %v2172 = vpack.c.b16 %v2082, %v2079
        %v2173 = vpack.c.b16 %v2083, %v2080
        %v2174 = vpack.c.b16 %v2087, %v2084
        %v2175 = vpack.c.b16 %v2088, %v2085
        %v2176 = vpack.c.b16 %v2089, %v2086
        %v2177 = vpack.c.b16 %v2093, %v2090
        %v2178 = vpack.c.b16 %v2094, %v2091
        %v2179 = vpack.c.b16 %v2095, %v2092
        %v2180 = vpack.c.b16 %v2099, %v2096
        %v2181 = vpack.c.b16 %v2100, %v2097
        %v2182 = vpack.c.b16 %v2101, %v2098
        %v2183 = vpack.c.b16 %v2105, %v2102
        %v2184 = vpack.c.b16 %v2106, %v2103
        %v2185 = vpack.c.b16 %v2107, %v2104
        %v2186 = vpack.c.b16 %v2111, %v2108
        %v2187 = vpack.c.b16 %v2112, %v2109
        %v2188 = vpack.c.b16 %v2113, %v2110
        %v2189 = vpack.c.b16 %v2117, %v2114
        %v2190 = vpack.c.b16 %v2118, %v2115
        %v2191 = vpack.c.b16 %v2119, %v2116
        %2264 = vmatprep.subr.bf16.mxu0 %v2121
        %2265 = vmatpush1.bf16.msra.mxu0 %v2120
        %2266 = vmatprep.subr.bf16.mxu0 %v2124
        %2267 = vmatpush1.bf16.msra.mxu0 %v2123
        %2268 = vmatprep.subr.bf16.mxu0 %v2127
        %2269 = vmatpush1.bf16.msra.mxu0 %v2126
        %2270 = vmatprep.subr.bf16.mxu0 %v2130
        %2271 = vmatpush1.bf16.msra.mxu0 %v2129
        %2272 = vmatprep.subr.bf16.mxu0 %v2133
        %2273 = vmatpush1.bf16.msra.mxu0 %v2132
        %2274 = vmatprep.subr.bf16.mxu0 %v2136
        %2275 = vmatpush1.bf16.msra.mxu0 %v2135
        %2276 = vmatprep.subr.bf16.mxu0 %v2139
        %2277 = vmatpush1.bf16.msra.mxu0 %v2138
        %2278 = vmatprep.subr.bf16.mxu0 %v2142
        %2279 = vmatpush1.bf16.msra.mxu0 %v2141
        %2280 = vmatprep.subr.bf16.mxu0 %v2145
        %2281 = vmatpush1.bf16.msra.mxu0 %v2144
        %2282 = vmatprep.subr.bf16.mxu0 %v2148
        %2283 = vmatpush1.bf16.msra.mxu0 %v2147
        %2284 = vmatprep.subr.bf16.mxu0 %v2151
        %2285 = vmatpush1.bf16.msra.mxu0 %v2150
        %2286 = vmatprep.subr.bf16.mxu0 %v2154
        %2287 = vmatpush1.bf16.msra.mxu0 %v2153
        %2288 = vmatprep.subr.bf16.mxu0 %v2157
        %2289 = vmatpush1.bf16.msra.mxu0 %v2156
        %2290 = vmatprep.subr.bf16.mxu0 %v2160
        %2291 = vmatpush1.bf16.msra.mxu0 %v2159
        %2292 = vmatprep.subr.bf16.mxu0 %v2163
        %2293 = vmatpush1.bf16.msra.mxu0 %v2162
        %2294 = vmatprep.subr.bf16.mxu0 %v2166
        %2295 = vmatpush1.bf16.msra.mxu0 %v2165
        %2296 = vmatprep.mubr.bf16.mxu0 %v1140
        %2297 = vmatmul.mubr.bf16.gmra.mrb[0].mxu0 %v1139
        %v2298 = vpop.f32.mrb[0].mxu0
        %v2299 = vadd.f32 0.0, %v2298
        %v2300 = vpop.f32.mrb[0].mxu0
        %v2301 = vadd.f32 0.0, %v2300
        %v2302 = vpop.f32.mrb[0].mxu0
        %v2303 = vpop.f32.mrb[0].mxu0
        %2304 = vdwg.mxu0
        %2305 = vmatprep.subr.bf16.mxu0 %v2169
        %2306 = vmatpush1.bf16.msra.mxu0 %v2168
        %2307 = vmatprep.subr.bf16.mxu0 %v2172
        %2308 = vmatpush1.bf16.msra.mxu0 %v2171
        %2309 = vmatprep.subr.bf16.mxu0 %v2175
        %2310 = vmatpush1.bf16.msra.mxu0 %v2174
        %2311 = vmatprep.subr.bf16.mxu0 %v2178
        %2312 = vmatpush1.bf16.msra.mxu0 %v2177
        %2313 = vmatprep.subr.bf16.mxu0 %v2181
        %2314 = vmatpush1.bf16.msra.mxu0 %v2180
        %2315 = vmatprep.subr.bf16.mxu0 %v2184
        %2316 = vmatpush1.bf16.msra.mxu0 %v2183
        %2317 = vmatprep.subr.bf16.mxu0 %v2187
        %2318 = vmatpush1.bf16.msra.mxu0 %v2186
        %2319 = vmatprep.subr.bf16.mxu0 %v2190
        %2320 = vmatpush1.bf16.msra.mxu0 %v2189
        %2321 = vmatprep.subr.bf16.mxu0 0
        %2322 = vmatpush1.bf16.msra.mxu0 0
        %2323 = vmatprep.subr.bf16.mxu0 0
        %2324 = vmatpush1.bf16.msra.mxu0 0
        %2325 = vmatprep.subr.bf16.mxu0 0
        %2326 = vmatpush1.bf16.msra.mxu0 0
        %2327 = vmatprep.subr.bf16.mxu0 0
        %2328 = vmatpush1.bf16.msra.mxu0 0
        %2329 = vmatprep.subr.bf16.mxu0 0
        %2330 = vmatpush1.bf16.msra.mxu0 0
        %2331 = vmatprep.subr.bf16.mxu0 0
        %2332 = vmatpush1.bf16.msra.mxu0 0
        %2333 = vmatprep.subr.bf16.mxu0 0
        %2334 = vmatpush1.bf16.msra.mxu0 0
        %2335 = vmatprep.subr.bf16.mxu0 0
        %2336 = vmatpush1.bf16.msra.mxu0 0
        %2337 = vmatprep.mubr.bf16.mxu0 0
        %2338 = vmatmul.mubr.bf16.gmra.mrb[0].mxu0 %v1141
        %v2339 = vpop.f32.mrb[0].mxu0
        %v2340 = vadd.f32 %v2299, %v2339
        %v2341 = vpop.f32.mrb[0].mxu0
        %v2342 = vadd.f32 %v2301, %v2341
        %v2343 = vpop.f32.mrb[0].mxu0
        %v2344 = vpop.f32.mrb[0].mxu0
        %2345 = vdwg.mxu0
        %2346 = vmatprep.subr.bf16.mxu0 0
        %2347 = vmatpush1.bf16.msra.mxu0 %v2122
        %2348 = vmatprep.subr.bf16.mxu0 0
        %2349 = vmatpush1.bf16.msra.mxu0 %v2125
        %2350 = vmatprep.subr.bf16.mxu0 0
        %2351 = vmatpush1.bf16.msra.mxu0 %v2128
        %2352 = vmatprep.subr.bf16.mxu0 0
        %2353 = vmatpush1.bf16.msra.mxu0 %v2131
        %2354 = vmatprep.subr.bf16.mxu0 0
        %2355 = vmatpush1.bf16.msra.mxu0 %v2134
        %2356 = vmatprep.subr.bf16.mxu0 0
        %2357 = vmatpush1.bf16.msra.mxu0 %v2137
        %2358 = vmatprep.subr.bf16.mxu0 0
        %2359 = vmatpush1.bf16.msra.mxu0 %v2140
        %2360 = vmatprep.subr.bf16.mxu0 0
        %2361 = vmatpush1.bf16.msra.mxu0 %v2143
        %2362 = vmatprep.subr.bf16.mxu0 0
        %2363 = vmatpush1.bf16.msra.mxu0 %v2146
        %2364 = vmatprep.subr.bf16.mxu0 0
        %2365 = vmatpush1.bf16.msra.mxu0 %v2149
        %2366 = vmatprep.subr.bf16.mxu0 0
        %2367 = vmatpush1.bf16.msra.mxu0 %v2152
        %2368 = vmatprep.subr.bf16.mxu0 0
        %2369 = vmatpush1.bf16.msra.mxu0 %v2155
        %2370 = vmatprep.subr.bf16.mxu0 0
        %2371 = vmatpush1.bf16.msra.mxu0 %v2158
        %2372 = vmatprep.subr.bf16.mxu0 0
        %2373 = vmatpush1.bf16.msra.mxu0 %v2161
        %2374 = vmatprep.subr.bf16.mxu0 0
        %2375 = vmatpush1.bf16.msra.mxu0 %v2164
        %2376 = vmatprep.subr.bf16.mxu0 0
        %2377 = vmatpush1.bf16.msra.mxu0 %v2167
        %2378 = vmatprep.mubr.bf16.mxu0 %v1140
        %2379 = vmatmul.mubr.bf16.gmra.mrb[0].mxu0 %v1139
        %v2380 = vpop.f32.mrb[0].mxu0
        %v2381 = vadd.f32 0.0, %v2380
        %v2382 = vpop.f32.mrb[0].mxu0
        %v2383 = vpop.f32.mrb[0].mxu0
        %v2384 = vpop.f32.mrb[0].mxu0
        %2385 = vdwg.mxu0
        %2386 = vmatprep.subr.bf16.mxu0 0
        %2387 = vmatpush1.bf16.msra.mxu0 %v2170
        %2388 = vmatprep.subr.bf16.mxu0 0
        %2389 = vmatpush1.bf16.msra.mxu0 %v2173
        %2390 = vmatprep.subr.bf16.mxu0 0
        %2391 = vmatpush1.bf16.msra.mxu0 %v2176
        %2392 = vmatprep.subr.bf16.mxu0 0
        %2393 = vmatpush1.bf16.msra.mxu0 %v2179
        %2394 = vmatprep.subr.bf16.mxu0 0
        %2395 = vmatpush1.bf16.msra.mxu0 %v2182
        %2396 = vmatprep.subr.bf16.mxu0 0
        %2397 = vmatpush1.bf16.msra.mxu0 %v2185
        %2398 = vmatprep.subr.bf16.mxu0 0
        %2399 = vmatpush1.bf16.msra.mxu0 %v2188
        %2400 = vmatprep.subr.bf16.mxu0 0
        %2401 = vmatpush1.bf16.msra.mxu0 %v2191
        %2402 = vmatprep.subr.bf16.mxu0 0
        %2403 = vmatpush1.bf16.msra.mxu0 0
        %2404 = vmatprep.subr.bf16.mxu0 0
        %2405 = vmatpush1.bf16.msra.mxu0 0
        %2406 = vmatprep.subr.bf16.mxu0 0
        %2407 = vmatpush1.bf16.msra.mxu0 0
        %2408 = vmatprep.subr.bf16.mxu0 0
        %2409 = vmatpush1.bf16.msra.mxu0 0
        %2410 = vmatprep.subr.bf16.mxu0 0
        %2411 = vmatpush1.bf16.msra.mxu0 0
        %2412 = vmatprep.subr.bf16.mxu0 0
        %2413 = vmatpush1.bf16.msra.mxu0 0
        %2414 = vmatprep.subr.bf16.mxu0 0
        %2415 = vmatpush1.bf16.msra.mxu0 0
        %2416 = vmatprep.subr.bf16.mxu0 0
        %2417 = vmatpush1.bf16.msra.mxu0 0
        %2418 = vmatprep.mubr.bf16.mxu0 0
        %2419 = vmatmul.mubr.bf16.gmra.mrb[0].mxu0 %v1141
        %v2420 = vpop.f32.mrb[0].mxu0
        %v2421 = vadd.f32 %v2381, %v2420
        %v2422 = vpop.f32.mrb[0].mxu0
        %v2423 = vpop.f32.mrb[0].mxu0
        %v2424 = vpop.f32.mrb[0].mxu0
        %2425 = vdwg.mxu0
        %v2426 = vld [vmem:[%s869] sm:$0xff]
        %v2427 = vld [vmem:[%s869 + $0x8] sm:$0xf]
        %v2428 = vld [vmem:[%s869 + $0xc] sm:$0xff]
        %v2429 = vld [vmem:[%s869 + $0x14] sm:$0xf]
        %v2430 = vld [vmem:[%s869 + $0x18] sm:$0xff]
        %v2431 = vld [vmem:[%s869 + $0x20] sm:$0xf]
        %v2432 = vld [vmem:[%s869 + $0x24] sm:$0xff]
        %v2433 = vld [vmem:[%s869 + $0x2c] sm:$0xf]
        %v2434 = vld [vmem:[%s869 + $0x30] sm:$0xff]
        %v2435 = vld [vmem:[%s869 + $0x38] sm:$0xf]
        %v2436 = vld [vmem:[%s869 + $0x3c] sm:$0xff]
        %v2437 = vld [vmem:[%s869 + $0x44] sm:$0xf]
        %v2438 = vld [vmem:[%s869 + $0x48] sm:$0xff]
        %v2439 = vld [vmem:[%s869 + $0x50] sm:$0xf]
        %v2440 = vld [vmem:[%s869 + $0x54] sm:$0xff]
        %v2441 = vld [vmem:[%s869 + $0x5c] sm:$0xf]
        %v2442 = vld [vmem:[%s869 + $0x60] sm:$0xff]
        %v2443 = vld [vmem:[%s869 + $0x68] sm:$0xf]
        %v2444 = vld [vmem:[%s869 + $0x6c] sm:$0xff]
        %v2445 = vld [vmem:[%s869 + $0x74] sm:$0xf]
        %v2446 = vld [vmem:[%s869 + $0x78] sm:$0xff]
        %v2447 = vld [vmem:[%s869 + $0x80] sm:$0xf]
        %v2448 = vld [vmem:[%s869 + $0x84] sm:$0xff]
        %v2449 = vld [vmem:[%s869 + $0x8c] sm:$0xf]
        %v2450 = vld [vmem:[%s869 + $0x90] sm:$0xff]
        %v2451 = vld [vmem:[%s869 + $0x98] sm:$0xf]
        %v2452 = vld [vmem:[%s869 + $0x9c] sm:$0xff]
        %v2453 = vld [vmem:[%s869 + $0xa4] sm:$0xf]
        %v2454 = vld [vmem:[%s869 + $0xa8] sm:$0xff]
        %v2455 = vld [vmem:[%s869 + $0xb0] sm:$0xf]
        %v2456 = vld [vmem:[%s869 + $0xb4] sm:$0xff]
        %v2457 = vld [vmem:[%s869 + $0xbc] sm:$0xf]
        %v2458 = vld [vmem:[%s869 + $0xc0] sm:$0xff]
        %v2459 = vld [vmem:[%s869 + $0xc8] sm:$0xf]
        %v2460 = vld [vmem:[%s869 + $0xcc] sm:$0xff]
        %v2461 = vld [vmem:[%s869 + $0xd4] sm:$0xf]
        %v2462 = vld [vmem:[%s869 + $0xd8] sm:$0xff]
        %v2463 = vld [vmem:[%s869 + $0xe0] sm:$0xf]
        %v2464 = vld [vmem:[%s869 + $0xe4] sm:$0xff]
        %v2465 = vld [vmem:[%s869 + $0xec] sm:$0xf]
        %v2466 = vld [vmem:[%s869 + $0xf0] sm:$0xff]
        %v2467 = vld [vmem:[%s869 + $0xf8] sm:$0xf]
        %v2468 = vld [vmem:[%s869 + $0xfc] sm:$0xff]
        %v2469 = vld [vmem:[%s869 + $0x104] sm:$0xf]
        %v2470 = vld [vmem:[%s869 + $0x108] sm:$0xff]
        %v2471 = vld [vmem:[%s869 + $0x110] sm:$0xf]
        %v2472 = vld [vmem:[%s869 + $0x114] sm:$0xff]
        %v2473 = vld [vmem:[%s869 + $0x11c] sm:$0xf]
        %v2474 = vld [vmem:[%s869 + $0x120] sm:$0xff]
        %v2475 = vld [vmem:[%s869 + $0x128] sm:$0xf]
        %v2476 = vld [vmem:[%s869 + $0x12c] sm:$0xff]
        %v2477 = vld [vmem:[%s869 + $0x134] sm:$0xf]
        %v2478 = vld [vmem:[%s869 + $0x138] sm:$0xff]
        %v2479 = vld [vmem:[%s869 + $0x140] sm:$0xf]
        %v2480 = vld [vmem:[%s869 + $0x144] sm:$0xff]
        %v2481 = vld [vmem:[%s869 + $0x14c] sm:$0xf]
        %v2482 = vld [vmem:[%s869 + $0x150] sm:$0xff]
        %v2483 = vld [vmem:[%s869 + $0x158] sm:$0xf]
        %v2484 = vld [vmem:[%s869 + $0x15c] sm:$0xff]
        %v2485 = vld [vmem:[%s869 + $0x164] sm:$0xf]
        %v2486 = vld [vmem:[%s869 + $0x168] sm:$0xff]
        %v2487 = vld [vmem:[%s869 + $0x170] sm:$0xf]
        %v2488 = vld [vmem:[%s869 + $0x174] sm:$0xff]
        %v2489 = vld [vmem:[%s869 + $0x17c] sm:$0xf]
        %v2490 = vld [vmem:[%s869 + $0x180] sm:$0xff]
        %v2491 = vld [vmem:[%s869 + $0x188] sm:$0xf]
        %v2492 = vld [vmem:[%s869 + $0x18c] sm:$0xff]
        %v2493 = vld [vmem:[%s869 + $0x194] sm:$0xf]
        %v2494 = vld [vmem:[%s869 + $0x198] sm:$0xff]
        %v2495 = vld [vmem:[%s869 + $0x1a0] sm:$0xf]
        %v2496 = vld [vmem:[%s869 + $0x1a4] sm:$0xff]
        %v2497 = vld [vmem:[%s869 + $0x1ac] sm:$0xf]
        %v2498 = vld [vmem:[%s869 + $0x1b0] sm:$0xff]
        %v2499 = vld [vmem:[%s869 + $0x1b8] sm:$0xf]
        %v2500 = vld [vmem:[%s869 + $0x1bc] sm:$0xff]
        %v2501 = vld [vmem:[%s869 + $0x1c4] sm:$0xf]
        %v2502 = vld [vmem:[%s869 + $0x1c8] sm:$0xff]
        %v2503 = vld [vmem:[%s869 + $0x1d0] sm:$0xf]
        %v2504 = vld [vmem:[%s869 + $0x1d4] sm:$0xff]
        %v2505 = vld [vmem:[%s869 + $0x1dc] sm:$0xf]
        %v2506 = vld [vmem:[%s869 + $0x1e0] sm:$0xff]
        %v2507 = vld [vmem:[%s869 + $0x1e8] sm:$0xf]
        %v2508 = vld [vmem:[%s869 + $0x1ec] sm:$0xff]
        %v2509 = vld [vmem:[%s869 + $0x1f4] sm:$0xf]
        %v2510 = vld [vmem:[%s869 + $0x1f8] sm:$0xff]
        %v2511 = vld [vmem:[%s869 + $0x200] sm:$0xf]
        %v2512 = vld [vmem:[%s869 + $0x204] sm:$0xff]
        %v2513 = vld [vmem:[%s869 + $0x20c] sm:$0xf]
        %v2514 = vld [vmem:[%s869 + $0x210] sm:$0xff]
        %v2515 = vld [vmem:[%s869 + $0x218] sm:$0xf]
        %v2516 = vld [vmem:[%s869 + $0x21c] sm:$0xff]
        %v2517 = vld [vmem:[%s869 + $0x224] sm:$0xf]
        %v2518 = vld [vmem:[%s869 + $0x228] sm:$0xff]
        %v2519 = vld [vmem:[%s869 + $0x230] sm:$0xf]
        %v2520 = vld [vmem:[%s869 + $0x234] sm:$0xff]
        %v2521 = vld [vmem:[%s869 + $0x23c] sm:$0xf]
        %v2618 = vunpack.c.l.b16 %v2426
        %v2619 = vunpack.c.h.b16 %v2426
        %v2620 = vunpack.c.l.b16 %v2427
        %v2621 = vunpack.c.l.b16 %v2428
        %v2622 = vunpack.c.h.b16 %v2428
        %v2623 = vunpack.c.l.b16 %v2429
        %v2624 = vunpack.c.l.b16 %v2430
        %v2625 = vunpack.c.h.b16 %v2430
        %v2626 = vunpack.c.l.b16 %v2431
        %v2627 = vunpack.c.l.b16 %v2432
        %v2628 = vunpack.c.h.b16 %v2432
        %v2629 = vunpack.c.l.b16 %v2433
        %v2630 = vunpack.c.l.b16 %v2434
        %v2631 = vunpack.c.h.b16 %v2434
        %v2632 = vunpack.c.l.b16 %v2435
        %v2633 = vunpack.c.l.b16 %v2436
        %v2634 = vunpack.c.h.b16 %v2436
        %v2635 = vunpack.c.l.b16 %v2437
        %v2636 = vunpack.c.l.b16 %v2438
        %v2637 = vunpack.c.h.b16 %v2438
        %v2638 = vunpack.c.l.b16 %v2439
        %v2639 = vunpack.c.l.b16 %v2440
        %v2640 = vunpack.c.h.b16 %v2440
        %v2641 = vunpack.c.l.b16 %v2441
        %v2642 = vunpack.c.l.b16 %v2442
        %v2643 = vunpack.c.h.b16 %v2442
        %v2644 = vunpack.c.l.b16 %v2443
        %v2645 = vunpack.c.l.b16 %v2444
        %v2646 = vunpack.c.h.b16 %v2444
        %v2647 = vunpack.c.l.b16 %v2445
        %v2648 = vunpack.c.l.b16 %v2446
        %v2649 = vunpack.c.h.b16 %v2446
        %v2650 = vunpack.c.l.b16 %v2447
        %v2651 = vunpack.c.l.b16 %v2448
        %v2652 = vunpack.c.h.b16 %v2448
        %v2653 = vunpack.c.l.b16 %v2449
        %v2654 = vunpack.c.l.b16 %v2450
        %v2655 = vunpack.c.h.b16 %v2450
        %v2656 = vunpack.c.l.b16 %v2451
        %v2657 = vunpack.c.l.b16 %v2452
        %v2658 = vunpack.c.h.b16 %v2452
        %v2659 = vunpack.c.l.b16 %v2453
        %v2660 = vunpack.c.l.b16 %v2454
        %v2661 = vunpack.c.h.b16 %v2454
        %v2662 = vunpack.c.l.b16 %v2455
        %v2663 = vunpack.c.l.b16 %v2456
        %v2664 = vunpack.c.h.b16 %v2456
        %v2665 = vunpack.c.l.b16 %v2457
        %v2666 = vunpack.c.l.b16 %v2458
        %v2667 = vunpack.c.h.b16 %v2458
        %v2668 = vunpack.c.l.b16 %v2459
        %v2669 = vunpack.c.l.b16 %v2460
        %v2670 = vunpack.c.h.b16 %v2460
        %v2671 = vunpack.c.l.b16 %v2461
        %v2672 = vunpack.c.l.b16 %v2462
        %v2673 = vunpack.c.h.b16 %v2462
        %v2674 = vunpack.c.l.b16 %v2463
        %v2675 = vunpack.c.l.b16 %v2464
        %v2676 = vunpack.c.h.b16 %v2464
        %v2677 = vunpack.c.l.b16 %v2465
        %v2678 = vunpack.c.l.b16 %v2466
        %v2679 = vunpack.c.h.b16 %v2466
        %v2680 = vunpack.c.l.b16 %v2467
        %v2681 = vunpack.c.l.b16 %v2468
        %v2682 = vunpack.c.h.b16 %v2468
        %v2683 = vunpack.c.l.b16 %v2469
        %v2684 = vunpack.c.l.b16 %v2470
        %v2685 = vunpack.c.h.b16 %v2470
        %v2686 = vunpack.c.l.b16 %v2471
        %v2687 = vunpack.c.l.b16 %v2472
        %v2688 = vunpack.c.h.b16 %v2472
        %v2689 = vunpack.c.l.b16 %v2473
        %v2690 = vunpack.c.l.b16 %v2474
        %v2691 = vunpack.c.h.b16 %v2474
        %v2692 = vunpack.c.l.b16 %v2475
        %v2693 = vunpack.c.l.b16 %v2476
        %v2694 = vunpack.c.h.b16 %v2476
        %v2695 = vunpack.c.l.b16 %v2477
        %v2696 = vunpack.c.l.b16 %v2478
        %v2697 = vunpack.c.h.b16 %v2478
        %v2698 = vunpack.c.l.b16 %v2479
        %v2699 = vunpack.c.l.b16 %v2480
        %v2700 = vunpack.c.h.b16 %v2480
        %v2701 = vunpack.c.l.b16 %v2481
        %v2702 = vunpack.c.l.b16 %v2482
        %v2703 = vunpack.c.h.b16 %v2482
        %v2704 = vunpack.c.l.b16 %v2483
        %v2705 = vunpack.c.l.b16 %v2484
        %v2706 = vunpack.c.h.b16 %v2484
        %v2707 = vunpack.c.l.b16 %v2485
        %v2708 = vunpack.c.l.b16 %v2486
        %v2709 = vunpack.c.h.b16 %v2486
        %v2710 = vunpack.c.l.b16 %v2487
        %v2711 = vunpack.c.l.b16 %v2488
        %v2712 = vunpack.c.h.b16 %v2488
        %v2713 = vunpack.c.l.b16 %v2489
        %v2714 = vunpack.c.l.b16 %v2490
        %v2715 = vunpack.c.h.b16 %v2490
        %v2716 = vunpack.c.l.b16 %v2491
        %v2717 = vunpack.c.l.b16 %v2492
        %v2718 = vunpack.c.h.b16 %v2492
        %v2719 = vunpack.c.l.b16 %v2493
        %v2720 = vunpack.c.l.b16 %v2494
        %v2721 = vunpack.c.h.b16 %v2494
        %v2722 = vunpack.c.l.b16 %v2495
        %v2723 = vunpack.c.l.b16 %v2496
        %v2724 = vunpack.c.h.b16 %v2496
        %v2725 = vunpack.c.l.b16 %v2497
        %v2726 = vunpack.c.l.b16 %v2498
        %v2727 = vunpack.c.h.b16 %v2498
        %v2728 = vunpack.c.l.b16 %v2499
        %v2729 = vunpack.c.l.b16 %v2500
        %v2730 = vunpack.c.h.b16 %v2500
        %v2731 = vunpack.c.l.b16 %v2501
        %v2732 = vunpack.c.l.b16 %v2502
        %v2733 = vunpack.c.h.b16 %v2502
        %v2734 = vunpack.c.l.b16 %v2503
        %v2735 = vunpack.c.l.b16 %v2504
        %v2736 = vunpack.c.h.b16 %v2504
        %v2737 = vunpack.c.l.b16 %v2505
        %v2738 = vunpack.c.l.b16 %v2506
        %v2739 = vunpack.c.h.b16 %v2506
        %v2740 = vunpack.c.l.b16 %v2507
        %v2741 = vunpack.c.l.b16 %v2508
        %v2742 = vunpack.c.h.b16 %v2508
        %v2743 = vunpack.c.l.b16 %v2509
        %v2744 = vunpack.c.l.b16 %v2510
        %v2745 = vunpack.c.h.b16 %v2510
        %v2746 = vunpack.c.l.b16 %v2511
        %v2747 = vunpack.c.l.b16 %v2512
        %v2748 = vunpack.c.h.b16 %v2512
        %v2749 = vunpack.c.l.b16 %v2513
        %v2750 = vunpack.c.l.b16 %v2514
        %v2751 = vunpack.c.h.b16 %v2514
        %v2752 = vunpack.c.l.b16 %v2515
        %v2753 = vunpack.c.l.b16 %v2516
        %v2754 = vunpack.c.h.b16 %v2516
        %v2755 = vunpack.c.l.b16 %v2517
        %v2756 = vunpack.c.l.b16 %v2518
        %v2757 = vunpack.c.h.b16 %v2518
        %v2758 = vunpack.c.l.b16 %v2519
        %v2759 = vunpack.c.l.b16 %v2520
        %v2760 = vunpack.c.h.b16 %v2520
        %v2761 = vunpack.c.l.b16 %v2521
        %v2762 = vpack.c.b16 %v2621, %v2618
        %v2763 = vpack.c.b16 %v2622, %v2619
        %v2764 = vpack.c.b16 %v2623, %v2620
        %v2765 = vpack.c.b16 %v2627, %v2624
        %v2766 = vpack.c.b16 %v2628, %v2625
        %v2767 = vpack.c.b16 %v2629, %v2626
        %v2768 = vpack.c.b16 %v2633, %v2630
        %v2769 = vpack.c.b16 %v2634, %v2631
        %v2770 = vpack.c.b16 %v2635, %v2632
        %v2771 = vpack.c.b16 %v2639, %v2636
        %v2772 = vpack.c.b16 %v2640, %v2637
        %v2773 = vpack.c.b16 %v2641, %v2638
        %v2774 = vpack.c.b16 %v2645, %v2642
        %v2775 = vpack.c.b16 %v2646, %v2643
        %v2776 = vpack.c.b16 %v2647, %v2644
        %v2777 = vpack.c.b16 %v2651, %v2648
        %v2778 = vpack.c.b16 %v2652, %v2649
        %v2779 = vpack.c.b16 %v2653, %v2650
        %v2780 = vpack.c.b16 %v2657, %v2654
        %v2781 = vpack.c.b16 %v2658, %v2655
        %v2782 = vpack.c.b16 %v2659, %v2656
        %v2783 = vpack.c.b16 %v2663, %v2660
        %v2784 = vpack.c.b16 %v2664, %v2661
        %v2785 = vpack.c.b16 %v2665, %v2662
        %v2786 = vpack.c.b16 %v2669, %v2666
        %v2787 = vpack.c.b16 %v2670, %v2667
        %v2788 = vpack.c.b16 %v2671, %v2668
        %v2789 = vpack.c.b16 %v2675, %v2672
        %v2790 = vpack.c.b16 %v2676, %v2673
        %v2791 = vpack.c.b16 %v2677, %v2674
        %v2792 = vpack.c.b16 %v2681, %v2678
        %v2793 = vpack.c.b16 %v2682, %v2679
        %v2794 = vpack.c.b16 %v2683, %v2680
        %v2795 = vpack.c.b16 %v2687, %v2684
        %v2796 = vpack.c.b16 %v2688, %v2685
        %v2797 = vpack.c.b16 %v2689, %v2686
        %v2798 = vpack.c.b16 %v2693, %v2690
        %v2799 = vpack.c.b16 %v2694, %v2691
        %v2800 = vpack.c.b16 %v2695, %v2692
        %v2801 = vpack.c.b16 %v2699, %v2696
        %v2802 = vpack.c.b16 %v2700, %v2697
        %v2803 = vpack.c.b16 %v2701, %v2698
        %v2804 = vpack.c.b16 %v2705, %v2702
        %v2805 = vpack.c.b16 %v2706, %v2703
        %v2806 = vpack.c.b16 %v2707, %v2704
        %v2807 = vpack.c.b16 %v2711, %v2708
        %v2808 = vpack.c.b16 %v2712, %v2709
        %v2809 = vpack.c.b16 %v2713, %v2710
        %v2810 = vpack.c.b16 %v2717, %v2714
        %v2811 = vpack.c.b16 %v2718, %v2715
        %v2812 = vpack.c.b16 %v2719, %v2716
        %v2813 = vpack.c.b16 %v2723, %v2720
        %v2814 = vpack.c.b16 %v2724, %v2721
        %v2815 = vpack.c.b16 %v2725, %v2722
        %v2816 = vpack.c.b16 %v2729, %v2726
        %v2817 = vpack.c.b16 %v2730, %v2727
        %v2818 = vpack.c.b16 %v2731, %v2728
        %v2819 = vpack.c.b16 %v2735, %v2732
        %v2820 = vpack.c.b16 %v2736, %v2733
        %v2821 = vpack.c.b16 %v2737, %v2734
        %v2822 = vpack.c.b16 %v2741, %v2738
        %v2823 = vpack.c.b16 %v2742, %v2739
        %v2824 = vpack.c.b16 %v2743, %v2740
        %v2825 = vpack.c.b16 %v2747, %v2744
        %v2826 = vpack.c.b16 %v2748, %v2745
        %v2827 = vpack.c.b16 %v2749, %v2746
        %v2828 = vpack.c.b16 %v2753, %v2750
        %v2829 = vpack.c.b16 %v2754, %v2751
        %v2830 = vpack.c.b16 %v2755, %v2752
        %v2831 = vpack.c.b16 %v2759, %v2756
        %v2832 = vpack.c.b16 %v2760, %v2757
        %v2833 = vpack.c.b16 %v2761, %v2758
        %2906 = vmatprep.subr.bf16.mxu0 %v2763
        %2907 = vmatpush1.bf16.msra.mxu0 %v2762
        %2908 = vmatprep.subr.bf16.mxu0 %v2766
        %2909 = vmatpush1.bf16.msra.mxu0 %v2765
        %2910 = vmatprep.subr.bf16.mxu0 %v2769
        %2911 = vmatpush1.bf16.msra.mxu0 %v2768
        %2912 = vmatprep.subr.bf16.mxu0 %v2772
        %2913 = vmatpush1.bf16.msra.mxu0 %v2771
        %2914 = vmatprep.subr.bf16.mxu0 %v2775
        %2915 = vmatpush1.bf16.msra.mxu0 %v2774
        %2916 = vmatprep.subr.bf16.mxu0 %v2778
        %2917 = vmatpush1.bf16.msra.mxu0 %v2777
        %2918 = vmatprep.subr.bf16.mxu0 %v2781
        %2919 = vmatpush1.bf16.msra.mxu0 %v2780
        %2920 = vmatprep.subr.bf16.mxu0 %v2784
        %2921 = vmatpush1.bf16.msra.mxu0 %v2783
        %2922 = vmatprep.subr.bf16.mxu0 %v2787
        %2923 = vmatpush1.bf16.msra.mxu0 %v2786
        %2924 = vmatprep.subr.bf16.mxu0 %v2790
        %2925 = vmatpush1.bf16.msra.mxu0 %v2789
        %2926 = vmatprep.subr.bf16.mxu0 %v2793
        %2927 = vmatpush1.bf16.msra.mxu0 %v2792
        %2928 = vmatprep.subr.bf16.mxu0 %v2796
        %2929 = vmatpush1.bf16.msra.mxu0 %v2795
        %2930 = vmatprep.subr.bf16.mxu0 %v2799
        %2931 = vmatpush1.bf16.msra.mxu0 %v2798
        %2932 = vmatprep.subr.bf16.mxu0 %v2802
        %2933 = vmatpush1.bf16.msra.mxu0 %v2801
        %2934 = vmatprep.subr.bf16.mxu0 %v2805
        %2935 = vmatpush1.bf16.msra.mxu0 %v2804
        %2936 = vmatprep.subr.bf16.mxu0 %v2808
        %2937 = vmatpush1.bf16.msra.mxu0 %v2807
        %2938 = vmatprep.mubr.bf16.mxu0 %v1140
        %2939 = vmatmul.mubr.bf16.gmra.mrb[0].mxu0 %v1139
        %v2940 = vpop.f32.mrb[0].mxu0
        %v2941 = vadd.f32 0.0, %v2940
        %v2942 = vpop.f32.mrb[0].mxu0
        %v2943 = vadd.f32 0.0, %v2942
        %v2944 = vpop.f32.mrb[0].mxu0
        %v2945 = vpop.f32.mrb[0].mxu0
        %2946 = vdwg.mxu0
        %2947 = vmatprep.subr.bf16.mxu0 %v2811
        %2948 = vmatpush1.bf16.msra.mxu0 %v2810
        %2949 = vmatprep.subr.bf16.mxu0 %v2814
        %2950 = vmatpush1.bf16.msra.mxu0 %v2813
        %2951 = vmatprep.subr.bf16.mxu0 %v2817
        %2952 = vmatpush1.bf16.msra.mxu0 %v2816
        %2953 = vmatprep.subr.bf16.mxu0 %v2820
        %2954 = vmatpush1.bf16.msra.mxu0 %v2819
        %2955 = vmatprep.subr.bf16.mxu0 %v2823
        %2956 = vmatpush1.bf16.msra.mxu0 %v2822
        %2957 = vmatprep.subr.bf16.mxu0 %v2826
        %2958 = vmatpush1.bf16.msra.mxu0 %v2825
        %2959 = vmatprep.subr.bf16.mxu0 %v2829
        %2960 = vmatpush1.bf16.msra.mxu0 %v2828
        %2961 = vmatprep.subr.bf16.mxu0 %v2832
        %2962 = vmatpush1.bf16.msra.mxu0 %v2831
        %2963 = vmatprep.subr.bf16.mxu0 0
        %2964 = vmatpush1.bf16.msra.mxu0 0
        %2965 = vmatprep.subr.bf16.mxu0 0
        %2966 = vmatpush1.bf16.msra.mxu0 0
        %2967 = vmatprep.subr.bf16.mxu0 0
        %2968 = vmatpush1.bf16.msra.mxu0 0
        %2969 = vmatprep.subr.bf16.mxu0 0
        %2970 = vmatpush1.bf16.msra.mxu0 0
        %2971 = vmatprep.subr.bf16.mxu0 0
        %2972 = vmatpush1.bf16.msra.mxu0 0
        %2973 = vmatprep.subr.bf16.mxu0 0
        %2974 = vmatpush1.bf16.msra.mxu0 0
        %2975 = vmatprep.subr.bf16.mxu0 0
        %2976 = vmatpush1.bf16.msra.mxu0 0
        %2977 = vmatprep.subr.bf16.mxu0 0
        %2978 = vmatpush1.bf16.msra.mxu0 0
        %2979 = vmatprep.mubr.bf16.mxu0 0
        %2980 = vmatmul.mubr.bf16.gmra.mrb[0].mxu0 %v1141
        %v2981 = vpop.f32.mrb[0].mxu0
        %v2982 = vadd.f32 %v2941, %v2981
        %v2983 = vpop.f32.mrb[0].mxu0
        %v2984 = vadd.f32 %v2943, %v2983
        %v2985 = vpop.f32.mrb[0].mxu0
        %v2986 = vpop.f32.mrb[0].mxu0
        %2987 = vdwg.mxu0
        %2988 = vmatprep.subr.bf16.mxu0 0
        %2989 = vmatpush1.bf16.msra.mxu0 %v2764
        %2990 = vmatprep.subr.bf16.mxu0 0
        %2991 = vmatpush1.bf16.msra.mxu0 %v2767
        %2992 = vmatprep.subr.bf16.mxu0 0
        %2993 = vmatpush1.bf16.msra.mxu0 %v2770
        %2994 = vmatprep.subr.bf16.mxu0 0
        %2995 = vmatpush1.bf16.msra.mxu0 %v2773
        %2996 = vmatprep.subr.bf16.mxu0 0
        %2997 = vmatpush1.bf16.msra.mxu0 %v2776
        %2998 = vmatprep.subr.bf16.mxu0 0
        %2999 = vmatpush1.bf16.msra.mxu0 %v2779
        %3000 = vmatprep.subr.bf16.mxu0 0
        %3001 = vmatpush1.bf16.msra.mxu0 %v2782
        %3002 = vmatprep.subr.bf16.mxu0 0
        %3003 = vmatpush1.bf16.msra.mxu0 %v2785
        %3004 = vmatprep.subr.bf16.mxu0 0
        %3005 = vmatpush1.bf16.msra.mxu0 %v2788
        %3006 = vmatprep.subr.bf16.mxu0 0
        %3007 = vmatpush1.bf16.msra.mxu0 %v2791
        %3008 = vmatprep.subr.bf16.mxu0 0
        %3009 = vmatpush1.bf16.msra.mxu0 %v2794
        %3010 = vmatprep.subr.bf16.mxu0 0
        %3011 = vmatpush1.bf16.msra.mxu0 %v2797
        %3012 = vmatprep.subr.bf16.mxu0 0
        %3013 = vmatpush1.bf16.msra.mxu0 %v2800
        %3014 = vmatprep.subr.bf16.mxu0 0
        %3015 = vmatpush1.bf16.msra.mxu0 %v2803
        %3016 = vmatprep.subr.bf16.mxu0 0
        %3017 = vmatpush1.bf16.msra.mxu0 %v2806
        %3018 = vmatprep.subr.bf16.mxu0 0
        %3019 = vmatpush1.bf16.msra.mxu0 %v2809
        %3020 = vmatprep.mubr.bf16.mxu0 %v1140
        %3021 = vmatmul.mubr.bf16.gmra.mrb[0].mxu0 %v1139
        %v3022 = vpop.f32.mrb[0].mxu0
        %v3023 = vadd.f32 0.0, %v3022
        %v3024 = vpop.f32.mrb[0].mxu0
        %v3025 = vpop.f32.mrb[0].mxu0
        %v3026 = vpop.f32.mrb[0].mxu0
        %3027 = vdwg.mxu0
        %3028 = vmatprep.subr.bf16.mxu0 0
        %3029 = vmatpush1.bf16.msra.mxu0 %v2812
        %3030 = vmatprep.subr.bf16.mxu0 0
        %3031 = vmatpush1.bf16.msra.mxu0 %v2815
        %3032 = vmatprep.subr.bf16.mxu0 0
        %3033 = vmatpush1.bf16.msra.mxu0 %v2818
        %3034 = vmatprep.subr.bf16.mxu0 0
        %3035 = vmatpush1.bf16.msra.mxu0 %v2821
        %3036 = vmatprep.subr.bf16.mxu0 0
        %3037 = vmatpush1.bf16.msra.mxu0 %v2824
        %3038 = vmatprep.subr.bf16.mxu0 0
        %3039 = vmatpush1.bf16.msra.mxu0 %v2827
        %3040 = vmatprep.subr.bf16.mxu0 0
        %3041 = vmatpush1.bf16.msra.mxu0 %v2830
        %3042 = vmatprep.subr.bf16.mxu0 0
        %3043 = vmatpush1.bf16.msra.mxu0 %v2833
        %3044 = vmatprep.subr.bf16.mxu0 0
        %3045 = vmatpush1.bf16.msra.mxu0 0
        %3046 = vmatprep.subr.bf16.mxu0 0
        %3047 = vmatpush1.bf16.msra.mxu0 0
        %3048 = vmatprep.subr.bf16.mxu0 0
        %3049 = vmatpush1.bf16.msra.mxu0 0
        %3050 = vmatprep.subr.bf16.mxu0 0
        %3051 = vmatpush1.bf16.msra.mxu0 0
        %3052 = vmatprep.subr.bf16.mxu0 0
        %3053 = vmatpush1.bf16.msra.mxu0 0
        %3054 = vmatprep.subr.bf16.mxu0 0
        %3055 = vmatpush1.bf16.msra.mxu0 0
        %3056 = vmatprep.subr.bf16.mxu0 0
        %3057 = vmatpush1.bf16.msra.mxu0 0
        %3058 = vmatprep.subr.bf16.mxu0 0
        %3059 = vmatpush1.bf16.msra.mxu0 0
        %3060 = vmatprep.mubr.bf16.mxu0 0
        %3061 = vmatmul.mubr.bf16.gmra.mrb[0].mxu0 %v1141
        %v3062 = vpop.f32.mrb[0].mxu0
        %v3063 = vadd.f32 %v3023, %v3062
        %v3064 = vpop.f32.mrb[0].mxu0
        %v3065 = vpop.f32.mrb[0].mxu0
        %v3066 = vpop.f32.mrb[0].mxu0
        %3067 = vdwg.mxu0
        %v3068 = vmul.f32 %v1698, 0.05103104
        %v3069 = vmul.f32 %v1700, 0.05103104
        %v3070 = vmul.f32 %v1779, 0.05103104
        %v3071 = vpack.c.bf16 %v3068, %v3068
        %v3072 = vpack.c.bf16 %v3069, %v3069
        %v3073 = vpack.c.bf16 %v3070, %v3070
        %v3074 = vpack.c.bf16 %v2340, %v2340
        %v3075 = vpack.c.bf16 %v2342, %v2342
        %v3076 = vpack.c.bf16 %v2421, %v2421
        %v3077 = vpack.c.bf16 %v2982, %v2982
        %v3078 = vpack.c.bf16 %v2984, %v2984
        %v3079 = vpack.c.bf16 %v3063, %v3063
        %v3080 = vlaneseq
        %v3081 = vshrl.u32 %v3080, 7
        %v3082 = vlaneseq
        %v3083 = vand.u32 %v3082, 127
        %vm3084 = vcmp.ge.s32.totalorder %v3081, %v3083
        %vm3085 = vcmask 523264
        %v3087 = vsel %vm3085, %v3071, 0
        %v3090 = vsel %vm3085, %v3074, 0
        %3092 = vmatprep.subr.bf16.mxu0 0
        %3093 = vmatpush1.bf16.xpose.msra.mxu0 %v3090
        %3094 = vmatprep.subr.bf16.mxu0 0
        %3095 = vmatpush1.bf16.xpose.msra.mxu0 0
        %3096 = vmatprep.subr.bf16.mxu0 0
        %3097 = vmatpush1.bf16.xpose.msra.mxu0 0
        %3098 = vmatprep.subr.bf16.mxu0 0
        %3099 = vmatpush1.bf16.xpose.msra.mxu0 0
        %3100 = vmatprep.subr.bf16.mxu0 0
        %3101 = vmatpush1.bf16.xpose.msra.mxu0 0
        %3102 = vmatprep.subr.bf16.mxu0 0
        %3103 = vmatpush1.bf16.xpose.msra.mxu0 0
        %3104 = vmatprep.subr.bf16.mxu0 0
        %3105 = vmatpush1.bf16.xpose.msra.mxu0 0
        %3106 = vmatprep.subr.bf16.mxu0 0
        %3107 = vmatpush1.bf16.xpose.msra.mxu0 0
        %3108 = vmatprep.subr.bf16.mxu0 0
        %3109 = vmatpush1.bf16.xpose.msra.mxu0 0
        %3110 = vmatprep.subr.bf16.mxu0 0
        %3111 = vmatpush1.bf16.xpose.msra.mxu0 0
        %3112 = vmatprep.subr.bf16.mxu0 0
        %3113 = vmatpush1.bf16.xpose.msra.mxu0 0
        %3114 = vmatprep.subr.bf16.mxu0 0
        %3115 = vmatpush1.bf16.xpose.msra.mxu0 0
        %3116 = vmatprep.subr.bf16.mxu0 0
        %3117 = vmatpush1.bf16.xpose.msra.mxu0 0
        %3118 = vmatprep.subr.bf16.mxu0 0
        %3119 = vmatpush1.bf16.xpose.msra.mxu0 0
        %3120 = vmatprep.subr.bf16.mxu0 0
        %3121 = vmatpush1.bf16.xpose.msra.mxu0 0
        %3122 = vmatprep.subr.bf16.mxu0 0
        %3123 = vmatpush1.bf16.xpose.msra.mxu0 0
        %3124 = vmatprep.mubr.bf16.mxu0 0
        %3125 = vmatmul.mubr.bf16.gmra.mrb[0].mxu0 %v3087
        %v3126 = vpop.f32.mrb[0].mxu0
        %v3127 = vadd.f32 0.0, %v3126
        %v3128 = vpop.f32.mrb[0].mxu0
        %v3129 = vpop.f32.mrb[0].mxu0
        %v3130 = vpop.f32.mrb[0].mxu0
        %3131 = vdwg.mxu0
        %v3132 = vsel %vm3084, %v3127, -1e+30
        %vm3133 = vcmask 64512
        %v3134 = vsel %vm3133, %v3132, -inf
        %3135 = vmax.xlane.f32.xlu0 %v3134
        %v3136 = vpop.xlane.xlu0 %3135
        %v3137 = vsub.f32 %v3132, %v3136
        %v3138 = vmul.f32 %v3137, 1.442695
        %v3139 = vpow.pop %v3138
        %v3140 = vsel %vm3133, %v3139, 0.0
        %3141 = vadd.xlane.f32.xlu0 %v3140
        %v3142 = vpop.xlane.xlu0 %3141
        %v3143 = vrcp.pop %v3142
        %v3144 = vmul.f32 %v3139, %v3143
        %v3145 = vpack.c.bf16 %v3144, %v3144
        %v3147 = vsel %vm3133, %v3145, 0
        %vm3149 = vcmask 1043456
        %v3151 = vsel %vm3149, %v3077, 0
        %3153 = vmatprep.subr.bf16.mxu0 0
        %3154 = vmatpush1.bf16.msra.mxu0 %v3151
        %3155 = vmatprep.subr.bf16.mxu0 0
        %3156 = vmatpush1.bf16.msra.mxu0 0
        %3157 = vmatprep.subr.bf16.mxu0 0
        %3158 = vmatpush1.bf16.msra.mxu0 0
        %3159 = vmatprep.subr.bf16.mxu0 0
        %3160 = vmatpush1.bf16.msra.mxu0 0
        %3161 = vmatprep.subr.bf16.mxu0 0
        %3162 = vmatpush1.bf16.msra.mxu0 0
        %3163 = vmatprep.subr.bf16.mxu0 0
        %3164 = vmatpush1.bf16.msra.mxu0 0
        %3165 = vmatprep.subr.bf16.mxu0 0
        %3166 = vmatpush1.bf16.msra.mxu0 0
        %3167 = vmatprep.subr.bf16.mxu0 0
        %3168 = vmatpush1.bf16.msra.mxu0 0
        %3169 = vmatprep.subr.bf16.mxu0 0
        %3170 = vmatpush1.bf16.msra.mxu0 0
        %3171 = vmatprep.subr.bf16.mxu0 0
        %3172 = vmatpush1.bf16.msra.mxu0 0
        %3173 = vmatprep.subr.bf16.mxu0 0
        %3174 = vmatpush1.bf16.msra.mxu0 0
        %3175 = vmatprep.subr.bf16.mxu0 0
        %3176 = vmatpush1.bf16.msra.mxu0 0
        %3177 = vmatprep.subr.bf16.mxu0 0
        %3178 = vmatpush1.bf16.msra.mxu0 0
        %3179 = vmatprep.subr.bf16.mxu0 0
        %3180 = vmatpush1.bf16.msra.mxu0 0
        %3181 = vmatprep.subr.bf16.mxu0 0
        %3182 = vmatpush1.bf16.msra.mxu0 0
        %3183 = vmatprep.subr.bf16.mxu0 0
        %3184 = vmatpush1.bf16.msra.mxu0 0
        %3185 = vmatprep.mubr.bf16.mxu0 0
        %3186 = vmatmul.mubr.bf16.gmra.mrb[0].mxu0 %v3147
        %v3187 = vpop.f32.mrb[0].mxu0
        %v3188 = vadd.f32 0.0, %v3187
        %v3189 = vpop.f32.mrb[0].mxu0
        %v3190 = vpop.f32.mrb[0].mxu0
        %v3191 = vpop.f32.mrb[0].mxu0
        %3192 = vdwg.mxu0
        %3194 = vrot.lane.b32.xlu0 %v3071, 64
        %v3195 = vpop.permute.xlu0 %3194
        %3197 = vrot.lane.b32.xlu0 %v3074, 64
        %v3198 = vpop.permute.xlu0 %3197
        %v3200 = vsel %vm3085, %v3195, 0
        %v3203 = vsel %vm3085, %v3198, 0
        %3205 = vmatprep.subr.bf16.mxu0 0
        %3206 = vmatpush1.bf16.xpose.msra.mxu0 %v3203
        %3207 = vmatprep.subr.bf16.mxu0 0
        %3208 = vmatpush1.bf16.xpose.msra.mxu0 0
        %3209 = vmatprep.subr.bf16.mxu0 0
        %3210 = vmatpush1.bf16.xpose.msra.mxu0 0
        %3211 = vmatprep.subr.bf16.mxu0 0
        %3212 = vmatpush1.bf16.xpose.msra.mxu0 0
        %3213 = vmatprep.subr.bf16.mxu0 0
        %3214 = vmatpush1.bf16.xpose.msra.mxu0 0
        %3215 = vmatprep.subr.bf16.mxu0 0
        %3216 = vmatpush1.bf16.xpose.msra.mxu0 0
        %3217 = vmatprep.subr.bf16.mxu0 0
        %3218 = vmatpush1.bf16.xpose.msra.mxu0 0
        %3219 = vmatprep.subr.bf16.mxu0 0
        %3220 = vmatpush1.bf16.xpose.msra.mxu0 0
        %3221 = vmatprep.subr.bf16.mxu0 0
        %3222 = vmatpush1.bf16.xpose.msra.mxu0 0
        %3223 = vmatprep.subr.bf16.mxu0 0
        %3224 = vmatpush1.bf16.xpose.msra.mxu0 0
        %3225 = vmatprep.subr.bf16.mxu0 0
        %3226 = vmatpush1.bf16.xpose.msra.mxu0 0
        %3227 = vmatprep.subr.bf16.mxu0 0
        %3228 = vmatpush1.bf16.xpose.msra.mxu0 0
        %3229 = vmatprep.subr.bf16.mxu0 0
        %3230 = vmatpush1.bf16.xpose.msra.mxu0 0
        %3231 = vmatprep.subr.bf16.mxu0 0
        %3232 = vmatpush1.bf16.xpose.msra.mxu0 0
        %3233 = vmatprep.subr.bf16.mxu0 0
        %3234 = vmatpush1.bf16.xpose.msra.mxu0 0
        %3235 = vmatprep.subr.bf16.mxu0 0
        %3236 = vmatpush1.bf16.xpose.msra.mxu0 0
        %3237 = vmatprep.mubr.bf16.mxu0 0
        %3238 = vmatmul.mubr.bf16.gmra.mrb[0].mxu0 %v3200
        %v3239 = vpop.f32.mrb[0].mxu0
        %v3240 = vadd.f32 0.0, %v3239
        %v3241 = vpop.f32.mrb[0].mxu0
        %v3242 = vpop.f32.mrb[0].mxu0
        %v3243 = vpop.f32.mrb[0].mxu0
        %3244 = vdwg.mxu0
        %v3245 = vsel %vm3084, %v3240, -1e+30
        %v3246 = vsel %vm3133, %v3245, -inf
        %3247 = vmax.xlane.f32.xlu0 %v3246
        %v3248 = vpop.xlane.xlu0 %3247
        %v3249 = vsub.f32 %v3245, %v3248
        %v3250 = vmul.f32 %v3249, 1.442695
        %v3251 = vpow.pop %v3250
        %v3252 = vsel %vm3133, %v3251, 0.0
        %3253 = vadd.xlane.f32.xlu0 %v3252
        %v3254 = vpop.xlane.xlu0 %3253
        %v3255 = vrcp.pop %v3254
        %v3256 = vmul.f32 %v3251, %v3255
        %v3257 = vpack.c.bf16 %v3256, %v3256
        %3259 = vrot.lane.b32.xlu0 %v3077, 64
        %v3260 = vpop.permute.xlu0 %3259
        %v3262 = vsel %vm3133, %v3257, 0
        %v3265 = vsel %vm3149, %v3260, 0
        %3267 = vmatprep.subr.bf16.mxu0 0
        %3268 = vmatpush1.bf16.msra.mxu0 %v3265
        %3269 = vmatprep.subr.bf16.mxu0 0
        %3270 = vmatpush1.bf16.msra.mxu0 0
        %3271 = vmatprep.subr.bf16.mxu0 0
        %3272 = vmatpush1.bf16.msra.mxu0 0
        %3273 = vmatprep.subr.bf16.mxu0 0
        %3274 = vmatpush1.bf16.msra.mxu0 0
        %3275 = vmatprep.subr.bf16.mxu0 0
        %3276 = vmatpush1.bf16.msra.mxu0 0
        %3277 = vmatprep.subr.bf16.mxu0 0
        %3278 = vmatpush1.bf16.msra.mxu0 0
        %3279 = vmatprep.subr.bf16.mxu0 0
        %3280 = vmatpush1.bf16.msra.mxu0 0
        %3281 = vmatprep.subr.bf16.mxu0 0
        %3282 = vmatpush1.bf16.msra.mxu0 0
        %3283 = vmatprep.subr.bf16.mxu0 0
        %3284 = vmatpush1.bf16.msra.mxu0 0
        %3285 = vmatprep.subr.bf16.mxu0 0
        %3286 = vmatpush1.bf16.msra.mxu0 0
        %3287 = vmatprep.subr.bf16.mxu0 0
        %3288 = vmatpush1.bf16.msra.mxu0 0
        %3289 = vmatprep.subr.bf16.mxu0 0
        %3290 = vmatpush1.bf16.msra.mxu0 0
        %3291 = vmatprep.subr.bf16.mxu0 0
        %3292 = vmatpush1.bf16.msra.mxu0 0
        %3293 = vmatprep.subr.bf16.mxu0 0
        %3294 = vmatpush1.bf16.msra.mxu0 0
        %3295 = vmatprep.subr.bf16.mxu0 0
        %3296 = vmatpush1.bf16.msra.mxu0 0
        %3297 = vmatprep.subr.bf16.mxu0 0
        %3298 = vmatpush1.bf16.msra.mxu0 0
        %3299 = vmatprep.mubr.bf16.mxu0 0
        %3300 = vmatmul.mubr.bf16.gmra.mrb[0].mxu0 %v3262
        %v3301 = vpop.f32.mrb[0].mxu0
        %v3302 = vadd.f32 0.0, %v3301
        %v3303 = vpop.f32.mrb[0].mxu0
        %v3304 = vpop.f32.mrb[0].mxu0
        %v3305 = vpop.f32.mrb[0].mxu0
        %3306 = vdwg.mxu0
        %v3308 = vsel %vm3085, %v3072, 0
        %v3311 = vsel %vm3085, %v3075, 0
        %3313 = vmatprep.subr.bf16.mxu0 0
        %3314 = vmatpush1.bf16.xpose.msra.mxu0 %v3311
        %3315 = vmatprep.subr.bf16.mxu0 0
        %3316 = vmatpush1.bf16.xpose.msra.mxu0 0
        %3317 = vmatprep.subr.bf16.mxu0 0
        %3318 = vmatpush1.bf16.xpose.msra.mxu0 0
        %3319 = vmatprep.subr.bf16.mxu0 0
        %3320 = vmatpush1.bf16.xpose.msra.mxu0 0
        %3321 = vmatprep.subr.bf16.mxu0 0
        %3322 = vmatpush1.bf16.xpose.msra.mxu0 0
        %3323 = vmatprep.subr.bf16.mxu0 0
        %3324 = vmatpush1.bf16.xpose.msra.mxu0 0
        %3325 = vmatprep.subr.bf16.mxu0 0
        %3326 = vmatpush1.bf16.xpose.msra.mxu0 0
        %3327 = vmatprep.subr.bf16.mxu0 0
        %3328 = vmatpush1.bf16.xpose.msra.mxu0 0
        %3329 = vmatprep.subr.bf16.mxu0 0
        %3330 = vmatpush1.bf16.xpose.msra.mxu0 0
        %3331 = vmatprep.subr.bf16.mxu0 0
        %3332 = vmatpush1.bf16.xpose.msra.mxu0 0
        %3333 = vmatprep.subr.bf16.mxu0 0
        %3334 = vmatpush1.bf16.xpose.msra.mxu0 0
        %3335 = vmatprep.subr.bf16.mxu0 0
        %3336 = vmatpush1.bf16.xpose.msra.mxu0 0
        %3337 = vmatprep.subr.bf16.mxu0 0
        %3338 = vmatpush1.bf16.xpose.msra.mxu0 0
        %3339 = vmatprep.subr.bf16.mxu0 0
        %3340 = vmatpush1.bf16.xpose.msra.mxu0 0
        %3341 = vmatprep.subr.bf16.mxu0 0
        %3342 = vmatpush1.bf16.xpose.msra.mxu0 0
        %3343 = vmatprep.subr.bf16.mxu0 0
        %3344 = vmatpush1.bf16.xpose.msra.mxu0 0
        %3345 = vmatprep.mubr.bf16.mxu0 0
        %3346 = vmatmul.mubr.bf16.gmra.mrb[0].mxu0 %v3308
        %v3347 = vpop.f32.mrb[0].mxu0
        %v3348 = vadd.f32 0.0, %v3347
        %v3349 = vpop.f32.mrb[0].mxu0
        %v3350 = vpop.f32.mrb[0].mxu0
        %v3351 = vpop.f32.mrb[0].mxu0
        %3352 = vdwg.mxu0
        %v3353 = vsel %vm3084, %v3348, -1e+30
        %v3354 = vsel %vm3133, %v3353, -inf
        %3355 = vmax.xlane.f32.xlu0 %v3354
        %v3356 = vpop.xlane.xlu0 %3355
        %v3357 = vsub.f32 %v3353, %v3356
        %v3358 = vmul.f32 %v3357, 1.442695
        %v3359 = vpow.pop %v3358
        %v3360 = vsel %vm3133, %v3359, 0.0
        %3361 = vadd.xlane.f32.xlu0 %v3360
        %v3362 = vpop.xlane.xlu0 %3361
        %v3363 = vrcp.pop %v3362
        %v3364 = vmul.f32 %v3359, %v3363
        %v3365 = vpack.c.bf16 %v3364, %v3364
        %v3367 = vsel %vm3133, %v3365, 0
        %v3370 = vsel %vm3149, %v3078, 0
        %3372 = vmatprep.subr.bf16.mxu0 0
        %3373 = vmatpush1.bf16.msra.mxu0 %v3370
        %3374 = vmatprep.subr.bf16.mxu0 0
        %3375 = vmatpush1.bf16.msra.mxu0 0
        %3376 = vmatprep.subr.bf16.mxu0 0
        %3377 = vmatpush1.bf16.msra.mxu0 0
        %3378 = vmatprep.subr.bf16.mxu0 0
        %3379 = vmatpush1.bf16.msra.mxu0 0
        %3380 = vmatprep.subr.bf16.mxu0 0
        %3381 = vmatpush1.bf16.msra.mxu0 0
        %3382 = vmatprep.subr.bf16.mxu0 0
        %3383 = vmatpush1.bf16.msra.mxu0 0
        %3384 = vmatprep.subr.bf16.mxu0 0
        %3385 = vmatpush1.bf16.msra.mxu0 0
        %3386 = vmatprep.subr.bf16.mxu0 0
        %3387 = vmatpush1.bf16.msra.mxu0 0
        %3388 = vmatprep.subr.bf16.mxu0 0
        %3389 = vmatpush1.bf16.msra.mxu0 0
        %3390 = vmatprep.subr.bf16.mxu0 0
        %3391 = vmatpush1.bf16.msra.mxu0 0
        %3392 = vmatprep.subr.bf16.mxu0 0
        %3393 = vmatpush1.bf16.msra.mxu0 0
        %3394 = vmatprep.subr.bf16.mxu0 0
        %3395 = vmatpush1.bf16.msra.mxu0 0
        %3396 = vmatprep.subr.bf16.mxu0 0
        %3397 = vmatpush1.bf16.msra.mxu0 0
        %3398 = vmatprep.subr.bf16.mxu0 0
        %3399 = vmatpush1.bf16.msra.mxu0 0
        %3400 = vmatprep.subr.bf16.mxu0 0
        %3401 = vmatpush1.bf16.msra.mxu0 0
        %3402 = vmatprep.subr.bf16.mxu0 0
        %3403 = vmatpush1.bf16.msra.mxu0 0
        %3404 = vmatprep.mubr.bf16.mxu0 0
        %3405 = vmatmul.mubr.bf16.gmra.mrb[0].mxu0 %v3367
        %v3406 = vpop.f32.mrb[0].mxu0
        %v3407 = vadd.f32 0.0, %v3406
        %v3408 = vpop.f32.mrb[0].mxu0
        %v3409 = vpop.f32.mrb[0].mxu0
        %v3410 = vpop.f32.mrb[0].mxu0
        %3411 = vdwg.mxu0
        %3413 = vrot.lane.b32.xlu0 %v3072, 64
        %v3414 = vpop.permute.xlu0 %3413
        %3416 = vrot.lane.b32.xlu0 %v3075, 64
        %v3417 = vpop.permute.xlu0 %3416
        %v3419 = vsel %vm3085, %v3414, 0
        %v3422 = vsel %vm3085, %v3417, 0
        %3424 = vmatprep.subr.bf16.mxu0 0
        %3425 = vmatpush1.bf16.xpose.msra.mxu0 %v3422
        %3426 = vmatprep.subr.bf16.mxu0 0
        %3427 = vmatpush1.bf16.xpose.msra.mxu0 0
        %3428 = vmatprep.subr.bf16.mxu0 0
        %3429 = vmatpush1.bf16.xpose.msra.mxu0 0
        %3430 = vmatprep.subr.bf16.mxu0 0
        %3431 = vmatpush1.bf16.xpose.msra.mxu0 0
        %3432 = vmatprep.subr.bf16.mxu0 0
        %3433 = vmatpush1.bf16.xpose.msra.mxu0 0
        %3434 = vmatprep.subr.bf16.mxu0 0
        %3435 = vmatpush1.bf16.xpose.msra.mxu0 0
        %3436 = vmatprep.subr.bf16.mxu0 0
        %3437 = vmatpush1.bf16.xpose.msra.mxu0 0
        %3438 = vmatprep.subr.bf16.mxu0 0
        %3439 = vmatpush1.bf16.xpose.msra.mxu0 0
        %3440 = vmatprep.subr.bf16.mxu0 0
        %3441 = vmatpush1.bf16.xpose.msra.mxu0 0
        %3442 = vmatprep.subr.bf16.mxu0 0
        %3443 = vmatpush1.bf16.xpose.msra.mxu0 0
        %3444 = vmatprep.subr.bf16.mxu0 0
        %3445 = vmatpush1.bf16.xpose.msra.mxu0 0
        %3446 = vmatprep.subr.bf16.mxu0 0
        %3447 = vmatpush1.bf16.xpose.msra.mxu0 0
        %3448 = vmatprep.subr.bf16.mxu0 0
        %3449 = vmatpush1.bf16.xpose.msra.mxu0 0
        %3450 = vmatprep.subr.bf16.mxu0 0
        %3451 = vmatpush1.bf16.xpose.msra.mxu0 0
        %3452 = vmatprep.subr.bf16.mxu0 0
        %3453 = vmatpush1.bf16.xpose.msra.mxu0 0
        %3454 = vmatprep.subr.bf16.mxu0 0
        %3455 = vmatpush1.bf16.xpose.msra.mxu0 0
        %3456 = vmatprep.mubr.bf16.mxu0 0
        %3457 = vmatmul.mubr.bf16.gmra.mrb[0].mxu0 %v3419
        %v3458 = vpop.f32.mrb[0].mxu0
        %v3459 = vadd.f32 0.0, %v3458
        %v3460 = vpop.f32.mrb[0].mxu0
        %v3461 = vpop.f32.mrb[0].mxu0
        %v3462 = vpop.f32.mrb[0].mxu0
        %3463 = vdwg.mxu0
        %v3464 = vsel %vm3084, %v3459, -1e+30
        %v3465 = vsel %vm3133, %v3464, -inf
        %3466 = vmax.xlane.f32.xlu0 %v3465
        %v3467 = vpop.xlane.xlu0 %3466
        %v3468 = vsub.f32 %v3464, %v3467
        %v3469 = vmul.f32 %v3468, 1.442695
        %v3470 = vpow.pop %v3469
        %v3471 = vsel %vm3133, %v3470, 0.0
        %3472 = vadd.xlane.f32.xlu0 %v3471
        %v3473 = vpop.xlane.xlu0 %3472
        %v3474 = vrcp.pop %v3473
        %v3475 = vmul.f32 %v3470, %v3474
        %v3476 = vpack.c.bf16 %v3475, %v3475
        %3478 = vrot.lane.b32.xlu0 %v3078, 64
        %v3479 = vpop.permute.xlu0 %3478
        %v3481 = vsel %vm3133, %v3476, 0
        %v3484 = vsel %vm3149, %v3479, 0
        %3486 = vmatprep.subr.bf16.mxu0 0
        %3487 = vmatpush1.bf16.msra.mxu0 %v3484
        %3488 = vmatprep.subr.bf16.mxu0 0
        %3489 = vmatpush1.bf16.msra.mxu0 0
        %3490 = vmatprep.subr.bf16.mxu0 0
        %3491 = vmatpush1.bf16.msra.mxu0 0
        %3492 = vmatprep.subr.bf16.mxu0 0
        %3493 = vmatpush1.bf16.msra.mxu0 0
        %3494 = vmatprep.subr.bf16.mxu0 0
        %3495 = vmatpush1.bf16.msra.mxu0 0
        %3496 = vmatprep.subr.bf16.mxu0 0
        %3497 = vmatpush1.bf16.msra.mxu0 0
        %3498 = vmatprep.subr.bf16.mxu0 0
        %3499 = vmatpush1.bf16.msra.mxu0 0
        %3500 = vmatprep.subr.bf16.mxu0 0
        %3501 = vmatpush1.bf16.msra.mxu0 0
        %3502 = vmatprep.subr.bf16.mxu0 0
        %3503 = vmatpush1.bf16.msra.mxu0 0
        %3504 = vmatprep.subr.bf16.mxu0 0
        %3505 = vmatpush1.bf16.msra.mxu0 0
        %3506 = vmatprep.subr.bf16.mxu0 0
        %3507 = vmatpush1.bf16.msra.mxu0 0
        %3508 = vmatprep.subr.bf16.mxu0 0
        %3509 = vmatpush1.bf16.msra.mxu0 0
        %3510 = vmatprep.subr.bf16.mxu0 0
        %3511 = vmatpush1.bf16.msra.mxu0 0
        %3512 = vmatprep.subr.bf16.mxu0 0
        %3513 = vmatpush1.bf16.msra.mxu0 0
        %3514 = vmatprep.subr.bf16.mxu0 0
        %3515 = vmatpush1.bf16.msra.mxu0 0
        %3516 = vmatprep.subr.bf16.mxu0 0
        %3517 = vmatpush1.bf16.msra.mxu0 0
        %3518 = vmatprep.mubr.bf16.mxu0 0
        %3519 = vmatmul.mubr.bf16.gmra.mrb[0].mxu0 %v3481
        %v3520 = vpop.f32.mrb[0].mxu0
        %v3521 = vadd.f32 0.0, %v3520
        %v3522 = vpop.f32.mrb[0].mxu0
        %v3523 = vpop.f32.mrb[0].mxu0
        %v3524 = vpop.f32.mrb[0].mxu0
        %3525 = vdwg.mxu0
        %v3527 = vsel %vm3085, %v3073, 0
        %v3530 = vsel %vm3085, %v3076, 0
        %3532 = vmatprep.subr.bf16.mxu0 0
        %3533 = vmatpush1.bf16.xpose.msra.mxu0 %v3530
        %3534 = vmatprep.subr.bf16.mxu0 0
        %3535 = vmatpush1.bf16.xpose.msra.mxu0 0
        %3536 = vmatprep.subr.bf16.mxu0 0
        %3537 = vmatpush1.bf16.xpose.msra.mxu0 0
        %3538 = vmatprep.subr.bf16.mxu0 0
        %3539 = vmatpush1.bf16.xpose.msra.mxu0 0
        %3540 = vmatprep.subr.bf16.mxu0 0
        %3541 = vmatpush1.bf16.xpose.msra.mxu0 0
        %3542 = vmatprep.subr.bf16.mxu0 0
        %3543 = vmatpush1.bf16.xpose.msra.mxu0 0
        %3544 = vmatprep.subr.bf16.mxu0 0
        %3545 = vmatpush1.bf16.xpose.msra.mxu0 0
        %3546 = vmatprep.subr.bf16.mxu0 0
        %3547 = vmatpush1.bf16.xpose.msra.mxu0 0
        %3548 = vmatprep.subr.bf16.mxu0 0
        %3549 = vmatpush1.bf16.xpose.msra.mxu0 0
        %3550 = vmatprep.subr.bf16.mxu0 0
        %3551 = vmatpush1.bf16.xpose.msra.mxu0 0
        %3552 = vmatprep.subr.bf16.mxu0 0
        %3553 = vmatpush1.bf16.xpose.msra.mxu0 0
        %3554 = vmatprep.subr.bf16.mxu0 0
        %3555 = vmatpush1.bf16.xpose.msra.mxu0 0
        %3556 = vmatprep.subr.bf16.mxu0 0
        %3557 = vmatpush1.bf16.xpose.msra.mxu0 0
        %3558 = vmatprep.subr.bf16.mxu0 0
        %3559 = vmatpush1.bf16.xpose.msra.mxu0 0
        %3560 = vmatprep.subr.bf16.mxu0 0
        %3561 = vmatpush1.bf16.xpose.msra.mxu0 0
        %3562 = vmatprep.subr.bf16.mxu0 0
        %3563 = vmatpush1.bf16.xpose.msra.mxu0 0
        %3564 = vmatprep.mubr.bf16.mxu0 0
        %3565 = vmatmul.mubr.bf16.gmra.mrb[0].mxu0 %v3527
        %v3566 = vpop.f32.mrb[0].mxu0
        %v3567 = vadd.f32 0.0, %v3566
        %v3568 = vpop.f32.mrb[0].mxu0
        %v3569 = vpop.f32.mrb[0].mxu0
        %v3570 = vpop.f32.mrb[0].mxu0
        %3571 = vdwg.mxu0
        %v3572 = vsel %vm3084, %v3567, -1e+30
        %v3573 = vsel %vm3133, %v3572, -inf
        %3574 = vmax.xlane.f32.xlu0 %v3573
        %v3575 = vpop.xlane.xlu0 %3574
        %v3576 = vsub.f32 %v3572, %v3575
        %v3577 = vmul.f32 %v3576, 1.442695
        %v3578 = vpow.pop %v3577
        %v3579 = vsel %vm3133, %v3578, 0.0
        %3580 = vadd.xlane.f32.xlu0 %v3579
        %v3581 = vpop.xlane.xlu0 %3580
        %v3582 = vrcp.pop %v3581
        %v3583 = vmul.f32 %v3578, %v3582
        %v3584 = vpack.c.bf16 %v3583, %v3583
        %v3586 = vsel %vm3133, %v3584, 0
        %v3589 = vsel %vm3149, %v3079, 0
        %3591 = vmatprep.subr.bf16.mxu0 0
        %3592 = vmatpush1.bf16.msra.mxu0 %v3589
        %3593 = vmatprep.subr.bf16.mxu0 0
        %3594 = vmatpush1.bf16.msra.mxu0 0
        %3595 = vmatprep.subr.bf16.mxu0 0
        %3596 = vmatpush1.bf16.msra.mxu0 0
        %3597 = vmatprep.subr.bf16.mxu0 0
        %3598 = vmatpush1.bf16.msra.mxu0 0
        %3599 = vmatprep.subr.bf16.mxu0 0
        %3600 = vmatpush1.bf16.msra.mxu0 0
        %3601 = vmatprep.subr.bf16.mxu0 0
        %3602 = vmatpush1.bf16.msra.mxu0 0
        %3603 = vmatprep.subr.bf16.mxu0 0
        %3604 = vmatpush1.bf16.msra.mxu0 0
        %3605 = vmatprep.subr.bf16.mxu0 0
        %3606 = vmatpush1.bf16.msra.mxu0 0
        %3607 = vmatprep.subr.bf16.mxu0 0
        %3608 = vmatpush1.bf16.msra.mxu0 0
        %3609 = vmatprep.subr.bf16.mxu0 0
        %3610 = vmatpush1.bf16.msra.mxu0 0
        %3611 = vmatprep.subr.bf16.mxu0 0
        %3612 = vmatpush1.bf16.msra.mxu0 0
        %3613 = vmatprep.subr.bf16.mxu0 0
        %3614 = vmatpush1.bf16.msra.mxu0 0
        %3615 = vmatprep.subr.bf16.mxu0 0
        %3616 = vmatpush1.bf16.msra.mxu0 0
        %3617 = vmatprep.subr.bf16.mxu0 0
        %3618 = vmatpush1.bf16.msra.mxu0 0
        %3619 = vmatprep.subr.bf16.mxu0 0
        %3620 = vmatpush1.bf16.msra.mxu0 0
        %3621 = vmatprep.subr.bf16.mxu0 0
        %3622 = vmatpush1.bf16.msra.mxu0 0
        %3623 = vmatprep.mubr.bf16.mxu0 0
        %3624 = vmatmul.mubr.bf16.gmra.mrb[0].mxu0 %v3586
        %v3625 = vpop.f32.mrb[0].mxu0
        %v3626 = vadd.f32 0.0, %v3625
        %v3627 = vpop.f32.mrb[0].mxu0
        %v3628 = vpop.f32.mrb[0].mxu0
        %v3629 = vpop.f32.mrb[0].mxu0
        %3630 = vdwg.mxu0
        %3632 = vrot.lane.b32.xlu0 %v3073, 64
        %v3633 = vpop.permute.xlu0 %3632
        %3635 = vrot.lane.b32.xlu0 %v3076, 64
        %v3636 = vpop.permute.xlu0 %3635
        %v3638 = vsel %vm3085, %v3633, 0
        %v3641 = vsel %vm3085, %v3636, 0
        %3643 = vmatprep.subr.bf16.mxu0 0
        %3644 = vmatpush1.bf16.xpose.msra.mxu0 %v3641
        %3645 = vmatprep.subr.bf16.mxu0 0
        %3646 = vmatpush1.bf16.xpose.msra.mxu0 0
        %3647 = vmatprep.subr.bf16.mxu0 0
        %3648 = vmatpush1.bf16.xpose.msra.mxu0 0
        %3649 = vmatprep.subr.bf16.mxu0 0
        %3650 = vmatpush1.bf16.xpose.msra.mxu0 0
        %3651 = vmatprep.subr.bf16.mxu0 0
        %3652 = vmatpush1.bf16.xpose.msra.mxu0 0
        %3653 = vmatprep.subr.bf16.mxu0 0
        %3654 = vmatpush1.bf16.xpose.msra.mxu0 0
        %3655 = vmatprep.subr.bf16.mxu0 0
        %3656 = vmatpush1.bf16.xpose.msra.mxu0 0
        %3657 = vmatprep.subr.bf16.mxu0 0
        %3658 = vmatpush1.bf16.xpose.msra.mxu0 0
        %3659 = vmatprep.subr.bf16.mxu0 0
        %3660 = vmatpush1.bf16.xpose.msra.mxu0 0
        %3661 = vmatprep.subr.bf16.mxu0 0
        %3662 = vmatpush1.bf16.xpose.msra.mxu0 0
        %3663 = vmatprep.subr.bf16.mxu0 0
        %3664 = vmatpush1.bf16.xpose.msra.mxu0 0
        %3665 = vmatprep.subr.bf16.mxu0 0
        %3666 = vmatpush1.bf16.xpose.msra.mxu0 0
        %3667 = vmatprep.subr.bf16.mxu0 0
        %3668 = vmatpush1.bf16.xpose.msra.mxu0 0
        %3669 = vmatprep.subr.bf16.mxu0 0
        %3670 = vmatpush1.bf16.xpose.msra.mxu0 0
        %3671 = vmatprep.subr.bf16.mxu0 0
        %3672 = vmatpush1.bf16.xpose.msra.mxu0 0
        %3673 = vmatprep.subr.bf16.mxu0 0
        %3674 = vmatpush1.bf16.xpose.msra.mxu0 0
        %3675 = vmatprep.mubr.bf16.mxu0 0
        %3676 = vmatmul.mubr.bf16.gmra.mrb[0].mxu0 %v3638
        %v3677 = vpop.f32.mrb[0].mxu0
        %v3678 = vadd.f32 0.0, %v3677
        %v3679 = vpop.f32.mrb[0].mxu0
        %v3680 = vpop.f32.mrb[0].mxu0
        %v3681 = vpop.f32.mrb[0].mxu0
        %3682 = vdwg.mxu0
        %v3683 = vsel %vm3084, %v3678, -1e+30
        %v3684 = vsel %vm3133, %v3683, -inf
        %3685 = vmax.xlane.f32.xlu0 %v3684
        %v3686 = vpop.xlane.xlu0 %3685
        %v3687 = vsub.f32 %v3683, %v3686
        %v3688 = vmul.f32 %v3687, 1.442695
        %v3689 = vpow.pop %v3688
        %v3690 = vsel %vm3133, %v3689, 0.0
        %3691 = vadd.xlane.f32.xlu0 %v3690
        %v3692 = vpop.xlane.xlu0 %3691
        %v3693 = vrcp.pop %v3692
        %v3694 = vmul.f32 %v3689, %v3693
        %v3695 = vpack.c.bf16 %v3694, %v3694
        %3697 = vrot.lane.b32.xlu0 %v3079, 64
        %v3698 = vpop.permute.xlu0 %3697
        %v3700 = vsel %vm3133, %v3695, 0
        %v3703 = vsel %vm3149, %v3698, 0
        %3705 = vmatprep.subr.bf16.mxu0 0
        %3706 = vmatpush1.bf16.msra.mxu0 %v3703
        %3707 = vmatprep.subr.bf16.mxu0 0
        %3708 = vmatpush1.bf16.msra.mxu0 0
        %3709 = vmatprep.subr.bf16.mxu0 0
        %3710 = vmatpush1.bf16.msra.mxu0 0
        %3711 = vmatprep.subr.bf16.mxu0 0
        %3712 = vmatpush1.bf16.msra.mxu0 0
        %3713 = vmatprep.subr.bf16.mxu0 0
        %3714 = vmatpush1.bf16.msra.mxu0 0
        %3715 = vmatprep.subr.bf16.mxu0 0
        %3716 = vmatpush1.bf16.msra.mxu0 0
        %3717 = vmatprep.subr.bf16.mxu0 0
        %3718 = vmatpush1.bf16.msra.mxu0 0
        %3719 = vmatprep.subr.bf16.mxu0 0
        %3720 = vmatpush1.bf16.msra.mxu0 0
        %3721 = vmatprep.subr.bf16.mxu0 0
        %3722 = vmatpush1.bf16.msra.mxu0 0
        %3723 = vmatprep.subr.bf16.mxu0 0
        %3724 = vmatpush1.bf16.msra.mxu0 0
        %3725 = vmatprep.subr.bf16.mxu0 0
        %3726 = vmatpush1.bf16.msra.mxu0 0
        %3727 = vmatprep.subr.bf16.mxu0 0
        %3728 = vmatpush1.bf16.msra.mxu0 0
        %3729 = vmatprep.subr.bf16.mxu0 0
        %3730 = vmatpush1.bf16.msra.mxu0 0
        %3731 = vmatprep.subr.bf16.mxu0 0
        %3732 = vmatpush1.bf16.msra.mxu0 0
        %3733 = vmatprep.subr.bf16.mxu0 0
        %3734 = vmatpush1.bf16.msra.mxu0 0
        %3735 = vmatprep.subr.bf16.mxu0 0
        %3736 = vmatpush1.bf16.msra.mxu0 0
        %3737 = vmatprep.mubr.bf16.mxu0 0
        %3738 = vmatmul.mubr.bf16.gmra.mrb[0].mxu0 %v3700
        %v3739 = vpop.f32.mrb[0].mxu0
        %v3740 = vadd.f32 0.0, %v3739
        %v3741 = vpop.f32.mrb[0].mxu0
        %v3742 = vpop.f32.mrb[0].mxu0
        %v3743 = vpop.f32.mrb[0].mxu0
        %3744 = vdwg.mxu0
        %3746 = vrot.lane.b32.xlu0 %v3302, 64
        %v3747 = vpop.permute.xlu0 %3746
        %3750 = vrot.lane.b32.xlu0 %v3521, 64
        %v3751 = vpop.permute.xlu0 %3750
        %3754 = vrot.lane.b32.xlu0 %v3740, 64
        %v3755 = vpop.permute.xlu0 %3754
        %v3757 = vsel %vm3085, %v3188, %v3747
        %v3758 = vsel %vm3085, %v3407, %v3751
        %v3759 = vsel %vm3085, %v3626, %v3755
        %v3760 = vpack.c.bf16 %v3757, %v3757
        %v3761 = vpack.c.bf16 %v3758, %v3758
        %v3762 = vpack.c.bf16 %v3759, %v3759
        %v3763 = vld [vmem:[%s878] sm:$0xff]
        %v3764 = vld [vmem:[%s878 + $0x8] sm:$0xf]
        %v3765 = vld [vmem:[%s878 + $0xc] sm:$0xff]
        %v3766 = vld [vmem:[%s878 + $0x14] sm:$0xf]
        %v3767 = vld [vmem:[%s878 + $0x18] sm:$0xff]
        %v3768 = vld [vmem:[%s878 + $0x20] sm:$0xf]
        %v3769 = vld [vmem:[%s878 + $0x24] sm:$0xff]
        %v3770 = vld [vmem:[%s878 + $0x2c] sm:$0xf]
        %v3771 = vld [vmem:[%s878 + $0x30] sm:$0xff]
        %v3772 = vld [vmem:[%s878 + $0x38] sm:$0xf]
        %v3773 = vld [vmem:[%s878 + $0x3c] sm:$0xff]
        %v3774 = vld [vmem:[%s878 + $0x44] sm:$0xf]
        %v3775 = vld [vmem:[%s878 + $0x48] sm:$0xff]
        %v3776 = vld [vmem:[%s878 + $0x50] sm:$0xf]
        %v3777 = vld [vmem:[%s878 + $0x54] sm:$0xff]
        %v3778 = vld [vmem:[%s878 + $0x5c] sm:$0xf]
        %v3779 = vld [vmem:[%s878 + $0x60] sm:$0xff]
        %v3780 = vld [vmem:[%s878 + $0x68] sm:$0xf]
        %v3781 = vld [vmem:[%s878 + $0x6c] sm:$0xff]
        %v3782 = vld [vmem:[%s878 + $0x74] sm:$0xf]
        %v3783 = vld [vmem:[%s878 + $0x78] sm:$0xff]
        %v3784 = vld [vmem:[%s878 + $0x80] sm:$0xf]
        %v3785 = vld [vmem:[%s878 + $0x84] sm:$0xff]
        %v3786 = vld [vmem:[%s878 + $0x8c] sm:$0xf]
        %v3787 = vld [vmem:[%s878 + $0x90] sm:$0xff]
        %v3788 = vld [vmem:[%s878 + $0x98] sm:$0xf]
        %v3789 = vld [vmem:[%s878 + $0x9c] sm:$0xff]
        %v3790 = vld [vmem:[%s878 + $0xa4] sm:$0xf]
        %v3791 = vld [vmem:[%s878 + $0xa8] sm:$0xff]
        %v3792 = vld [vmem:[%s878 + $0xb0] sm:$0xf]
        %v3793 = vld [vmem:[%s878 + $0xb4] sm:$0xff]
        %v3794 = vld [vmem:[%s878 + $0xbc] sm:$0xf]
        %v3795 = vld [vmem:[%s878 + $0xc0] sm:$0xff]
        %v3796 = vld [vmem:[%s878 + $0xc8] sm:$0xf]
        %v3797 = vld [vmem:[%s878 + $0xcc] sm:$0xff]
        %v3798 = vld [vmem:[%s878 + $0xd4] sm:$0xf]
        %v3799 = vld [vmem:[%s878 + $0xd8] sm:$0xff]
        %v3800 = vld [vmem:[%s878 + $0xe0] sm:$0xf]
        %v3801 = vld [vmem:[%s878 + $0xe4] sm:$0xff]
        %v3802 = vld [vmem:[%s878 + $0xec] sm:$0xf]
        %v3803 = vld [vmem:[%s878 + $0xf0] sm:$0xff]
        %v3804 = vld [vmem:[%s878 + $0xf8] sm:$0xf]
        %v3805 = vld [vmem:[%s878 + $0xfc] sm:$0xff]
        %v3806 = vld [vmem:[%s878 + $0x104] sm:$0xf]
        %v3807 = vld [vmem:[%s878 + $0x108] sm:$0xff]
        %v3808 = vld [vmem:[%s878 + $0x110] sm:$0xf]
        %v3809 = vld [vmem:[%s878 + $0x114] sm:$0xff]
        %v3810 = vld [vmem:[%s878 + $0x11c] sm:$0xf]
        %v3811 = vld [vmem:[%s878 + $0x120] sm:$0xff]
        %v3812 = vld [vmem:[%s878 + $0x128] sm:$0xf]
        %v3813 = vld [vmem:[%s878 + $0x12c] sm:$0xff]
        %v3814 = vld [vmem:[%s878 + $0x134] sm:$0xf]
        %v3815 = vld [vmem:[%s878 + $0x138] sm:$0xff]
        %v3816 = vld [vmem:[%s878 + $0x140] sm:$0xf]
        %v3817 = vld [vmem:[%s878 + $0x144] sm:$0xff]
        %v3818 = vld [vmem:[%s878 + $0x14c] sm:$0xf]
        %v3819 = vld [vmem:[%s878 + $0x150] sm:$0xff]
        %v3820 = vld [vmem:[%s878 + $0x158] sm:$0xf]
        %v3821 = vld [vmem:[%s878 + $0x15c] sm:$0xff]
        %v3822 = vld [vmem:[%s878 + $0x164] sm:$0xf]
        %v3823 = vld [vmem:[%s878 + $0x168] sm:$0xff]
        %v3824 = vld [vmem:[%s878 + $0x170] sm:$0xf]
        %v3825 = vld [vmem:[%s878 + $0x174] sm:$0xff]
        %v3826 = vld [vmem:[%s878 + $0x17c] sm:$0xf]
        %v3827 = vld [vmem:[%s878 + $0x180] sm:$0xff]
        %v3828 = vld [vmem:[%s878 + $0x188] sm:$0xf]
        %v3829 = vld [vmem:[%s878 + $0x18c] sm:$0xff]
        %v3830 = vld [vmem:[%s878 + $0x194] sm:$0xf]
        %v3831 = vld [vmem:[%s878 + $0x198] sm:$0xff]
        %v3832 = vld [vmem:[%s878 + $0x1a0] sm:$0xf]
        %v3833 = vld [vmem:[%s878 + $0x1a4] sm:$0xff]
        %v3834 = vld [vmem:[%s878 + $0x1ac] sm:$0xf]
        %v3835 = vld [vmem:[%s878 + $0x1b0] sm:$0xff]
        %v3836 = vld [vmem:[%s878 + $0x1b8] sm:$0xf]
        %v3837 = vld [vmem:[%s878 + $0x1bc] sm:$0xff]
        %v3838 = vld [vmem:[%s878 + $0x1c4] sm:$0xf]
        %v3839 = vld [vmem:[%s878 + $0x1c8] sm:$0xff]
        %v3840 = vld [vmem:[%s878 + $0x1d0] sm:$0xf]
        %v3841 = vld [vmem:[%s878 + $0x1d4] sm:$0xff]
        %v3842 = vld [vmem:[%s878 + $0x1dc] sm:$0xf]
        %v3843 = vld [vmem:[%s878 + $0x1e0] sm:$0xff]
        %v3844 = vld [vmem:[%s878 + $0x1e8] sm:$0xf]
        %v3845 = vld [vmem:[%s878 + $0x1ec] sm:$0xff]
        %v3846 = vld [vmem:[%s878 + $0x1f4] sm:$0xf]
        %v3847 = vld [vmem:[%s878 + $0x1f8] sm:$0xff]
        %v3848 = vld [vmem:[%s878 + $0x200] sm:$0xf]
        %v3849 = vld [vmem:[%s878 + $0x204] sm:$0xff]
        %v3850 = vld [vmem:[%s878 + $0x20c] sm:$0xf]
        %v3851 = vld [vmem:[%s878 + $0x210] sm:$0xff]
        %v3852 = vld [vmem:[%s878 + $0x218] sm:$0xf]
        %v3853 = vld [vmem:[%s878 + $0x21c] sm:$0xff]
        %v3854 = vld [vmem:[%s878 + $0x224] sm:$0xf]
        %v3855 = vld [vmem:[%s878 + $0x228] sm:$0xff]
        %v3856 = vld [vmem:[%s878 + $0x230] sm:$0xf]
        %v3857 = vld [vmem:[%s878 + $0x234] sm:$0xff]
        %v3858 = vld [vmem:[%s878 + $0x23c] sm:$0xf]
        %v3859 = vld [vmem:[%s887] sm:$0x7]
        %v3861 = vlaneseq
        %v3862 = vshrl.u32 %v3861, 7
        %v3863 = vsub.s32 0, %v3862
        %v3864 = vrot.slane %v3859, %v3863
        %v3865 = vlaneseq
        %v3866 = vshrl.u32 %v3865, 7
        %v3867 = vsub.s32 1, %v3866
        %v3868 = vrot.slane %v3859, %v3867
        %v3869 = vlaneseq
        %v3870 = vshrl.u32 %v3869, 7
        %v3871 = vsub.s32 2, %v3870
        %v3872 = vrot.slane %v3859, %v3871
        %v3972 = vunpack.c.l.b16 %v3763
        %v3973 = vunpack.c.h.b16 %v3763
        %v3974 = vunpack.c.l.b16 %v3764
        %v3975 = vunpack.c.l.b16 %v3765
        %v3976 = vunpack.c.h.b16 %v3765
        %v3977 = vunpack.c.l.b16 %v3766
        %v3978 = vunpack.c.l.b16 %v3767
        %v3979 = vunpack.c.h.b16 %v3767
        %v3980 = vunpack.c.l.b16 %v3768
        %v3981 = vunpack.c.l.b16 %v3769
        %v3982 = vunpack.c.h.b16 %v3769
        %v3983 = vunpack.c.l.b16 %v3770
        %v3984 = vunpack.c.l.b16 %v3771
        %v3985 = vunpack.c.h.b16 %v3771
        %v3986 = vunpack.c.l.b16 %v3772
        %v3987 = vunpack.c.l.b16 %v3773
        %v3988 = vunpack.c.h.b16 %v3773
        %v3989 = vunpack.c.l.b16 %v3774
        %v3990 = vunpack.c.l.b16 %v3775
        %v3991 = vunpack.c.h.b16 %v3775
        %v3992 = vunpack.c.l.b16 %v3776
        %v3993 = vunpack.c.l.b16 %v3777
        %v3994 = vunpack.c.h.b16 %v3777
        %v3995 = vunpack.c.l.b16 %v3778
        %v3996 = vunpack.c.l.b16 %v3779
        %v3997 = vunpack.c.h.b16 %v3779
        %v3998 = vunpack.c.l.b16 %v3780
        %v3999 = vunpack.c.l.b16 %v3781
        %v4000 = vunpack.c.h.b16 %v3781
        %v4001 = vunpack.c.l.b16 %v3782
        %v4002 = vunpack.c.l.b16 %v3783
        %v4003 = vunpack.c.h.b16 %v3783
        %v4004 = vunpack.c.l.b16 %v3784
        %v4005 = vunpack.c.l.b16 %v3785
        %v4006 = vunpack.c.h.b16 %v3785
        %v4007 = vunpack.c.l.b16 %v3786
        %v4008 = vunpack.c.l.b16 %v3787
        %v4009 = vunpack.c.h.b16 %v3787
        %v4010 = vunpack.c.l.b16 %v3788
        %v4011 = vunpack.c.l.b16 %v3789
        %v4012 = vunpack.c.h.b16 %v3789
        %v4013 = vunpack.c.l.b16 %v3790
        %v4014 = vunpack.c.l.b16 %v3791
        %v4015 = vunpack.c.h.b16 %v3791
        %v4016 = vunpack.c.l.b16 %v3792
        %v4017 = vunpack.c.l.b16 %v3793
        %v4018 = vunpack.c.h.b16 %v3793
        %v4019 = vunpack.c.l.b16 %v3794
        %v4020 = vunpack.c.l.b16 %v3795
        %v4021 = vunpack.c.h.b16 %v3795
        %v4022 = vunpack.c.l.b16 %v3796
        %v4023 = vunpack.c.l.b16 %v3797
        %v4024 = vunpack.c.h.b16 %v3797
        %v4025 = vunpack.c.l.b16 %v3798
        %v4026 = vunpack.c.l.b16 %v3799
        %v4027 = vunpack.c.h.b16 %v3799
        %v4028 = vunpack.c.l.b16 %v3800
        %v4029 = vunpack.c.l.b16 %v3801
        %v4030 = vunpack.c.h.b16 %v3801
        %v4031 = vunpack.c.l.b16 %v3802
        %v4032 = vunpack.c.l.b16 %v3803
        %v4033 = vunpack.c.h.b16 %v3803
        %v4034 = vunpack.c.l.b16 %v3804
        %v4035 = vunpack.c.l.b16 %v3805
        %v4036 = vunpack.c.h.b16 %v3805
        %v4037 = vunpack.c.l.b16 %v3806
        %v4038 = vunpack.c.l.b16 %v3807
        %v4039 = vunpack.c.h.b16 %v3807
        %v4040 = vunpack.c.l.b16 %v3808
        %v4041 = vunpack.c.l.b16 %v3809
        %v4042 = vunpack.c.h.b16 %v3809
        %v4043 = vunpack.c.l.b16 %v3810
        %v4044 = vunpack.c.l.b16 %v3811
        %v4045 = vunpack.c.h.b16 %v3811
        %v4046 = vunpack.c.l.b16 %v3812
        %v4047 = vunpack.c.l.b16 %v3813
        %v4048 = vunpack.c.h.b16 %v3813
        %v4049 = vunpack.c.l.b16 %v3814
        %v4050 = vunpack.c.l.b16 %v3815
        %v4051 = vunpack.c.h.b16 %v3815
        %v4052 = vunpack.c.l.b16 %v3816
        %v4053 = vunpack.c.l.b16 %v3817
        %v4054 = vunpack.c.h.b16 %v3817
        %v4055 = vunpack.c.l.b16 %v3818
        %v4056 = vunpack.c.l.b16 %v3819
        %v4057 = vunpack.c.h.b16 %v3819
        %v4058 = vunpack.c.l.b16 %v3820
        %v4059 = vunpack.c.l.b16 %v3821
        %v4060 = vunpack.c.h.b16 %v3821
        %v4061 = vunpack.c.l.b16 %v3822
        %v4062 = vunpack.c.l.b16 %v3823
        %v4063 = vunpack.c.h.b16 %v3823
        %v4064 = vunpack.c.l.b16 %v3824
        %v4065 = vunpack.c.l.b16 %v3825
        %v4066 = vunpack.c.h.b16 %v3825
        %v4067 = vunpack.c.l.b16 %v3826
        %v4068 = vunpack.c.l.b16 %v3827
        %v4069 = vunpack.c.h.b16 %v3827
        %v4070 = vunpack.c.l.b16 %v3828
        %v4071 = vunpack.c.l.b16 %v3829
        %v4072 = vunpack.c.h.b16 %v3829
        %v4073 = vunpack.c.l.b16 %v3830
        %v4074 = vunpack.c.l.b16 %v3831
        %v4075 = vunpack.c.h.b16 %v3831
        %v4076 = vunpack.c.l.b16 %v3832
        %v4077 = vunpack.c.l.b16 %v3833
        %v4078 = vunpack.c.h.b16 %v3833
        %v4079 = vunpack.c.l.b16 %v3834
        %v4080 = vunpack.c.l.b16 %v3835
        %v4081 = vunpack.c.h.b16 %v3835
        %v4082 = vunpack.c.l.b16 %v3836
        %v4083 = vunpack.c.l.b16 %v3837
        %v4084 = vunpack.c.h.b16 %v3837
        %v4085 = vunpack.c.l.b16 %v3838
        %v4086 = vunpack.c.l.b16 %v3839
        %v4087 = vunpack.c.h.b16 %v3839
        %v4088 = vunpack.c.l.b16 %v3840
        %v4089 = vunpack.c.l.b16 %v3841
        %v4090 = vunpack.c.h.b16 %v3841
        %v4091 = vunpack.c.l.b16 %v3842
        %v4092 = vunpack.c.l.b16 %v3843
        %v4093 = vunpack.c.h.b16 %v3843
        %v4094 = vunpack.c.l.b16 %v3844
        %v4095 = vunpack.c.l.b16 %v3845
        %v4096 = vunpack.c.h.b16 %v3845
        %v4097 = vunpack.c.l.b16 %v3846
        %v4098 = vunpack.c.l.b16 %v3847
        %v4099 = vunpack.c.h.b16 %v3847
        %v4100 = vunpack.c.l.b16 %v3848
        %v4101 = vunpack.c.l.b16 %v3849
        %v4102 = vunpack.c.h.b16 %v3849
        %v4103 = vunpack.c.l.b16 %v3850
        %v4104 = vunpack.c.l.b16 %v3851
        %v4105 = vunpack.c.h.b16 %v3851
        %v4106 = vunpack.c.l.b16 %v3852
        %v4107 = vunpack.c.l.b16 %v3853
        %v4108 = vunpack.c.h.b16 %v3853
        %v4109 = vunpack.c.l.b16 %v3854
        %v4110 = vunpack.c.l.b16 %v3855
        %v4111 = vunpack.c.h.b16 %v3855
        %v4112 = vunpack.c.l.b16 %v3856
        %v4113 = vunpack.c.l.b16 %v3857
        %v4114 = vunpack.c.h.b16 %v3857
        %v4115 = vunpack.c.l.b16 %v3858
        %v4116 = vpack.c.b16 %v3975, %v3972
        %v4117 = vpack.c.b16 %v3976, %v3973
        %v4118 = vpack.c.b16 %v3977, %v3974
        %v4119 = vpack.c.b16 %v3981, %v3978
        %v4120 = vpack.c.b16 %v3982, %v3979
        %v4121 = vpack.c.b16 %v3983, %v3980
        %v4122 = vpack.c.b16 %v3987, %v3984
        %v4123 = vpack.c.b16 %v3988, %v3985
        %v4124 = vpack.c.b16 %v3989, %v3986
        %v4125 = vpack.c.b16 %v3993, %v3990
        %v4126 = vpack.c.b16 %v3994, %v3991
        %v4127 = vpack.c.b16 %v3995, %v3992
        %v4128 = vpack.c.b16 %v3999, %v3996
        %v4129 = vpack.c.b16 %v4000, %v3997
        %v4130 = vpack.c.b16 %v4001, %v3998
        %v4131 = vpack.c.b16 %v4005, %v4002
        %v4132 = vpack.c.b16 %v4006, %v4003
        %v4133 = vpack.c.b16 %v4007, %v4004
        %v4134 = vpack.c.b16 %v4011, %v4008
        %v4135 = vpack.c.b16 %v4012, %v4009
        %v4136 = vpack.c.b16 %v4013, %v4010
        %v4137 = vpack.c.b16 %v4017, %v4014
        %v4138 = vpack.c.b16 %v4018, %v4015
        %v4139 = vpack.c.b16 %v4019, %v4016
        %v4140 = vpack.c.b16 %v4023, %v4020
        %v4141 = vpack.c.b16 %v4024, %v4021
        %v4142 = vpack.c.b16 %v4025, %v4022
        %v4143 = vpack.c.b16 %v4029, %v4026
        %v4144 = vpack.c.b16 %v4030, %v4027
        %v4145 = vpack.c.b16 %v4031, %v4028
        %v4146 = vpack.c.b16 %v4035, %v4032
        %v4147 = vpack.c.b16 %v4036, %v4033
        %v4148 = vpack.c.b16 %v4037, %v4034
        %v4149 = vpack.c.b16 %v4041, %v4038
        %v4150 = vpack.c.b16 %v4042, %v4039
        %v4151 = vpack.c.b16 %v4043, %v4040
        %v4152 = vpack.c.b16 %v4047, %v4044
        %v4153 = vpack.c.b16 %v4048, %v4045
        %v4154 = vpack.c.b16 %v4049, %v4046
        %v4155 = vpack.c.b16 %v4053, %v4050
        %v4156 = vpack.c.b16 %v4054, %v4051
        %v4157 = vpack.c.b16 %v4055, %v4052
        %v4158 = vpack.c.b16 %v4059, %v4056
        %v4159 = vpack.c.b16 %v4060, %v4057
        %v4160 = vpack.c.b16 %v4061, %v4058
        %v4161 = vpack.c.b16 %v4065, %v4062
        %v4162 = vpack.c.b16 %v4066, %v4063
        %v4163 = vpack.c.b16 %v4067, %v4064
        %v4164 = vpack.c.b16 %v4071, %v4068
        %v4165 = vpack.c.b16 %v4072, %v4069
        %v4166 = vpack.c.b16 %v4073, %v4070
        %v4167 = vpack.c.b16 %v4077, %v4074
        %v4168 = vpack.c.b16 %v4078, %v4075
        %v4169 = vpack.c.b16 %v4079, %v4076
        %v4170 = vpack.c.b16 %v4083, %v4080
        %v4171 = vpack.c.b16 %v4084, %v4081
        %v4172 = vpack.c.b16 %v4085, %v4082
        %v4173 = vpack.c.b16 %v4089, %v4086
        %v4174 = vpack.c.b16 %v4090, %v4087
        %v4175 = vpack.c.b16 %v4091, %v4088
        %v4176 = vpack.c.b16 %v4095, %v4092
        %v4177 = vpack.c.b16 %v4096, %v4093
        %v4178 = vpack.c.b16 %v4097, %v4094
        %v4179 = vpack.c.b16 %v4101, %v4098
        %v4180 = vpack.c.b16 %v4102, %v4099
        %v4181 = vpack.c.b16 %v4103, %v4100
        %v4182 = vpack.c.b16 %v4107, %v4104
        %v4183 = vpack.c.b16 %v4108, %v4105
        %v4184 = vpack.c.b16 %v4109, %v4106
        %v4185 = vpack.c.b16 %v4113, %v4110
        %v4186 = vpack.c.b16 %v4114, %v4111
        %v4187 = vpack.c.b16 %v4115, %v4112
        %4260 = vmatprep.subr.bf16.mxu0 %v4117
        %4261 = vmatpush1.bf16.msra.mxu0 %v4116
        %4262 = vmatprep.subr.bf16.mxu0 %v4120
        %4263 = vmatpush1.bf16.msra.mxu0 %v4119
        %4264 = vmatprep.subr.bf16.mxu0 %v4123
        %4265 = vmatpush1.bf16.msra.mxu0 %v4122
        %4266 = vmatprep.subr.bf16.mxu0 %v4126
        %4267 = vmatpush1.bf16.msra.mxu0 %v4125
        %4268 = vmatprep.subr.bf16.mxu0 %v4129
        %4269 = vmatpush1.bf16.msra.mxu0 %v4128
        %4270 = vmatprep.subr.bf16.mxu0 %v4132
        %4271 = vmatpush1.bf16.msra.mxu0 %v4131
        %4272 = vmatprep.subr.bf16.mxu0 %v4135
        %4273 = vmatpush1.bf16.msra.mxu0 %v4134
        %4274 = vmatprep.subr.bf16.mxu0 %v4138
        %4275 = vmatpush1.bf16.msra.mxu0 %v4137
        %4276 = vmatprep.subr.bf16.mxu0 %v4141
        %4277 = vmatpush1.bf16.msra.mxu0 %v4140
        %4278 = vmatprep.subr.bf16.mxu0 %v4144
        %4279 = vmatpush1.bf16.msra.mxu0 %v4143
        %4280 = vmatprep.subr.bf16.mxu0 %v4147
        %4281 = vmatpush1.bf16.msra.mxu0 %v4146
        %4282 = vmatprep.subr.bf16.mxu0 %v4150
        %4283 = vmatpush1.bf16.msra.mxu0 %v4149
        %4284 = vmatprep.subr.bf16.mxu0 %v4153
        %4285 = vmatpush1.bf16.msra.mxu0 %v4152
        %4286 = vmatprep.subr.bf16.mxu0 %v4156
        %4287 = vmatpush1.bf16.msra.mxu0 %v4155
        %4288 = vmatprep.subr.bf16.mxu0 %v4159
        %4289 = vmatpush1.bf16.msra.mxu0 %v4158
        %4290 = vmatprep.subr.bf16.mxu0 %v4162
        %4291 = vmatpush1.bf16.msra.mxu0 %v4161
        %4292 = vmatprep.mubr.bf16.mxu0 %v3761
        %4293 = vmatmul.mubr.bf16.gmra.mrb[0].mxu0 %v3760
        %v4294 = vpop.f32.mrb[0].mxu0
        %v4295 = vadd.f32 %v3864, %v4294
        %v4296 = vpop.f32.mrb[0].mxu0
        %v4297 = vadd.f32 %v3868, %v4296
        %v4298 = vpop.f32.mrb[0].mxu0
        %v4299 = vpop.f32.mrb[0].mxu0
        %4300 = vdwg.mxu0
        %4301 = vmatprep.subr.bf16.mxu0 %v4165
        %4302 = vmatpush1.bf16.msra.mxu0 %v4164
        %4303 = vmatprep.subr.bf16.mxu0 %v4168
        %4304 = vmatpush1.bf16.msra.mxu0 %v4167
        %4305 = vmatprep.subr.bf16.mxu0 %v4171
        %4306 = vmatpush1.bf16.msra.mxu0 %v4170
        %4307 = vmatprep.subr.bf16.mxu0 %v4174
        %4308 = vmatpush1.bf16.msra.mxu0 %v4173
        %4309 = vmatprep.subr.bf16.mxu0 %v4177
        %4310 = vmatpush1.bf16.msra.mxu0 %v4176
        %4311 = vmatprep.subr.bf16.mxu0 %v4180
        %4312 = vmatpush1.bf16.msra.mxu0 %v4179
        %4313 = vmatprep.subr.bf16.mxu0 %v4183
        %4314 = vmatpush1.bf16.msra.mxu0 %v4182
        %4315 = vmatprep.subr.bf16.mxu0 %v4186
        %4316 = vmatpush1.bf16.msra.mxu0 %v4185
        %4317 = vmatprep.subr.bf16.mxu0 0
        %4318 = vmatpush1.bf16.msra.mxu0 0
        %4319 = vmatprep.subr.bf16.mxu0 0
        %4320 = vmatpush1.bf16.msra.mxu0 0
        %4321 = vmatprep.subr.bf16.mxu0 0
        %4322 = vmatpush1.bf16.msra.mxu0 0
        %4323 = vmatprep.subr.bf16.mxu0 0
        %4324 = vmatpush1.bf16.msra.mxu0 0
        %4325 = vmatprep.subr.bf16.mxu0 0
        %4326 = vmatpush1.bf16.msra.mxu0 0
        %4327 = vmatprep.subr.bf16.mxu0 0
        %4328 = vmatpush1.bf16.msra.mxu0 0
        %4329 = vmatprep.subr.bf16.mxu0 0
        %4330 = vmatpush1.bf16.msra.mxu0 0
        %4331 = vmatprep.subr.bf16.mxu0 0
        %4332 = vmatpush1.bf16.msra.mxu0 0
        %4333 = vmatprep.mubr.bf16.mxu0 0
        %4334 = vmatmul.mubr.bf16.gmra.mrb[0].mxu0 %v3762
        %v4335 = vpop.f32.mrb[0].mxu0
        %v4336 = vadd.f32 %v4295, %v4335
        %v4337 = vpop.f32.mrb[0].mxu0
        %v4338 = vadd.f32 %v4297, %v4337
        %v4339 = vpop.f32.mrb[0].mxu0
        %v4340 = vpop.f32.mrb[0].mxu0
        %4341 = vdwg.mxu0
        %4342 = vmatprep.subr.bf16.mxu0 0
        %4343 = vmatpush1.bf16.msra.mxu0 %v4118
        %4344 = vmatprep.subr.bf16.mxu0 0
        %4345 = vmatpush1.bf16.msra.mxu0 %v4121
        %4346 = vmatprep.subr.bf16.mxu0 0
        %4347 = vmatpush1.bf16.msra.mxu0 %v4124
        %4348 = vmatprep.subr.bf16.mxu0 0
        %4349 = vmatpush1.bf16.msra.mxu0 %v4127
        %4350 = vmatprep.subr.bf16.mxu0 0
        %4351 = vmatpush1.bf16.msra.mxu0 %v4130
        %4352 = vmatprep.subr.bf16.mxu0 0
        %4353 = vmatpush1.bf16.msra.mxu0 %v4133
        %4354 = vmatprep.subr.bf16.mxu0 0
        %4355 = vmatpush1.bf16.msra.mxu0 %v4136
        %4356 = vmatprep.subr.bf16.mxu0 0
        %4357 = vmatpush1.bf16.msra.mxu0 %v4139
        %4358 = vmatprep.subr.bf16.mxu0 0
        %4359 = vmatpush1.bf16.msra.mxu0 %v4142
        %4360 = vmatprep.subr.bf16.mxu0 0
        %4361 = vmatpush1.bf16.msra.mxu0 %v4145
        %4362 = vmatprep.subr.bf16.mxu0 0
        %4363 = vmatpush1.bf16.msra.mxu0 %v4148
        %4364 = vmatprep.subr.bf16.mxu0 0
        %4365 = vmatpush1.bf16.msra.mxu0 %v4151
        %4366 = vmatprep.subr.bf16.mxu0 0
        %4367 = vmatpush1.bf16.msra.mxu0 %v4154
        %4368 = vmatprep.subr.bf16.mxu0 0
        %4369 = vmatpush1.bf16.msra.mxu0 %v4157
        %4370 = vmatprep.subr.bf16.mxu0 0
        %4371 = vmatpush1.bf16.msra.mxu0 %v4160
        %4372 = vmatprep.subr.bf16.mxu0 0
        %4373 = vmatpush1.bf16.msra.mxu0 %v4163
        %4374 = vmatprep.mubr.bf16.mxu0 %v3761
        %4375 = vmatmul.mubr.bf16.gmra.mrb[0].mxu0 %v3760
        %v4376 = vpop.f32.mrb[0].mxu0
        %v4377 = vadd.f32 %v3872, %v4376
        %v4378 = vpop.f32.mrb[0].mxu0
        %v4379 = vpop.f32.mrb[0].mxu0
        %v4380 = vpop.f32.mrb[0].mxu0
        %4381 = vdwg.mxu0
        %4382 = vmatprep.subr.bf16.mxu0 0
        %4383 = vmatpush1.bf16.msra.mxu0 %v4166
        %4384 = vmatprep.subr.bf16.mxu0 0
        %4385 = vmatpush1.bf16.msra.mxu0 %v4169
        %4386 = vmatprep.subr.bf16.mxu0 0
        %4387 = vmatpush1.bf16.msra.mxu0 %v4172
        %4388 = vmatprep.subr.bf16.mxu0 0
        %4389 = vmatpush1.bf16.msra.mxu0 %v4175
        %4390 = vmatprep.subr.bf16.mxu0 0
        %4391 = vmatpush1.bf16.msra.mxu0 %v4178
        %4392 = vmatprep.subr.bf16.mxu0 0
        %4393 = vmatpush1.bf16.msra.mxu0 %v4181
        %4394 = vmatprep.subr.bf16.mxu0 0
        %4395 = vmatpush1.bf16.msra.mxu0 %v4184
        %4396 = vmatprep.subr.bf16.mxu0 0
        %4397 = vmatpush1.bf16.msra.mxu0 %v4187
        %4398 = vmatprep.subr.bf16.mxu0 0
        %4399 = vmatpush1.bf16.msra.mxu0 0
        %4400 = vmatprep.subr.bf16.mxu0 0
        %4401 = vmatpush1.bf16.msra.mxu0 0
        %4402 = vmatprep.subr.bf16.mxu0 0
        %4403 = vmatpush1.bf16.msra.mxu0 0
        %4404 = vmatprep.subr.bf16.mxu0 0
        %4405 = vmatpush1.bf16.msra.mxu0 0
        %4406 = vmatprep.subr.bf16.mxu0 0
        %4407 = vmatpush1.bf16.msra.mxu0 0
        %4408 = vmatprep.subr.bf16.mxu0 0
        %4409 = vmatpush1.bf16.msra.mxu0 0
        %4410 = vmatprep.subr.bf16.mxu0 0
        %4411 = vmatpush1.bf16.msra.mxu0 0
        %4412 = vmatprep.subr.bf16.mxu0 0
        %4413 = vmatpush1.bf16.msra.mxu0 0
        %4414 = vmatprep.mubr.bf16.mxu0 0
        %4415 = vmatmul.mubr.bf16.gmra.mrb[0].mxu0 %v3762
        %v4416 = vpop.f32.mrb[0].mxu0
        %v4417 = vadd.f32 %v4377, %v4416
        %v4418 = vpop.f32.mrb[0].mxu0
        %v4419 = vpop.f32.mrb[0].mxu0
        %v4420 = vpop.f32.mrb[0].mxu0
        %4421 = vdwg.mxu0
        %v4422 = vadd.f32 %v1074, %v4336
        %v4423 = vadd.f32 %v1075, %v4338
        %v4424 = vadd.f32 %v1076, %v4417
        %v4425 = vld [vmem:[%s896] sm:$0x7]
        %v4426 = vld [vmem:[%s905] sm:$0x7]
        %v4427 = vadd.f32 %v4422, %v4423
        %v4428 = vadd.f32 %v4427, %v4424
        %4429 = vadd.xlane.f32.xlu0 %v4428
        %v4430 = vpop.xlane.xlu0 %4429
        %v4431 = vmul.f32 %v4430, %v1083
        %v4432 = vsub.f32 %v4422, %v4431
        %v4433 = vsub.f32 %v4423, %v4431
        %v4434 = vsub.f32 %v4424, %v4431
        %v4435 = vmul.f32 %v4432, %v4432
        %v4436 = vmul.f32 %v4433, %v4433
        %v4437 = vmul.f32 %v4434, %v4434
        %v4438 = vadd.f32 %v4435, %v4436
        %v4439 = vadd.f32 %v4438, %v4437
        %4440 = vadd.xlane.f32.xlu0 %v4439
        %v4441 = vpop.xlane.xlu0 %4440
        %v4442 = vmul.f32 %v4441, %v1083
        %v4443 = vadd.f32 %v4442, 1e-05
        %v4444 = vrsqrt.pop %v4443
        %v4445 = vmul.f32 %v4432, %v4444
        %v4446 = vmul.f32 %v4433, %v4444
        %v4447 = vmul.f32 %v4434, %v4444
        %v4449 = vlaneseq
        %v4450 = vshrl.u32 %v4449, 7
        %v4451 = vsub.s32 0, %v4450
        %v4452 = vrot.slane %v4425, %v4451
        %v4453 = vlaneseq
        %v4454 = vshrl.u32 %v4453, 7
        %v4455 = vsub.s32 1, %v4454
        %v4456 = vrot.slane %v4425, %v4455
        %v4457 = vlaneseq
        %v4458 = vshrl.u32 %v4457, 7
        %v4459 = vsub.s32 2, %v4458
        %v4460 = vrot.slane %v4425, %v4459
        %v4464 = vmul.f32 %v4445, %v4452
        %v4465 = vmul.f32 %v4446, %v4456
        %v4466 = vmul.f32 %v4447, %v4460
        %v4468 = vlaneseq
        %v4469 = vshrl.u32 %v4468, 7
        %v4470 = vsub.s32 0, %v4469
        %v4471 = vrot.slane %v4426, %v4470
        %v4472 = vlaneseq
        %v4473 = vshrl.u32 %v4472, 7
        %v4474 = vsub.s32 1, %v4473
        %v4475 = vrot.slane %v4426, %v4474
        %v4476 = vlaneseq
        %v4477 = vshrl.u32 %v4476, 7
        %v4478 = vsub.s32 2, %v4477
        %v4479 = vrot.slane %v4426, %v4478
        %v4483 = vadd.f32 %v4464, %v4471
        %v4484 = vadd.f32 %v4465, %v4475
        %v4485 = vadd.f32 %v4466, %v4479
        %v4486 = vpack.c.bf16 %v4483, %v4483
        %v4487 = vpack.c.bf16 %v4484, %v4484
        %v4488 = vpack.c.bf16 %v4485, %v4485
        %v4489 = vld [vmem:[%s914] sm:$0xff]
        %v4490 = vld [vmem:[%s914 + $0x8] sm:$0xff]
        %v4491 = vld [vmem:[%s914 + $0x10] sm:$0xff]
        %v4492 = vld [vmem:[%s914 + $0x18] sm:$0xff]
        %v4493 = vld [vmem:[%s914 + $0x20] sm:$0xff]
        %v4494 = vld [vmem:[%s914 + $0x28] sm:$0xff]
        %v4495 = vld [vmem:[%s914 + $0x30] sm:$0xff]
        %v4496 = vld [vmem:[%s914 + $0x38] sm:$0xff]
        %v4497 = vld [vmem:[%s914 + $0x40] sm:$0xff]
        %v4498 = vld [vmem:[%s914 + $0x48] sm:$0xff]
        %v4499 = vld [vmem:[%s914 + $0x50] sm:$0xff]
        %v4500 = vld [vmem:[%s914 + $0x58] sm:$0xff]
        %v4501 = vld [vmem:[%s914 + $0x60] sm:$0xff]
        %v4502 = vld [vmem:[%s914 + $0x68] sm:$0xff]
        %v4503 = vld [vmem:[%s914 + $0x70] sm:$0xff]
        %v4504 = vld [vmem:[%s914 + $0x78] sm:$0xff]
        %v4505 = vld [vmem:[%s914 + $0x80] sm:$0xff]
        %v4506 = vld [vmem:[%s914 + $0x88] sm:$0xff]
        %v4507 = vld [vmem:[%s914 + $0x90] sm:$0xff]
        %v4508 = vld [vmem:[%s914 + $0x98] sm:$0xff]
        %v4509 = vld [vmem:[%s914 + $0xa0] sm:$0xff]
        %v4510 = vld [vmem:[%s914 + $0xa8] sm:$0xff]
        %v4511 = vld [vmem:[%s914 + $0xb0] sm:$0xff]
        %v4512 = vld [vmem:[%s914 + $0xb8] sm:$0xff]
        %v4513 = vld [vmem:[%s914 + $0xc0] sm:$0xff]
        %v4514 = vld [vmem:[%s914 + $0xc8] sm:$0xff]
        %v4515 = vld [vmem:[%s914 + $0xd0] sm:$0xff]
        %v4516 = vld [vmem:[%s914 + $0xd8] sm:$0xff]
        %v4517 = vld [vmem:[%s914 + $0xe0] sm:$0xff]
        %v4518 = vld [vmem:[%s914 + $0xe8] sm:$0xff]
        %v4519 = vld [vmem:[%s914 + $0xf0] sm:$0xff]
        %v4520 = vld [vmem:[%s914 + $0xf8] sm:$0xff]
        %v4521 = vld [vmem:[%s914 + $0x100] sm:$0xff]
        %v4522 = vld [vmem:[%s914 + $0x108] sm:$0xff]
        %v4523 = vld [vmem:[%s914 + $0x110] sm:$0xff]
        %v4524 = vld [vmem:[%s914 + $0x118] sm:$0xff]
        %v4525 = vld [vmem:[%s914 + $0x120] sm:$0xff]
        %v4526 = vld [vmem:[%s914 + $0x128] sm:$0xff]
        %v4527 = vld [vmem:[%s914 + $0x130] sm:$0xff]
        %v4528 = vld [vmem:[%s914 + $0x138] sm:$0xff]
        %v4529 = vld [vmem:[%s914 + $0x140] sm:$0xff]
        %v4530 = vld [vmem:[%s914 + $0x148] sm:$0xff]
        %v4531 = vld [vmem:[%s914 + $0x150] sm:$0xff]
        %v4532 = vld [vmem:[%s914 + $0x158] sm:$0xff]
        %v4533 = vld [vmem:[%s914 + $0x160] sm:$0xff]
        %v4534 = vld [vmem:[%s914 + $0x168] sm:$0xff]
        %v4535 = vld [vmem:[%s914 + $0x170] sm:$0xff]
        %v4536 = vld [vmem:[%s914 + $0x178] sm:$0xff]
        %v4537 = vld [vmem:[%s914 + $0x180] sm:$0xff]
        %v4538 = vld [vmem:[%s914 + $0x188] sm:$0xff]
        %v4539 = vld [vmem:[%s914 + $0x190] sm:$0xff]
        %v4540 = vld [vmem:[%s914 + $0x198] sm:$0xff]
        %v4541 = vld [vmem:[%s914 + $0x1a0] sm:$0xff]
        %v4542 = vld [vmem:[%s914 + $0x1a8] sm:$0xff]
        %v4543 = vld [vmem:[%s914 + $0x1b0] sm:$0xff]
        %v4544 = vld [vmem:[%s914 + $0x1b8] sm:$0xff]
        %v4545 = vld [vmem:[%s914 + $0x1c0] sm:$0xff]
        %v4546 = vld [vmem:[%s914 + $0x1c8] sm:$0xff]
        %v4547 = vld [vmem:[%s914 + $0x1d0] sm:$0xff]
        %v4548 = vld [vmem:[%s914 + $0x1d8] sm:$0xff]
        %v4549 = vld [vmem:[%s914 + $0x1e0] sm:$0xff]
        %v4550 = vld [vmem:[%s914 + $0x1e8] sm:$0xff]
        %v4551 = vld [vmem:[%s914 + $0x1f0] sm:$0xff]
        %v4552 = vld [vmem:[%s914 + $0x1f8] sm:$0xff]
        %v4553 = vld [vmem:[%s914 + $0x200] sm:$0xff]
        %v4554 = vld [vmem:[%s914 + $0x208] sm:$0xff]
        %v4555 = vld [vmem:[%s914 + $0x210] sm:$0xff]
        %v4556 = vld [vmem:[%s914 + $0x218] sm:$0xff]
        %v4557 = vld [vmem:[%s914 + $0x220] sm:$0xff]
        %v4558 = vld [vmem:[%s914 + $0x228] sm:$0xff]
        %v4559 = vld [vmem:[%s914 + $0x230] sm:$0xff]
        %v4560 = vld [vmem:[%s914 + $0x238] sm:$0xff]
        %v4561 = vld [vmem:[%s914 + $0x240] sm:$0xff]
        %v4562 = vld [vmem:[%s914 + $0x248] sm:$0xff]
        %v4563 = vld [vmem:[%s914 + $0x250] sm:$0xff]
        %v4564 = vld [vmem:[%s914 + $0x258] sm:$0xff]
        %v4565 = vld [vmem:[%s914 + $0x260] sm:$0xff]
        %v4566 = vld [vmem:[%s914 + $0x268] sm:$0xff]
        %v4567 = vld [vmem:[%s914 + $0x270] sm:$0xff]
        %v4568 = vld [vmem:[%s914 + $0x278] sm:$0xff]
        %v4569 = vld [vmem:[%s914 + $0x280] sm:$0xff]
        %v4570 = vld [vmem:[%s914 + $0x288] sm:$0xff]
        %v4571 = vld [vmem:[%s914 + $0x290] sm:$0xff]
        %v4572 = vld [vmem:[%s914 + $0x298] sm:$0xff]
        %v4573 = vld [vmem:[%s914 + $0x2a0] sm:$0xff]
        %v4574 = vld [vmem:[%s914 + $0x2a8] sm:$0xff]
        %v4575 = vld [vmem:[%s914 + $0x2b0] sm:$0xff]
        %v4576 = vld [vmem:[%s914 + $0x2b8] sm:$0xff]
        %v4577 = vld [vmem:[%s914 + $0x2c0] sm:$0xff]
        %v4578 = vld [vmem:[%s914 + $0x2c8] sm:$0xff]
        %v4579 = vld [vmem:[%s914 + $0x2d0] sm:$0xff]
        %v4580 = vld [vmem:[%s914 + $0x2d8] sm:$0xff]
        %v4581 = vld [vmem:[%s914 + $0x2e0] sm:$0xff]
        %v4582 = vld [vmem:[%s914 + $0x2e8] sm:$0xff]
        %v4583 = vld [vmem:[%s914 + $0x2f0] sm:$0xff]
        %v4584 = vld [vmem:[%s914 + $0x2f8] sm:$0xff]
        %v4585 = vld [vmem:[%s914 + $0x300] sm:$0xff]
        %v4586 = vld [vmem:[%s914 + $0x308] sm:$0xff]
        %v4587 = vld [vmem:[%s914 + $0x310] sm:$0xff]
        %v4588 = vld [vmem:[%s914 + $0x318] sm:$0xff]
        %v4589 = vld [vmem:[%s914 + $0x320] sm:$0xff]
        %v4590 = vld [vmem:[%s914 + $0x328] sm:$0xff]
        %v4591 = vld [vmem:[%s914 + $0x330] sm:$0xff]
        %v4592 = vld [vmem:[%s914 + $0x338] sm:$0xff]
        %v4593 = vld [vmem:[%s914 + $0x340] sm:$0xff]
        %v4594 = vld [vmem:[%s914 + $0x348] sm:$0xff]
        %v4595 = vld [vmem:[%s914 + $0x350] sm:$0xff]
        %v4596 = vld [vmem:[%s914 + $0x358] sm:$0xff]
        %v4597 = vld [vmem:[%s914 + $0x360] sm:$0xff]
        %v4598 = vld [vmem:[%s914 + $0x368] sm:$0xff]
        %v4599 = vld [vmem:[%s914 + $0x370] sm:$0xff]
        %v4600 = vld [vmem:[%s914 + $0x378] sm:$0xff]
        %v4601 = vld [vmem:[%s914 + $0x380] sm:$0xff]
        %v4602 = vld [vmem:[%s914 + $0x388] sm:$0xff]
        %v4603 = vld [vmem:[%s914 + $0x390] sm:$0xff]
        %v4604 = vld [vmem:[%s914 + $0x398] sm:$0xff]
        %v4605 = vld [vmem:[%s914 + $0x3a0] sm:$0xff]
        %v4606 = vld [vmem:[%s914 + $0x3a8] sm:$0xff]
        %v4607 = vld [vmem:[%s914 + $0x3b0] sm:$0xff]
        %v4608 = vld [vmem:[%s914 + $0x3b8] sm:$0xff]
        %v4609 = vld [vmem:[%s914 + $0x3c0] sm:$0xff]
        %v4610 = vld [vmem:[%s914 + $0x3c8] sm:$0xff]
        %v4611 = vld [vmem:[%s914 + $0x3d0] sm:$0xff]
        %v4612 = vld [vmem:[%s914 + $0x3d8] sm:$0xff]
        %v4613 = vld [vmem:[%s914 + $0x3e0] sm:$0xff]
        %v4614 = vld [vmem:[%s914 + $0x3e8] sm:$0xff]
        %v4615 = vld [vmem:[%s914 + $0x3f0] sm:$0xff]
        %v4616 = vld [vmem:[%s914 + $0x3f8] sm:$0xff]
        %v4617 = vld [vmem:[%s914 + $0x400] sm:$0xff]
        %v4618 = vld [vmem:[%s914 + $0x408] sm:$0xff]
        %v4619 = vld [vmem:[%s914 + $0x410] sm:$0xff]
        %v4620 = vld [vmem:[%s914 + $0x418] sm:$0xff]
        %v4621 = vld [vmem:[%s914 + $0x420] sm:$0xff]
        %v4622 = vld [vmem:[%s914 + $0x428] sm:$0xff]
        %v4623 = vld [vmem:[%s914 + $0x430] sm:$0xff]
        %v4624 = vld [vmem:[%s914 + $0x438] sm:$0xff]
        %v4625 = vld [vmem:[%s914 + $0x440] sm:$0xff]
        %v4626 = vld [vmem:[%s914 + $0x448] sm:$0xff]
        %v4627 = vld [vmem:[%s914 + $0x450] sm:$0xff]
        %v4628 = vld [vmem:[%s914 + $0x458] sm:$0xff]
        %v4629 = vld [vmem:[%s914 + $0x460] sm:$0xff]
        %v4630 = vld [vmem:[%s914 + $0x468] sm:$0xff]
        %v4631 = vld [vmem:[%s914 + $0x470] sm:$0xff]
        %v4632 = vld [vmem:[%s914 + $0x478] sm:$0xff]
        %v4633 = vld [vmem:[%s914 + $0x480] sm:$0xff]
        %v4634 = vld [vmem:[%s914 + $0x488] sm:$0xff]
        %v4635 = vld [vmem:[%s914 + $0x490] sm:$0xff]
        %v4636 = vld [vmem:[%s914 + $0x498] sm:$0xff]
        %v4637 = vld [vmem:[%s914 + $0x4a0] sm:$0xff]
        %v4638 = vld [vmem:[%s914 + $0x4a8] sm:$0xff]
        %v4639 = vld [vmem:[%s914 + $0x4b0] sm:$0xff]
        %v4640 = vld [vmem:[%s914 + $0x4b8] sm:$0xff]
        %v4641 = vld [vmem:[%s914 + $0x4c0] sm:$0xff]
        %v4642 = vld [vmem:[%s914 + $0x4c8] sm:$0xff]
        %v4643 = vld [vmem:[%s914 + $0x4d0] sm:$0xff]
        %v4644 = vld [vmem:[%s914 + $0x4d8] sm:$0xff]
        %v4645 = vld [vmem:[%s914 + $0x4e0] sm:$0xff]
        %v4646 = vld [vmem:[%s914 + $0x4e8] sm:$0xff]
        %v4647 = vld [vmem:[%s914 + $0x4f0] sm:$0xff]
        %v4648 = vld [vmem:[%s914 + $0x4f8] sm:$0xff]
        %v4649 = vld [vmem:[%s914 + $0x500] sm:$0xff]
        %v4650 = vld [vmem:[%s914 + $0x508] sm:$0xff]
        %v4651 = vld [vmem:[%s914 + $0x510] sm:$0xff]
        %v4652 = vld [vmem:[%s914 + $0x518] sm:$0xff]
        %v4653 = vld [vmem:[%s914 + $0x520] sm:$0xff]
        %v4654 = vld [vmem:[%s914 + $0x528] sm:$0xff]
        %v4655 = vld [vmem:[%s914 + $0x530] sm:$0xff]
        %v4656 = vld [vmem:[%s914 + $0x538] sm:$0xff]
        %v4657 = vld [vmem:[%s914 + $0x540] sm:$0xff]
        %v4658 = vld [vmem:[%s914 + $0x548] sm:$0xff]
        %v4659 = vld [vmem:[%s914 + $0x550] sm:$0xff]
        %v4660 = vld [vmem:[%s914 + $0x558] sm:$0xff]
        %v4661 = vld [vmem:[%s914 + $0x560] sm:$0xff]
        %v4662 = vld [vmem:[%s914 + $0x568] sm:$0xff]
        %v4663 = vld [vmem:[%s914 + $0x570] sm:$0xff]
        %v4664 = vld [vmem:[%s914 + $0x578] sm:$0xff]
        %v4665 = vld [vmem:[%s914 + $0x580] sm:$0xff]
        %v4666 = vld [vmem:[%s914 + $0x588] sm:$0xff]
        %v4667 = vld [vmem:[%s914 + $0x590] sm:$0xff]
        %v4668 = vld [vmem:[%s914 + $0x598] sm:$0xff]
        %v4669 = vld [vmem:[%s914 + $0x5a0] sm:$0xff]
        %v4670 = vld [vmem:[%s914 + $0x5a8] sm:$0xff]
        %v4671 = vld [vmem:[%s914 + $0x5b0] sm:$0xff]
        %v4672 = vld [vmem:[%s914 + $0x5b8] sm:$0xff]
        %v4673 = vld [vmem:[%s914 + $0x5c0] sm:$0xff]
        %v4674 = vld [vmem:[%s914 + $0x5c8] sm:$0xff]
        %v4675 = vld [vmem:[%s914 + $0x5d0] sm:$0xff]
        %v4676 = vld [vmem:[%s914 + $0x5d8] sm:$0xff]
        %v4677 = vld [vmem:[%s914 + $0x5e0] sm:$0xff]
        %v4678 = vld [vmem:[%s914 + $0x5e8] sm:$0xff]
        %v4679 = vld [vmem:[%s914 + $0x5f0] sm:$0xff]
        %v4680 = vld [vmem:[%s914 + $0x5f8] sm:$0xff]
        %v4681 = vld [vmem:[%s914 + $0x600] sm:$0xff]
        %v4682 = vld [vmem:[%s914 + $0x608] sm:$0xff]
        %v4683 = vld [vmem:[%s914 + $0x610] sm:$0xff]
        %v4684 = vld [vmem:[%s914 + $0x618] sm:$0xff]
        %v4685 = vld [vmem:[%s914 + $0x620] sm:$0xff]
        %v4686 = vld [vmem:[%s914 + $0x628] sm:$0xff]
        %v4687 = vld [vmem:[%s914 + $0x630] sm:$0xff]
        %v4688 = vld [vmem:[%s914 + $0x638] sm:$0xff]
        %v4689 = vld [vmem:[%s914 + $0x640] sm:$0xff]
        %v4690 = vld [vmem:[%s914 + $0x648] sm:$0xff]
        %v4691 = vld [vmem:[%s914 + $0x650] sm:$0xff]
        %v4692 = vld [vmem:[%s914 + $0x658] sm:$0xff]
        %v4693 = vld [vmem:[%s914 + $0x660] sm:$0xff]
        %v4694 = vld [vmem:[%s914 + $0x668] sm:$0xff]
        %v4695 = vld [vmem:[%s914 + $0x670] sm:$0xff]
        %v4696 = vld [vmem:[%s914 + $0x678] sm:$0xff]
        %v4697 = vld [vmem:[%s914 + $0x680] sm:$0xff]
        %v4698 = vld [vmem:[%s914 + $0x688] sm:$0xff]
        %v4699 = vld [vmem:[%s914 + $0x690] sm:$0xff]
        %v4700 = vld [vmem:[%s914 + $0x698] sm:$0xff]
        %v4701 = vld [vmem:[%s914 + $0x6a0] sm:$0xff]
        %v4702 = vld [vmem:[%s914 + $0x6a8] sm:$0xff]
        %v4703 = vld [vmem:[%s914 + $0x6b0] sm:$0xff]
        %v4704 = vld [vmem:[%s914 + $0x6b8] sm:$0xff]
        %v4705 = vld [vmem:[%s914 + $0x6c0] sm:$0xff]
        %v4706 = vld [vmem:[%s914 + $0x6c8] sm:$0xff]
        %v4707 = vld [vmem:[%s914 + $0x6d0] sm:$0xff]
        %v4708 = vld [vmem:[%s914 + $0x6d8] sm:$0xff]
        %v4709 = vld [vmem:[%s914 + $0x6e0] sm:$0xff]
        %v4710 = vld [vmem:[%s914 + $0x6e8] sm:$0xff]
        %v4711 = vld [vmem:[%s914 + $0x6f0] sm:$0xff]
        %v4712 = vld [vmem:[%s914 + $0x6f8] sm:$0xff]
        %v4713 = vld [vmem:[%s914 + $0x700] sm:$0xff]
        %v4714 = vld [vmem:[%s914 + $0x708] sm:$0xff]
        %v4715 = vld [vmem:[%s914 + $0x710] sm:$0xff]
        %v4716 = vld [vmem:[%s914 + $0x718] sm:$0xff]
        %v4717 = vld [vmem:[%s914 + $0x720] sm:$0xff]
        %v4718 = vld [vmem:[%s914 + $0x728] sm:$0xff]
        %v4719 = vld [vmem:[%s914 + $0x730] sm:$0xff]
        %v4720 = vld [vmem:[%s914 + $0x738] sm:$0xff]
        %v4721 = vld [vmem:[%s914 + $0x740] sm:$0xff]
        %v4722 = vld [vmem:[%s914 + $0x748] sm:$0xff]
        %v4723 = vld [vmem:[%s914 + $0x750] sm:$0xff]
        %v4724 = vld [vmem:[%s914 + $0x758] sm:$0xff]
        %v4725 = vld [vmem:[%s914 + $0x760] sm:$0xff]
        %v4726 = vld [vmem:[%s914 + $0x768] sm:$0xff]
        %v4727 = vld [vmem:[%s914 + $0x770] sm:$0xff]
        %v4728 = vld [vmem:[%s914 + $0x778] sm:$0xff]
        %v4729 = vld [vmem:[%s914 + $0x780] sm:$0xff]
        %v4730 = vld [vmem:[%s914 + $0x788] sm:$0xff]
        %v4731 = vld [vmem:[%s914 + $0x790] sm:$0xff]
        %v4732 = vld [vmem:[%s914 + $0x798] sm:$0xff]
        %v4733 = vld [vmem:[%s914 + $0x7a0] sm:$0xff]
        %v4734 = vld [vmem:[%s914 + $0x7a8] sm:$0xff]
        %v4735 = vld [vmem:[%s914 + $0x7b0] sm:$0xff]
        %v4736 = vld [vmem:[%s914 + $0x7b8] sm:$0xff]
        %v4737 = vld [vmem:[%s914 + $0x7c0] sm:$0xff]
        %v4738 = vld [vmem:[%s914 + $0x7c8] sm:$0xff]
        %v4739 = vld [vmem:[%s914 + $0x7d0] sm:$0xff]
        %v4740 = vld [vmem:[%s914 + $0x7d8] sm:$0xff]
        %v4741 = vld [vmem:[%s914 + $0x7e0] sm:$0xff]
        %v4742 = vld [vmem:[%s914 + $0x7e8] sm:$0xff]
        %v4743 = vld [vmem:[%s914 + $0x7f0] sm:$0xff]
        %v4744 = vld [vmem:[%s914 + $0x7f8] sm:$0xff]
        %v4745 = vld [vmem:[%s914 + $0x800] sm:$0xff]
        %v4746 = vld [vmem:[%s914 + $0x808] sm:$0xff]
        %v4747 = vld [vmem:[%s914 + $0x810] sm:$0xff]
        %v4748 = vld [vmem:[%s914 + $0x818] sm:$0xff]
        %v4749 = vld [vmem:[%s914 + $0x820] sm:$0xff]
        %v4750 = vld [vmem:[%s914 + $0x828] sm:$0xff]
        %v4751 = vld [vmem:[%s914 + $0x830] sm:$0xff]
        %v4752 = vld [vmem:[%s914 + $0x838] sm:$0xff]
        %v4753 = vld [vmem:[%s914 + $0x840] sm:$0xff]
        %v4754 = vld [vmem:[%s914 + $0x848] sm:$0xff]
        %v4755 = vld [vmem:[%s914 + $0x850] sm:$0xff]
        %v4756 = vld [vmem:[%s914 + $0x858] sm:$0xff]
        %v4757 = vld [vmem:[%s914 + $0x860] sm:$0xff]
        %v4758 = vld [vmem:[%s914 + $0x868] sm:$0xff]
        %v4759 = vld [vmem:[%s914 + $0x870] sm:$0xff]
        %v4760 = vld [vmem:[%s914 + $0x878] sm:$0xff]
        %v4761 = vld [vmem:[%s914 + $0x880] sm:$0xff]
        %v4762 = vld [vmem:[%s914 + $0x888] sm:$0xff]
        %v4763 = vld [vmem:[%s914 + $0x890] sm:$0xff]
        %v4764 = vld [vmem:[%s914 + $0x898] sm:$0xff]
        %v4765 = vld [vmem:[%s914 + $0x8a0] sm:$0xff]
        %v4766 = vld [vmem:[%s914 + $0x8a8] sm:$0xff]
        %v4767 = vld [vmem:[%s914 + $0x8b0] sm:$0xff]
        %v4768 = vld [vmem:[%s914 + $0x8b8] sm:$0xff]
        %v4769 = vld [vmem:[%s914 + $0x8c0] sm:$0xff]
        %v4770 = vld [vmem:[%s914 + $0x8c8] sm:$0xff]
        %v4771 = vld [vmem:[%s914 + $0x8d0] sm:$0xff]
        %v4772 = vld [vmem:[%s914 + $0x8d8] sm:$0xff]
        %v4773 = vld [vmem:[%s914 + $0x8e0] sm:$0xff]
        %v4774 = vld [vmem:[%s914 + $0x8e8] sm:$0xff]
        %v4775 = vld [vmem:[%s914 + $0x8f0] sm:$0xff]
        %v4776 = vld [vmem:[%s914 + $0x8f8] sm:$0xff]
        %v4777 = vld [vmem:[%s923] sm:$0xff]
        %v4778 = vld [vmem:[%s923 + $0x8] sm:$0xf]
        %v4781 = vlaneseq
        %v4782 = vshrl.u32 %v4781, 7
        %v4783 = vsub.s32 0, %v4782
        %v4784 = vrot.slane %v4777, %v4783
        %v4785 = vlaneseq
        %v4786 = vshrl.u32 %v4785, 7
        %v4787 = vsub.s32 1, %v4786
        %v4788 = vrot.slane %v4777, %v4787
        %v4789 = vlaneseq
        %v4790 = vshrl.u32 %v4789, 7
        %v4791 = vsub.s32 2, %v4790
        %v4792 = vrot.slane %v4777, %v4791
        %v4793 = vlaneseq
        %v4794 = vshrl.u32 %v4793, 7
        %v4795 = vsub.s32 3, %v4794
        %v4796 = vrot.slane %v4777, %v4795
        %v4797 = vlaneseq
        %v4798 = vshrl.u32 %v4797, 7
        %v4799 = vsub.s32 4, %v4798
        %v4800 = vrot.slane %v4777, %v4799
        %v4801 = vlaneseq
        %v4802 = vshrl.u32 %v4801, 7
        %v4803 = vsub.s32 5, %v4802
        %v4804 = vrot.slane %v4777, %v4803
        %v4805 = vlaneseq
        %v4806 = vshrl.u32 %v4805, 7
        %v4807 = vsub.s32 6, %v4806
        %v4808 = vrot.slane %v4777, %v4807
        %v4809 = vlaneseq
        %v4810 = vshrl.u32 %v4809, 7
        %v4811 = vsub.s32 7, %v4810
        %v4812 = vrot.slane %v4777, %v4811
        %v4813 = vlaneseq
        %v4814 = vshrl.u32 %v4813, 7
        %v4815 = vsub.s32 0, %v4814
        %v4816 = vrot.slane %v4778, %v4815
        %v4817 = vlaneseq
        %v4818 = vshrl.u32 %v4817, 7
        %v4819 = vsub.s32 1, %v4818
        %v4820 = vrot.slane %v4778, %v4819
        %v4821 = vlaneseq
        %v4822 = vshrl.u32 %v4821, 7
        %v4823 = vsub.s32 2, %v4822
        %v4824 = vrot.slane %v4778, %v4823
        %v4825 = vlaneseq
        %v4826 = vshrl.u32 %v4825, 7
        %v4827 = vsub.s32 3, %v4826
        %v4828 = vrot.slane %v4778, %v4827
        %v5129 = vunpack.c.l.b16 %v4489
        %v5130 = vunpack.c.h.b16 %v4489
        %v5131 = vunpack.c.l.b16 %v4490
        %v5132 = vunpack.c.h.b16 %v4490
        %v5133 = vunpack.c.l.b16 %v4491
        %v5134 = vunpack.c.h.b16 %v4491
        %v5135 = vunpack.c.l.b16 %v4492
        %v5136 = vunpack.c.h.b16 %v4492
        %v5137 = vunpack.c.l.b16 %v4493
        %v5138 = vunpack.c.h.b16 %v4493
        %v5139 = vunpack.c.l.b16 %v4494
        %v5140 = vunpack.c.h.b16 %v4494
        %v5141 = vunpack.c.l.b16 %v4495
        %v5142 = vunpack.c.h.b16 %v4495
        %v5143 = vunpack.c.l.b16 %v4496
        %v5144 = vunpack.c.h.b16 %v4496
        %v5145 = vunpack.c.l.b16 %v4497
        %v5146 = vunpack.c.h.b16 %v4497
        %v5147 = vunpack.c.l.b16 %v4498
        %v5148 = vunpack.c.h.b16 %v4498
        %v5149 = vunpack.c.l.b16 %v4499
        %v5150 = vunpack.c.h.b16 %v4499
        %v5151 = vunpack.c.l.b16 %v4500
        %v5152 = vunpack.c.h.b16 %v4500
        %v5153 = vunpack.c.l.b16 %v4501
        %v5154 = vunpack.c.h.b16 %v4501
        %v5155 = vunpack.c.l.b16 %v4502
        %v5156 = vunpack.c.h.b16 %v4502
        %v5157 = vunpack.c.l.b16 %v4503
        %v5158 = vunpack.c.h.b16 %v4503
        %v5159 = vunpack.c.l.b16 %v4504
        %v5160 = vunpack.c.h.b16 %v4504
        %v5161 = vunpack.c.l.b16 %v4505
        %v5162 = vunpack.c.h.b16 %v4505
        %v5163 = vunpack.c.l.b16 %v4506
        %v5164 = vunpack.c.h.b16 %v4506
        %v5165 = vunpack.c.l.b16 %v4507
        %v5166 = vunpack.c.h.b16 %v4507
        %v5167 = vunpack.c.l.b16 %v4508
        %v5168 = vunpack.c.h.b16 %v4508
        %v5169 = vunpack.c.l.b16 %v4509
        %v5170 = vunpack.c.h.b16 %v4509
        %v5171 = vunpack.c.l.b16 %v4510
        %v5172 = vunpack.c.h.b16 %v4510
        %v5173 = vunpack.c.l.b16 %v4511
        %v5174 = vunpack.c.h.b16 %v4511
        %v5175 = vunpack.c.l.b16 %v4512
        %v5176 = vunpack.c.h.b16 %v4512
        %v5177 = vunpack.c.l.b16 %v4513
        %v5178 = vunpack.c.h.b16 %v4513
        %v5179 = vunpack.c.l.b16 %v4514
        %v5180 = vunpack.c.h.b16 %v4514
        %v5181 = vunpack.c.l.b16 %v4515
        %v5182 = vunpack.c.h.b16 %v4515
        %v5183 = vunpack.c.l.b16 %v4516
        %v5184 = vunpack.c.h.b16 %v4516
        %v5185 = vunpack.c.l.b16 %v4517
        %v5186 = vunpack.c.h.b16 %v4517
        %v5187 = vunpack.c.l.b16 %v4518
        %v5188 = vunpack.c.h.b16 %v4518
        %v5189 = vunpack.c.l.b16 %v4519
        %v5190 = vunpack.c.h.b16 %v4519
        %v5191 = vunpack.c.l.b16 %v4520
        %v5192 = vunpack.c.h.b16 %v4520
        %v5193 = vunpack.c.l.b16 %v4521
        %v5194 = vunpack.c.h.b16 %v4521
        %v5195 = vunpack.c.l.b16 %v4522
        %v5196 = vunpack.c.h.b16 %v4522
        %v5197 = vunpack.c.l.b16 %v4523
        %v5198 = vunpack.c.h.b16 %v4523
        %v5199 = vunpack.c.l.b16 %v4524
        %v5200 = vunpack.c.h.b16 %v4524
        %v5201 = vunpack.c.l.b16 %v4525
        %v5202 = vunpack.c.h.b16 %v4525
        %v5203 = vunpack.c.l.b16 %v4526
        %v5204 = vunpack.c.h.b16 %v4526
        %v5205 = vunpack.c.l.b16 %v4527
        %v5206 = vunpack.c.h.b16 %v4527
        %v5207 = vunpack.c.l.b16 %v4528
        %v5208 = vunpack.c.h.b16 %v4528
        %v5209 = vunpack.c.l.b16 %v4529
        %v5210 = vunpack.c.h.b16 %v4529
        %v5211 = vunpack.c.l.b16 %v4530
        %v5212 = vunpack.c.h.b16 %v4530
        %v5213 = vunpack.c.l.b16 %v4531
        %v5214 = vunpack.c.h.b16 %v4531
        %v5215 = vunpack.c.l.b16 %v4532
        %v5216 = vunpack.c.h.b16 %v4532
        %v5217 = vunpack.c.l.b16 %v4533
        %v5218 = vunpack.c.h.b16 %v4533
        %v5219 = vunpack.c.l.b16 %v4534
        %v5220 = vunpack.c.h.b16 %v4534
        %v5221 = vunpack.c.l.b16 %v4535
        %v5222 = vunpack.c.h.b16 %v4535
        %v5223 = vunpack.c.l.b16 %v4536
        %v5224 = vunpack.c.h.b16 %v4536
        %v5225 = vunpack.c.l.b16 %v4537
        %v5226 = vunpack.c.h.b16 %v4537
        %v5227 = vunpack.c.l.b16 %v4538
        %v5228 = vunpack.c.h.b16 %v4538
        %v5229 = vunpack.c.l.b16 %v4539
        %v5230 = vunpack.c.h.b16 %v4539
        %v5231 = vunpack.c.l.b16 %v4540
        %v5232 = vunpack.c.h.b16 %v4540
        %v5233 = vunpack.c.l.b16 %v4541
        %v5234 = vunpack.c.h.b16 %v4541
        %v5235 = vunpack.c.l.b16 %v4542
        %v5236 = vunpack.c.h.b16 %v4542
        %v5237 = vunpack.c.l.b16 %v4543
        %v5238 = vunpack.c.h.b16 %v4543
        %v5239 = vunpack.c.l.b16 %v4544
        %v5240 = vunpack.c.h.b16 %v4544
        %v5241 = vunpack.c.l.b16 %v4545
        %v5242 = vunpack.c.h.b16 %v4545
        %v5243 = vunpack.c.l.b16 %v4546
        %v5244 = vunpack.c.h.b16 %v4546
        %v5245 = vunpack.c.l.b16 %v4547
        %v5246 = vunpack.c.h.b16 %v4547
        %v5247 = vunpack.c.l.b16 %v4548
        %v5248 = vunpack.c.h.b16 %v4548
        %v5249 = vunpack.c.l.b16 %v4549
        %v5250 = vunpack.c.h.b16 %v4549
        %v5251 = vunpack.c.l.b16 %v4550
        %v5252 = vunpack.c.h.b16 %v4550
        %v5253 = vunpack.c.l.b16 %v4551
        %v5254 = vunpack.c.h.b16 %v4551
        %v5255 = vunpack.c.l.b16 %v4552
        %v5256 = vunpack.c.h.b16 %v4552
        %v5257 = vunpack.c.l.b16 %v4553
        %v5258 = vunpack.c.h.b16 %v4553
        %v5259 = vunpack.c.l.b16 %v4554
        %v5260 = vunpack.c.h.b16 %v4554
        %v5261 = vunpack.c.l.b16 %v4555
        %v5262 = vunpack.c.h.b16 %v4555
        %v5263 = vunpack.c.l.b16 %v4556
        %v5264 = vunpack.c.h.b16 %v4556
        %v5265 = vunpack.c.l.b16 %v4557
        %v5266 = vunpack.c.h.b16 %v4557
        %v5267 = vunpack.c.l.b16 %v4558
        %v5268 = vunpack.c.h.b16 %v4558
        %v5269 = vunpack.c.l.b16 %v4559
        %v5270 = vunpack.c.h.b16 %v4559
        %v5271 = vunpack.c.l.b16 %v4560
        %v5272 = vunpack.c.h.b16 %v4560
        %v5273 = vunpack.c.l.b16 %v4561
        %v5274 = vunpack.c.h.b16 %v4561
        %v5275 = vunpack.c.l.b16 %v4562
        %v5276 = vunpack.c.h.b16 %v4562
        %v5277 = vunpack.c.l.b16 %v4563
        %v5278 = vunpack.c.h.b16 %v4563
        %v5279 = vunpack.c.l.b16 %v4564
        %v5280 = vunpack.c.h.b16 %v4564
        %v5281 = vunpack.c.l.b16 %v4565
        %v5282 = vunpack.c.h.b16 %v4565
        %v5283 = vunpack.c.l.b16 %v4566
        %v5284 = vunpack.c.h.b16 %v4566
        %v5285 = vunpack.c.l.b16 %v4567
        %v5286 = vunpack.c.h.b16 %v4567
        %v5287 = vunpack.c.l.b16 %v4568
        %v5288 = vunpack.c.h.b16 %v4568
        %v5289 = vunpack.c.l.b16 %v4569
        %v5290 = vunpack.c.h.b16 %v4569
        %v5291 = vunpack.c.l.b16 %v4570
        %v5292 = vunpack.c.h.b16 %v4570
        %v5293 = vunpack.c.l.b16 %v4571
        %v5294 = vunpack.c.h.b16 %v4571
        %v5295 = vunpack.c.l.b16 %v4572
        %v5296 = vunpack.c.h.b16 %v4572
        %v5297 = vunpack.c.l.b16 %v4573
        %v5298 = vunpack.c.h.b16 %v4573
        %v5299 = vunpack.c.l.b16 %v4574
        %v5300 = vunpack.c.h.b16 %v4574
        %v5301 = vunpack.c.l.b16 %v4575
        %v5302 = vunpack.c.h.b16 %v4575
        %v5303 = vunpack.c.l.b16 %v4576
        %v5304 = vunpack.c.h.b16 %v4576
        %v5305 = vunpack.c.l.b16 %v4577
        %v5306 = vunpack.c.h.b16 %v4577
        %v5307 = vunpack.c.l.b16 %v4578
        %v5308 = vunpack.c.h.b16 %v4578
        %v5309 = vunpack.c.l.b16 %v4579
        %v5310 = vunpack.c.h.b16 %v4579
        %v5311 = vunpack.c.l.b16 %v4580
        %v5312 = vunpack.c.h.b16 %v4580
        %v5313 = vunpack.c.l.b16 %v4581
        %v5314 = vunpack.c.h.b16 %v4581
        %v5315 = vunpack.c.l.b16 %v4582
        %v5316 = vunpack.c.h.b16 %v4582
        %v5317 = vunpack.c.l.b16 %v4583
        %v5318 = vunpack.c.h.b16 %v4583
        %v5319 = vunpack.c.l.b16 %v4584
        %v5320 = vunpack.c.h.b16 %v4584
        %v5321 = vunpack.c.l.b16 %v4585
        %v5322 = vunpack.c.h.b16 %v4585
        %v5323 = vunpack.c.l.b16 %v4586
        %v5324 = vunpack.c.h.b16 %v4586
        %v5325 = vunpack.c.l.b16 %v4587
        %v5326 = vunpack.c.h.b16 %v4587
        %v5327 = vunpack.c.l.b16 %v4588
        %v5328 = vunpack.c.h.b16 %v4588
        %v5329 = vunpack.c.l.b16 %v4589
        %v5330 = vunpack.c.h.b16 %v4589
        %v5331 = vunpack.c.l.b16 %v4590
        %v5332 = vunpack.c.h.b16 %v4590
        %v5333 = vunpack.c.l.b16 %v4591
        %v5334 = vunpack.c.h.b16 %v4591
        %v5335 = vunpack.c.l.b16 %v4592
        %v5336 = vunpack.c.h.b16 %v4592
        %v5337 = vunpack.c.l.b16 %v4593
        %v5338 = vunpack.c.h.b16 %v4593
        %v5339 = vunpack.c.l.b16 %v4594
        %v5340 = vunpack.c.h.b16 %v4594
        %v5341 = vunpack.c.l.b16 %v4595
        %v5342 = vunpack.c.h.b16 %v4595
        %v5343 = vunpack.c.l.b16 %v4596
        %v5344 = vunpack.c.h.b16 %v4596
        %v5345 = vunpack.c.l.b16 %v4597
        %v5346 = vunpack.c.h.b16 %v4597
        %v5347 = vunpack.c.l.b16 %v4598
        %v5348 = vunpack.c.h.b16 %v4598
        %v5349 = vunpack.c.l.b16 %v4599
        %v5350 = vunpack.c.h.b16 %v4599
        %v5351 = vunpack.c.l.b16 %v4600
        %v5352 = vunpack.c.h.b16 %v4600
        %v5353 = vunpack.c.l.b16 %v4601
        %v5354 = vunpack.c.h.b16 %v4601
        %v5355 = vunpack.c.l.b16 %v4602
        %v5356 = vunpack.c.h.b16 %v4602
        %v5357 = vunpack.c.l.b16 %v4603
        %v5358 = vunpack.c.h.b16 %v4603
        %v5359 = vunpack.c.l.b16 %v4604
        %v5360 = vunpack.c.h.b16 %v4604
        %v5361 = vunpack.c.l.b16 %v4605
        %v5362 = vunpack.c.h.b16 %v4605
        %v5363 = vunpack.c.l.b16 %v4606
        %v5364 = vunpack.c.h.b16 %v4606
        %v5365 = vunpack.c.l.b16 %v4607
        %v5366 = vunpack.c.h.b16 %v4607
        %v5367 = vunpack.c.l.b16 %v4608
        %v5368 = vunpack.c.h.b16 %v4608
        %v5369 = vunpack.c.l.b16 %v4609
        %v5370 = vunpack.c.h.b16 %v4609
        %v5371 = vunpack.c.l.b16 %v4610
        %v5372 = vunpack.c.h.b16 %v4610
        %v5373 = vunpack.c.l.b16 %v4611
        %v5374 = vunpack.c.h.b16 %v4611
        %v5375 = vunpack.c.l.b16 %v4612
        %v5376 = vunpack.c.h.b16 %v4612
        %v5377 = vunpack.c.l.b16 %v4613
        %v5378 = vunpack.c.h.b16 %v4613
        %v5379 = vunpack.c.l.b16 %v4614
        %v5380 = vunpack.c.h.b16 %v4614
        %v5381 = vunpack.c.l.b16 %v4615
        %v5382 = vunpack.c.h.b16 %v4615
        %v5383 = vunpack.c.l.b16 %v4616
        %v5384 = vunpack.c.h.b16 %v4616
        %v5385 = vunpack.c.l.b16 %v4617
        %v5386 = vunpack.c.h.b16 %v4617
        %v5387 = vunpack.c.l.b16 %v4618
        %v5388 = vunpack.c.h.b16 %v4618
        %v5389 = vunpack.c.l.b16 %v4619
        %v5390 = vunpack.c.h.b16 %v4619
        %v5391 = vunpack.c.l.b16 %v4620
        %v5392 = vunpack.c.h.b16 %v4620
        %v5393 = vunpack.c.l.b16 %v4621
        %v5394 = vunpack.c.h.b16 %v4621
        %v5395 = vunpack.c.l.b16 %v4622
        %v5396 = vunpack.c.h.b16 %v4622
        %v5397 = vunpack.c.l.b16 %v4623
        %v5398 = vunpack.c.h.b16 %v4623
        %v5399 = vunpack.c.l.b16 %v4624
        %v5400 = vunpack.c.h.b16 %v4624
        %v5401 = vunpack.c.l.b16 %v4625
        %v5402 = vunpack.c.h.b16 %v4625
        %v5403 = vunpack.c.l.b16 %v4626
        %v5404 = vunpack.c.h.b16 %v4626
        %v5405 = vunpack.c.l.b16 %v4627
        %v5406 = vunpack.c.h.b16 %v4627
        %v5407 = vunpack.c.l.b16 %v4628
        %v5408 = vunpack.c.h.b16 %v4628
        %v5409 = vunpack.c.l.b16 %v4629
        %v5410 = vunpack.c.h.b16 %v4629
        %v5411 = vunpack.c.l.b16 %v4630
        %v5412 = vunpack.c.h.b16 %v4630
        %v5413 = vunpack.c.l.b16 %v4631
        %v5414 = vunpack.c.h.b16 %v4631
        %v5415 = vunpack.c.l.b16 %v4632
        %v5416 = vunpack.c.h.b16 %v4632
        %v5417 = vunpack.c.l.b16 %v4633
        %v5418 = vunpack.c.h.b16 %v4633
        %v5419 = vunpack.c.l.b16 %v4634
        %v5420 = vunpack.c.h.b16 %v4634
        %v5421 = vunpack.c.l.b16 %v4635
        %v5422 = vunpack.c.h.b16 %v4635
        %v5423 = vunpack.c.l.b16 %v4636
        %v5424 = vunpack.c.h.b16 %v4636
        %v5425 = vunpack.c.l.b16 %v4637
        %v5426 = vunpack.c.h.b16 %v4637
        %v5427 = vunpack.c.l.b16 %v4638
        %v5428 = vunpack.c.h.b16 %v4638
        %v5429 = vunpack.c.l.b16 %v4639
        %v5430 = vunpack.c.h.b16 %v4639
        %v5431 = vunpack.c.l.b16 %v4640
        %v5432 = vunpack.c.h.b16 %v4640
        %v5433 = vunpack.c.l.b16 %v4641
        %v5434 = vunpack.c.h.b16 %v4641
        %v5435 = vunpack.c.l.b16 %v4642
        %v5436 = vunpack.c.h.b16 %v4642
        %v5437 = vunpack.c.l.b16 %v4643
        %v5438 = vunpack.c.h.b16 %v4643
        %v5439 = vunpack.c.l.b16 %v4644
        %v5440 = vunpack.c.h.b16 %v4644
        %v5441 = vunpack.c.l.b16 %v4645
        %v5442 = vunpack.c.h.b16 %v4645
        %v5443 = vunpack.c.l.b16 %v4646
        %v5444 = vunpack.c.h.b16 %v4646
        %v5445 = vunpack.c.l.b16 %v4647
        %v5446 = vunpack.c.h.b16 %v4647
        %v5447 = vunpack.c.l.b16 %v4648
        %v5448 = vunpack.c.h.b16 %v4648
        %v5449 = vunpack.c.l.b16 %v4649
        %v5450 = vunpack.c.h.b16 %v4649
        %v5451 = vunpack.c.l.b16 %v4650
        %v5452 = vunpack.c.h.b16 %v4650
        %v5453 = vunpack.c.l.b16 %v4651
        %v5454 = vunpack.c.h.b16 %v4651
        %v5455 = vunpack.c.l.b16 %v4652
        %v5456 = vunpack.c.h.b16 %v4652
        %v5457 = vunpack.c.l.b16 %v4653
        %v5458 = vunpack.c.h.b16 %v4653
        %v5459 = vunpack.c.l.b16 %v4654
        %v5460 = vunpack.c.h.b16 %v4654
        %v5461 = vunpack.c.l.b16 %v4655
        %v5462 = vunpack.c.h.b16 %v4655
        %v5463 = vunpack.c.l.b16 %v4656
        %v5464 = vunpack.c.h.b16 %v4656
        %v5465 = vunpack.c.l.b16 %v4657
        %v5466 = vunpack.c.h.b16 %v4657
        %v5467 = vunpack.c.l.b16 %v4658
        %v5468 = vunpack.c.h.b16 %v4658
        %v5469 = vunpack.c.l.b16 %v4659
        %v5470 = vunpack.c.h.b16 %v4659
        %v5471 = vunpack.c.l.b16 %v4660
        %v5472 = vunpack.c.h.b16 %v4660
        %v5473 = vunpack.c.l.b16 %v4661
        %v5474 = vunpack.c.h.b16 %v4661
        %v5475 = vunpack.c.l.b16 %v4662
        %v5476 = vunpack.c.h.b16 %v4662
        %v5477 = vunpack.c.l.b16 %v4663
        %v5478 = vunpack.c.h.b16 %v4663
        %v5479 = vunpack.c.l.b16 %v4664
        %v5480 = vunpack.c.h.b16 %v4664
        %v5481 = vunpack.c.l.b16 %v4665
        %v5482 = vunpack.c.h.b16 %v4665
        %v5483 = vunpack.c.l.b16 %v4666
        %v5484 = vunpack.c.h.b16 %v4666
        %v5485 = vunpack.c.l.b16 %v4667
        %v5486 = vunpack.c.h.b16 %v4667
        %v5487 = vunpack.c.l.b16 %v4668
        %v5488 = vunpack.c.h.b16 %v4668
        %v5489 = vunpack.c.l.b16 %v4669
        %v5490 = vunpack.c.h.b16 %v4669
        %v5491 = vunpack.c.l.b16 %v4670
        %v5492 = vunpack.c.h.b16 %v4670
        %v5493 = vunpack.c.l.b16 %v4671
        %v5494 = vunpack.c.h.b16 %v4671
        %v5495 = vunpack.c.l.b16 %v4672
        %v5496 = vunpack.c.h.b16 %v4672
        %v5497 = vunpack.c.l.b16 %v4673
        %v5498 = vunpack.c.h.b16 %v4673
        %v5499 = vunpack.c.l.b16 %v4674
        %v5500 = vunpack.c.h.b16 %v4674
        %v5501 = vunpack.c.l.b16 %v4675
        %v5502 = vunpack.c.h.b16 %v4675
        %v5503 = vunpack.c.l.b16 %v4676
        %v5504 = vunpack.c.h.b16 %v4676
        %v5505 = vunpack.c.l.b16 %v4677
        %v5506 = vunpack.c.h.b16 %v4677
        %v5507 = vunpack.c.l.b16 %v4678
        %v5508 = vunpack.c.h.b16 %v4678
        %v5509 = vunpack.c.l.b16 %v4679
        %v5510 = vunpack.c.h.b16 %v4679
        %v5511 = vunpack.c.l.b16 %v4680
        %v5512 = vunpack.c.h.b16 %v4680
        %v5513 = vunpack.c.l.b16 %v4681
        %v5514 = vunpack.c.h.b16 %v4681
        %v5515 = vunpack.c.l.b16 %v4682
        %v5516 = vunpack.c.h.b16 %v4682
        %v5517 = vunpack.c.l.b16 %v4683
        %v5518 = vunpack.c.h.b16 %v4683
        %v5519 = vunpack.c.l.b16 %v4684
        %v5520 = vunpack.c.h.b16 %v4684
        %v5521 = vunpack.c.l.b16 %v4685
        %v5522 = vunpack.c.h.b16 %v4685
        %v5523 = vunpack.c.l.b16 %v4686
        %v5524 = vunpack.c.h.b16 %v4686
        %v5525 = vunpack.c.l.b16 %v4687
        %v5526 = vunpack.c.h.b16 %v4687
        %v5527 = vunpack.c.l.b16 %v4688
        %v5528 = vunpack.c.h.b16 %v4688
        %v5529 = vunpack.c.l.b16 %v4689
        %v5530 = vunpack.c.h.b16 %v4689
        %v5531 = vunpack.c.l.b16 %v4690
        %v5532 = vunpack.c.h.b16 %v4690
        %v5533 = vunpack.c.l.b16 %v4691
        %v5534 = vunpack.c.h.b16 %v4691
        %v5535 = vunpack.c.l.b16 %v4692
        %v5536 = vunpack.c.h.b16 %v4692
        %v5537 = vunpack.c.l.b16 %v4693
        %v5538 = vunpack.c.h.b16 %v4693
        %v5539 = vunpack.c.l.b16 %v4694
        %v5540 = vunpack.c.h.b16 %v4694
        %v5541 = vunpack.c.l.b16 %v4695
        %v5542 = vunpack.c.h.b16 %v4695
        %v5543 = vunpack.c.l.b16 %v4696
        %v5544 = vunpack.c.h.b16 %v4696
        %v5545 = vunpack.c.l.b16 %v4697
        %v5546 = vunpack.c.h.b16 %v4697
        %v5547 = vunpack.c.l.b16 %v4698
        %v5548 = vunpack.c.h.b16 %v4698
        %v5549 = vunpack.c.l.b16 %v4699
        %v5550 = vunpack.c.h.b16 %v4699
        %v5551 = vunpack.c.l.b16 %v4700
        %v5552 = vunpack.c.h.b16 %v4700
        %v5553 = vunpack.c.l.b16 %v4701
        %v5554 = vunpack.c.h.b16 %v4701
        %v5555 = vunpack.c.l.b16 %v4702
        %v5556 = vunpack.c.h.b16 %v4702
        %v5557 = vunpack.c.l.b16 %v4703
        %v5558 = vunpack.c.h.b16 %v4703
        %v5559 = vunpack.c.l.b16 %v4704
        %v5560 = vunpack.c.h.b16 %v4704
        %v5561 = vunpack.c.l.b16 %v4705
        %v5562 = vunpack.c.h.b16 %v4705
        %v5563 = vunpack.c.l.b16 %v4706
        %v5564 = vunpack.c.h.b16 %v4706
        %v5565 = vunpack.c.l.b16 %v4707
        %v5566 = vunpack.c.h.b16 %v4707
        %v5567 = vunpack.c.l.b16 %v4708
        %v5568 = vunpack.c.h.b16 %v4708
        %v5569 = vunpack.c.l.b16 %v4709
        %v5570 = vunpack.c.h.b16 %v4709
        %v5571 = vunpack.c.l.b16 %v4710
        %v5572 = vunpack.c.h.b16 %v4710
        %v5573 = vunpack.c.l.b16 %v4711
        %v5574 = vunpack.c.h.b16 %v4711
        %v5575 = vunpack.c.l.b16 %v4712
        %v5576 = vunpack.c.h.b16 %v4712
        %v5577 = vunpack.c.l.b16 %v4713
        %v5578 = vunpack.c.h.b16 %v4713
        %v5579 = vunpack.c.l.b16 %v4714
        %v5580 = vunpack.c.h.b16 %v4714
        %v5581 = vunpack.c.l.b16 %v4715
        %v5582 = vunpack.c.h.b16 %v4715
        %v5583 = vunpack.c.l.b16 %v4716
        %v5584 = vunpack.c.h.b16 %v4716
        %v5585 = vunpack.c.l.b16 %v4717
        %v5586 = vunpack.c.h.b16 %v4717
        %v5587 = vunpack.c.l.b16 %v4718
        %v5588 = vunpack.c.h.b16 %v4718
        %v5589 = vunpack.c.l.b16 %v4719
        %v5590 = vunpack.c.h.b16 %v4719
        %v5591 = vunpack.c.l.b16 %v4720
        %v5592 = vunpack.c.h.b16 %v4720
        %v5593 = vunpack.c.l.b16 %v4721
        %v5594 = vunpack.c.h.b16 %v4721
        %v5595 = vunpack.c.l.b16 %v4722
        %v5596 = vunpack.c.h.b16 %v4722
        %v5597 = vunpack.c.l.b16 %v4723
        %v5598 = vunpack.c.h.b16 %v4723
        %v5599 = vunpack.c.l.b16 %v4724
        %v5600 = vunpack.c.h.b16 %v4724
        %v5601 = vunpack.c.l.b16 %v4725
        %v5602 = vunpack.c.h.b16 %v4725
        %v5603 = vunpack.c.l.b16 %v4726
        %v5604 = vunpack.c.h.b16 %v4726
        %v5605 = vunpack.c.l.b16 %v4727
        %v5606 = vunpack.c.h.b16 %v4727
        %v5607 = vunpack.c.l.b16 %v4728
        %v5608 = vunpack.c.h.b16 %v4728
        %v5609 = vunpack.c.l.b16 %v4729
        %v5610 = vunpack.c.h.b16 %v4729
        %v5611 = vunpack.c.l.b16 %v4730
        %v5612 = vunpack.c.h.b16 %v4730
        %v5613 = vunpack.c.l.b16 %v4731
        %v5614 = vunpack.c.h.b16 %v4731
        %v5615 = vunpack.c.l.b16 %v4732
        %v5616 = vunpack.c.h.b16 %v4732
        %v5617 = vunpack.c.l.b16 %v4733
        %v5618 = vunpack.c.h.b16 %v4733
        %v5619 = vunpack.c.l.b16 %v4734
        %v5620 = vunpack.c.h.b16 %v4734
        %v5621 = vunpack.c.l.b16 %v4735
        %v5622 = vunpack.c.h.b16 %v4735
        %v5623 = vunpack.c.l.b16 %v4736
        %v5624 = vunpack.c.h.b16 %v4736
        %v5625 = vunpack.c.l.b16 %v4737
        %v5626 = vunpack.c.h.b16 %v4737
        %v5627 = vunpack.c.l.b16 %v4738
        %v5628 = vunpack.c.h.b16 %v4738
        %v5629 = vunpack.c.l.b16 %v4739
        %v5630 = vunpack.c.h.b16 %v4739
        %v5631 = vunpack.c.l.b16 %v4740
        %v5632 = vunpack.c.h.b16 %v4740
        %v5633 = vunpack.c.l.b16 %v4741
        %v5634 = vunpack.c.h.b16 %v4741
        %v5635 = vunpack.c.l.b16 %v4742
        %v5636 = vunpack.c.h.b16 %v4742
        %v5637 = vunpack.c.l.b16 %v4743
        %v5638 = vunpack.c.h.b16 %v4743
        %v5639 = vunpack.c.l.b16 %v4744
        %v5640 = vunpack.c.h.b16 %v4744
        %v5641 = vunpack.c.l.b16 %v4745
        %v5642 = vunpack.c.h.b16 %v4745
        %v5643 = vunpack.c.l.b16 %v4746
        %v5644 = vunpack.c.h.b16 %v4746
        %v5645 = vunpack.c.l.b16 %v4747
        %v5646 = vunpack.c.h.b16 %v4747
        %v5647 = vunpack.c.l.b16 %v4748
        %v5648 = vunpack.c.h.b16 %v4748
        %v5649 = vunpack.c.l.b16 %v4749
        %v5650 = vunpack.c.h.b16 %v4749
        %v5651 = vunpack.c.l.b16 %v4750
        %v5652 = vunpack.c.h.b16 %v4750
        %v5653 = vunpack.c.l.b16 %v4751
        %v5654 = vunpack.c.h.b16 %v4751
        %v5655 = vunpack.c.l.b16 %v4752
        %v5656 = vunpack.c.h.b16 %v4752
        %v5657 = vunpack.c.l.b16 %v4753
        %v5658 = vunpack.c.h.b16 %v4753
        %v5659 = vunpack.c.l.b16 %v4754
        %v5660 = vunpack.c.h.b16 %v4754
        %v5661 = vunpack.c.l.b16 %v4755
        %v5662 = vunpack.c.h.b16 %v4755
        %v5663 = vunpack.c.l.b16 %v4756
        %v5664 = vunpack.c.h.b16 %v4756
        %v5665 = vunpack.c.l.b16 %v4757
        %v5666 = vunpack.c.h.b16 %v4757
        %v5667 = vunpack.c.l.b16 %v4758
        %v5668 = vunpack.c.h.b16 %v4758
        %v5669 = vunpack.c.l.b16 %v4759
        %v5670 = vunpack.c.h.b16 %v4759
        %v5671 = vunpack.c.l.b16 %v4760
        %v5672 = vunpack.c.h.b16 %v4760
        %v5673 = vunpack.c.l.b16 %v4761
        %v5674 = vunpack.c.h.b16 %v4761
        %v5675 = vunpack.c.l.b16 %v4762
        %v5676 = vunpack.c.h.b16 %v4762
        %v5677 = vunpack.c.l.b16 %v4763
        %v5678 = vunpack.c.h.b16 %v4763
        %v5679 = vunpack.c.l.b16 %v4764
        %v5680 = vunpack.c.h.b16 %v4764
        %v5681 = vunpack.c.l.b16 %v4765
        %v5682 = vunpack.c.h.b16 %v4765
        %v5683 = vunpack.c.l.b16 %v4766
        %v5684 = vunpack.c.h.b16 %v4766
        %v5685 = vunpack.c.l.b16 %v4767
        %v5686 = vunpack.c.h.b16 %v4767
        %v5687 = vunpack.c.l.b16 %v4768
        %v5688 = vunpack.c.h.b16 %v4768
        %v5689 = vunpack.c.l.b16 %v4769
        %v5690 = vunpack.c.h.b16 %v4769
        %v5691 = vunpack.c.l.b16 %v4770
        %v5692 = vunpack.c.h.b16 %v4770
        %v5693 = vunpack.c.l.b16 %v4771
        %v5694 = vunpack.c.h.b16 %v4771
        %v5695 = vunpack.c.l.b16 %v4772
        %v5696 = vunpack.c.h.b16 %v4772
        %v5697 = vunpack.c.l.b16 %v4773
        %v5698 = vunpack.c.h.b16 %v4773
        %v5699 = vunpack.c.l.b16 %v4774
        %v5700 = vunpack.c.h.b16 %v4774
        %v5701 = vunpack.c.l.b16 %v4775
        %v5702 = vunpack.c.h.b16 %v4775
        %v5703 = vunpack.c.l.b16 %v4776
        %v5704 = vunpack.c.h.b16 %v4776
        %v5705 = vpack.c.b16 %v5141, %v5129
        %v5706 = vpack.c.b16 %v5142, %v5130
        %v5707 = vpack.c.b16 %v5143, %v5131
        %v5708 = vpack.c.b16 %v5144, %v5132
        %v5709 = vpack.c.b16 %v5145, %v5133
        %v5710 = vpack.c.b16 %v5146, %v5134
        %v5711 = vpack.c.b16 %v5147, %v5135
        %v5712 = vpack.c.b16 %v5148, %v5136
        %v5713 = vpack.c.b16 %v5149, %v5137
        %v5714 = vpack.c.b16 %v5150, %v5138
        %v5715 = vpack.c.b16 %v5151, %v5139
        %v5716 = vpack.c.b16 %v5152, %v5140
        %v5717 = vpack.c.b16 %v5165, %v5153
        %v5718 = vpack.c.b16 %v5166, %v5154
        %v5719 = vpack.c.b16 %v5167, %v5155
        %v5720 = vpack.c.b16 %v5168, %v5156
        %v5721 = vpack.c.b16 %v5169, %v5157
        %v5722 = vpack.c.b16 %v5170, %v5158
        %v5723 = vpack.c.b16 %v5171, %v5159
        %v5724 = vpack.c.b16 %v5172, %v5160
        %v5725 = vpack.c.b16 %v5173, %v5161
        %v5726 = vpack.c.b16 %v5174, %v5162
        %v5727 = vpack.c.b16 %v5175, %v5163
        %v5728 = vpack.c.b16 %v5176, %v5164
        %v5729 = vpack.c.b16 %v5189, %v5177
        %v5730 = vpack.c.b16 %v5190, %v5178
        %v5731 = vpack.c.b16 %v5191, %v5179
        %v5732 = vpack.c.b16 %v5192, %v5180
        %v5733 = vpack.c.b16 %v5193, %v5181
        %v5734 = vpack.c.b16 %v5194, %v5182
        %v5735 = vpack.c.b16 %v5195, %v5183
        %v5736 = vpack.c.b16 %v5196, %v5184
        %v5737 = vpack.c.b16 %v5197, %v5185
        %v5738 = vpack.c.b16 %v5198, %v5186
        %v5739 = vpack.c.b16 %v5199, %v5187
        %v5740 = vpack.c.b16 %v5200, %v5188
        %v5741 = vpack.c.b16 %v5213, %v5201
        %v5742 = vpack.c.b16 %v5214, %v5202
        %v5743 = vpack.c.b16 %v5215, %v5203
        %v5744 = vpack.c.b16 %v5216, %v5204
        %v5745 = vpack.c.b16 %v5217, %v5205
        %v5746 = vpack.c.b16 %v5218, %v5206
        %v5747 = vpack.c.b16 %v5219, %v5207
        %v5748 = vpack.c.b16 %v5220, %v5208
        %v5749 = vpack.c.b16 %v5221, %v5209
        %v5750 = vpack.c.b16 %v5222, %v5210
        %v5751 = vpack.c.b16 %v5223, %v5211
        %v5752 = vpack.c.b16 %v5224, %v5212
        %v5753 = vpack.c.b16 %v5237, %v5225
        %v5754 = vpack.c.b16 %v5238, %v5226
        %v5755 = vpack.c.b16 %v5239, %v5227
        %v5756 = vpack.c.b16 %v5240, %v5228
        %v5757 = vpack.c.b16 %v5241, %v5229
        %v5758 = vpack.c.b16 %v5242, %v5230
        %v5759 = vpack.c.b16 %v5243, %v5231
        %v5760 = vpack.c.b16 %v5244, %v5232
        %v5761 = vpack.c.b16 %v5245, %v5233
        %v5762 = vpack.c.b16 %v5246, %v5234
        %v5763 = vpack.c.b16 %v5247, %v5235
        %v5764 = vpack.c.b16 %v5248, %v5236
        %v5765 = vpack.c.b16 %v5261, %v5249
        %v5766 = vpack.c.b16 %v5262, %v5250
        %v5767 = vpack.c.b16 %v5263, %v5251
        %v5768 = vpack.c.b16 %v5264, %v5252
        %v5769 = vpack.c.b16 %v5265, %v5253
        %v5770 = vpack.c.b16 %v5266, %v5254
        %v5771 = vpack.c.b16 %v5267, %v5255
        %v5772 = vpack.c.b16 %v5268, %v5256
        %v5773 = vpack.c.b16 %v5269, %v5257
        %v5774 = vpack.c.b16 %v5270, %v5258
        %v5775 = vpack.c.b16 %v5271, %v5259
        %v5776 = vpack.c.b16 %v5272, %v5260
        %v5777 = vpack.c.b16 %v5285, %v5273
        %v5778 = vpack.c.b16 %v5286, %v5274
        %v5779 = vpack.c.b16 %v5287, %v5275
        %v5780 = vpack.c.b16 %v5288, %v5276
        %v5781 = vpack.c.b16 %v5289, %v5277
        %v5782 = vpack.c.b16 %v5290, %v5278
        %v5783 = vpack.c.b16 %v5291, %v5279
        %v5784 = vpack.c.b16 %v5292, %v5280
        %v5785 = vpack.c.b16 %v5293, %v5281
        %v5786 = vpack.c.b16 %v5294, %v5282
        %v5787 = vpack.c.b16 %v5295, %v5283
        %v5788 = vpack.c.b16 %v5296, %v5284
        %v5789 = vpack.c.b16 %v5309, %v5297
        %v5790 = vpack.c.b16 %v5310, %v5298
        %v5791 = vpack.c.b16 %v5311, %v5299
        %v5792 = vpack.c.b16 %v5312, %v5300
        %v5793 = vpack.c.b16 %v5313, %v5301
        %v5794 = vpack.c.b16 %v5314, %v5302
        %v5795 = vpack.c.b16 %v5315, %v5303
        %v5796 = vpack.c.b16 %v5316, %v5304
        %v5797 = vpack.c.b16 %v5317, %v5305
        %v5798 = vpack.c.b16 %v5318, %v5306
        %v5799 = vpack.c.b16 %v5319, %v5307
        %v5800 = vpack.c.b16 %v5320, %v5308
        %v5801 = vpack.c.b16 %v5333, %v5321
        %v5802 = vpack.c.b16 %v5334, %v5322
        %v5803 = vpack.c.b16 %v5335, %v5323
        %v5804 = vpack.c.b16 %v5336, %v5324
        %v5805 = vpack.c.b16 %v5337, %v5325
        %v5806 = vpack.c.b16 %v5338, %v5326
        %v5807 = vpack.c.b16 %v5339, %v5327
        %v5808 = vpack.c.b16 %v5340, %v5328
        %v5809 = vpack.c.b16 %v5341, %v5329
        %v5810 = vpack.c.b16 %v5342, %v5330
        %v5811 = vpack.c.b16 %v5343, %v5331
        %v5812 = vpack.c.b16 %v5344, %v5332
        %v5813 = vpack.c.b16 %v5357, %v5345
        %v5814 = vpack.c.b16 %v5358, %v5346
        %v5815 = vpack.c.b16 %v5359, %v5347
        %v5816 = vpack.c.b16 %v5360, %v5348
        %v5817 = vpack.c.b16 %v5361, %v5349
        %v5818 = vpack.c.b16 %v5362, %v5350
        %v5819 = vpack.c.b16 %v5363, %v5351
        %v5820 = vpack.c.b16 %v5364, %v5352
        %v5821 = vpack.c.b16 %v5365, %v5353
        %v5822 = vpack.c.b16 %v5366, %v5354
        %v5823 = vpack.c.b16 %v5367, %v5355
        %v5824 = vpack.c.b16 %v5368, %v5356
        %v5825 = vpack.c.b16 %v5381, %v5369
        %v5826 = vpack.c.b16 %v5382, %v5370
        %v5827 = vpack.c.b16 %v5383, %v5371
        %v5828 = vpack.c.b16 %v5384, %v5372
        %v5829 = vpack.c.b16 %v5385, %v5373
        %v5830 = vpack.c.b16 %v5386, %v5374
        %v5831 = vpack.c.b16 %v5387, %v5375
        %v5832 = vpack.c.b16 %v5388, %v5376
        %v5833 = vpack.c.b16 %v5389, %v5377
        %v5834 = vpack.c.b16 %v5390, %v5378
        %v5835 = vpack.c.b16 %v5391, %v5379
        %v5836 = vpack.c.b16 %v5392, %v5380
        %v5837 = vpack.c.b16 %v5405, %v5393
        %v5838 = vpack.c.b16 %v5406, %v5394
        %v5839 = vpack.c.b16 %v5407, %v5395
        %v5840 = vpack.c.b16 %v5408, %v5396
        %v5841 = vpack.c.b16 %v5409, %v5397
        %v5842 = vpack.c.b16 %v5410, %v5398
        %v5843 = vpack.c.b16 %v5411, %v5399
        %v5844 = vpack.c.b16 %v5412, %v5400
        %v5845 = vpack.c.b16 %v5413, %v5401
        %v5846 = vpack.c.b16 %v5414, %v5402
        %v5847 = vpack.c.b16 %v5415, %v5403
        %v5848 = vpack.c.b16 %v5416, %v5404
        %v5849 = vpack.c.b16 %v5429, %v5417
        %v5850 = vpack.c.b16 %v5430, %v5418
        %v5851 = vpack.c.b16 %v5431, %v5419
        %v5852 = vpack.c.b16 %v5432, %v5420
        %v5853 = vpack.c.b16 %v5433, %v5421
        %v5854 = vpack.c.b16 %v5434, %v5422
        %v5855 = vpack.c.b16 %v5435, %v5423
        %v5856 = vpack.c.b16 %v5436, %v5424
        %v5857 = vpack.c.b16 %v5437, %v5425
        %v5858 = vpack.c.b16 %v5438, %v5426
        %v5859 = vpack.c.b16 %v5439, %v5427
        %v5860 = vpack.c.b16 %v5440, %v5428
        %v5861 = vpack.c.b16 %v5453, %v5441
        %v5862 = vpack.c.b16 %v5454, %v5442
        %v5863 = vpack.c.b16 %v5455, %v5443
        %v5864 = vpack.c.b16 %v5456, %v5444
        %v5865 = vpack.c.b16 %v5457, %v5445
        %v5866 = vpack.c.b16 %v5458, %v5446
        %v5867 = vpack.c.b16 %v5459, %v5447
        %v5868 = vpack.c.b16 %v5460, %v5448
        %v5869 = vpack.c.b16 %v5461, %v5449
        %v5870 = vpack.c.b16 %v5462, %v5450
        %v5871 = vpack.c.b16 %v5463, %v5451
        %v5872 = vpack.c.b16 %v5464, %v5452
        %v5873 = vpack.c.b16 %v5477, %v5465
        %v5874 = vpack.c.b16 %v5478, %v5466
        %v5875 = vpack.c.b16 %v5479, %v5467
        %v5876 = vpack.c.b16 %v5480, %v5468
        %v5877 = vpack.c.b16 %v5481, %v5469
        %v5878 = vpack.c.b16 %v5482, %v5470
        %v5879 = vpack.c.b16 %v5483, %v5471
        %v5880 = vpack.c.b16 %v5484, %v5472
        %v5881 = vpack.c.b16 %v5485, %v5473
        %v5882 = vpack.c.b16 %v5486, %v5474
        %v5883 = vpack.c.b16 %v5487, %v5475
        %v5884 = vpack.c.b16 %v5488, %v5476
        %v5885 = vpack.c.b16 %v5501, %v5489
        %v5886 = vpack.c.b16 %v5502, %v5490
        %v5887 = vpack.c.b16 %v5503, %v5491
        %v5888 = vpack.c.b16 %v5504, %v5492
        %v5889 = vpack.c.b16 %v5505, %v5493
        %v5890 = vpack.c.b16 %v5506, %v5494
        %v5891 = vpack.c.b16 %v5507, %v5495
        %v5892 = vpack.c.b16 %v5508, %v5496
        %v5893 = vpack.c.b16 %v5509, %v5497
        %v5894 = vpack.c.b16 %v5510, %v5498
        %v5895 = vpack.c.b16 %v5511, %v5499
        %v5896 = vpack.c.b16 %v5512, %v5500
        %v5897 = vpack.c.b16 %v5525, %v5513
        %v5898 = vpack.c.b16 %v5526, %v5514
        %v5899 = vpack.c.b16 %v5527, %v5515
        %v5900 = vpack.c.b16 %v5528, %v5516
        %v5901 = vpack.c.b16 %v5529, %v5517
        %v5902 = vpack.c.b16 %v5530, %v5518
        %v5903 = vpack.c.b16 %v5531, %v5519
        %v5904 = vpack.c.b16 %v5532, %v5520
        %v5905 = vpack.c.b16 %v5533, %v5521
        %v5906 = vpack.c.b16 %v5534, %v5522
        %v5907 = vpack.c.b16 %v5535, %v5523
        %v5908 = vpack.c.b16 %v5536, %v5524
        %v5909 = vpack.c.b16 %v5549, %v5537
        %v5910 = vpack.c.b16 %v5550, %v5538
        %v5911 = vpack.c.b16 %v5551, %v5539
        %v5912 = vpack.c.b16 %v5552, %v5540
        %v5913 = vpack.c.b16 %v5553, %v5541
        %v5914 = vpack.c.b16 %v5554, %v5542
        %v5915 = vpack.c.b16 %v5555, %v5543
        %v5916 = vpack.c.b16 %v5556, %v5544
        %v5917 = vpack.c.b16 %v5557, %v5545
        %v5918 = vpack.c.b16 %v5558, %v5546
        %v5919 = vpack.c.b16 %v5559, %v5547
        %v5920 = vpack.c.b16 %v5560, %v5548
        %v5921 = vpack.c.b16 %v5573, %v5561
        %v5922 = vpack.c.b16 %v5574, %v5562
        %v5923 = vpack.c.b16 %v5575, %v5563
        %v5924 = vpack.c.b16 %v5576, %v5564
        %v5925 = vpack.c.b16 %v5577, %v5565
        %v5926 = vpack.c.b16 %v5578, %v5566
        %v5927 = vpack.c.b16 %v5579, %v5567
        %v5928 = vpack.c.b16 %v5580, %v5568
        %v5929 = vpack.c.b16 %v5581, %v5569
        %v5930 = vpack.c.b16 %v5582, %v5570
        %v5931 = vpack.c.b16 %v5583, %v5571
        %v5932 = vpack.c.b16 %v5584, %v5572
        %v5933 = vpack.c.b16 %v5597, %v5585
        %v5934 = vpack.c.b16 %v5598, %v5586
        %v5935 = vpack.c.b16 %v5599, %v5587
        %v5936 = vpack.c.b16 %v5600, %v5588
        %v5937 = vpack.c.b16 %v5601, %v5589
        %v5938 = vpack.c.b16 %v5602, %v5590
        %v5939 = vpack.c.b16 %v5603, %v5591
        %v5940 = vpack.c.b16 %v5604, %v5592
        %v5941 = vpack.c.b16 %v5605, %v5593
        %v5942 = vpack.c.b16 %v5606, %v5594
        %v5943 = vpack.c.b16 %v5607, %v5595
        %v5944 = vpack.c.b16 %v5608, %v5596
        %v5945 = vpack.c.b16 %v5621, %v5609
        %v5946 = vpack.c.b16 %v5622, %v5610
        %v5947 = vpack.c.b16 %v5623, %v5611
        %v5948 = vpack.c.b16 %v5624, %v5612
        %v5949 = vpack.c.b16 %v5625, %v5613
        %v5950 = vpack.c.b16 %v5626, %v5614
        %v5951 = vpack.c.b16 %v5627, %v5615
        %v5952 = vpack.c.b16 %v5628, %v5616
        %v5953 = vpack.c.b16 %v5629, %v5617
        %v5954 = vpack.c.b16 %v5630, %v5618
        %v5955 = vpack.c.b16 %v5631, %v5619
        %v5956 = vpack.c.b16 %v5632, %v5620
        %v5957 = vpack.c.b16 %v5645, %v5633
        %v5958 = vpack.c.b16 %v5646, %v5634
        %v5959 = vpack.c.b16 %v5647, %v5635
        %v5960 = vpack.c.b16 %v5648, %v5636
        %v5961 = vpack.c.b16 %v5649, %v5637
        %v5962 = vpack.c.b16 %v5650, %v5638
        %v5963 = vpack.c.b16 %v5651, %v5639
        %v5964 = vpack.c.b16 %v5652, %v5640
        %v5965 = vpack.c.b16 %v5653, %v5641
        %v5966 = vpack.c.b16 %v5654, %v5642
        %v5967 = vpack.c.b16 %v5655, %v5643
        %v5968 = vpack.c.b16 %v5656, %v5644
        %v5969 = vpack.c.b16 %v5669, %v5657
        %v5970 = vpack.c.b16 %v5670, %v5658
        %v5971 = vpack.c.b16 %v5671, %v5659
        %v5972 = vpack.c.b16 %v5672, %v5660
        %v5973 = vpack.c.b16 %v5673, %v5661
        %v5974 = vpack.c.b16 %v5674, %v5662
        %v5975 = vpack.c.b16 %v5675, %v5663
        %v5976 = vpack.c.b16 %v5676, %v5664
        %v5977 = vpack.c.b16 %v5677, %v5665
        %v5978 = vpack.c.b16 %v5678, %v5666
        %v5979 = vpack.c.b16 %v5679, %v5667
        %v5980 = vpack.c.b16 %v5680, %v5668
        %v5981 = vpack.c.b16 %v5693, %v5681
        %v5982 = vpack.c.b16 %v5694, %v5682
        %v5983 = vpack.c.b16 %v5695, %v5683
        %v5984 = vpack.c.b16 %v5696, %v5684
        %v5985 = vpack.c.b16 %v5697, %v5685
        %v5986 = vpack.c.b16 %v5698, %v5686
        %v5987 = vpack.c.b16 %v5699, %v5687
        %v5988 = vpack.c.b16 %v5700, %v5688
        %v5989 = vpack.c.b16 %v5701, %v5689
        %v5990 = vpack.c.b16 %v5702, %v5690
        %v5991 = vpack.c.b16 %v5703, %v5691
        %v5992 = vpack.c.b16 %v5704, %v5692
        %6281 = vmatprep.subr.bf16.mxu0 %v5706
        %6282 = vmatpush1.bf16.msra.mxu0 %v5705
        %6283 = vmatprep.subr.bf16.mxu0 %v5718
        %6284 = vmatpush1.bf16.msra.mxu0 %v5717
        %6285 = vmatprep.subr.bf16.mxu0 %v5730
        %6286 = vmatpush1.bf16.msra.mxu0 %v5729
        %6287 = vmatprep.subr.bf16.mxu0 %v5742
        %6288 = vmatpush1.bf16.msra.mxu0 %v5741
        %6289 = vmatprep.subr.bf16.mxu0 %v5754
        %6290 = vmatpush1.bf16.msra.mxu0 %v5753
        %6291 = vmatprep.subr.bf16.mxu0 %v5766
        %6292 = vmatpush1.bf16.msra.mxu0 %v5765
        %6293 = vmatprep.subr.bf16.mxu0 %v5778
        %6294 = vmatpush1.bf16.msra.mxu0 %v5777
        %6295 = vmatprep.subr.bf16.mxu0 %v5790
        %6296 = vmatpush1.bf16.msra.mxu0 %v5789
        %6297 = vmatprep.subr.bf16.mxu0 %v5802
        %6298 = vmatpush1.bf16.msra.mxu0 %v5801
        %6299 = vmatprep.subr.bf16.mxu0 %v5814
        %6300 = vmatpush1.bf16.msra.mxu0 %v5813
        %6301 = vmatprep.subr.bf16.mxu0 %v5826
        %6302 = vmatpush1.bf16.msra.mxu0 %v5825
        %6303 = vmatprep.subr.bf16.mxu0 %v5838
        %6304 = vmatpush1.bf16.msra.mxu0 %v5837
        %6305 = vmatprep.subr.bf16.mxu0 %v5850
        %6306 = vmatpush1.bf16.msra.mxu0 %v5849
        %6307 = vmatprep.subr.bf16.mxu0 %v5862
        %6308 = vmatpush1.bf16.msra.mxu0 %v5861
        %6309 = vmatprep.subr.bf16.mxu0 %v5874
        %6310 = vmatpush1.bf16.msra.mxu0 %v5873
        %6311 = vmatprep.subr.bf16.mxu0 %v5886
        %6312 = vmatpush1.bf16.msra.mxu0 %v5885
        %6313 = vmatprep.mubr.bf16.mxu0 %v4487
        %6314 = vmatmul.mubr.bf16.gmra.mrb[0].mxu0 %v4486
        %v6315 = vpop.f32.mrb[0].mxu0
        %v6316 = vadd.f32 %v4784, %v6315
        %v6317 = vpop.f32.mrb[0].mxu0
        %v6318 = vadd.f32 %v4788, %v6317
        %v6319 = vpop.f32.mrb[0].mxu0
        %v6320 = vpop.f32.mrb[0].mxu0
        %6321 = vdwg.mxu0
        %6322 = vmatprep.subr.bf16.mxu0 %v5898
        %6323 = vmatpush1.bf16.msra.mxu0 %v5897
        %6324 = vmatprep.subr.bf16.mxu0 %v5910
        %6325 = vmatpush1.bf16.msra.mxu0 %v5909
        %6326 = vmatprep.subr.bf16.mxu0 %v5922
        %6327 = vmatpush1.bf16.msra.mxu0 %v5921
        %6328 = vmatprep.subr.bf16.mxu0 %v5934
        %6329 = vmatpush1.bf16.msra.mxu0 %v5933
        %6330 = vmatprep.subr.bf16.mxu0 %v5946
        %6331 = vmatpush1.bf16.msra.mxu0 %v5945
        %6332 = vmatprep.subr.bf16.mxu0 %v5958
        %6333 = vmatpush1.bf16.msra.mxu0 %v5957
        %6334 = vmatprep.subr.bf16.mxu0 %v5970
        %6335 = vmatpush1.bf16.msra.mxu0 %v5969
        %6336 = vmatprep.subr.bf16.mxu0 %v5982
        %6337 = vmatpush1.bf16.msra.mxu0 %v5981
        %6338 = vmatprep.subr.bf16.mxu0 0
        %6339 = vmatpush1.bf16.msra.mxu0 0
        %6340 = vmatprep.subr.bf16.mxu0 0
        %6341 = vmatpush1.bf16.msra.mxu0 0
        %6342 = vmatprep.subr.bf16.mxu0 0
        %6343 = vmatpush1.bf16.msra.mxu0 0
        %6344 = vmatprep.subr.bf16.mxu0 0
        %6345 = vmatpush1.bf16.msra.mxu0 0
        %6346 = vmatprep.subr.bf16.mxu0 0
        %6347 = vmatpush1.bf16.msra.mxu0 0
        %6348 = vmatprep.subr.bf16.mxu0 0
        %6349 = vmatpush1.bf16.msra.mxu0 0
        %6350 = vmatprep.subr.bf16.mxu0 0
        %6351 = vmatpush1.bf16.msra.mxu0 0
        %6352 = vmatprep.subr.bf16.mxu0 0
        %6353 = vmatpush1.bf16.msra.mxu0 0
        %6354 = vmatprep.mubr.bf16.mxu0 0
        %6355 = vmatmul.mubr.bf16.gmra.mrb[0].mxu0 %v4488
        %v6356 = vpop.f32.mrb[0].mxu0
        %v6357 = vadd.f32 %v6316, %v6356
        %v6358 = vpop.f32.mrb[0].mxu0
        %v6359 = vadd.f32 %v6318, %v6358
        %v6360 = vpop.f32.mrb[0].mxu0
        %v6361 = vpop.f32.mrb[0].mxu0
        %6362 = vdwg.mxu0
        %6363 = vmatprep.subr.bf16.mxu0 %v5708
        %6364 = vmatpush1.bf16.msra.mxu0 %v5707
        %6365 = vmatprep.subr.bf16.mxu0 %v5720
        %6366 = vmatpush1.bf16.msra.mxu0 %v5719
        %6367 = vmatprep.subr.bf16.mxu0 %v5732
        %6368 = vmatpush1.bf16.msra.mxu0 %v5731
        %6369 = vmatprep.subr.bf16.mxu0 %v5744
        %6370 = vmatpush1.bf16.msra.mxu0 %v5743
        %6371 = vmatprep.subr.bf16.mxu0 %v5756
        %6372 = vmatpush1.bf16.msra.mxu0 %v5755
        %6373 = vmatprep.subr.bf16.mxu0 %v5768
        %6374 = vmatpush1.bf16.msra.mxu0 %v5767
        %6375 = vmatprep.subr.bf16.mxu0 %v5780
        %6376 = vmatpush1.bf16.msra.mxu0 %v5779
        %6377 = vmatprep.subr.bf16.mxu0 %v5792
        %6378 = vmatpush1.bf16.msra.mxu0 %v5791
        %6379 = vmatprep.subr.bf16.mxu0 %v5804
        %6380 = vmatpush1.bf16.msra.mxu0 %v5803
        %6381 = vmatprep.subr.bf16.mxu0 %v5816
        %6382 = vmatpush1.bf16.msra.mxu0 %v5815
        %6383 = vmatprep.subr.bf16.mxu0 %v5828
        %6384 = vmatpush1.bf16.msra.mxu0 %v5827
        %6385 = vmatprep.subr.bf16.mxu0 %v5840
        %6386 = vmatpush1.bf16.msra.mxu0 %v5839
        %6387 = vmatprep.subr.bf16.mxu0 %v5852
        %6388 = vmatpush1.bf16.msra.mxu0 %v5851
        %6389 = vmatprep.subr.bf16.mxu0 %v5864
        %6390 = vmatpush1.bf16.msra.mxu0 %v5863
        %6391 = vmatprep.subr.bf16.mxu0 %v5876
        %6392 = vmatpush1.bf16.msra.mxu0 %v5875
        %6393 = vmatprep.subr.bf16.mxu0 %v5888
        %6394 = vmatpush1.bf16.msra.mxu0 %v5887
        %6395 = vmatprep.mubr.bf16.mxu0 %v4487
        %6396 = vmatmul.mubr.bf16.gmra.mrb[0].mxu0 %v4486
        %v6397 = vpop.f32.mrb[0].mxu0
        %v6398 = vadd.f32 %v4792, %v6397
        %v6399 = vpop.f32.mrb[0].mxu0
        %v6400 = vadd.f32 %v4796, %v6399
        %v6401 = vpop.f32.mrb[0].mxu0
        %v6402 = vpop.f32.mrb[0].mxu0
        %6403 = vdwg.mxu0
        %6404 = vmatprep.subr.bf16.mxu0 %v5900
        %6405 = vmatpush1.bf16.msra.mxu0 %v5899
        %6406 = vmatprep.subr.bf16.mxu0 %v5912
        %6407 = vmatpush1.bf16.msra.mxu0 %v5911
        %6408 = vmatprep.subr.bf16.mxu0 %v5924
        %6409 = vmatpush1.bf16.msra.mxu0 %v5923
        %6410 = vmatprep.subr.bf16.mxu0 %v5936
        %6411 = vmatpush1.bf16.msra.mxu0 %v5935
        %6412 = vmatprep.subr.bf16.mxu0 %v5948
        %6413 = vmatpush1.bf16.msra.mxu0 %v5947
        %6414 = vmatprep.subr.bf16.mxu0 %v5960
        %6415 = vmatpush1.bf16.msra.mxu0 %v5959
        %6416 = vmatprep.subr.bf16.mxu0 %v5972
        %6417 = vmatpush1.bf16.msra.mxu0 %v5971
        %6418 = vmatprep.subr.bf16.mxu0 %v5984
        %6419 = vmatpush1.bf16.msra.mxu0 %v5983
        %6420 = vmatprep.subr.bf16.mxu0 0
        %6421 = vmatpush1.bf16.msra.mxu0 0
        %6422 = vmatprep.subr.bf16.mxu0 0
        %6423 = vmatpush1.bf16.msra.mxu0 0
        %6424 = vmatprep.subr.bf16.mxu0 0
        %6425 = vmatpush1.bf16.msra.mxu0 0
        %6426 = vmatprep.subr.bf16.mxu0 0
        %6427 = vmatpush1.bf16.msra.mxu0 0
        %6428 = vmatprep.subr.bf16.mxu0 0
        %6429 = vmatpush1.bf16.msra.mxu0 0
        %6430 = vmatprep.subr.bf16.mxu0 0
        %6431 = vmatpush1.bf16.msra.mxu0 0
        %6432 = vmatprep.subr.bf16.mxu0 0
        %6433 = vmatpush1.bf16.msra.mxu0 0
        %6434 = vmatprep.subr.bf16.mxu0 0
        %6435 = vmatpush1.bf16.msra.mxu0 0
        %6436 = vmatprep.mubr.bf16.mxu0 0
        %6437 = vmatmul.mubr.bf16.gmra.mrb[0].mxu0 %v4488
        %v6438 = vpop.f32.mrb[0].mxu0
        %v6439 = vadd.f32 %v6398, %v6438
        %v6440 = vpop.f32.mrb[0].mxu0
        %v6441 = vadd.f32 %v6400, %v6440
        %v6442 = vpop.f32.mrb[0].mxu0
        %v6443 = vpop.f32.mrb[0].mxu0
        %6444 = vdwg.mxu0
        %6445 = vmatprep.subr.bf16.mxu0 %v5710
        %6446 = vmatpush1.bf16.msra.mxu0 %v5709
        %6447 = vmatprep.subr.bf16.mxu0 %v5722
        %6448 = vmatpush1.bf16.msra.mxu0 %v5721
        %6449 = vmatprep.subr.bf16.mxu0 %v5734
        %6450 = vmatpush1.bf16.msra.mxu0 %v5733
        %6451 = vmatprep.subr.bf16.mxu0 %v5746
        %6452 = vmatpush1.bf16.msra.mxu0 %v5745
        %6453 = vmatprep.subr.bf16.mxu0 %v5758
        %6454 = vmatpush1.bf16.msra.mxu0 %v5757
        %6455 = vmatprep.subr.bf16.mxu0 %v5770
        %6456 = vmatpush1.bf16.msra.mxu0 %v5769
        %6457 = vmatprep.subr.bf16.mxu0 %v5782
        %6458 = vmatpush1.bf16.msra.mxu0 %v5781
        %6459 = vmatprep.subr.bf16.mxu0 %v5794
        %6460 = vmatpush1.bf16.msra.mxu0 %v5793
        %6461 = vmatprep.subr.bf16.mxu0 %v5806
        %6462 = vmatpush1.bf16.msra.mxu0 %v5805
        %6463 = vmatprep.subr.bf16.mxu0 %v5818
        %6464 = vmatpush1.bf16.msra.mxu0 %v5817
        %6465 = vmatprep.subr.bf16.mxu0 %v5830
        %6466 = vmatpush1.bf16.msra.mxu0 %v5829
        %6467 = vmatprep.subr.bf16.mxu0 %v5842
        %6468 = vmatpush1.bf16.msra.mxu0 %v5841
        %6469 = vmatprep.subr.bf16.mxu0 %v5854
        %6470 = vmatpush1.bf16.msra.mxu0 %v5853
        %6471 = vmatprep.subr.bf16.mxu0 %v5866
        %6472 = vmatpush1.bf16.msra.mxu0 %v5865
        %6473 = vmatprep.subr.bf16.mxu0 %v5878
        %6474 = vmatpush1.bf16.msra.mxu0 %v5877
        %6475 = vmatprep.subr.bf16.mxu0 %v5890
        %6476 = vmatpush1.bf16.msra.mxu0 %v5889
        %6477 = vmatprep.mubr.bf16.mxu0 %v4487
        %6478 = vmatmul.mubr.bf16.gmra.mrb[0].mxu0 %v4486
        %v6479 = vpop.f32.mrb[0].mxu0
        %v6480 = vadd.f32 %v4800, %v6479
        %v6481 = vpop.f32.mrb[0].mxu0
        %v6482 = vadd.f32 %v4804, %v6481
        %v6483 = vpop.f32.mrb[0].mxu0
        %v6484 = vpop.f32.mrb[0].mxu0
        %6485 = vdwg.mxu0
        %6486 = vmatprep.subr.bf16.mxu0 %v5902
        %6487 = vmatpush1.bf16.msra.mxu0 %v5901
        %6488 = vmatprep.subr.bf16.mxu0 %v5914
        %6489 = vmatpush1.bf16.msra.mxu0 %v5913
        %6490 = vmatprep.subr.bf16.mxu0 %v5926
        %6491 = vmatpush1.bf16.msra.mxu0 %v5925
        %6492 = vmatprep.subr.bf16.mxu0 %v5938
        %6493 = vmatpush1.bf16.msra.mxu0 %v5937
        %6494 = vmatprep.subr.bf16.mxu0 %v5950
        %6495 = vmatpush1.bf16.msra.mxu0 %v5949
        %6496 = vmatprep.subr.bf16.mxu0 %v5962
        %6497 = vmatpush1.bf16.msra.mxu0 %v5961
        %6498 = vmatprep.subr.bf16.mxu0 %v5974
        %6499 = vmatpush1.bf16.msra.mxu0 %v5973
        %6500 = vmatprep.subr.bf16.mxu0 %v5986
        %6501 = vmatpush1.bf16.msra.mxu0 %v5985
        %6502 = vmatprep.subr.bf16.mxu0 0
        %6503 = vmatpush1.bf16.msra.mxu0 0
        %6504 = vmatprep.subr.bf16.mxu0 0
        %6505 = vmatpush1.bf16.msra.mxu0 0
        %6506 = vmatprep.subr.bf16.mxu0 0
        %6507 = vmatpush1.bf16.msra.mxu0 0
        %6508 = vmatprep.subr.bf16.mxu0 0
        %6509 = vmatpush1.bf16.msra.mxu0 0
        %6510 = vmatprep.subr.bf16.mxu0 0
        %6511 = vmatpush1.bf16.msra.mxu0 0
        %6512 = vmatprep.subr.bf16.mxu0 0
        %6513 = vmatpush1.bf16.msra.mxu0 0
        %6514 = vmatprep.subr.bf16.mxu0 0
        %6515 = vmatpush1.bf16.msra.mxu0 0
        %6516 = vmatprep.subr.bf16.mxu0 0
        %6517 = vmatpush1.bf16.msra.mxu0 0
        %6518 = vmatprep.mubr.bf16.mxu0 0
        %6519 = vmatmul.mubr.bf16.gmra.mrb[0].mxu0 %v4488
        %v6520 = vpop.f32.mrb[0].mxu0
        %v6521 = vadd.f32 %v6480, %v6520
        %v6522 = vpop.f32.mrb[0].mxu0
        %v6523 = vadd.f32 %v6482, %v6522
        %v6524 = vpop.f32.mrb[0].mxu0
        %v6525 = vpop.f32.mrb[0].mxu0
        %6526 = vdwg.mxu0
        %6527 = vmatprep.subr.bf16.mxu0 %v5712
        %6528 = vmatpush1.bf16.msra.mxu0 %v5711
        %6529 = vmatprep.subr.bf16.mxu0 %v5724
        %6530 = vmatpush1.bf16.msra.mxu0 %v5723
        %6531 = vmatprep.subr.bf16.mxu0 %v5736
        %6532 = vmatpush1.bf16.msra.mxu0 %v5735
        %6533 = vmatprep.subr.bf16.mxu0 %v5748
        %6534 = vmatpush1.bf16.msra.mxu0 %v5747
        %6535 = vmatprep.subr.bf16.mxu0 %v5760
        %6536 = vmatpush1.bf16.msra.mxu0 %v5759
        %6537 = vmatprep.subr.bf16.mxu0 %v5772
        %6538 = vmatpush1.bf16.msra.mxu0 %v5771
        %6539 = vmatprep.subr.bf16.mxu0 %v5784
        %6540 = vmatpush1.bf16.msra.mxu0 %v5783
        %6541 = vmatprep.subr.bf16.mxu0 %v5796
        %6542 = vmatpush1.bf16.msra.mxu0 %v5795
        %6543 = vmatprep.subr.bf16.mxu0 %v5808
        %6544 = vmatpush1.bf16.msra.mxu0 %v5807
        %6545 = vmatprep.subr.bf16.mxu0 %v5820
        %6546 = vmatpush1.bf16.msra.mxu0 %v5819
        %6547 = vmatprep.subr.bf16.mxu0 %v5832
        %6548 = vmatpush1.bf16.msra.mxu0 %v5831
        %6549 = vmatprep.subr.bf16.mxu0 %v5844
        %6550 = vmatpush1.bf16.msra.mxu0 %v5843
        %6551 = vmatprep.subr.bf16.mxu0 %v5856
        %6552 = vmatpush1.bf16.msra.mxu0 %v5855
        %6553 = vmatprep.subr.bf16.mxu0 %v5868
        %6554 = vmatpush1.bf16.msra.mxu0 %v5867
        %6555 = vmatprep.subr.bf16.mxu0 %v5880
        %6556 = vmatpush1.bf16.msra.mxu0 %v5879
        %6557 = vmatprep.subr.bf16.mxu0 %v5892
        %6558 = vmatpush1.bf16.msra.mxu0 %v5891
        %6559 = vmatprep.mubr.bf16.mxu0 %v4487
        %6560 = vmatmul.mubr.bf16.gmra.mrb[0].mxu0 %v4486
        %v6561 = vpop.f32.mrb[0].mxu0
        %v6562 = vadd.f32 %v4808, %v6561
        %v6563 = vpop.f32.mrb[0].mxu0
        %v6564 = vadd.f32 %v4812, %v6563
        %v6565 = vpop.f32.mrb[0].mxu0
        %v6566 = vpop.f32.mrb[0].mxu0
        %6567 = vdwg.mxu0
        %6568 = vmatprep.subr.bf16.mxu0 %v5904
        %6569 = vmatpush1.bf16.msra.mxu0 %v5903
        %6570 = vmatprep.subr.bf16.mxu0 %v5916
        %6571 = vmatpush1.bf16.msra.mxu0 %v5915
        %6572 = vmatprep.subr.bf16.mxu0 %v5928
        %6573 = vmatpush1.bf16.msra.mxu0 %v5927
        %6574 = vmatprep.subr.bf16.mxu0 %v5940
        %6575 = vmatpush1.bf16.msra.mxu0 %v5939
        %6576 = vmatprep.subr.bf16.mxu0 %v5952
        %6577 = vmatpush1.bf16.msra.mxu0 %v5951
        %6578 = vmatprep.subr.bf16.mxu0 %v5964
        %6579 = vmatpush1.bf16.msra.mxu0 %v5963
        %6580 = vmatprep.subr.bf16.mxu0 %v5976
        %6581 = vmatpush1.bf16.msra.mxu0 %v5975
        %6582 = vmatprep.subr.bf16.mxu0 %v5988
        %6583 = vmatpush1.bf16.msra.mxu0 %v5987
        %6584 = vmatprep.subr.bf16.mxu0 0
        %6585 = vmatpush1.bf16.msra.mxu0 0
        %6586 = vmatprep.subr.bf16.mxu0 0
        %6587 = vmatpush1.bf16.msra.mxu0 0
        %6588 = vmatprep.subr.bf16.mxu0 0
        %6589 = vmatpush1.bf16.msra.mxu0 0
        %6590 = vmatprep.subr.bf16.mxu0 0
        %6591 = vmatpush1.bf16.msra.mxu0 0
        %6592 = vmatprep.subr.bf16.mxu0 0
        %6593 = vmatpush1.bf16.msra.mxu0 0
        %6594 = vmatprep.subr.bf16.mxu0 0
        %6595 = vmatpush1.bf16.msra.mxu0 0
        %6596 = vmatprep.subr.bf16.mxu0 0
        %6597 = vmatpush1.bf16.msra.mxu0 0
        %6598 = vmatprep.subr.bf16.mxu0 0
        %6599 = vmatpush1.bf16.msra.mxu0 0
        %6600 = vmatprep.mubr.bf16.mxu0 0
        %6601 = vmatmul.mubr.bf16.gmra.mrb[0].mxu0 %v4488
        %v6602 = vpop.f32.mrb[0].mxu0
        %v6603 = vadd.f32 %v6562, %v6602
        %v6604 = vpop.f32.mrb[0].mxu0
        %v6605 = vadd.f32 %v6564, %v6604
        %v6606 = vpop.f32.mrb[0].mxu0
        %v6607 = vpop.f32.mrb[0].mxu0
        %6608 = vdwg.mxu0
        %6609 = vmatprep.subr.bf16.mxu0 %v5714
        %6610 = vmatpush1.bf16.msra.mxu0 %v5713
        %6611 = vmatprep.subr.bf16.mxu0 %v5726
        %6612 = vmatpush1.bf16.msra.mxu0 %v5725
        %6613 = vmatprep.subr.bf16.mxu0 %v5738
        %6614 = vmatpush1.bf16.msra.mxu0 %v5737
        %6615 = vmatprep.subr.bf16.mxu0 %v5750
        %6616 = vmatpush1.bf16.msra.mxu0 %v5749
        %6617 = vmatprep.subr.bf16.mxu0 %v5762
        %6618 = vmatpush1.bf16.msra.mxu0 %v5761
        %6619 = vmatprep.subr.bf16.mxu0 %v5774
        %6620 = vmatpush1.bf16.msra.mxu0 %v5773
        %6621 = vmatprep.subr.bf16.mxu0 %v5786
        %6622 = vmatpush1.bf16.msra.mxu0 %v5785
        %6623 = vmatprep.subr.bf16.mxu0 %v5798
        %6624 = vmatpush1.bf16.msra.mxu0 %v5797
        %6625 = vmatprep.subr.bf16.mxu0 %v5810
        %6626 = vmatpush1.bf16.msra.mxu0 %v5809
        %6627 = vmatprep.subr.bf16.mxu0 %v5822
        %6628 = vmatpush1.bf16.msra.mxu0 %v5821
        %6629 = vmatprep.subr.bf16.mxu0 %v5834
        %6630 = vmatpush1.bf16.msra.mxu0 %v5833
        %6631 = vmatprep.subr.bf16.mxu0 %v5846
        %6632 = vmatpush1.bf16.msra.mxu0 %v5845
        %6633 = vmatprep.subr.bf16.mxu0 %v5858
        %6634 = vmatpush1.bf16.msra.mxu0 %v5857
        %6635 = vmatprep.subr.bf16.mxu0 %v5870
        %6636 = vmatpush1.bf16.msra.mxu0 %v5869
        %6637 = vmatprep.subr.bf16.mxu0 %v5882
        %6638 = vmatpush1.bf16.msra.mxu0 %v5881
        %6639 = vmatprep.subr.bf16.mxu0 %v5894
        %6640 = vmatpush1.bf16.msra.mxu0 %v5893
        %6641 = vmatprep.mubr.bf16.mxu0 %v4487
        %6642 = vmatmul.mubr.bf16.gmra.mrb[0].mxu0 %v4486
        %v6643 = vpop.f32.mrb[0].mxu0
        %v6644 = vadd.f32 %v4816, %v6643
        %v6645 = vpop.f32.mrb[0].mxu0
        %v6646 = vadd.f32 %v4820, %v6645
        %v6647 = vpop.f32.mrb[0].mxu0
        %v6648 = vpop.f32.mrb[0].mxu0
        %6649 = vdwg.mxu0
        %6650 = vmatprep.subr.bf16.mxu0 %v5906
        %6651 = vmatpush1.bf16.msra.mxu0 %v5905
        %6652 = vmatprep.subr.bf16.mxu0 %v5918
        %6653 = vmatpush1.bf16.msra.mxu0 %v5917
        %6654 = vmatprep.subr.bf16.mxu0 %v5930
        %6655 = vmatpush1.bf16.msra.mxu0 %v5929
        %6656 = vmatprep.subr.bf16.mxu0 %v5942
        %6657 = vmatpush1.bf16.msra.mxu0 %v5941
        %6658 = vmatprep.subr.bf16.mxu0 %v5954
        %6659 = vmatpush1.bf16.msra.mxu0 %v5953
        %6660 = vmatprep.subr.bf16.mxu0 %v5966
        %6661 = vmatpush1.bf16.msra.mxu0 %v5965
        %6662 = vmatprep.subr.bf16.mxu0 %v5978
        %6663 = vmatpush1.bf16.msra.mxu0 %v5977
        %6664 = vmatprep.subr.bf16.mxu0 %v5990
        %6665 = vmatpush1.bf16.msra.mxu0 %v5989
        %6666 = vmatprep.subr.bf16.mxu0 0
        %6667 = vmatpush1.bf16.msra.mxu0 0
        %6668 = vmatprep.subr.bf16.mxu0 0
        %6669 = vmatpush1.bf16.msra.mxu0 0
        %6670 = vmatprep.subr.bf16.mxu0 0
        %6671 = vmatpush1.bf16.msra.mxu0 0
        %6672 = vmatprep.subr.bf16.mxu0 0
        %6673 = vmatpush1.bf16.msra.mxu0 0
        %6674 = vmatprep.subr.bf16.mxu0 0
        %6675 = vmatpush1.bf16.msra.mxu0 0
        %6676 = vmatprep.subr.bf16.mxu0 0
        %6677 = vmatpush1.bf16.msra.mxu0 0
        %6678 = vmatprep.subr.bf16.mxu0 0
        %6679 = vmatpush1.bf16.msra.mxu0 0
        %6680 = vmatprep.subr.bf16.mxu0 0
        %6681 = vmatpush1.bf16.msra.mxu0 0
        %6682 = vmatprep.mubr.bf16.mxu0 0
        %6683 = vmatmul.mubr.bf16.gmra.mrb[0].mxu0 %v4488
        %v6684 = vpop.f32.mrb[0].mxu0
        %v6685 = vadd.f32 %v6644, %v6684
        %v6686 = vpop.f32.mrb[0].mxu0
        %v6687 = vadd.f32 %v6646, %v6686
        %v6688 = vpop.f32.mrb[0].mxu0
        %v6689 = vpop.f32.mrb[0].mxu0
        %6690 = vdwg.mxu0
        %6691 = vmatprep.subr.bf16.mxu0 %v5716
        %6692 = vmatpush1.bf16.msra.mxu0 %v5715
        %6693 = vmatprep.subr.bf16.mxu0 %v5728
        %6694 = vmatpush1.bf16.msra.mxu0 %v5727
        %6695 = vmatprep.subr.bf16.mxu0 %v5740
        %6696 = vmatpush1.bf16.msra.mxu0 %v5739
        %6697 = vmatprep.subr.bf16.mxu0 %v5752
        %6698 = vmatpush1.bf16.msra.mxu0 %v5751
        %6699 = vmatprep.subr.bf16.mxu0 %v5764
        %6700 = vmatpush1.bf16.msra.mxu0 %v5763
        %6701 = vmatprep.subr.bf16.mxu0 %v5776
        %6702 = vmatpush1.bf16.msra.mxu0 %v5775
        %6703 = vmatprep.subr.bf16.mxu0 %v5788
        %6704 = vmatpush1.bf16.msra.mxu0 %v5787
        %6705 = vmatprep.subr.bf16.mxu0 %v5800
        %6706 = vmatpush1.bf16.msra.mxu0 %v5799
        %6707 = vmatprep.subr.bf16.mxu0 %v5812
        %6708 = vmatpush1.bf16.msra.mxu0 %v5811
        %6709 = vmatprep.subr.bf16.mxu0 %v5824
        %6710 = vmatpush1.bf16.msra.mxu0 %v5823
        %6711 = vmatprep.subr.bf16.mxu0 %v5836
        %6712 = vmatpush1.bf16.msra.mxu0 %v5835
        %6713 = vmatprep.subr.bf16.mxu0 %v5848
        %6714 = vmatpush1.bf16.msra.mxu0 %v5847
        %6715 = vmatprep.subr.bf16.mxu0 %v5860
        %6716 = vmatpush1.bf16.msra.mxu0 %v5859
        %6717 = vmatprep.subr.bf16.mxu0 %v5872
        %6718 = vmatpush1.bf16.msra.mxu0 %v5871
        %6719 = vmatprep.subr.bf16.mxu0 %v5884
        %6720 = vmatpush1.bf16.msra.mxu0 %v5883
        %6721 = vmatprep.subr.bf16.mxu0 %v5896
        %6722 = vmatpush1.bf16.msra.mxu0 %v5895
        %6723 = vmatprep.mubr.bf16.mxu0 %v4487
        %6724 = vmatmul.mubr.bf16.gmra.mrb[0].mxu0 %v4486
        %v6725 = vpop.f32.mrb[0].mxu0
        %v6726 = vadd.f32 %v4824, %v6725
        %v6727 = vpop.f32.mrb[0].mxu0
        %v6728 = vadd.f32 %v4828, %v6727
        %v6729 = vpop.f32.mrb[0].mxu0
        %v6730 = vpop.f32.mrb[0].mxu0
        %6731 = vdwg.mxu0
        %6732 = vmatprep.subr.bf16.mxu0 %v5908
        %6733 = vmatpush1.bf16.msra.mxu0 %v5907
        %6734 = vmatprep.subr.bf16.mxu0 %v5920
        %6735 = vmatpush1.bf16.msra.mxu0 %v5919
        %6736 = vmatprep.subr.bf16.mxu0 %v5932
        %6737 = vmatpush1.bf16.msra.mxu0 %v5931
        %6738 = vmatprep.subr.bf16.mxu0 %v5944
        %6739 = vmatpush1.bf16.msra.mxu0 %v5943
        %6740 = vmatprep.subr.bf16.mxu0 %v5956
        %6741 = vmatpush1.bf16.msra.mxu0 %v5955
        %6742 = vmatprep.subr.bf16.mxu0 %v5968
        %6743 = vmatpush1.bf16.msra.mxu0 %v5967
        %6744 = vmatprep.subr.bf16.mxu0 %v5980
        %6745 = vmatpush1.bf16.msra.mxu0 %v5979
        %6746 = vmatprep.subr.bf16.mxu0 %v5992
        %6747 = vmatpush1.bf16.msra.mxu0 %v5991
        %6748 = vmatprep.subr.bf16.mxu0 0
        %6749 = vmatpush1.bf16.msra.mxu0 0
        %6750 = vmatprep.subr.bf16.mxu0 0
        %6751 = vmatpush1.bf16.msra.mxu0 0
        %6752 = vmatprep.subr.bf16.mxu0 0
        %6753 = vmatpush1.bf16.msra.mxu0 0
        %6754 = vmatprep.subr.bf16.mxu0 0
        %6755 = vmatpush1.bf16.msra.mxu0 0
        %6756 = vmatprep.subr.bf16.mxu0 0
        %6757 = vmatpush1.bf16.msra.mxu0 0
        %6758 = vmatprep.subr.bf16.mxu0 0
        %6759 = vmatpush1.bf16.msra.mxu0 0
        %6760 = vmatprep.subr.bf16.mxu0 0
        %6761 = vmatpush1.bf16.msra.mxu0 0
        %6762 = vmatprep.subr.bf16.mxu0 0
        %6763 = vmatpush1.bf16.msra.mxu0 0
        %6764 = vmatprep.mubr.bf16.mxu0 0
        %6765 = vmatmul.mubr.bf16.gmra.mrb[0].mxu0 %v4488
        %v6766 = vpop.f32.mrb[0].mxu0
        %v6767 = vadd.f32 %v6726, %v6766
        %v6768 = vpop.f32.mrb[0].mxu0
        %v6769 = vadd.f32 %v6728, %v6768
        %v6770 = vpop.f32.mrb[0].mxu0
        %v6771 = vpop.f32.mrb[0].mxu0
        %6772 = vdwg.mxu0
        %v6773 = vmax.f32 %v6357, 0.0
        %v6774 = vmax.f32 %v6359, 0.0
        %v6775 = vmax.f32 %v6439, 0.0
        %v6776 = vmax.f32 %v6441, 0.0
        %v6777 = vmax.f32 %v6521, 0.0
        %v6778 = vmax.f32 %v6523, 0.0
        %v6779 = vmax.f32 %v6603, 0.0
        %v6780 = vmax.f32 %v6605, 0.0
        %v6781 = vmax.f32 %v6685, 0.0
        %v6782 = vmax.f32 %v6687, 0.0
        %v6783 = vmax.f32 %v6767, 0.0
        %v6784 = vmax.f32 %v6769, 0.0
        %v6785 = vpack.c.bf16 %v6773, %v6773
        %v6786 = vpack.c.bf16 %v6774, %v6774
        %v6787 = vpack.c.bf16 %v6775, %v6775
        %v6788 = vpack.c.bf16 %v6776, %v6776
        %v6789 = vpack.c.bf16 %v6777, %v6777
        %v6790 = vpack.c.bf16 %v6778, %v6778
        %v6791 = vpack.c.bf16 %v6779, %v6779
        %v6792 = vpack.c.bf16 %v6780, %v6780
        %v6793 = vpack.c.bf16 %v6781, %v6781
        %v6794 = vpack.c.bf16 %v6782, %v6782
        %v6795 = vpack.c.bf16 %v6783, %v6783
        %v6796 = vpack.c.bf16 %v6784, %v6784
        %v6797 = vld [vmem:[%s932] sm:$0xff]
        %v6798 = vld [vmem:[%s932 + $0x8] sm:$0xf]
        %v6799 = vld [vmem:[%s932 + $0xc] sm:$0xff]
        %v6800 = vld [vmem:[%s932 + $0x14] sm:$0xf]
        %v6801 = vld [vmem:[%s932 + $0x18] sm:$0xff]
        %v6802 = vld [vmem:[%s932 + $0x20] sm:$0xf]
        %v6803 = vld [vmem:[%s932 + $0x24] sm:$0xff]
        %v6804 = vld [vmem:[%s932 + $0x2c] sm:$0xf]
        %v6805 = vld [vmem:[%s932 + $0x30] sm:$0xff]
        %v6806 = vld [vmem:[%s932 + $0x38] sm:$0xf]
        %v6807 = vld [vmem:[%s932 + $0x3c] sm:$0xff]
        %v6808 = vld [vmem:[%s932 + $0x44] sm:$0xf]
        %v6809 = vld [vmem:[%s932 + $0x48] sm:$0xff]
        %v6810 = vld [vmem:[%s932 + $0x50] sm:$0xf]
        %v6811 = vld [vmem:[%s932 + $0x54] sm:$0xff]
        %v6812 = vld [vmem:[%s932 + $0x5c] sm:$0xf]
        %v6813 = vld [vmem:[%s932 + $0x60] sm:$0xff]
        %v6814 = vld [vmem:[%s932 + $0x68] sm:$0xf]
        %v6815 = vld [vmem:[%s932 + $0x6c] sm:$0xff]
        %v6816 = vld [vmem:[%s932 + $0x74] sm:$0xf]
        %v6817 = vld [vmem:[%s932 + $0x78] sm:$0xff]
        %v6818 = vld [vmem:[%s932 + $0x80] sm:$0xf]
        %v6819 = vld [vmem:[%s932 + $0x84] sm:$0xff]
        %v6820 = vld [vmem:[%s932 + $0x8c] sm:$0xf]
        %v6821 = vld [vmem:[%s932 + $0x90] sm:$0xff]
        %v6822 = vld [vmem:[%s932 + $0x98] sm:$0xf]
        %v6823 = vld [vmem:[%s932 + $0x9c] sm:$0xff]
        %v6824 = vld [vmem:[%s932 + $0xa4] sm:$0xf]
        %v6825 = vld [vmem:[%s932 + $0xa8] sm:$0xff]
        %v6826 = vld [vmem:[%s932 + $0xb0] sm:$0xf]
        %v6827 = vld [vmem:[%s932 + $0xb4] sm:$0xff]
        %v6828 = vld [vmem:[%s932 + $0xbc] sm:$0xf]
        %v6829 = vld [vmem:[%s932 + $0xc0] sm:$0xff]
        %v6830 = vld [vmem:[%s932 + $0xc8] sm:$0xf]
        %v6831 = vld [vmem:[%s932 + $0xcc] sm:$0xff]
        %v6832 = vld [vmem:[%s932 + $0xd4] sm:$0xf]
        %v6833 = vld [vmem:[%s932 + $0xd8] sm:$0xff]
        %v6834 = vld [vmem:[%s932 + $0xe0] sm:$0xf]
        %v6835 = vld [vmem:[%s932 + $0xe4] sm:$0xff]
        %v6836 = vld [vmem:[%s932 + $0xec] sm:$0xf]
        %v6837 = vld [vmem:[%s932 + $0xf0] sm:$0xff]
        %v6838 = vld [vmem:[%s932 + $0xf8] sm:$0xf]
        %v6839 = vld [vmem:[%s932 + $0xfc] sm:$0xff]
        %v6840 = vld [vmem:[%s932 + $0x104] sm:$0xf]
        %v6841 = vld [vmem:[%s932 + $0x108] sm:$0xff]
        %v6842 = vld [vmem:[%s932 + $0x110] sm:$0xf]
        %v6843 = vld [vmem:[%s932 + $0x114] sm:$0xff]
        %v6844 = vld [vmem:[%s932 + $0x11c] sm:$0xf]
        %v6845 = vld [vmem:[%s932 + $0x120] sm:$0xff]
        %v6846 = vld [vmem:[%s932 + $0x128] sm:$0xf]
        %v6847 = vld [vmem:[%s932 + $0x12c] sm:$0xff]
        %v6848 = vld [vmem:[%s932 + $0x134] sm:$0xf]
        %v6849 = vld [vmem:[%s932 + $0x138] sm:$0xff]
        %v6850 = vld [vmem:[%s932 + $0x140] sm:$0xf]
        %v6851 = vld [vmem:[%s932 + $0x144] sm:$0xff]
        %v6852 = vld [vmem:[%s932 + $0x14c] sm:$0xf]
        %v6853 = vld [vmem:[%s932 + $0x150] sm:$0xff]
        %v6854 = vld [vmem:[%s932 + $0x158] sm:$0xf]
        %v6855 = vld [vmem:[%s932 + $0x15c] sm:$0xff]
        %v6856 = vld [vmem:[%s932 + $0x164] sm:$0xf]
        %v6857 = vld [vmem:[%s932 + $0x168] sm:$0xff]
        %v6858 = vld [vmem:[%s932 + $0x170] sm:$0xf]
        %v6859 = vld [vmem:[%s932 + $0x174] sm:$0xff]
        %v6860 = vld [vmem:[%s932 + $0x17c] sm:$0xf]
        %v6861 = vld [vmem:[%s932 + $0x180] sm:$0xff]
        %v6862 = vld [vmem:[%s932 + $0x188] sm:$0xf]
        %v6863 = vld [vmem:[%s932 + $0x18c] sm:$0xff]
        %v6864 = vld [vmem:[%s932 + $0x194] sm:$0xf]
        %v6865 = vld [vmem:[%s932 + $0x198] sm:$0xff]
        %v6866 = vld [vmem:[%s932 + $0x1a0] sm:$0xf]
        %v6867 = vld [vmem:[%s932 + $0x1a4] sm:$0xff]
        %v6868 = vld [vmem:[%s932 + $0x1ac] sm:$0xf]
        %v6869 = vld [vmem:[%s932 + $0x1b0] sm:$0xff]
        %v6870 = vld [vmem:[%s932 + $0x1b8] sm:$0xf]
        %v6871 = vld [vmem:[%s932 + $0x1bc] sm:$0xff]
        %v6872 = vld [vmem:[%s932 + $0x1c4] sm:$0xf]
        %v6873 = vld [vmem:[%s932 + $0x1c8] sm:$0xff]
        %v6874 = vld [vmem:[%s932 + $0x1d0] sm:$0xf]
        %v6875 = vld [vmem:[%s932 + $0x1d4] sm:$0xff]
        %v6876 = vld [vmem:[%s932 + $0x1dc] sm:$0xf]
        %v6877 = vld [vmem:[%s932 + $0x1e0] sm:$0xff]
        %v6878 = vld [vmem:[%s932 + $0x1e8] sm:$0xf]
        %v6879 = vld [vmem:[%s932 + $0x1ec] sm:$0xff]
        %v6880 = vld [vmem:[%s932 + $0x1f4] sm:$0xf]
        %v6881 = vld [vmem:[%s932 + $0x1f8] sm:$0xff]
        %v6882 = vld [vmem:[%s932 + $0x200] sm:$0xf]
        %v6883 = vld [vmem:[%s932 + $0x204] sm:$0xff]
        %v6884 = vld [vmem:[%s932 + $0x20c] sm:$0xf]
        %v6885 = vld [vmem:[%s932 + $0x210] sm:$0xff]
        %v6886 = vld [vmem:[%s932 + $0x218] sm:$0xf]
        %v6887 = vld [vmem:[%s932 + $0x21c] sm:$0xff]
        %v6888 = vld [vmem:[%s932 + $0x224] sm:$0xf]
        %v6889 = vld [vmem:[%s932 + $0x228] sm:$0xff]
        %v6890 = vld [vmem:[%s932 + $0x230] sm:$0xf]
        %v6891 = vld [vmem:[%s932 + $0x234] sm:$0xff]
        %v6892 = vld [vmem:[%s932 + $0x23c] sm:$0xf]
        %v6893 = vld [vmem:[%s932 + $0x240] sm:$0xff]
        %v6894 = vld [vmem:[%s932 + $0x248] sm:$0xf]
        %v6895 = vld [vmem:[%s932 + $0x24c] sm:$0xff]
        %v6896 = vld [vmem:[%s932 + $0x254] sm:$0xf]
        %v6897 = vld [vmem:[%s932 + $0x258] sm:$0xff]
        %v6898 = vld [vmem:[%s932 + $0x260] sm:$0xf]
        %v6899 = vld [vmem:[%s932 + $0x264] sm:$0xff]
        %v6900 = vld [vmem:[%s932 + $0x26c] sm:$0xf]
        %v6901 = vld [vmem:[%s932 + $0x270] sm:$0xff]
        %v6902 = vld [vmem:[%s932 + $0x278] sm:$0xf]
        %v6903 = vld [vmem:[%s932 + $0x27c] sm:$0xff]
        %v6904 = vld [vmem:[%s932 + $0x284] sm:$0xf]
        %v6905 = vld [vmem:[%s932 + $0x288] sm:$0xff]
        %v6906 = vld [vmem:[%s932 + $0x290] sm:$0xf]
        %v6907 = vld [vmem:[%s932 + $0x294] sm:$0xff]
        %v6908 = vld [vmem:[%s932 + $0x29c] sm:$0xf]
        %v6909 = vld [vmem:[%s932 + $0x2a0] sm:$0xff]
        %v6910 = vld [vmem:[%s932 + $0x2a8] sm:$0xf]
        %v6911 = vld [vmem:[%s932 + $0x2ac] sm:$0xff]
        %v6912 = vld [vmem:[%s932 + $0x2b4] sm:$0xf]
        %v6913 = vld [vmem:[%s932 + $0x2b8] sm:$0xff]
        %v6914 = vld [vmem:[%s932 + $0x2c0] sm:$0xf]
        %v6915 = vld [vmem:[%s932 + $0x2c4] sm:$0xff]
        %v6916 = vld [vmem:[%s932 + $0x2cc] sm:$0xf]
        %v6917 = vld [vmem:[%s932 + $0x2d0] sm:$0xff]
        %v6918 = vld [vmem:[%s932 + $0x2d8] sm:$0xf]
        %v6919 = vld [vmem:[%s932 + $0x2dc] sm:$0xff]
        %v6920 = vld [vmem:[%s932 + $0x2e4] sm:$0xf]
        %v6921 = vld [vmem:[%s932 + $0x2e8] sm:$0xff]
        %v6922 = vld [vmem:[%s932 + $0x2f0] sm:$0xf]
        %v6923 = vld [vmem:[%s932 + $0x2f4] sm:$0xff]
        %v6924 = vld [vmem:[%s932 + $0x2fc] sm:$0xf]
        %v6925 = vld [vmem:[%s932 + $0x300] sm:$0xff]
        %v6926 = vld [vmem:[%s932 + $0x308] sm:$0xf]
        %v6927 = vld [vmem:[%s932 + $0x30c] sm:$0xff]
        %v6928 = vld [vmem:[%s932 + $0x314] sm:$0xf]
        %v6929 = vld [vmem:[%s932 + $0x318] sm:$0xff]
        %v6930 = vld [vmem:[%s932 + $0x320] sm:$0xf]
        %v6931 = vld [vmem:[%s932 + $0x324] sm:$0xff]
        %v6932 = vld [vmem:[%s932 + $0x32c] sm:$0xf]
        %v6933 = vld [vmem:[%s932 + $0x330] sm:$0xff]
        %v6934 = vld [vmem:[%s932 + $0x338] sm:$0xf]
        %v6935 = vld [vmem:[%s932 + $0x33c] sm:$0xff]
        %v6936 = vld [vmem:[%s932 + $0x344] sm:$0xf]
        %v6937 = vld [vmem:[%s932 + $0x348] sm:$0xff]
        %v6938 = vld [vmem:[%s932 + $0x350] sm:$0xf]
        %v6939 = vld [vmem:[%s932 + $0x354] sm:$0xff]
        %v6940 = vld [vmem:[%s932 + $0x35c] sm:$0xf]
        %v6941 = vld [vmem:[%s932 + $0x360] sm:$0xff]
        %v6942 = vld [vmem:[%s932 + $0x368] sm:$0xf]
        %v6943 = vld [vmem:[%s932 + $0x36c] sm:$0xff]
        %v6944 = vld [vmem:[%s932 + $0x374] sm:$0xf]
        %v6945 = vld [vmem:[%s932 + $0x378] sm:$0xff]
        %v6946 = vld [vmem:[%s932 + $0x380] sm:$0xf]
        %v6947 = vld [vmem:[%s932 + $0x384] sm:$0xff]
        %v6948 = vld [vmem:[%s932 + $0x38c] sm:$0xf]
        %v6949 = vld [vmem:[%s932 + $0x390] sm:$0xff]
        %v6950 = vld [vmem:[%s932 + $0x398] sm:$0xf]
        %v6951 = vld [vmem:[%s932 + $0x39c] sm:$0xff]
        %v6952 = vld [vmem:[%s932 + $0x3a4] sm:$0xf]
        %v6953 = vld [vmem:[%s932 + $0x3a8] sm:$0xff]
        %v6954 = vld [vmem:[%s932 + $0x3b0] sm:$0xf]
        %v6955 = vld [vmem:[%s932 + $0x3b4] sm:$0xff]
        %v6956 = vld [vmem:[%s932 + $0x3bc] sm:$0xf]
        %v6957 = vld [vmem:[%s932 + $0x3c0] sm:$0xff]
        %v6958 = vld [vmem:[%s932 + $0x3c8] sm:$0xf]
        %v6959 = vld [vmem:[%s932 + $0x3cc] sm:$0xff]
        %v6960 = vld [vmem:[%s932 + $0x3d4] sm:$0xf]
        %v6961 = vld [vmem:[%s932 + $0x3d8] sm:$0xff]
        %v6962 = vld [vmem:[%s932 + $0x3e0] sm:$0xf]
        %v6963 = vld [vmem:[%s932 + $0x3e4] sm:$0xff]
        %v6964 = vld [vmem:[%s932 + $0x3ec] sm:$0xf]
        %v6965 = vld [vmem:[%s932 + $0x3f0] sm:$0xff]
        %v6966 = vld [vmem:[%s932 + $0x3f8] sm:$0xf]
        %v6967 = vld [vmem:[%s932 + $0x3fc] sm:$0xff]
        %v6968 = vld [vmem:[%s932 + $0x404] sm:$0xf]
        %v6969 = vld [vmem:[%s932 + $0x408] sm:$0xff]
        %v6970 = vld [vmem:[%s932 + $0x410] sm:$0xf]
        %v6971 = vld [vmem:[%s932 + $0x414] sm:$0xff]
        %v6972 = vld [vmem:[%s932 + $0x41c] sm:$0xf]
        %v6973 = vld [vmem:[%s932 + $0x420] sm:$0xff]
        %v6974 = vld [vmem:[%s932 + $0x428] sm:$0xf]
        %v6975 = vld [vmem:[%s932 + $0x42c] sm:$0xff]
        %v6976 = vld [vmem:[%s932 + $0x434] sm:$0xf]
        %v6977 = vld [vmem:[%s932 + $0x438] sm:$0xff]
        %v6978 = vld [vmem:[%s932 + $0x440] sm:$0xf]
        %v6979 = vld [vmem:[%s932 + $0x444] sm:$0xff]
        %v6980 = vld [vmem:[%s932 + $0x44c] sm:$0xf]
        %v6981 = vld [vmem:[%s932 + $0x450] sm:$0xff]
        %v6982 = vld [vmem:[%s932 + $0x458] sm:$0xf]
        %v6983 = vld [vmem:[%s932 + $0x45c] sm:$0xff]
        %v6984 = vld [vmem:[%s932 + $0x464] sm:$0xf]
        %v6985 = vld [vmem:[%s932 + $0x468] sm:$0xff]
        %v6986 = vld [vmem:[%s932 + $0x470] sm:$0xf]
        %v6987 = vld [vmem:[%s932 + $0x474] sm:$0xff]
        %v6988 = vld [vmem:[%s932 + $0x47c] sm:$0xf]
        %v6989 = vld [vmem:[%s932 + $0x480] sm:$0xff]
        %v6990 = vld [vmem:[%s932 + $0x488] sm:$0xf]
        %v6991 = vld [vmem:[%s932 + $0x48c] sm:$0xff]
        %v6992 = vld [vmem:[%s932 + $0x494] sm:$0xf]
        %v6993 = vld [vmem:[%s932 + $0x498] sm:$0xff]
        %v6994 = vld [vmem:[%s932 + $0x4a0] sm:$0xf]
        %v6995 = vld [vmem:[%s932 + $0x4a4] sm:$0xff]
        %v6996 = vld [vmem:[%s932 + $0x4ac] sm:$0xf]
        %v6997 = vld [vmem:[%s932 + $0x4b0] sm:$0xff]
        %v6998 = vld [vmem:[%s932 + $0x4b8] sm:$0xf]
        %v6999 = vld [vmem:[%s932 + $0x4bc] sm:$0xff]
        %v7000 = vld [vmem:[%s932 + $0x4c4] sm:$0xf]
        %v7001 = vld [vmem:[%s932 + $0x4c8] sm:$0xff]
        %v7002 = vld [vmem:[%s932 + $0x4d0] sm:$0xf]
        %v7003 = vld [vmem:[%s932 + $0x4d4] sm:$0xff]
        %v7004 = vld [vmem:[%s932 + $0x4dc] sm:$0xf]
        %v7005 = vld [vmem:[%s932 + $0x4e0] sm:$0xff]
        %v7006 = vld [vmem:[%s932 + $0x4e8] sm:$0xf]
        %v7007 = vld [vmem:[%s932 + $0x4ec] sm:$0xff]
        %v7008 = vld [vmem:[%s932 + $0x4f4] sm:$0xf]
        %v7009 = vld [vmem:[%s932 + $0x4f8] sm:$0xff]
        %v7010 = vld [vmem:[%s932 + $0x500] sm:$0xf]
        %v7011 = vld [vmem:[%s932 + $0x504] sm:$0xff]
        %v7012 = vld [vmem:[%s932 + $0x50c] sm:$0xf]
        %v7013 = vld [vmem:[%s932 + $0x510] sm:$0xff]
        %v7014 = vld [vmem:[%s932 + $0x518] sm:$0xf]
        %v7015 = vld [vmem:[%s932 + $0x51c] sm:$0xff]
        %v7016 = vld [vmem:[%s932 + $0x524] sm:$0xf]
        %v7017 = vld [vmem:[%s932 + $0x528] sm:$0xff]
        %v7018 = vld [vmem:[%s932 + $0x530] sm:$0xf]
        %v7019 = vld [vmem:[%s932 + $0x534] sm:$0xff]
        %v7020 = vld [vmem:[%s932 + $0x53c] sm:$0xf]
        %v7021 = vld [vmem:[%s932 + $0x540] sm:$0xff]
        %v7022 = vld [vmem:[%s932 + $0x548] sm:$0xf]
        %v7023 = vld [vmem:[%s932 + $0x54c] sm:$0xff]
        %v7024 = vld [vmem:[%s932 + $0x554] sm:$0xf]
        %v7025 = vld [vmem:[%s932 + $0x558] sm:$0xff]
        %v7026 = vld [vmem:[%s932 + $0x560] sm:$0xf]
        %v7027 = vld [vmem:[%s932 + $0x564] sm:$0xff]
        %v7028 = vld [vmem:[%s932 + $0x56c] sm:$0xf]
        %v7029 = vld [vmem:[%s932 + $0x570] sm:$0xff]
        %v7030 = vld [vmem:[%s932 + $0x578] sm:$0xf]
        %v7031 = vld [vmem:[%s932 + $0x57c] sm:$0xff]
        %v7032 = vld [vmem:[%s932 + $0x584] sm:$0xf]
        %v7033 = vld [vmem:[%s932 + $0x588] sm:$0xff]
        %v7034 = vld [vmem:[%s932 + $0x590] sm:$0xf]
        %v7035 = vld [vmem:[%s932 + $0x594] sm:$0xff]
        %v7036 = vld [vmem:[%s932 + $0x59c] sm:$0xf]
        %v7037 = vld [vmem:[%s932 + $0x5a0] sm:$0xff]
        %v7038 = vld [vmem:[%s932 + $0x5a8] sm:$0xf]
        %v7039 = vld [vmem:[%s932 + $0x5ac] sm:$0xff]
        %v7040 = vld [vmem:[%s932 + $0x5b4] sm:$0xf]
        %v7041 = vld [vmem:[%s932 + $0x5b8] sm:$0xff]
        %v7042 = vld [vmem:[%s932 + $0x5c0] sm:$0xf]
        %v7043 = vld [vmem:[%s932 + $0x5c4] sm:$0xff]
        %v7044 = vld [vmem:[%s932 + $0x5cc] sm:$0xf]
        %v7045 = vld [vmem:[%s932 + $0x5d0] sm:$0xff]
        %v7046 = vld [vmem:[%s932 + $0x5d8] sm:$0xf]
        %v7047 = vld [vmem:[%s932 + $0x5dc] sm:$0xff]
        %v7048 = vld [vmem:[%s932 + $0x5e4] sm:$0xf]
        %v7049 = vld [vmem:[%s932 + $0x5e8] sm:$0xff]
        %v7050 = vld [vmem:[%s932 + $0x5f0] sm:$0xf]
        %v7051 = vld [vmem:[%s932 + $0x5f4] sm:$0xff]
        %v7052 = vld [vmem:[%s932 + $0x5fc] sm:$0xf]
        %v7053 = vld [vmem:[%s932 + $0x600] sm:$0xff]
        %v7054 = vld [vmem:[%s932 + $0x608] sm:$0xf]
        %v7055 = vld [vmem:[%s932 + $0x60c] sm:$0xff]
        %v7056 = vld [vmem:[%s932 + $0x614] sm:$0xf]
        %v7057 = vld [vmem:[%s932 + $0x618] sm:$0xff]
        %v7058 = vld [vmem:[%s932 + $0x620] sm:$0xf]
        %v7059 = vld [vmem:[%s932 + $0x624] sm:$0xff]
        %v7060 = vld [vmem:[%s932 + $0x62c] sm:$0xf]
        %v7061 = vld [vmem:[%s932 + $0x630] sm:$0xff]
        %v7062 = vld [vmem:[%s932 + $0x638] sm:$0xf]
        %v7063 = vld [vmem:[%s932 + $0x63c] sm:$0xff]
        %v7064 = vld [vmem:[%s932 + $0x644] sm:$0xf]
        %v7065 = vld [vmem:[%s932 + $0x648] sm:$0xff]
        %v7066 = vld [vmem:[%s932 + $0x650] sm:$0xf]
        %v7067 = vld [vmem:[%s932 + $0x654] sm:$0xff]
        %v7068 = vld [vmem:[%s932 + $0x65c] sm:$0xf]
        %v7069 = vld [vmem:[%s932 + $0x660] sm:$0xff]
        %v7070 = vld [vmem:[%s932 + $0x668] sm:$0xf]
        %v7071 = vld [vmem:[%s932 + $0x66c] sm:$0xff]
        %v7072 = vld [vmem:[%s932 + $0x674] sm:$0xf]
        %v7073 = vld [vmem:[%s932 + $0x678] sm:$0xff]
        %v7074 = vld [vmem:[%s932 + $0x680] sm:$0xf]
        %v7075 = vld [vmem:[%s932 + $0x684] sm:$0xff]
        %v7076 = vld [vmem:[%s932 + $0x68c] sm:$0xf]
        %v7077 = vld [vmem:[%s932 + $0x690] sm:$0xff]
        %v7078 = vld [vmem:[%s932 + $0x698] sm:$0xf]
        %v7079 = vld [vmem:[%s932 + $0x69c] sm:$0xff]
        %v7080 = vld [vmem:[%s932 + $0x6a4] sm:$0xf]
        %v7081 = vld [vmem:[%s932 + $0x6a8] sm:$0xff]
        %v7082 = vld [vmem:[%s932 + $0x6b0] sm:$0xf]
        %v7083 = vld [vmem:[%s932 + $0x6b4] sm:$0xff]
        %v7084 = vld [vmem:[%s932 + $0x6bc] sm:$0xf]
        %v7085 = vld [vmem:[%s932 + $0x6c0] sm:$0xff]
        %v7086 = vld [vmem:[%s932 + $0x6c8] sm:$0xf]
        %v7087 = vld [vmem:[%s932 + $0x6cc] sm:$0xff]
        %v7088 = vld [vmem:[%s932 + $0x6d4] sm:$0xf]
        %v7089 = vld [vmem:[%s932 + $0x6d8] sm:$0xff]
        %v7090 = vld [vmem:[%s932 + $0x6e0] sm:$0xf]
        %v7091 = vld [vmem:[%s932 + $0x6e4] sm:$0xff]
        %v7092 = vld [vmem:[%s932 + $0x6ec] sm:$0xf]
        %v7093 = vld [vmem:[%s932 + $0x6f0] sm:$0xff]
        %v7094 = vld [vmem:[%s932 + $0x6f8] sm:$0xf]
        %v7095 = vld [vmem:[%s932 + $0x6fc] sm:$0xff]
        %v7096 = vld [vmem:[%s932 + $0x704] sm:$0xf]
        %v7097 = vld [vmem:[%s932 + $0x708] sm:$0xff]
        %v7098 = vld [vmem:[%s932 + $0x710] sm:$0xf]
        %v7099 = vld [vmem:[%s932 + $0x714] sm:$0xff]
        %v7100 = vld [vmem:[%s932 + $0x71c] sm:$0xf]
        %v7101 = vld [vmem:[%s932 + $0x720] sm:$0xff]
        %v7102 = vld [vmem:[%s932 + $0x728] sm:$0xf]
        %v7103 = vld [vmem:[%s932 + $0x72c] sm:$0xff]
        %v7104 = vld [vmem:[%s932 + $0x734] sm:$0xf]
        %v7105 = vld [vmem:[%s932 + $0x738] sm:$0xff]
        %v7106 = vld [vmem:[%s932 + $0x740] sm:$0xf]
        %v7107 = vld [vmem:[%s932 + $0x744] sm:$0xff]
        %v7108 = vld [vmem:[%s932 + $0x74c] sm:$0xf]
        %v7109 = vld [vmem:[%s932 + $0x750] sm:$0xff]
        %v7110 = vld [vmem:[%s932 + $0x758] sm:$0xf]
        %v7111 = vld [vmem:[%s932 + $0x75c] sm:$0xff]
        %v7112 = vld [vmem:[%s932 + $0x764] sm:$0xf]
        %v7113 = vld [vmem:[%s932 + $0x768] sm:$0xff]
        %v7114 = vld [vmem:[%s932 + $0x770] sm:$0xf]
        %v7115 = vld [vmem:[%s932 + $0x774] sm:$0xff]
        %v7116 = vld [vmem:[%s932 + $0x77c] sm:$0xf]
        %v7117 = vld [vmem:[%s932 + $0x780] sm:$0xff]
        %v7118 = vld [vmem:[%s932 + $0x788] sm:$0xf]
        %v7119 = vld [vmem:[%s932 + $0x78c] sm:$0xff]
        %v7120 = vld [vmem:[%s932 + $0x794] sm:$0xf]
        %v7121 = vld [vmem:[%s932 + $0x798] sm:$0xff]
        %v7122 = vld [vmem:[%s932 + $0x7a0] sm:$0xf]
        %v7123 = vld [vmem:[%s932 + $0x7a4] sm:$0xff]
        %v7124 = vld [vmem:[%s932 + $0x7ac] sm:$0xf]
        %v7125 = vld [vmem:[%s932 + $0x7b0] sm:$0xff]
        %v7126 = vld [vmem:[%s932 + $0x7b8] sm:$0xf]
        %v7127 = vld [vmem:[%s932 + $0x7bc] sm:$0xff]
        %v7128 = vld [vmem:[%s932 + $0x7c4] sm:$0xf]
        %v7129 = vld [vmem:[%s932 + $0x7c8] sm:$0xff]
        %v7130 = vld [vmem:[%s932 + $0x7d0] sm:$0xf]
        %v7131 = vld [vmem:[%s932 + $0x7d4] sm:$0xff]
        %v7132 = vld [vmem:[%s932 + $0x7dc] sm:$0xf]
        %v7133 = vld [vmem:[%s932 + $0x7e0] sm:$0xff]
        %v7134 = vld [vmem:[%s932 + $0x7e8] sm:$0xf]
        %v7135 = vld [vmem:[%s932 + $0x7ec] sm:$0xff]
        %v7136 = vld [vmem:[%s932 + $0x7f4] sm:$0xf]
        %v7137 = vld [vmem:[%s932 + $0x7f8] sm:$0xff]
        %v7138 = vld [vmem:[%s932 + $0x800] sm:$0xf]
        %v7139 = vld [vmem:[%s932 + $0x804] sm:$0xff]
        %v7140 = vld [vmem:[%s932 + $0x80c] sm:$0xf]
        %v7141 = vld [vmem:[%s932 + $0x810] sm:$0xff]
        %v7142 = vld [vmem:[%s932 + $0x818] sm:$0xf]
        %v7143 = vld [vmem:[%s932 + $0x81c] sm:$0xff]
        %v7144 = vld [vmem:[%s932 + $0x824] sm:$0xf]
        %v7145 = vld [vmem:[%s932 + $0x828] sm:$0xff]
        %v7146 = vld [vmem:[%s932 + $0x830] sm:$0xf]
        %v7147 = vld [vmem:[%s932 + $0x834] sm:$0xff]
        %v7148 = vld [vmem:[%s932 + $0x83c] sm:$0xf]
        %v7149 = vld [vmem:[%s932 + $0x840] sm:$0xff]
        %v7150 = vld [vmem:[%s932 + $0x848] sm:$0xf]
        %v7151 = vld [vmem:[%s932 + $0x84c] sm:$0xff]
        %v7152 = vld [vmem:[%s932 + $0x854] sm:$0xf]
        %v7153 = vld [vmem:[%s932 + $0x858] sm:$0xff]
        %v7154 = vld [vmem:[%s932 + $0x860] sm:$0xf]
        %v7155 = vld [vmem:[%s932 + $0x864] sm:$0xff]
        %v7156 = vld [vmem:[%s932 + $0x86c] sm:$0xf]
        %v7157 = vld [vmem:[%s932 + $0x870] sm:$0xff]
        %v7158 = vld [vmem:[%s932 + $0x878] sm:$0xf]
        %v7159 = vld [vmem:[%s932 + $0x87c] sm:$0xff]
        %v7160 = vld [vmem:[%s932 + $0x884] sm:$0xf]
        %v7161 = vld [vmem:[%s932 + $0x888] sm:$0xff]
        %v7162 = vld [vmem:[%s932 + $0x890] sm:$0xf]
        %v7163 = vld [vmem:[%s932 + $0x894] sm:$0xff]
        %v7164 = vld [vmem:[%s932 + $0x89c] sm:$0xf]
        %v7165 = vld [vmem:[%s932 + $0x8a0] sm:$0xff]
        %v7166 = vld [vmem:[%s932 + $0x8a8] sm:$0xf]
        %v7167 = vld [vmem:[%s932 + $0x8ac] sm:$0xff]
        %v7168 = vld [vmem:[%s932 + $0x8b4] sm:$0xf]
        %v7169 = vld [vmem:[%s932 + $0x8b8] sm:$0xff]
        %v7170 = vld [vmem:[%s932 + $0x8c0] sm:$0xf]
        %v7171 = vld [vmem:[%s932 + $0x8c4] sm:$0xff]
        %v7172 = vld [vmem:[%s932 + $0x8cc] sm:$0xf]
        %v7173 = vld [vmem:[%s932 + $0x8d0] sm:$0xff]
        %v7174 = vld [vmem:[%s932 + $0x8d8] sm:$0xf]
        %v7175 = vld [vmem:[%s932 + $0x8dc] sm:$0xff]
        %v7176 = vld [vmem:[%s932 + $0x8e4] sm:$0xf]
        %v7177 = vld [vmem:[%s932 + $0x8e8] sm:$0xff]
        %v7178 = vld [vmem:[%s932 + $0x8f0] sm:$0xf]
        %v7179 = vld [vmem:[%s932 + $0x8f4] sm:$0xff]
        %v7180 = vld [vmem:[%s932 + $0x8fc] sm:$0xf]
        %v7181 = vld [vmem:[%s941] sm:$0x7]
        %v7183 = vlaneseq
        %v7184 = vshrl.u32 %v7183, 7
        %v7185 = vsub.s32 0, %v7184
        %v7186 = vrot.slane %v7181, %v7185
        %v7187 = vlaneseq
        %v7188 = vshrl.u32 %v7187, 7
        %v7189 = vsub.s32 1, %v7188
        %v7190 = vrot.slane %v7181, %v7189
        %v7191 = vlaneseq
        %v7192 = vshrl.u32 %v7191, 7
        %v7193 = vsub.s32 2, %v7192
        %v7194 = vrot.slane %v7181, %v7193
        %v7582 = vunpack.c.l.b16 %v6797
        %v7583 = vunpack.c.h.b16 %v6797
        %v7584 = vunpack.c.l.b16 %v6798
        %v7585 = vunpack.c.l.b16 %v6799
        %v7586 = vunpack.c.h.b16 %v6799
        %v7587 = vunpack.c.l.b16 %v6800
        %v7588 = vunpack.c.l.b16 %v6801
        %v7589 = vunpack.c.h.b16 %v6801
        %v7590 = vunpack.c.l.b16 %v6802
        %v7591 = vunpack.c.l.b16 %v6803
        %v7592 = vunpack.c.h.b16 %v6803
        %v7593 = vunpack.c.l.b16 %v6804
        %v7594 = vunpack.c.l.b16 %v6805
        %v7595 = vunpack.c.h.b16 %v6805
        %v7596 = vunpack.c.l.b16 %v6806
        %v7597 = vunpack.c.l.b16 %v6807
        %v7598 = vunpack.c.h.b16 %v6807
        %v7599 = vunpack.c.l.b16 %v6808
        %v7600 = vunpack.c.l.b16 %v6809
        %v7601 = vunpack.c.h.b16 %v6809
        %v7602 = vunpack.c.l.b16 %v6810
        %v7603 = vunpack.c.l.b16 %v6811
        %v7604 = vunpack.c.h.b16 %v6811
        %v7605 = vunpack.c.l.b16 %v6812
        %v7606 = vunpack.c.l.b16 %v6813
        %v7607 = vunpack.c.h.b16 %v6813
        %v7608 = vunpack.c.l.b16 %v6814
        %v7609 = vunpack.c.l.b16 %v6815
        %v7610 = vunpack.c.h.b16 %v6815
        %v7611 = vunpack.c.l.b16 %v6816
        %v7612 = vunpack.c.l.b16 %v6817
        %v7613 = vunpack.c.h.b16 %v6817
        %v7614 = vunpack.c.l.b16 %v6818
        %v7615 = vunpack.c.l.b16 %v6819
        %v7616 = vunpack.c.h.b16 %v6819
        %v7617 = vunpack.c.l.b16 %v6820
        %v7618 = vunpack.c.l.b16 %v6821
        %v7619 = vunpack.c.h.b16 %v6821
        %v7620 = vunpack.c.l.b16 %v6822
        %v7621 = vunpack.c.l.b16 %v6823
        %v7622 = vunpack.c.h.b16 %v6823
        %v7623 = vunpack.c.l.b16 %v6824
        %v7624 = vunpack.c.l.b16 %v6825
        %v7625 = vunpack.c.h.b16 %v6825
        %v7626 = vunpack.c.l.b16 %v6826
        %v7627 = vunpack.c.l.b16 %v6827
        %v7628 = vunpack.c.h.b16 %v6827
        %v7629 = vunpack.c.l.b16 %v6828
        %v7630 = vunpack.c.l.b16 %v6829
        %v7631 = vunpack.c.h.b16 %v6829
        %v7632 = vunpack.c.l.b16 %v6830
        %v7633 = vunpack.c.l.b16 %v6831
        %v7634 = vunpack.c.h.b16 %v6831
        %v7635 = vunpack.c.l.b16 %v6832
        %v7636 = vunpack.c.l.b16 %v6833
        %v7637 = vunpack.c.h.b16 %v6833
        %v7638 = vunpack.c.l.b16 %v6834
        %v7639 = vunpack.c.l.b16 %v6835
        %v7640 = vunpack.c.h.b16 %v6835
        %v7641 = vunpack.c.l.b16 %v6836
        %v7642 = vunpack.c.l.b16 %v6837
        %v7643 = vunpack.c.h.b16 %v6837
        %v7644 = vunpack.c.l.b16 %v6838
        %v7645 = vunpack.c.l.b16 %v6839
        %v7646 = vunpack.c.h.b16 %v6839
        %v7647 = vunpack.c.l.b16 %v6840
        %v7648 = vunpack.c.l.b16 %v6841
        %v7649 = vunpack.c.h.b16 %v6841
        %v7650 = vunpack.c.l.b16 %v6842
        %v7651 = vunpack.c.l.b16 %v6843
        %v7652 = vunpack.c.h.b16 %v6843
        %v7653 = vunpack.c.l.b16 %v6844
        %v7654 = vunpack.c.l.b16 %v6845
        %v7655 = vunpack.c.h.b16 %v6845
        %v7656 = vunpack.c.l.b16 %v6846
        %v7657 = vunpack.c.l.b16 %v6847
        %v7658 = vunpack.c.h.b16 %v6847
        %v7659 = vunpack.c.l.b16 %v6848
        %v7660 = vunpack.c.l.b16 %v6849
        %v7661 = vunpack.c.h.b16 %v6849
        %v7662 = vunpack.c.l.b16 %v6850
        %v7663 = vunpack.c.l.b16 %v6851
        %v7664 = vunpack.c.h.b16 %v6851
        %v7665 = vunpack.c.l.b16 %v6852
        %v7666 = vunpack.c.l.b16 %v6853
        %v7667 = vunpack.c.h.b16 %v6853
        %v7668 = vunpack.c.l.b16 %v6854
        %v7669 = vunpack.c.l.b16 %v6855
        %v7670 = vunpack.c.h.b16 %v6855
        %v7671 = vunpack.c.l.b16 %v6856
        %v7672 = vunpack.c.l.b16 %v6857
        %v7673 = vunpack.c.h.b16 %v6857
        %v7674 = vunpack.c.l.b16 %v6858
        %v7675 = vunpack.c.l.b16 %v6859
        %v7676 = vunpack.c.h.b16 %v6859
        %v7677 = vunpack.c.l.b16 %v6860
        %v7678 = vunpack.c.l.b16 %v6861
        %v7679 = vunpack.c.h.b16 %v6861
        %v7680 = vunpack.c.l.b16 %v6862
        %v7681 = vunpack.c.l.b16 %v6863
        %v7682 = vunpack.c.h.b16 %v6863
        %v7683 = vunpack.c.l.b16 %v6864
        %v7684 = vunpack.c.l.b16 %v6865
        %v7685 = vunpack.c.h.b16 %v6865
        %v7686 = vunpack.c.l.b16 %v6866
        %v7687 = vunpack.c.l.b16 %v6867
        %v7688 = vunpack.c.h.b16 %v6867
        %v7689 = vunpack.c.l.b16 %v6868
        %v7690 = vunpack.c.l.b16 %v6869
        %v7691 = vunpack.c.h.b16 %v6869
        %v7692 = vunpack.c.l.b16 %v6870
        %v7693 = vunpack.c.l.b16 %v6871
        %v7694 = vunpack.c.h.b16 %v6871
        %v7695 = vunpack.c.l.b16 %v6872
        %v7696 = vunpack.c.l.b16 %v6873
        %v7697 = vunpack.c.h.b16 %v6873
        %v7698 = vunpack.c.l.b16 %v6874
        %v7699 = vunpack.c.l.b16 %v6875
        %v7700 = vunpack.c.h.b16 %v6875
        %v7701 = vunpack.c.l.b16 %v6876
        %v7702 = vunpack.c.l.b16 %v6877
        %v7703 = vunpack.c.h.b16 %v6877
        %v7704 = vunpack.c.l.b16 %v6878
        %v7705 = vunpack.c.l.b16 %v6879
        %v7706 = vunpack.c.h.b16 %v6879
        %v7707 = vunpack.c.l.b16 %v6880
        %v7708 = vunpack.c.l.b16 %v6881
        %v7709 = vunpack.c.h.b16 %v6881
        %v7710 = vunpack.c.l.b16 %v6882
        %v7711 = vunpack.c.l.b16 %v6883
        %v7712 = vunpack.c.h.b16 %v6883
        %v7713 = vunpack.c.l.b16 %v6884
        %v7714 = vunpack.c.l.b16 %v6885
        %v7715 = vunpack.c.h.b16 %v6885
        %v7716 = vunpack.c.l.b16 %v6886
        %v7717 = vunpack.c.l.b16 %v6887
        %v7718 = vunpack.c.h.b16 %v6887
        %v7719 = vunpack.c.l.b16 %v6888
        %v7720 = vunpack.c.l.b16 %v6889
        %v7721 = vunpack.c.h.b16 %v6889
        %v7722 = vunpack.c.l.b16 %v6890
        %v7723 = vunpack.c.l.b16 %v6891
        %v7724 = vunpack.c.h.b16 %v6891
        %v7725 = vunpack.c.l.b16 %v6892
        %v7726 = vunpack.c.l.b16 %v6893
        %v7727 = vunpack.c.h.b16 %v6893
        %v7728 = vunpack.c.l.b16 %v6894
        %v7729 = vunpack.c.l.b16 %v6895
        %v7730 = vunpack.c.h.b16 %v6895
        %v7731 = vunpack.c.l.b16 %v6896
        %v7732 = vunpack.c.l.b16 %v6897
        %v7733 = vunpack.c.h.b16 %v6897
        %v7734 = vunpack.c.l.b16 %v6898
        %v7735 = vunpack.c.l.b16 %v6899
        %v7736 = vunpack.c.h.b16 %v6899
        %v7737 = vunpack.c.l.b16 %v6900
        %v7738 = vunpack.c.l.b16 %v6901
        %v7739 = vunpack.c.h.b16 %v6901
        %v7740 = vunpack.c.l.b16 %v6902
        %v7741 = vunpack.c.l.b16 %v6903
        %v7742 = vunpack.c.h.b16 %v6903
        %v7743 = vunpack.c.l.b16 %v6904
        %v7744 = vunpack.c.l.b16 %v6905
        %v7745 = vunpack.c.h.b16 %v6905
        %v7746 = vunpack.c.l.b16 %v6906
        %v7747 = vunpack.c.l.b16 %v6907
        %v7748 = vunpack.c.h.b16 %v6907
        %v7749 = vunpack.c.l.b16 %v6908
        %v7750 = vunpack.c.l.b16 %v6909
        %v7751 = vunpack.c.h.b16 %v6909
        %v7752 = vunpack.c.l.b16 %v6910
        %v7753 = vunpack.c.l.b16 %v6911
        %v7754 = vunpack.c.h.b16 %v6911
        %v7755 = vunpack.c.l.b16 %v6912
        %v7756 = vunpack.c.l.b16 %v6913
        %v7757 = vunpack.c.h.b16 %v6913
        %v7758 = vunpack.c.l.b16 %v6914
        %v7759 = vunpack.c.l.b16 %v6915
        %v7760 = vunpack.c.h.b16 %v6915
        %v7761 = vunpack.c.l.b16 %v6916
        %v7762 = vunpack.c.l.b16 %v6917
        %v7763 = vunpack.c.h.b16 %v6917
        %v7764 = vunpack.c.l.b16 %v6918
        %v7765 = vunpack.c.l.b16 %v6919
        %v7766 = vunpack.c.h.b16 %v6919
        %v7767 = vunpack.c.l.b16 %v6920
        %v7768 = vunpack.c.l.b16 %v6921
        %v7769 = vunpack.c.h.b16 %v6921
        %v7770 = vunpack.c.l.b16 %v6922
        %v7771 = vunpack.c.l.b16 %v6923
        %v7772 = vunpack.c.h.b16 %v6923
        %v7773 = vunpack.c.l.b16 %v6924
        %v7774 = vunpack.c.l.b16 %v6925
        %v7775 = vunpack.c.h.b16 %v6925
        %v7776 = vunpack.c.l.b16 %v6926
        %v7777 = vunpack.c.l.b16 %v6927
        %v7778 = vunpack.c.h.b16 %v6927
        %v7779 = vunpack.c.l.b16 %v6928
        %v7780 = vunpack.c.l.b16 %v6929
        %v7781 = vunpack.c.h.b16 %v6929
        %v7782 = vunpack.c.l.b16 %v6930
        %v7783 = vunpack.c.l.b16 %v6931
        %v7784 = vunpack.c.h.b16 %v6931
        %v7785 = vunpack.c.l.b16 %v6932
        %v7786 = vunpack.c.l.b16 %v6933
        %v7787 = vunpack.c.h.b16 %v6933
        %v7788 = vunpack.c.l.b16 %v6934
        %v7789 = vunpack.c.l.b16 %v6935
        %v7790 = vunpack.c.h.b16 %v6935
        %v7791 = vunpack.c.l.b16 %v6936
        %v7792 = vunpack.c.l.b16 %v6937
        %v7793 = vunpack.c.h.b16 %v6937
        %v7794 = vunpack.c.l.b16 %v6938
        %v7795 = vunpack.c.l.b16 %v6939
        %v7796 = vunpack.c.h.b16 %v6939
        %v7797 = vunpack.c.l.b16 %v6940
        %v7798 = vunpack.c.l.b16 %v6941
        %v7799 = vunpack.c.h.b16 %v6941
        %v7800 = vunpack.c.l.b16 %v6942
        %v7801 = vunpack.c.l.b16 %v6943
        %v7802 = vunpack.c.h.b16 %v6943
        %v7803 = vunpack.c.l.b16 %v6944
        %v7804 = vunpack.c.l.b16 %v6945
        %v7805 = vunpack.c.h.b16 %v6945
        %v7806 = vunpack.c.l.b16 %v6946
        %v7807 = vunpack.c.l.b16 %v6947
        %v7808 = vunpack.c.h.b16 %v6947
        %v7809 = vunpack.c.l.b16 %v6948
        %v7810 = vunpack.c.l.b16 %v6949
        %v7811 = vunpack.c.h.b16 %v6949
        %v7812 = vunpack.c.l.b16 %v6950
        %v7813 = vunpack.c.l.b16 %v6951
        %v7814 = vunpack.c.h.b16 %v6951
        %v7815 = vunpack.c.l.b16 %v6952
        %v7816 = vunpack.c.l.b16 %v6953
        %v7817 = vunpack.c.h.b16 %v6953
        %v7818 = vunpack.c.l.b16 %v6954
        %v7819 = vunpack.c.l.b16 %v6955
        %v7820 = vunpack.c.h.b16 %v6955
        %v7821 = vunpack.c.l.b16 %v6956
        %v7822 = vunpack.c.l.b16 %v6957
        %v7823 = vunpack.c.h.b16 %v6957
        %v7824 = vunpack.c.l.b16 %v6958
        %v7825 = vunpack.c.l.b16 %v6959
        %v7826 = vunpack.c.h.b16 %v6959
        %v7827 = vunpack.c.l.b16 %v6960
        %v7828 = vunpack.c.l.b16 %v6961
        %v7829 = vunpack.c.h.b16 %v6961
        %v7830 = vunpack.c.l.b16 %v6962
        %v7831 = vunpack.c.l.b16 %v6963
        %v7832 = vunpack.c.h.b16 %v6963
        %v7833 = vunpack.c.l.b16 %v6964
        %v7834 = vunpack.c.l.b16 %v6965
        %v7835 = vunpack.c.h.b16 %v6965
        %v7836 = vunpack.c.l.b16 %v6966
        %v7837 = vunpack.c.l.b16 %v6967
        %v7838 = vunpack.c.h.b16 %v6967
        %v7839 = vunpack.c.l.b16 %v6968
        %v7840 = vunpack.c.l.b16 %v6969
        %v7841 = vunpack.c.h.b16 %v6969
        %v7842 = vunpack.c.l.b16 %v6970
        %v7843 = vunpack.c.l.b16 %v6971
        %v7844 = vunpack.c.h.b16 %v6971
        %v7845 = vunpack.c.l.b16 %v6972
        %v7846 = vunpack.c.l.b16 %v6973
        %v7847 = vunpack.c.h.b16 %v6973
        %v7848 = vunpack.c.l.b16 %v6974
        %v7849 = vunpack.c.l.b16 %v6975
        %v7850 = vunpack.c.h.b16 %v6975
        %v7851 = vunpack.c.l.b16 %v6976
        %v7852 = vunpack.c.l.b16 %v6977
        %v7853 = vunpack.c.h.b16 %v6977
        %v7854 = vunpack.c.l.b16 %v6978
        %v7855 = vunpack.c.l.b16 %v6979
        %v7856 = vunpack.c.h.b16 %v6979
        %v7857 = vunpack.c.l.b16 %v6980
        %v7858 = vunpack.c.l.b16 %v6981
        %v7859 = vunpack.c.h.b16 %v6981
        %v7860 = vunpack.c.l.b16 %v6982
        %v7861 = vunpack.c.l.b16 %v6983
        %v7862 = vunpack.c.h.b16 %v6983
        %v7863 = vunpack.c.l.b16 %v6984
        %v7864 = vunpack.c.l.b16 %v6985
        %v7865 = vunpack.c.h.b16 %v6985
        %v7866 = vunpack.c.l.b16 %v6986
        %v7867 = vunpack.c.l.b16 %v6987
        %v7868 = vunpack.c.h.b16 %v6987
        %v7869 = vunpack.c.l.b16 %v6988
        %v7870 = vunpack.c.l.b16 %v6989
        %v7871 = vunpack.c.h.b16 %v6989
        %v7872 = vunpack.c.l.b16 %v6990
        %v7873 = vunpack.c.l.b16 %v6991
        %v7874 = vunpack.c.h.b16 %v6991
        %v7875 = vunpack.c.l.b16 %v6992
        %v7876 = vunpack.c.l.b16 %v6993
        %v7877 = vunpack.c.h.b16 %v6993
        %v7878 = vunpack.c.l.b16 %v6994
        %v7879 = vunpack.c.l.b16 %v6995
        %v7880 = vunpack.c.h.b16 %v6995
        %v7881 = vunpack.c.l.b16 %v6996
        %v7882 = vunpack.c.l.b16 %v6997
        %v7883 = vunpack.c.h.b16 %v6997
        %v7884 = vunpack.c.l.b16 %v6998
        %v7885 = vunpack.c.l.b16 %v6999
        %v7886 = vunpack.c.h.b16 %v6999
        %v7887 = vunpack.c.l.b16 %v7000
        %v7888 = vunpack.c.l.b16 %v7001
        %v7889 = vunpack.c.h.b16 %v7001
        %v7890 = vunpack.c.l.b16 %v7002
        %v7891 = vunpack.c.l.b16 %v7003
        %v7892 = vunpack.c.h.b16 %v7003
        %v7893 = vunpack.c.l.b16 %v7004
        %v7894 = vunpack.c.l.b16 %v7005
        %v7895 = vunpack.c.h.b16 %v7005
        %v7896 = vunpack.c.l.b16 %v7006
        %v7897 = vunpack.c.l.b16 %v7007
        %v7898 = vunpack.c.h.b16 %v7007
        %v7899 = vunpack.c.l.b16 %v7008
        %v7900 = vunpack.c.l.b16 %v7009
        %v7901 = vunpack.c.h.b16 %v7009
        %v7902 = vunpack.c.l.b16 %v7010
        %v7903 = vunpack.c.l.b16 %v7011
        %v7904 = vunpack.c.h.b16 %v7011
        %v7905 = vunpack.c.l.b16 %v7012
        %v7906 = vunpack.c.l.b16 %v7013
        %v7907 = vunpack.c.h.b16 %v7013
        %v7908 = vunpack.c.l.b16 %v7014
        %v7909 = vunpack.c.l.b16 %v7015
        %v7910 = vunpack.c.h.b16 %v7015
        %v7911 = vunpack.c.l.b16 %v7016
        %v7912 = vunpack.c.l.b16 %v7017
        %v7913 = vunpack.c.h.b16 %v7017
        %v7914 = vunpack.c.l.b16 %v7018
        %v7915 = vunpack.c.l.b16 %v7019
        %v7916 = vunpack.c.h.b16 %v7019
        %v7917 = vunpack.c.l.b16 %v7020
        %v7918 = vunpack.c.l.b16 %v7021
        %v7919 = vunpack.c.h.b16 %v7021
        %v7920 = vunpack.c.l.b16 %v7022
        %v7921 = vunpack.c.l.b16 %v7023
        %v7922 = vunpack.c.h.b16 %v7023
        %v7923 = vunpack.c.l.b16 %v7024
        %v7924 = vunpack.c.l.b16 %v7025
        %v7925 = vunpack.c.h.b16 %v7025
        %v7926 = vunpack.c.l.b16 %v7026
        %v7927 = vunpack.c.l.b16 %v7027
        %v7928 = vunpack.c.h.b16 %v7027
        %v7929 = vunpack.c.l.b16 %v7028
        %v7930 = vunpack.c.l.b16 %v7029
        %v7931 = vunpack.c.h.b16 %v7029
        %v7932 = vunpack.c.l.b16 %v7030
        %v7933 = vunpack.c.l.b16 %v7031
        %v7934 = vunpack.c.h.b16 %v7031
        %v7935 = vunpack.c.l.b16 %v7032
        %v7936 = vunpack.c.l.b16 %v7033
        %v7937 = vunpack.c.h.b16 %v7033
        %v7938 = vunpack.c.l.b16 %v7034
        %v7939 = vunpack.c.l.b16 %v7035
        %v7940 = vunpack.c.h.b16 %v7035
        %v7941 = vunpack.c.l.b16 %v7036
        %v7942 = vunpack.c.l.b16 %v7037
        %v7943 = vunpack.c.h.b16 %v7037
        %v7944 = vunpack.c.l.b16 %v7038
        %v7945 = vunpack.c.l.b16 %v7039
        %v7946 = vunpack.c.h.b16 %v7039
        %v7947 = vunpack.c.l.b16 %v7040
        %v7948 = vunpack.c.l.b16 %v7041
        %v7949 = vunpack.c.h.b16 %v7041
        %v7950 = vunpack.c.l.b16 %v7042
        %v7951 = vunpack.c.l.b16 %v7043
        %v7952 = vunpack.c.h.b16 %v7043
        %v7953 = vunpack.c.l.b16 %v7044
        %v7954 = vunpack.c.l.b16 %v7045
        %v7955 = vunpack.c.h.b16 %v7045
        %v7956 = vunpack.c.l.b16 %v7046
        %v7957 = vunpack.c.l.b16 %v7047
        %v7958 = vunpack.c.h.b16 %v7047
        %v7959 = vunpack.c.l.b16 %v7048
        %v7960 = vunpack.c.l.b16 %v7049
        %v7961 = vunpack.c.h.b16 %v7049
        %v7962 = vunpack.c.l.b16 %v7050
        %v7963 = vunpack.c.l.b16 %v7051
        %v7964 = vunpack.c.h.b16 %v7051
        %v7965 = vunpack.c.l.b16 %v7052
        %v7966 = vunpack.c.l.b16 %v7053
        %v7967 = vunpack.c.h.b16 %v7053
        %v7968 = vunpack.c.l.b16 %v7054
        %v7969 = vunpack.c.l.b16 %v7055
        %v7970 = vunpack.c.h.b16 %v7055
        %v7971 = vunpack.c.l.b16 %v7056
        %v7972 = vunpack.c.l.b16 %v7057
        %v7973 = vunpack.c.h.b16 %v7057
        %v7974 = vunpack.c.l.b16 %v7058
        %v7975 = vunpack.c.l.b16 %v7059
        %v7976 = vunpack.c.h.b16 %v7059
        %v7977 = vunpack.c.l.b16 %v7060
        %v7978 = vunpack.c.l.b16 %v7061
        %v7979 = vunpack.c.h.b16 %v7061
        %v7980 = vunpack.c.l.b16 %v7062
        %v7981 = vunpack.c.l.b16 %v7063
        %v7982 = vunpack.c.h.b16 %v7063
        %v7983 = vunpack.c.l.b16 %v7064
        %v7984 = vunpack.c.l.b16 %v7065
        %v7985 = vunpack.c.h.b16 %v7065
        %v7986 = vunpack.c.l.b16 %v7066
        %v7987 = vunpack.c.l.b16 %v7067
        %v7988 = vunpack.c.h.b16 %v7067
        %v7989 = vunpack.c.l.b16 %v7068
        %v7990 = vunpack.c.l.b16 %v7069
        %v7991 = vunpack.c.h.b16 %v7069
        %v7992 = vunpack.c.l.b16 %v7070
        %v7993 = vunpack.c.l.b16 %v7071
        %v7994 = vunpack.c.h.b16 %v7071
        %v7995 = vunpack.c.l.b16 %v7072
        %v7996 = vunpack.c.l.b16 %v7073
        %v7997 = vunpack.c.h.b16 %v7073
        %v7998 = vunpack.c.l.b16 %v7074
        %v7999 = vunpack.c.l.b16 %v7075
        %v8000 = vunpack.c.h.b16 %v7075
        %v8001 = vunpack.c.l.b16 %v7076
        %v8002 = vunpack.c.l.b16 %v7077
        %v8003 = vunpack.c.h.b16 %v7077
        %v8004 = vunpack.c.l.b16 %v7078
        %v8005 = vunpack.c.l.b16 %v7079
        %v8006 = vunpack.c.h.b16 %v7079
        %v8007 = vunpack.c.l.b16 %v7080
        %v8008 = vunpack.c.l.b16 %v7081
        %v8009 = vunpack.c.h.b16 %v7081
        %v8010 = vunpack.c.l.b16 %v7082
        %v8011 = vunpack.c.l.b16 %v7083
        %v8012 = vunpack.c.h.b16 %v7083
        %v8013 = vunpack.c.l.b16 %v7084
        %v8014 = vunpack.c.l.b16 %v7085
        %v8015 = vunpack.c.h.b16 %v7085
        %v8016 = vunpack.c.l.b16 %v7086
        %v8017 = vunpack.c.l.b16 %v7087
        %v8018 = vunpack.c.h.b16 %v7087
        %v8019 = vunpack.c.l.b16 %v7088
        %v8020 = vunpack.c.l.b16 %v7089
        %v8021 = vunpack.c.h.b16 %v7089
        %v8022 = vunpack.c.l.b16 %v7090
        %v8023 = vunpack.c.l.b16 %v7091
        %v8024 = vunpack.c.h.b16 %v7091
        %v8025 = vunpack.c.l.b16 %v7092
        %v8026 = vunpack.c.l.b16 %v7093
        %v8027 = vunpack.c.h.b16 %v7093
        %v8028 = vunpack.c.l.b16 %v7094
        %v8029 = vunpack.c.l.b16 %v7095
        %v8030 = vunpack.c.h.b16 %v7095
        %v8031 = vunpack.c.l.b16 %v7096
        %v8032 = vunpack.c.l.b16 %v7097
        %v8033 = vunpack.c.h.b16 %v7097
        %v8034 = vunpack.c.l.b16 %v7098
        %v8035 = vunpack.c.l.b16 %v7099
        %v8036 = vunpack.c.h.b16 %v7099
        %v8037 = vunpack.c.l.b16 %v7100
        %v8038 = vunpack.c.l.b16 %v7101
        %v8039 = vunpack.c.h.b16 %v7101
        %v8040 = vunpack.c.l.b16 %v7102
        %v8041 = vunpack.c.l.b16 %v7103
        %v8042 = vunpack.c.h.b16 %v7103
        %v8043 = vunpack.c.l.b16 %v7104
        %v8044 = vunpack.c.l.b16 %v7105
        %v8045 = vunpack.c.h.b16 %v7105
        %v8046 = vunpack.c.l.b16 %v7106
        %v8047 = vunpack.c.l.b16 %v7107
        %v8048 = vunpack.c.h.b16 %v7107
        %v8049 = vunpack.c.l.b16 %v7108
        %v8050 = vunpack.c.l.b16 %v7109
        %v8051 = vunpack.c.h.b16 %v7109
        %v8052 = vunpack.c.l.b16 %v7110
        %v8053 = vunpack.c.l.b16 %v7111
        %v8054 = vunpack.c.h.b16 %v7111
        %v8055 = vunpack.c.l.b16 %v7112
        %v8056 = vunpack.c.l.b16 %v7113
        %v8057 = vunpack.c.h.b16 %v7113
        %v8058 = vunpack.c.l.b16 %v7114
        %v8059 = vunpack.c.l.b16 %v7115
        %v8060 = vunpack.c.h.b16 %v7115
        %v8061 = vunpack.c.l.b16 %v7116
        %v8062 = vunpack.c.l.b16 %v7117
        %v8063 = vunpack.c.h.b16 %v7117
        %v8064 = vunpack.c.l.b16 %v7118
        %v8065 = vunpack.c.l.b16 %v7119
        %v8066 = vunpack.c.h.b16 %v7119
        %v8067 = vunpack.c.l.b16 %v7120
        %v8068 = vunpack.c.l.b16 %v7121
        %v8069 = vunpack.c.h.b16 %v7121
        %v8070 = vunpack.c.l.b16 %v7122
        %v8071 = vunpack.c.l.b16 %v7123
        %v8072 = vunpack.c.h.b16 %v7123
        %v8073 = vunpack.c.l.b16 %v7124
        %v8074 = vunpack.c.l.b16 %v7125
        %v8075 = vunpack.c.h.b16 %v7125
        %v8076 = vunpack.c.l.b16 %v7126
        %v8077 = vunpack.c.l.b16 %v7127
        %v8078 = vunpack.c.h.b16 %v7127
        %v8079 = vunpack.c.l.b16 %v7128
        %v8080 = vunpack.c.l.b16 %v7129
        %v8081 = vunpack.c.h.b16 %v7129
        %v8082 = vunpack.c.l.b16 %v7130
        %v8083 = vunpack.c.l.b16 %v7131
        %v8084 = vunpack.c.h.b16 %v7131
        %v8085 = vunpack.c.l.b16 %v7132
        %v8086 = vunpack.c.l.b16 %v7133
        %v8087 = vunpack.c.h.b16 %v7133
        %v8088 = vunpack.c.l.b16 %v7134
        %v8089 = vunpack.c.l.b16 %v7135
        %v8090 = vunpack.c.h.b16 %v7135
        %v8091 = vunpack.c.l.b16 %v7136
        %v8092 = vunpack.c.l.b16 %v7137
        %v8093 = vunpack.c.h.b16 %v7137
        %v8094 = vunpack.c.l.b16 %v7138
        %v8095 = vunpack.c.l.b16 %v7139
        %v8096 = vunpack.c.h.b16 %v7139
        %v8097 = vunpack.c.l.b16 %v7140
        %v8098 = vunpack.c.l.b16 %v7141
        %v8099 = vunpack.c.h.b16 %v7141
        %v8100 = vunpack.c.l.b16 %v7142
        %v8101 = vunpack.c.l.b16 %v7143
        %v8102 = vunpack.c.h.b16 %v7143
        %v8103 = vunpack.c.l.b16 %v7144
        %v8104 = vunpack.c.l.b16 %v7145
        %v8105 = vunpack.c.h.b16 %v7145
        %v8106 = vunpack.c.l.b16 %v7146
        %v8107 = vunpack.c.l.b16 %v7147
        %v8108 = vunpack.c.h.b16 %v7147
        %v8109 = vunpack.c.l.b16 %v7148
        %v8110 = vunpack.c.l.b16 %v7149
        %v8111 = vunpack.c.h.b16 %v7149
        %v8112 = vunpack.c.l.b16 %v7150
        %v8113 = vunpack.c.l.b16 %v7151
        %v8114 = vunpack.c.h.b16 %v7151
        %v8115 = vunpack.c.l.b16 %v7152
        %v8116 = vunpack.c.l.b16 %v7153
        %v8117 = vunpack.c.h.b16 %v7153
        %v8118 = vunpack.c.l.b16 %v7154
        %v8119 = vunpack.c.l.b16 %v7155
        %v8120 = vunpack.c.h.b16 %v7155
        %v8121 = vunpack.c.l.b16 %v7156
        %v8122 = vunpack.c.l.b16 %v7157
        %v8123 = vunpack.c.h.b16 %v7157
        %v8124 = vunpack.c.l.b16 %v7158
        %v8125 = vunpack.c.l.b16 %v7159
        %v8126 = vunpack.c.h.b16 %v7159
        %v8127 = vunpack.c.l.b16 %v7160
        %v8128 = vunpack.c.l.b16 %v7161
        %v8129 = vunpack.c.h.b16 %v7161
        %v8130 = vunpack.c.l.b16 %v7162
        %v8131 = vunpack.c.l.b16 %v7163
        %v8132 = vunpack.c.h.b16 %v7163
        %v8133 = vunpack.c.l.b16 %v7164
        %v8134 = vunpack.c.l.b16 %v7165
        %v8135 = vunpack.c.h.b16 %v7165
        %v8136 = vunpack.c.l.b16 %v7166
        %v8137 = vunpack.c.l.b16 %v7167
        %v8138 = vunpack.c.h.b16 %v7167
        %v8139 = vunpack.c.l.b16 %v7168
        %v8140 = vunpack.c.l.b16 %v7169
        %v8141 = vunpack.c.h.b16 %v7169
        %v8142 = vunpack.c.l.b16 %v7170
        %v8143 = vunpack.c.l.b16 %v7171
        %v8144 = vunpack.c.h.b16 %v7171
        %v8145 = vunpack.c.l.b16 %v7172
        %v8146 = vunpack.c.l.b16 %v7173
        %v8147 = vunpack.c.h.b16 %v7173
        %v8148 = vunpack.c.l.b16 %v7174
        %v8149 = vunpack.c.l.b16 %v7175
        %v8150 = vunpack.c.h.b16 %v7175
        %v8151 = vunpack.c.l.b16 %v7176
        %v8152 = vunpack.c.l.b16 %v7177
        %v8153 = vunpack.c.h.b16 %v7177
        %v8154 = vunpack.c.l.b16 %v7178
        %v8155 = vunpack.c.l.b16 %v7179
        %v8156 = vunpack.c.h.b16 %v7179
        %v8157 = vunpack.c.l.b16 %v7180
        %v8158 = vpack.c.b16 %v7585, %v7582
        %v8159 = vpack.c.b16 %v7586, %v7583
        %v8160 = vpack.c.b16 %v7587, %v7584
        %v8161 = vpack.c.b16 %v7591, %v7588
        %v8162 = vpack.c.b16 %v7592, %v7589
        %v8163 = vpack.c.b16 %v7593, %v7590
        %v8164 = vpack.c.b16 %v7597, %v7594
        %v8165 = vpack.c.b16 %v7598, %v7595
        %v8166 = vpack.c.b16 %v7599, %v7596
        %v8167 = vpack.c.b16 %v7603, %v7600
        %v8168 = vpack.c.b16 %v7604, %v7601
        %v8169 = vpack.c.b16 %v7605, %v7602
        %v8170 = vpack.c.b16 %v7609, %v7606
        %v8171 = vpack.c.b16 %v7610, %v7607
        %v8172 = vpack.c.b16 %v7611, %v7608
        %v8173 = vpack.c.b16 %v7615, %v7612
        %v8174 = vpack.c.b16 %v7616, %v7613
        %v8175 = vpack.c.b16 %v7617, %v7614
        %v8176 = vpack.c.b16 %v7621, %v7618
        %v8177 = vpack.c.b16 %v7622, %v7619
        %v8178 = vpack.c.b16 %v7623, %v7620
        %v8179 = vpack.c.b16 %v7627, %v7624
        %v8180 = vpack.c.b16 %v7628, %v7625
        %v8181 = vpack.c.b16 %v7629, %v7626
        %v8182 = vpack.c.b16 %v7633, %v7630
        %v8183 = vpack.c.b16 %v7634, %v7631
        %v8184 = vpack.c.b16 %v7635, %v7632
        %v8185 = vpack.c.b16 %v7639, %v7636
        %v8186 = vpack.c.b16 %v7640, %v7637
        %v8187 = vpack.c.b16 %v7641, %v7638
        %v8188 = vpack.c.b16 %v7645, %v7642
        %v8189 = vpack.c.b16 %v7646, %v7643
        %v8190 = vpack.c.b16 %v7647, %v7644
        %v8191 = vpack.c.b16 %v7651, %v7648
        %v8192 = vpack.c.b16 %v7652, %v7649
        %v8193 = vpack.c.b16 %v7653, %v7650
        %v8194 = vpack.c.b16 %v7657, %v7654
        %v8195 = vpack.c.b16 %v7658, %v7655
        %v8196 = vpack.c.b16 %v7659, %v7656
        %v8197 = vpack.c.b16 %v7663, %v7660
        %v8198 = vpack.c.b16 %v7664, %v7661
        %v8199 = vpack.c.b16 %v7665, %v7662
        %v8200 = vpack.c.b16 %v7669, %v7666
        %v8201 = vpack.c.b16 %v7670, %v7667
        %v8202 = vpack.c.b16 %v7671, %v7668
        %v8203 = vpack.c.b16 %v7675, %v7672
        %v8204 = vpack.c.b16 %v7676, %v7673
        %v8205 = vpack.c.b16 %v7677, %v7674
        %v8206 = vpack.c.b16 %v7681, %v7678
        %v8207 = vpack.c.b16 %v7682, %v7679
        %v8208 = vpack.c.b16 %v7683, %v7680
        %v8209 = vpack.c.b16 %v7687, %v7684
        %v8210 = vpack.c.b16 %v7688, %v7685
        %v8211 = vpack.c.b16 %v7689, %v7686
        %v8212 = vpack.c.b16 %v7693, %v7690
        %v8213 = vpack.c.b16 %v7694, %v7691
        %v8214 = vpack.c.b16 %v7695, %v7692
        %v8215 = vpack.c.b16 %v7699, %v7696
        %v8216 = vpack.c.b16 %v7700, %v7697
        %v8217 = vpack.c.b16 %v7701, %v7698
        %v8218 = vpack.c.b16 %v7705, %v7702
        %v8219 = vpack.c.b16 %v7706, %v7703
        %v8220 = vpack.c.b16 %v7707, %v7704
        %v8221 = vpack.c.b16 %v7711, %v7708
        %v8222 = vpack.c.b16 %v7712, %v7709
        %v8223 = vpack.c.b16 %v7713, %v7710
        %v8224 = vpack.c.b16 %v7717, %v7714
        %v8225 = vpack.c.b16 %v7718, %v7715
        %v8226 = vpack.c.b16 %v7719, %v7716
        %v8227 = vpack.c.b16 %v7723, %v7720
        %v8228 = vpack.c.b16 %v7724, %v7721
        %v8229 = vpack.c.b16 %v7725, %v7722
        %v8230 = vpack.c.b16 %v7729, %v7726
        %v8231 = vpack.c.b16 %v7730, %v7727
        %v8232 = vpack.c.b16 %v7731, %v7728
        %v8233 = vpack.c.b16 %v7735, %v7732
        %v8234 = vpack.c.b16 %v7736, %v7733
        %v8235 = vpack.c.b16 %v7737, %v7734
        %v8236 = vpack.c.b16 %v7741, %v7738
        %v8237 = vpack.c.b16 %v7742, %v7739
        %v8238 = vpack.c.b16 %v7743, %v7740
        %v8239 = vpack.c.b16 %v7747, %v7744
        %v8240 = vpack.c.b16 %v7748, %v7745
        %v8241 = vpack.c.b16 %v7749, %v7746
        %v8242 = vpack.c.b16 %v7753, %v7750
        %v8243 = vpack.c.b16 %v7754, %v7751
        %v8244 = vpack.c.b16 %v7755, %v7752
        %v8245 = vpack.c.b16 %v7759, %v7756
        %v8246 = vpack.c.b16 %v7760, %v7757
        %v8247 = vpack.c.b16 %v7761, %v7758
        %v8248 = vpack.c.b16 %v7765, %v7762
        %v8249 = vpack.c.b16 %v7766, %v7763
        %v8250 = vpack.c.b16 %v7767, %v7764
        %v8251 = vpack.c.b16 %v7771, %v7768
        %v8252 = vpack.c.b16 %v7772, %v7769
        %v8253 = vpack.c.b16 %v7773, %v7770
        %v8254 = vpack.c.b16 %v7777, %v7774
        %v8255 = vpack.c.b16 %v7778, %v7775
        %v8256 = vpack.c.b16 %v7779, %v7776
        %v8257 = vpack.c.b16 %v7783, %v7780
        %v8258 = vpack.c.b16 %v7784, %v7781
        %v8259 = vpack.c.b16 %v7785, %v7782
        %v8260 = vpack.c.b16 %v7789, %v7786
        %v8261 = vpack.c.b16 %v7790, %v7787
        %v8262 = vpack.c.b16 %v7791, %v7788
        %v8263 = vpack.c.b16 %v7795, %v7792
        %v8264 = vpack.c.b16 %v7796, %v7793
        %v8265 = vpack.c.b16 %v7797, %v7794
        %v8266 = vpack.c.b16 %v7801, %v7798
        %v8267 = vpack.c.b16 %v7802, %v7799
        %v8268 = vpack.c.b16 %v7803, %v7800
        %v8269 = vpack.c.b16 %v7807, %v7804
        %v8270 = vpack.c.b16 %v7808, %v7805
        %v8271 = vpack.c.b16 %v7809, %v7806
        %v8272 = vpack.c.b16 %v7813, %v7810
        %v8273 = vpack.c.b16 %v7814, %v7811
        %v8274 = vpack.c.b16 %v7815, %v7812
        %v8275 = vpack.c.b16 %v7819, %v7816
        %v8276 = vpack.c.b16 %v7820, %v7817
        %v8277 = vpack.c.b16 %v7821, %v7818
        %v8278 = vpack.c.b16 %v7825, %v7822
        %v8279 = vpack.c.b16 %v7826, %v7823
        %v8280 = vpack.c.b16 %v7827, %v7824
        %v8281 = vpack.c.b16 %v7831, %v7828
        %v8282 = vpack.c.b16 %v7832, %v7829
        %v8283 = vpack.c.b16 %v7833, %v7830
        %v8284 = vpack.c.b16 %v7837, %v7834
        %v8285 = vpack.c.b16 %v7838, %v7835
        %v8286 = vpack.c.b16 %v7839, %v7836
        %v8287 = vpack.c.b16 %v7843, %v7840
        %v8288 = vpack.c.b16 %v7844, %v7841
        %v8289 = vpack.c.b16 %v7845, %v7842
        %v8290 = vpack.c.b16 %v7849, %v7846
        %v8291 = vpack.c.b16 %v7850, %v7847
        %v8292 = vpack.c.b16 %v7851, %v7848
        %v8293 = vpack.c.b16 %v7855, %v7852
        %v8294 = vpack.c.b16 %v7856, %v7853
        %v8295 = vpack.c.b16 %v7857, %v7854
        %v8296 = vpack.c.b16 %v7861, %v7858
        %v8297 = vpack.c.b16 %v7862, %v7859
        %v8298 = vpack.c.b16 %v7863, %v7860
        %v8299 = vpack.c.b16 %v7867, %v7864
        %v8300 = vpack.c.b16 %v7868, %v7865
        %v8301 = vpack.c.b16 %v7869, %v7866
        %v8302 = vpack.c.b16 %v7873, %v7870
        %v8303 = vpack.c.b16 %v7874, %v7871
        %v8304 = vpack.c.b16 %v7875, %v7872
        %v8305 = vpack.c.b16 %v7879, %v7876
        %v8306 = vpack.c.b16 %v7880, %v7877
        %v8307 = vpack.c.b16 %v7881, %v7878
        %v8308 = vpack.c.b16 %v7885, %v7882
        %v8309 = vpack.c.b16 %v7886, %v7883
        %v8310 = vpack.c.b16 %v7887, %v7884
        %v8311 = vpack.c.b16 %v7891, %v7888
        %v8312 = vpack.c.b16 %v7892, %v7889
        %v8313 = vpack.c.b16 %v7893, %v7890
        %v8314 = vpack.c.b16 %v7897, %v7894
        %v8315 = vpack.c.b16 %v7898, %v7895
        %v8316 = vpack.c.b16 %v7899, %v7896
        %v8317 = vpack.c.b16 %v7903, %v7900
        %v8318 = vpack.c.b16 %v7904, %v7901
        %v8319 = vpack.c.b16 %v7905, %v7902
        %v8320 = vpack.c.b16 %v7909, %v7906
        %v8321 = vpack.c.b16 %v7910, %v7907
        %v8322 = vpack.c.b16 %v7911, %v7908
        %v8323 = vpack.c.b16 %v7915, %v7912
        %v8324 = vpack.c.b16 %v7916, %v7913
        %v8325 = vpack.c.b16 %v7917, %v7914
        %v8326 = vpack.c.b16 %v7921, %v7918
        %v8327 = vpack.c.b16 %v7922, %v7919
        %v8328 = vpack.c.b16 %v7923, %v7920
        %v8329 = vpack.c.b16 %v7927, %v7924
        %v8330 = vpack.c.b16 %v7928, %v7925
        %v8331 = vpack.c.b16 %v7929, %v7926
        %v8332 = vpack.c.b16 %v7933, %v7930
        %v8333 = vpack.c.b16 %v7934, %v7931
        %v8334 = vpack.c.b16 %v7935, %v7932
        %v8335 = vpack.c.b16 %v7939, %v7936
        %v8336 = vpack.c.b16 %v7940, %v7937
        %v8337 = vpack.c.b16 %v7941, %v7938
        %v8338 = vpack.c.b16 %v7945, %v7942
        %v8339 = vpack.c.b16 %v7946, %v7943
        %v8340 = vpack.c.b16 %v7947, %v7944
        %v8341 = vpack.c.b16 %v7951, %v7948
        %v8342 = vpack.c.b16 %v7952, %v7949
        %v8343 = vpack.c.b16 %v7953, %v7950
        %v8344 = vpack.c.b16 %v7957, %v7954
        %v8345 = vpack.c.b16 %v7958, %v7955
        %v8346 = vpack.c.b16 %v7959, %v7956
        %v8347 = vpack.c.b16 %v7963, %v7960
        %v8348 = vpack.c.b16 %v7964, %v7961
        %v8349 = vpack.c.b16 %v7965, %v7962
        %v8350 = vpack.c.b16 %v7969, %v7966
        %v8351 = vpack.c.b16 %v7970, %v7967
        %v8352 = vpack.c.b16 %v7971, %v7968
        %v8353 = vpack.c.b16 %v7975, %v7972
        %v8354 = vpack.c.b16 %v7976, %v7973
        %v8355 = vpack.c.b16 %v7977, %v7974
        %v8356 = vpack.c.b16 %v7981, %v7978
        %v8357 = vpack.c.b16 %v7982, %v7979
        %v8358 = vpack.c.b16 %v7983, %v7980
        %v8359 = vpack.c.b16 %v7987, %v7984
        %v8360 = vpack.c.b16 %v7988, %v7985
        %v8361 = vpack.c.b16 %v7989, %v7986
        %v8362 = vpack.c.b16 %v7993, %v7990
        %v8363 = vpack.c.b16 %v7994, %v7991
        %v8364 = vpack.c.b16 %v7995, %v7992
        %v8365 = vpack.c.b16 %v7999, %v7996
        %v8366 = vpack.c.b16 %v8000, %v7997
        %v8367 = vpack.c.b16 %v8001, %v7998
        %v8368 = vpack.c.b16 %v8005, %v8002
        %v8369 = vpack.c.b16 %v8006, %v8003
        %v8370 = vpack.c.b16 %v8007, %v8004
        %v8371 = vpack.c.b16 %v8011, %v8008
        %v8372 = vpack.c.b16 %v8012, %v8009
        %v8373 = vpack.c.b16 %v8013, %v8010
        %v8374 = vpack.c.b16 %v8017, %v8014
        %v8375 = vpack.c.b16 %v8018, %v8015
        %v8376 = vpack.c.b16 %v8019, %v8016
        %v8377 = vpack.c.b16 %v8023, %v8020
        %v8378 = vpack.c.b16 %v8024, %v8021
        %v8379 = vpack.c.b16 %v8025, %v8022
        %v8380 = vpack.c.b16 %v8029, %v8026
        %v8381 = vpack.c.b16 %v8030, %v8027
        %v8382 = vpack.c.b16 %v8031, %v8028
        %v8383 = vpack.c.b16 %v8035, %v8032
        %v8384 = vpack.c.b16 %v8036, %v8033
        %v8385 = vpack.c.b16 %v8037, %v8034
        %v8386 = vpack.c.b16 %v8041, %v8038
        %v8387 = vpack.c.b16 %v8042, %v8039
        %v8388 = vpack.c.b16 %v8043, %v8040
        %v8389 = vpack.c.b16 %v8047, %v8044
        %v8390 = vpack.c.b16 %v8048, %v8045
        %v8391 = vpack.c.b16 %v8049, %v8046
        %v8392 = vpack.c.b16 %v8053, %v8050
        %v8393 = vpack.c.b16 %v8054, %v8051
        %v8394 = vpack.c.b16 %v8055, %v8052
        %v8395 = vpack.c.b16 %v8059, %v8056
        %v8396 = vpack.c.b16 %v8060, %v8057
        %v8397 = vpack.c.b16 %v8061, %v8058
        %v8398 = vpack.c.b16 %v8065, %v8062
        %v8399 = vpack.c.b16 %v8066, %v8063
        %v8400 = vpack.c.b16 %v8067, %v8064
        %v8401 = vpack.c.b16 %v8071, %v8068
        %v8402 = vpack.c.b16 %v8072, %v8069
        %v8403 = vpack.c.b16 %v8073, %v8070
        %v8404 = vpack.c.b16 %v8077, %v8074
        %v8405 = vpack.c.b16 %v8078, %v8075
        %v8406 = vpack.c.b16 %v8079, %v8076
        %v8407 = vpack.c.b16 %v8083, %v8080
        %v8408 = vpack.c.b16 %v8084, %v8081
        %v8409 = vpack.c.b16 %v8085, %v8082
        %v8410 = vpack.c.b16 %v8089, %v8086
        %v8411 = vpack.c.b16 %v8090, %v8087
        %v8412 = vpack.c.b16 %v8091, %v8088
        %v8413 = vpack.c.b16 %v8095, %v8092
        %v8414 = vpack.c.b16 %v8096, %v8093
        %v8415 = vpack.c.b16 %v8097, %v8094
        %v8416 = vpack.c.b16 %v8101, %v8098
        %v8417 = vpack.c.b16 %v8102, %v8099
        %v8418 = vpack.c.b16 %v8103, %v8100
        %v8419 = vpack.c.b16 %v8107, %v8104
        %v8420 = vpack.c.b16 %v8108, %v8105
        %v8421 = vpack.c.b16 %v8109, %v8106
        %v8422 = vpack.c.b16 %v8113, %v8110
        %v8423 = vpack.c.b16 %v8114, %v8111
        %v8424 = vpack.c.b16 %v8115, %v8112
        %v8425 = vpack.c.b16 %v8119, %v8116
        %v8426 = vpack.c.b16 %v8120, %v8117
        %v8427 = vpack.c.b16 %v8121, %v8118
        %v8428 = vpack.c.b16 %v8125, %v8122
        %v8429 = vpack.c.b16 %v8126, %v8123
        %v8430 = vpack.c.b16 %v8127, %v8124
        %v8431 = vpack.c.b16 %v8131, %v8128
        %v8432 = vpack.c.b16 %v8132, %v8129
        %v8433 = vpack.c.b16 %v8133, %v8130
        %v8434 = vpack.c.b16 %v8137, %v8134
        %v8435 = vpack.c.b16 %v8138, %v8135
        %v8436 = vpack.c.b16 %v8139, %v8136
        %v8437 = vpack.c.b16 %v8143, %v8140
        %v8438 = vpack.c.b16 %v8144, %v8141
        %v8439 = vpack.c.b16 %v8145, %v8142
        %v8440 = vpack.c.b16 %v8149, %v8146
        %v8441 = vpack.c.b16 %v8150, %v8147
        %v8442 = vpack.c.b16 %v8151, %v8148
        %v8443 = vpack.c.b16 %v8155, %v8152
        %v8444 = vpack.c.b16 %v8156, %v8153
        %v8445 = vpack.c.b16 %v8157, %v8154
        %8734 = vmatprep.subr.bf16.mxu0 %v8159
        %8735 = vmatpush1.bf16.msra.mxu0 %v8158
        %8736 = vmatprep.subr.bf16.mxu0 %v8162
        %8737 = vmatpush1.bf16.msra.mxu0 %v8161
        %8738 = vmatprep.subr.bf16.mxu0 %v8165
        %8739 = vmatpush1.bf16.msra.mxu0 %v8164
        %8740 = vmatprep.subr.bf16.mxu0 %v8168
        %8741 = vmatpush1.bf16.msra.mxu0 %v8167
        %8742 = vmatprep.subr.bf16.mxu0 %v8171
        %8743 = vmatpush1.bf16.msra.mxu0 %v8170
        %8744 = vmatprep.subr.bf16.mxu0 %v8174
        %8745 = vmatpush1.bf16.msra.mxu0 %v8173
        %8746 = vmatprep.subr.bf16.mxu0 %v8177
        %8747 = vmatpush1.bf16.msra.mxu0 %v8176
        %8748 = vmatprep.subr.bf16.mxu0 %v8180
        %8749 = vmatpush1.bf16.msra.mxu0 %v8179
        %8750 = vmatprep.subr.bf16.mxu0 %v8183
        %8751 = vmatpush1.bf16.msra.mxu0 %v8182
        %8752 = vmatprep.subr.bf16.mxu0 %v8186
        %8753 = vmatpush1.bf16.msra.mxu0 %v8185
        %8754 = vmatprep.subr.bf16.mxu0 %v8189
        %8755 = vmatpush1.bf16.msra.mxu0 %v8188
        %8756 = vmatprep.subr.bf16.mxu0 %v8192
        %8757 = vmatpush1.bf16.msra.mxu0 %v8191
        %8758 = vmatprep.subr.bf16.mxu0 %v8195
        %8759 = vmatpush1.bf16.msra.mxu0 %v8194
        %8760 = vmatprep.subr.bf16.mxu0 %v8198
        %8761 = vmatpush1.bf16.msra.mxu0 %v8197
        %8762 = vmatprep.subr.bf16.mxu0 %v8201
        %8763 = vmatpush1.bf16.msra.mxu0 %v8200
        %8764 = vmatprep.subr.bf16.mxu0 %v8204
        %8765 = vmatpush1.bf16.msra.mxu0 %v8203
        %8766 = vmatprep.mubr.bf16.mxu0 %v6786
        %8767 = vmatmul.mubr.bf16.gmra.mrb[0].mxu0 %v6785
        %v8768 = vpop.f32.mrb[0].mxu0
        %v8769 = vadd.f32 %v7186, %v8768
        %v8770 = vpop.f32.mrb[0].mxu0
        %v8771 = vadd.f32 %v7190, %v8770
        %v8772 = vpop.f32.mrb[0].mxu0
        %v8773 = vpop.f32.mrb[0].mxu0
        %8774 = vdwg.mxu0
        %8775 = vmatprep.subr.bf16.mxu0 %v8207
        %8776 = vmatpush1.bf16.msra.mxu0 %v8206
        %8777 = vmatprep.subr.bf16.mxu0 %v8210
        %8778 = vmatpush1.bf16.msra.mxu0 %v8209
        %8779 = vmatprep.subr.bf16.mxu0 %v8213
        %8780 = vmatpush1.bf16.msra.mxu0 %v8212
        %8781 = vmatprep.subr.bf16.mxu0 %v8216
        %8782 = vmatpush1.bf16.msra.mxu0 %v8215
        %8783 = vmatprep.subr.bf16.mxu0 %v8219
        %8784 = vmatpush1.bf16.msra.mxu0 %v8218
        %8785 = vmatprep.subr.bf16.mxu0 %v8222
        %8786 = vmatpush1.bf16.msra.mxu0 %v8221
        %8787 = vmatprep.subr.bf16.mxu0 %v8225
        %8788 = vmatpush1.bf16.msra.mxu0 %v8224
        %8789 = vmatprep.subr.bf16.mxu0 %v8228
        %8790 = vmatpush1.bf16.msra.mxu0 %v8227
        %8791 = vmatprep.subr.bf16.mxu0 %v8231
        %8792 = vmatpush1.bf16.msra.mxu0 %v8230
        %8793 = vmatprep.subr.bf16.mxu0 %v8234
        %8794 = vmatpush1.bf16.msra.mxu0 %v8233
        %8795 = vmatprep.subr.bf16.mxu0 %v8237
        %8796 = vmatpush1.bf16.msra.mxu0 %v8236
        %8797 = vmatprep.subr.bf16.mxu0 %v8240
        %8798 = vmatpush1.bf16.msra.mxu0 %v8239
        %8799 = vmatprep.subr.bf16.mxu0 %v8243
        %8800 = vmatpush1.bf16.msra.mxu0 %v8242
        %8801 = vmatprep.subr.bf16.mxu0 %v8246
        %8802 = vmatpush1.bf16.msra.mxu0 %v8245
        %8803 = vmatprep.subr.bf16.mxu0 %v8249
        %8804 = vmatpush1.bf16.msra.mxu0 %v8248
        %8805 = vmatprep.subr.bf16.mxu0 %v8252
        %8806 = vmatpush1.bf16.msra.mxu0 %v8251
        %8807 = vmatprep.mubr.bf16.mxu0 %v6788
        %8808 = vmatmul.mubr.bf16.gmra.mrb[0].mxu0 %v6787
        %v8809 = vpop.f32.mrb[0].mxu0
        %v8810 = vadd.f32 %v8769, %v8809
        %v8811 = vpop.f32.mrb[0].mxu0
        %v8812 = vadd.f32 %v8771, %v8811
        %v8813 = vpop.f32.mrb[0].mxu0
        %v8814 = vpop.f32.mrb[0].mxu0
        %8815 = vdwg.mxu0
        %8816 = vmatprep.subr.bf16.mxu0 %v8255
        %8817 = vmatpush1.bf16.msra.mxu0 %v8254
        %8818 = vmatprep.subr.bf16.mxu0 %v8258
        %8819 = vmatpush1.bf16.msra.mxu0 %v8257
        %8820 = vmatprep.subr.bf16.mxu0 %v8261
        %8821 = vmatpush1.bf16.msra.mxu0 %v8260
        %8822 = vmatprep.subr.bf16.mxu0 %v8264
        %8823 = vmatpush1.bf16.msra.mxu0 %v8263
        %8824 = vmatprep.subr.bf16.mxu0 %v8267
        %8825 = vmatpush1.bf16.msra.mxu0 %v8266
        %8826 = vmatprep.subr.bf16.mxu0 %v8270
        %8827 = vmatpush1.bf16.msra.mxu0 %v8269
        %8828 = vmatprep.subr.bf16.mxu0 %v8273
        %8829 = vmatpush1.bf16.msra.mxu0 %v8272
        %8830 = vmatprep.subr.bf16.mxu0 %v8276
        %8831 = vmatpush1.bf16.msra.mxu0 %v8275
        %8832 = vmatprep.subr.bf16.mxu0 %v8279
        %8833 = vmatpush1.bf16.msra.mxu0 %v8278
        %8834 = vmatprep.subr.bf16.mxu0 %v8282
        %8835 = vmatpush1.bf16.msra.mxu0 %v8281
        %8836 = vmatprep.subr.bf16.mxu0 %v8285
        %8837 = vmatpush1.bf16.msra.mxu0 %v8284
        %8838 = vmatprep.subr.bf16.mxu0 %v8288
        %8839 = vmatpush1.bf16.msra.mxu0 %v8287
        %8840 = vmatprep.subr.bf16.mxu0 %v8291
        %8841 = vmatpush1.bf16.msra.mxu0 %v8290
        %8842 = vmatprep.subr.bf16.mxu0 %v8294
        %8843 = vmatpush1.bf16.msra.mxu0 %v8293
        %8844 = vmatprep.subr.bf16.mxu0 %v8297
        %8845 = vmatpush1.bf16.msra.mxu0 %v8296
        %8846 = vmatprep.subr.bf16.mxu0 %v8300
        %8847 = vmatpush1.bf16.msra.mxu0 %v8299
        %8848 = vmatprep.mubr.bf16.mxu0 %v6790
        %8849 = vmatmul.mubr.bf16.gmra.mrb[0].mxu0 %v6789
        %v8850 = vpop.f32.mrb[0].mxu0
        %v8851 = vadd.f32 %v8810, %v8850
        %v8852 = vpop.f32.mrb[0].mxu0
        %v8853 = vadd.f32 %v8812, %v8852
        %v8854 = vpop.f32.mrb[0].mxu0
        %v8855 = vpop.f32.mrb[0].mxu0
        %8856 = vdwg.mxu0
        %8857 = vmatprep.subr.bf16.mxu0 %v8303
        %8858 = vmatpush1.bf16.msra.mxu0 %v8302
        %8859 = vmatprep.subr.bf16.mxu0 %v8306
        %8860 = vmatpush1.bf16.msra.mxu0 %v8305
        %8861 = vmatprep.subr.bf16.mxu0 %v8309
        %8862 = vmatpush1.bf16.msra.mxu0 %v8308
        %8863 = vmatprep.subr.bf16.mxu0 %v8312
        %8864 = vmatpush1.bf16.msra.mxu0 %v8311
        %8865 = vmatprep.subr.bf16.mxu0 %v8315
        %8866 = vmatpush1.bf16.msra.mxu0 %v8314
        %8867 = vmatprep.subr.bf16.mxu0 %v8318
        %8868 = vmatpush1.bf16.msra.mxu0 %v8317
        %8869 = vmatprep.subr.bf16.mxu0 %v8321
        %8870 = vmatpush1.bf16.msra.mxu0 %v8320
        %8871 = vmatprep.subr.bf16.mxu0 %v8324
        %8872 = vmatpush1.bf16.msra.mxu0 %v8323
        %8873 = vmatprep.subr.bf16.mxu0 %v8327
        %8874 = vmatpush1.bf16.msra.mxu0 %v8326
        %8875 = vmatprep.subr.bf16.mxu0 %v8330
        %8876 = vmatpush1.bf16.msra.mxu0 %v8329
        %8877 = vmatprep.subr.bf16.mxu0 %v8333
        %8878 = vmatpush1.bf16.msra.mxu0 %v8332
        %8879 = vmatprep.subr.bf16.mxu0 %v8336
        %8880 = vmatpush1.bf16.msra.mxu0 %v8335
        %8881 = vmatprep.subr.bf16.mxu0 %v8339
        %8882 = vmatpush1.bf16.msra.mxu0 %v8338
        %8883 = vmatprep.subr.bf16.mxu0 %v8342
        %8884 = vmatpush1.bf16.msra.mxu0 %v8341
        %8885 = vmatprep.subr.bf16.mxu0 %v8345
        %8886 = vmatpush1.bf16.msra.mxu0 %v8344
        %8887 = vmatprep.subr.bf16.mxu0 %v8348
        %8888 = vmatpush1.bf16.msra.mxu0 %v8347
        %8889 = vmatprep.mubr.bf16.mxu0 %v6792
        %8890 = vmatmul.mubr.bf16.gmra.mrb[0].mxu0 %v6791
        %v8891 = vpop.f32.mrb[0].mxu0
        %v8892 = vadd.f32 %v8851, %v8891
        %v8893 = vpop.f32.mrb[0].mxu0
        %v8894 = vadd.f32 %v8853, %v8893
        %v8895 = vpop.f32.mrb[0].mxu0
        %v8896 = vpop.f32.mrb[0].mxu0
        %8897 = vdwg.mxu0
        %8898 = vmatprep.subr.bf16.mxu0 %v8351
        %8899 = vmatpush1.bf16.msra.mxu0 %v8350
        %8900 = vmatprep.subr.bf16.mxu0 %v8354
        %8901 = vmatpush1.bf16.msra.mxu0 %v8353
        %8902 = vmatprep.subr.bf16.mxu0 %v8357
        %8903 = vmatpush1.bf16.msra.mxu0 %v8356
        %8904 = vmatprep.subr.bf16.mxu0 %v8360
        %8905 = vmatpush1.bf16.msra.mxu0 %v8359
        %8906 = vmatprep.subr.bf16.mxu0 %v8363
        %8907 = vmatpush1.bf16.msra.mxu0 %v8362
        %8908 = vmatprep.subr.bf16.mxu0 %v8366
        %8909 = vmatpush1.bf16.msra.mxu0 %v8365
        %8910 = vmatprep.subr.bf16.mxu0 %v8369
        %8911 = vmatpush1.bf16.msra.mxu0 %v8368
        %8912 = vmatprep.subr.bf16.mxu0 %v8372
        %8913 = vmatpush1.bf16.msra.mxu0 %v8371
        %8914 = vmatprep.subr.bf16.mxu0 %v8375
        %8915 = vmatpush1.bf16.msra.mxu0 %v8374
        %8916 = vmatprep.subr.bf16.mxu0 %v8378
        %8917 = vmatpush1.bf16.msra.mxu0 %v8377
        %8918 = vmatprep.subr.bf16.mxu0 %v8381
        %8919 = vmatpush1.bf16.msra.mxu0 %v8380
        %8920 = vmatprep.subr.bf16.mxu0 %v8384
        %8921 = vmatpush1.bf16.msra.mxu0 %v8383
        %8922 = vmatprep.subr.bf16.mxu0 %v8387
        %8923 = vmatpush1.bf16.msra.mxu0 %v8386
        %8924 = vmatprep.subr.bf16.mxu0 %v8390
        %8925 = vmatpush1.bf16.msra.mxu0 %v8389
        %8926 = vmatprep.subr.bf16.mxu0 %v8393
        %8927 = vmatpush1.bf16.msra.mxu0 %v8392
        %8928 = vmatprep.subr.bf16.mxu0 %v8396
        %8929 = vmatpush1.bf16.msra.mxu0 %v8395
        %8930 = vmatprep.mubr.bf16.mxu0 %v6794
        %8931 = vmatmul.mubr.bf16.gmra.mrb[0].mxu0 %v6793
        %v8932 = vpop.f32.mrb[0].mxu0
        %v8933 = vadd.f32 %v8892, %v8932
        %v8934 = vpop.f32.mrb[0].mxu0
        %v8935 = vadd.f32 %v8894, %v8934
        %v8936 = vpop.f32.mrb[0].mxu0
        %v8937 = vpop.f32.mrb[0].mxu0
        %8938 = vdwg.mxu0
        %8939 = vmatprep.subr.bf16.mxu0 %v8399
        %8940 = vmatpush1.bf16.msra.mxu0 %v8398
        %8941 = vmatprep.subr.bf16.mxu0 %v8402
        %8942 = vmatpush1.bf16.msra.mxu0 %v8401
        %8943 = vmatprep.subr.bf16.mxu0 %v8405
        %8944 = vmatpush1.bf16.msra.mxu0 %v8404
        %8945 = vmatprep.subr.bf16.mxu0 %v8408
        %8946 = vmatpush1.bf16.msra.mxu0 %v8407
        %8947 = vmatprep.subr.bf16.mxu0 %v8411
        %8948 = vmatpush1.bf16.msra.mxu0 %v8410
        %8949 = vmatprep.subr.bf16.mxu0 %v8414
        %8950 = vmatpush1.bf16.msra.mxu0 %v8413
        %8951 = vmatprep.subr.bf16.mxu0 %v8417
        %8952 = vmatpush1.bf16.msra.mxu0 %v8416
        %8953 = vmatprep.subr.bf16.mxu0 %v8420
        %8954 = vmatpush1.bf16.msra.mxu0 %v8419
        %8955 = vmatprep.subr.bf16.mxu0 %v8423
        %8956 = vmatpush1.bf16.msra.mxu0 %v8422
        %8957 = vmatprep.subr.bf16.mxu0 %v8426
        %8958 = vmatpush1.bf16.msra.mxu0 %v8425
        %8959 = vmatprep.subr.bf16.mxu0 %v8429
        %8960 = vmatpush1.bf16.msra.mxu0 %v8428
        %8961 = vmatprep.subr.bf16.mxu0 %v8432
        %8962 = vmatpush1.bf16.msra.mxu0 %v8431
        %8963 = vmatprep.subr.bf16.mxu0 %v8435
        %8964 = vmatpush1.bf16.msra.mxu0 %v8434
        %8965 = vmatprep.subr.bf16.mxu0 %v8438
        %8966 = vmatpush1.bf16.msra.mxu0 %v8437
        %8967 = vmatprep.subr.bf16.mxu0 %v8441
        %8968 = vmatpush1.bf16.msra.mxu0 %v8440
        %8969 = vmatprep.subr.bf16.mxu0 %v8444
        %8970 = vmatpush1.bf16.msra.mxu0 %v8443
        %8971 = vmatprep.mubr.bf16.mxu0 %v6796
        %8972 = vmatmul.mubr.bf16.gmra.mrb[0].mxu0 %v6795
        %v8973 = vpop.f32.mrb[0].mxu0
        %v8974 = vadd.f32 %v8933, %v8973
        %v8975 = vpop.f32.mrb[0].mxu0
        %v8976 = vadd.f32 %v8935, %v8975
        %v8977 = vpop.f32.mrb[0].mxu0
        %v8978 = vpop.f32.mrb[0].mxu0
        %8979 = vdwg.mxu0
        %8980 = vmatprep.subr.bf16.mxu0 0
        %8981 = vmatpush1.bf16.msra.mxu0 %v8160
        %8982 = vmatprep.subr.bf16.mxu0 0
        %8983 = vmatpush1.bf16.msra.mxu0 %v8163
        %8984 = vmatprep.subr.bf16.mxu0 0
        %8985 = vmatpush1.bf16.msra.mxu0 %v8166
        %8986 = vmatprep.subr.bf16.mxu0 0
        %8987 = vmatpush1.bf16.msra.mxu0 %v8169
        %8988 = vmatprep.subr.bf16.mxu0 0
        %8989 = vmatpush1.bf16.msra.mxu0 %v8172
        %8990 = vmatprep.subr.bf16.mxu0 0
        %8991 = vmatpush1.bf16.msra.mxu0 %v8175
        %8992 = vmatprep.subr.bf16.mxu0 0
        %8993 = vmatpush1.bf16.msra.mxu0 %v8178
        %8994 = vmatprep.subr.bf16.mxu0 0
        %8995 = vmatpush1.bf16.msra.mxu0 %v8181
        %8996 = vmatprep.subr.bf16.mxu0 0
        %8997 = vmatpush1.bf16.msra.mxu0 %v8184
        %8998 = vmatprep.subr.bf16.mxu0 0
        %8999 = vmatpush1.bf16.msra.mxu0 %v8187
        %9000 = vmatprep.subr.bf16.mxu0 0
        %9001 = vmatpush1.bf16.msra.mxu0 %v8190
        %9002 = vmatprep.subr.bf16.mxu0 0
        %9003 = vmatpush1.bf16.msra.mxu0 %v8193
        %9004 = vmatprep.subr.bf16.mxu0 0
        %9005 = vmatpush1.bf16.msra.mxu0 %v8196
        %9006 = vmatprep.subr.bf16.mxu0 0
        %9007 = vmatpush1.bf16.msra.mxu0 %v8199
        %9008 = vmatprep.subr.bf16.mxu0 0
        %9009 = vmatpush1.bf16.msra.mxu0 %v8202
        %9010 = vmatprep.subr.bf16.mxu0 0
        %9011 = vmatpush1.bf16.msra.mxu0 %v8205
        %9012 = vmatprep.mubr.bf16.mxu0 %v6786
        %9013 = vmatmul.mubr.bf16.gmra.mrb[0].mxu0 %v6785
        %v9014 = vpop.f32.mrb[0].mxu0
        %v9015 = vadd.f32 %v7194, %v9014
        %v9016 = vpop.f32.mrb[0].mxu0
        %v9017 = vpop.f32.mrb[0].mxu0
        %v9018 = vpop.f32.mrb[0].mxu0
        %9019 = vdwg.mxu0
        %9020 = vmatprep.subr.bf16.mxu0 0
        %9021 = vmatpush1.bf16.msra.mxu0 %v8208
        %9022 = vmatprep.subr.bf16.mxu0 0
        %9023 = vmatpush1.bf16.msra.mxu0 %v8211
        %9024 = vmatprep.subr.bf16.mxu0 0
        %9025 = vmatpush1.bf16.msra.mxu0 %v8214
        %9026 = vmatprep.subr.bf16.mxu0 0
        %9027 = vmatpush1.bf16.msra.mxu0 %v8217
        %9028 = vmatprep.subr.bf16.mxu0 0
        %9029 = vmatpush1.bf16.msra.mxu0 %v8220
        %9030 = vmatprep.subr.bf16.mxu0 0
        %9031 = vmatpush1.bf16.msra.mxu0 %v8223
        %9032 = vmatprep.subr.bf16.mxu0 0
        %9033 = vmatpush1.bf16.msra.mxu0 %v8226
        %9034 = vmatprep.subr.bf16.mxu0 0
        %9035 = vmatpush1.bf16.msra.mxu0 %v8229
        %9036 = vmatprep.subr.bf16.mxu0 0
        %9037 = vmatpush1.bf16.msra.mxu0 %v8232
        %9038 = vmatprep.subr.bf16.mxu0 0
        %9039 = vmatpush1.bf16.msra.mxu0 %v8235
        %9040 = vmatprep.subr.bf16.mxu0 0
        %9041 = vmatpush1.bf16.msra.mxu0 %v8238
        %9042 = vmatprep.subr.bf16.mxu0 0
        %9043 = vmatpush1.bf16.msra.mxu0 %v8241
        %9044 = vmatprep.subr.bf16.mxu0 0
        %9045 = vmatpush1.bf16.msra.mxu0 %v8244
        %9046 = vmatprep.subr.bf16.mxu0 0
        %9047 = vmatpush1.bf16.msra.mxu0 %v8247
        %9048 = vmatprep.subr.bf16.mxu0 0
        %9049 = vmatpush1.bf16.msra.mxu0 %v8250
        %9050 = vmatprep.subr.bf16.mxu0 0
        %9051 = vmatpush1.bf16.msra.mxu0 %v8253
        %9052 = vmatprep.mubr.bf16.mxu0 %v6788
        %9053 = vmatmul.mubr.bf16.gmra.mrb[0].mxu0 %v6787
        %v9054 = vpop.f32.mrb[0].mxu0
        %v9055 = vadd.f32 %v9015, %v9054
        %v9056 = vpop.f32.mrb[0].mxu0
        %v9057 = vpop.f32.mrb[0].mxu0
        %v9058 = vpop.f32.mrb[0].mxu0
        %9059 = vdwg.mxu0
        %9060 = vmatprep.subr.bf16.mxu0 0
        %9061 = vmatpush1.bf16.msra.mxu0 %v8256
        %9062 = vmatprep.subr.bf16.mxu0 0
        %9063 = vmatpush1.bf16.msra.mxu0 %v8259
        %9064 = vmatprep.subr.bf16.mxu0 0
        %9065 = vmatpush1.bf16.msra.mxu0 %v8262
        %9066 = vmatprep.subr.bf16.mxu0 0
        %9067 = vmatpush1.bf16.msra.mxu0 %v8265
        %9068 = vmatprep.subr.bf16.mxu0 0
        %9069 = vmatpush1.bf16.msra.mxu0 %v8268
        %9070 = vmatprep.subr.bf16.mxu0 0
        %9071 = vmatpush1.bf16.msra.mxu0 %v8271
        %9072 = vmatprep.subr.bf16.mxu0 0
        %9073 = vmatpush1.bf16.msra.mxu0 %v8274
        %9074 = vmatprep.subr.bf16.mxu0 0
        %9075 = vmatpush1.bf16.msra.mxu0 %v8277
        %9076 = vmatprep.subr.bf16.mxu0 0
        %9077 = vmatpush1.bf16.msra.mxu0 %v8280
        %9078 = vmatprep.subr.bf16.mxu0 0
        %9079 = vmatpush1.bf16.msra.mxu0 %v8283
        %9080 = vmatprep.subr.bf16.mxu0 0
        %9081 = vmatpush1.bf16.msra.mxu0 %v8286
        %9082 = vmatprep.subr.bf16.mxu0 0
        %9083 = vmatpush1.bf16.msra.mxu0 %v8289
        %9084 = vmatprep.subr.bf16.mxu0 0
        %9085 = vmatpush1.bf16.msra.mxu0 %v8292
        %9086 = vmatprep.subr.bf16.mxu0 0
        %9087 = vmatpush1.bf16.msra.mxu0 %v8295
        %9088 = vmatprep.subr.bf16.mxu0 0
        %9089 = vmatpush1.bf16.msra.mxu0 %v8298
        %9090 = vmatprep.subr.bf16.mxu0 0
        %9091 = vmatpush1.bf16.msra.mxu0 %v8301
        %9092 = vmatprep.mubr.bf16.mxu0 %v6790
        %9093 = vmatmul.mubr.bf16.gmra.mrb[0].mxu0 %v6789
        %v9094 = vpop.f32.mrb[0].mxu0
        %v9095 = vadd.f32 %v9055, %v9094
        %v9096 = vpop.f32.mrb[0].mxu0
        %v9097 = vpop.f32.mrb[0].mxu0
        %v9098 = vpop.f32.mrb[0].mxu0
        %9099 = vdwg.mxu0
        %9100 = vmatprep.subr.bf16.mxu0 0
        %9101 = vmatpush1.bf16.msra.mxu0 %v8304
        %9102 = vmatprep.subr.bf16.mxu0 0
        %9103 = vmatpush1.bf16.msra.mxu0 %v8307
        %9104 = vmatprep.subr.bf16.mxu0 0
        %9105 = vmatpush1.bf16.msra.mxu0 %v8310
        %9106 = vmatprep.subr.bf16.mxu0 0
        %9107 = vmatpush1.bf16.msra.mxu0 %v8313
        %9108 = vmatprep.subr.bf16.mxu0 0
        %9109 = vmatpush1.bf16.msra.mxu0 %v8316
        %9110 = vmatprep.subr.bf16.mxu0 0
        %9111 = vmatpush1.bf16.msra.mxu0 %v8319
        %9112 = vmatprep.subr.bf16.mxu0 0
        %9113 = vmatpush1.bf16.msra.mxu0 %v8322
        %9114 = vmatprep.subr.bf16.mxu0 0
        %9115 = vmatpush1.bf16.msra.mxu0 %v8325
        %9116 = vmatprep.subr.bf16.mxu0 0
        %9117 = vmatpush1.bf16.msra.mxu0 %v8328
        %9118 = vmatprep.subr.bf16.mxu0 0
        %9119 = vmatpush1.bf16.msra.mxu0 %v8331
        %9120 = vmatprep.subr.bf16.mxu0 0
        %9121 = vmatpush1.bf16.msra.mxu0 %v8334
        %9122 = vmatprep.subr.bf16.mxu0 0
        %9123 = vmatpush1.bf16.msra.mxu0 %v8337
        %9124 = vmatprep.subr.bf16.mxu0 0
        %9125 = vmatpush1.bf16.msra.mxu0 %v8340
        %9126 = vmatprep.subr.bf16.mxu0 0
        %9127 = vmatpush1.bf16.msra.mxu0 %v8343
        %9128 = vmatprep.subr.bf16.mxu0 0
        %9129 = vmatpush1.bf16.msra.mxu0 %v8346
        %9130 = vmatprep.subr.bf16.mxu0 0
        %9131 = vmatpush1.bf16.msra.mxu0 %v8349
        %9132 = vmatprep.mubr.bf16.mxu0 %v6792
        %9133 = vmatmul.mubr.bf16.gmra.mrb[0].mxu0 %v6791
        %v9134 = vpop.f32.mrb[0].mxu0
        %v9135 = vadd.f32 %v9095, %v9134
        %v9136 = vpop.f32.mrb[0].mxu0
        %v9137 = vpop.f32.mrb[0].mxu0
        %v9138 = vpop.f32.mrb[0].mxu0
        %9139 = vdwg.mxu0
        %9140 = vmatprep.subr.bf16.mxu0 0
        %9141 = vmatpush1.bf16.msra.mxu0 %v8352
        %9142 = vmatprep.subr.bf16.mxu0 0
        %9143 = vmatpush1.bf16.msra.mxu0 %v8355
        %9144 = vmatprep.subr.bf16.mxu0 0
        %9145 = vmatpush1.bf16.msra.mxu0 %v8358
        %9146 = vmatprep.subr.bf16.mxu0 0
        %9147 = vmatpush1.bf16.msra.mxu0 %v8361
        %9148 = vmatprep.subr.bf16.mxu0 0
        %9149 = vmatpush1.bf16.msra.mxu0 %v8364
        %9150 = vmatprep.subr.bf16.mxu0 0
        %9151 = vmatpush1.bf16.msra.mxu0 %v8367
        %9152 = vmatprep.subr.bf16.mxu0 0
        %9153 = vmatpush1.bf16.msra.mxu0 %v8370
        %9154 = vmatprep.subr.bf16.mxu0 0
        %9155 = vmatpush1.bf16.msra.mxu0 %v8373
        %9156 = vmatprep.subr.bf16.mxu0 0
        %9157 = vmatpush1.bf16.msra.mxu0 %v8376
        %9158 = vmatprep.subr.bf16.mxu0 0
        %9159 = vmatpush1.bf16.msra.mxu0 %v8379
        %9160 = vmatprep.subr.bf16.mxu0 0
        %9161 = vmatpush1.bf16.msra.mxu0 %v8382
        %9162 = vmatprep.subr.bf16.mxu0 0
        %9163 = vmatpush1.bf16.msra.mxu0 %v8385
        %9164 = vmatprep.subr.bf16.mxu0 0
        %9165 = vmatpush1.bf16.msra.mxu0 %v8388
        %9166 = vmatprep.subr.bf16.mxu0 0
        %9167 = vmatpush1.bf16.msra.mxu0 %v8391
        %9168 = vmatprep.subr.bf16.mxu0 0
        %9169 = vmatpush1.bf16.msra.mxu0 %v8394
        %9170 = vmatprep.subr.bf16.mxu0 0
        %9171 = vmatpush1.bf16.msra.mxu0 %v8397
        %9172 = vmatprep.mubr.bf16.mxu0 %v6794
        %9173 = vmatmul.mubr.bf16.gmra.mrb[0].mxu0 %v6793
        %v9174 = vpop.f32.mrb[0].mxu0
        %v9175 = vadd.f32 %v9135, %v9174
        %v9176 = vpop.f32.mrb[0].mxu0
        %v9177 = vpop.f32.mrb[0].mxu0
        %v9178 = vpop.f32.mrb[0].mxu0
        %9179 = vdwg.mxu0
        %9180 = vmatprep.subr.bf16.mxu0 0
        %9181 = vmatpush1.bf16.msra.mxu0 %v8400
        %9182 = vmatprep.subr.bf16.mxu0 0
        %9183 = vmatpush1.bf16.msra.mxu0 %v8403
        %9184 = vmatprep.subr.bf16.mxu0 0
        %9185 = vmatpush1.bf16.msra.mxu0 %v8406
        %9186 = vmatprep.subr.bf16.mxu0 0
        %9187 = vmatpush1.bf16.msra.mxu0 %v8409
        %9188 = vmatprep.subr.bf16.mxu0 0
        %9189 = vmatpush1.bf16.msra.mxu0 %v8412
        %9190 = vmatprep.subr.bf16.mxu0 0
        %9191 = vmatpush1.bf16.msra.mxu0 %v8415
        %9192 = vmatprep.subr.bf16.mxu0 0
        %9193 = vmatpush1.bf16.msra.mxu0 %v8418
        %9194 = vmatprep.subr.bf16.mxu0 0
        %9195 = vmatpush1.bf16.msra.mxu0 %v8421
        %9196 = vmatprep.subr.bf16.mxu0 0
        %9197 = vmatpush1.bf16.msra.mxu0 %v8424
        %9198 = vmatprep.subr.bf16.mxu0 0
        %9199 = vmatpush1.bf16.msra.mxu0 %v8427
        %9200 = vmatprep.subr.bf16.mxu0 0
        %9201 = vmatpush1.bf16.msra.mxu0 %v8430
        %9202 = vmatprep.subr.bf16.mxu0 0
        %9203 = vmatpush1.bf16.msra.mxu0 %v8433
        %9204 = vmatprep.subr.bf16.mxu0 0
        %9205 = vmatpush1.bf16.msra.mxu0 %v8436
        %9206 = vmatprep.subr.bf16.mxu0 0
        %9207 = vmatpush1.bf16.msra.mxu0 %v8439
        %9208 = vmatprep.subr.bf16.mxu0 0
        %9209 = vmatpush1.bf16.msra.mxu0 %v8442
        %9210 = vmatprep.subr.bf16.mxu0 0
        %9211 = vmatpush1.bf16.msra.mxu0 %v8445
        %9212 = vmatprep.mubr.bf16.mxu0 %v6796
        %9213 = vmatmul.mubr.bf16.gmra.mrb[0].mxu0 %v6795
        %v9214 = vpop.f32.mrb[0].mxu0
        %v9215 = vadd.f32 %v9175, %v9214
        %v9216 = vpop.f32.mrb[0].mxu0
        %v9217 = vpop.f32.mrb[0].mxu0
        %v9218 = vpop.f32.mrb[0].mxu0
        %9219 = vdwg.mxu0
        %v9220 = vadd.f32 %v4422, %v8974
        %v9221 = vadd.f32 %v4423, %v8976
        %v9222 = vadd.f32 %v4424, %v9215
        %9223 = vst [vmem:[#allocation2] sm:$0xff] %v9220
        %9224 = vst [vmem:[#allocation2 + $0x8] sm:$0xff] %v9221
        %9225 = vst [vmem:[#allocation2 + $0x10] sm:$0xff] %v9222
        %p9226 = scmp.eq.s32.totalorder %s60, 5
        // Predicated region
        $region153: #{tpu_custom_call.1} parent=83 // pred_check
          %p9227 = pneg %p9226
        $region154: #{tpu_custom_call.1} parent=83 // pred_check_branch
          %9229 = sbr.rel (%p9227) target = $region156
        $region155: #{tpu_custom_call.1} parent=83 // pred_region
          %v9230 = vld [vmem:[#allocation26] sm:$0x7]
          %v9231 = vld [vmem:[#allocation27] sm:$0x7]
          %v9232 = vadd.f32 %v9220, %v9221
          %v9233 = vadd.f32 %v9232, %v9222
          %9234 = vadd.xlane.f32.xlu0 %v9233
          %v9235 = vpop.xlane.xlu0 %9234
          %v9236 = vmul.f32 %v9235, %v1083
          %v9237 = vsub.f32 %v9220, %v9236
          %v9238 = vsub.f32 %v9221, %v9236
          %v9239 = vsub.f32 %v9222, %v9236
          %v9240 = vmul.f32 %v9237, %v9237
          %v9241 = vmul.f32 %v9238, %v9238
          %v9242 = vmul.f32 %v9239, %v9239
          %v9243 = vadd.f32 %v9240, %v9241
          %v9244 = vadd.f32 %v9243, %v9242
          %9245 = vadd.xlane.f32.xlu0 %v9244
          %v9246 = vpop.xlane.xlu0 %9245
          %v9247 = vmul.f32 %v9246, %v1083
          %v9248 = vadd.f32 %v9247, 1e-05
          %v9249 = vrsqrt.pop %v9248
          %v9250 = vmul.f32 %v9237, %v9249
          %v9251 = vmul.f32 %v9238, %v9249
          %v9252 = vmul.f32 %v9239, %v9249
          %v9254 = vlaneseq
          %v9255 = vshrl.u32 %v9254, 7
          %v9256 = vsub.s32 0, %v9255
          %v9257 = vrot.slane %v9230, %v9256
          %v9258 = vlaneseq
          %v9259 = vshrl.u32 %v9258, 7
          %v9260 = vsub.s32 1, %v9259
          %v9261 = vrot.slane %v9230, %v9260
          %v9262 = vlaneseq
          %v9263 = vshrl.u32 %v9262, 7
          %v9264 = vsub.s32 2, %v9263
          %v9265 = vrot.slane %v9230, %v9264
          %v9269 = vmul.f32 %v9250, %v9257
          %v9270 = vmul.f32 %v9251, %v9261
          %v9271 = vmul.f32 %v9252, %v9265
          %v9273 = vlaneseq
          %v9274 = vshrl.u32 %v9273, 7
          %v9275 = vsub.s32 0, %v9274
          %v9276 = vrot.slane %v9231, %v9275
          %v9277 = vlaneseq
          %v9278 = vshrl.u32 %v9277, 7
          %v9279 = vsub.s32 1, %v9278
          %v9280 = vrot.slane %v9231, %v9279
          %v9281 = vlaneseq
          %v9282 = vshrl.u32 %v9281, 7
          %v9283 = vsub.s32 2, %v9282
          %v9284 = vrot.slane %v9231, %v9283
          %v9288 = vadd.f32 %v9269, %v9276
          %v9289 = vadd.f32 %v9270, %v9280
          %v9290 = vadd.f32 %v9271, %v9284
          %v9291 = vpack.c.bf16 %v9288, %v9288
          %v9292 = vpack.c.bf16 %v9289, %v9289
          %v9293 = vpack.c.bf16 %v9290, %v9290
          %v9297 = vunpack.c.l.b16 %v9291
          %v9298 = vunpack.c.l.b16 %v9292
          %v9299 = vunpack.c.l.b16 %v9293
          %v9300 = vpack.c.b16 %v9298, %v9297
          %v9301 = vpack.c.b16 %v9299, %v9299
          %9304 = vst [vmem:[%s1062] sm:$0xff] %v9300
          %9305 = vst [vmem:[%s1062 + $0x8] sm:$0xf] %v9301
        $region156: #{tpu_custom_call.1} parent=83 // pred_fallthru
          _
        %s9306 = sand.u32 %s481, 1
        %s9307 = scalar_lea.sflag [#allocation5], %s9306
        %s9308 = sand.u32 %s481, 1
        %s9309 = smul.addr %s9308, 12
        %s9310 = scalar_lea.vmem [#allocation29], %s9309
        // Predicated region
        $region157: #{tpu_custom_call.1} parent=83 // pred_check
          %p9311 = pneg %p491
        $region158: #{tpu_custom_call.1} parent=83 // pred_check_branch
          %9313 = sbr.rel (%p9311) target = $region160
        $region159: #{tpu_custom_call.1} parent=83 // pred_region
          %s9315 = ssub.s32 192, 192
          %9316 = vsyncadd %s9307, %s9315
          %s9317 = smul.addr %s59, 3
          %s9318 = smul.addr %s9317, 64
          %s9319 = scalar_lea.hbm %s16, %s9318
          %s9321 = sshll.u32 %s9310, 4
          %s9322 = int_to_ptr.vmem [resolvable:$true] %s9321
          %9324 = dma.vmem_to_hbm [thread:$0]  %s9322, 192, %s9319, %s9307
        $region160: #{tpu_custom_call.1} parent=83 // pred_fallthru
          _
      $region84: #{tpu_custom_call.1} parent=5 // pred_fallthru
        _
      %p9325 = scmp.le.s32.totalorder 2, %s50
      // Predicated region
      $region161: #{tpu_custom_call.1} parent=5 // pred_check
        %p9326 = pneg %p9325
      $region162: #{tpu_custom_call.1} parent=5 // pred_check_branch
        %9328 = sbr.rel (%p9326) target = $region164
      $region163: #{tpu_custom_call.1} parent=5 // pred_region
        %s9329 = ssub.s32 %s50, 2
        // Predicated region
        $region165: #{tpu_custom_call.1} parent=163 // pred_check
          %p9330 = pneg %p497
        $region166: #{tpu_custom_call.1} parent=163 // pred_check_branch
          %9332 = sbr.rel (%p9330) target = $region168
        $region167: #{tpu_custom_call.1} parent=163 // pred_region
          %s9333 = sand.u32 %s482, 1
          %s9334 = scalar_lea.sflag [#allocation5], %s9333
          %s9335 = sand.u32 %s482, 1
          %s9336 = smul.addr %s9335, 12
          %s9337 = scalar_lea.vmem [#allocation29], %s9336
          %9338 = dma.done %s9334, 192
        $region168: #{tpu_custom_call.1} parent=163 // pred_fallthru
          _
      $region164: #{tpu_custom_call.1} parent=5 // pred_fallthru
        _
    $region6: #{tpu_custom_call.1} parent=1 // loop_footer
      %s54 = sadd.s32 1, %s50
    $region7: #{tpu_custom_call.1} parent=1 // loop_footer_branch
      %49 = sbr.rel target = $region3
    $region8: #{tpu_custom_call.1} parent=1 // loop_exit
      _
    %9339 = vsyncpa [#allocation4], 1
    %s9340 = scalar_lea.sflag [#allocation4], 1
    %9341 = vsyncpa %s9340, 1
    %9342 = vsyncpa [#allocation7], 1
    %s9343 = scalar_lea.sflag [#allocation7], 1
    %9344 = vsyncpa %s9343, 1
    %9345 = vsyncpa [#allocation10], 1
    %s9346 = scalar_lea.sflag [#allocation10], 1
    %9347 = vsyncpa %s9346, 1
    %9348 = vsyncpa [#allocation13], 1
    %s9349 = scalar_lea.sflag [#allocation13], 1
    %9350 = vsyncpa %s9349, 1
    %9351 = vsyncpa [#allocation16], 1
    %s9352 = scalar_lea.sflag [#allocation16], 1
    %9353 = vsyncpa %s9352, 1
    %9354 = vsyncpa [#allocation19], 1
    %s9355 = scalar_lea.sflag [#allocation19], 1
    %9356 = vsyncpa %s9355, 1
    %9357 = vsyncpa [#allocation22], 1
    %s9358 = scalar_lea.sflag [#allocation22], 1
    %9359 = vsyncpa %s9358, 1
    %9360 = vsyncpa [#allocation25], 1
    %s9361 = scalar_lea.sflag [#allocation25], 1
    %9362 = vsyncpa %s9361, 1
    %9363 = vsyncpa [#allocation28], 1
    %9364 = vsyncpa [#allocation5], 1
    %s9365 = scalar_lea.sflag [#allocation5], 1
    %9366 = vsyncpa %s9365, 1

</llo_original>
